<compile_context>
chip_gen: v7x
topology: tpu7x:2x2x1
jax: 0.10.0
libtpu: 0.0.40
codegen_flags: <defaults>
</compile_context>

<pallas_src>
import functools

import jax
import jax.numpy as jnp
from jax import lax
from jax.experimental import pallas as pl
from jax.experimental.pallas import tpu as pltpu

_EPS = 1e-5


def _hardswish(x):
    return x * jnp.clip(x + 3.0, 0.0, 6.0) * (1.0 / 6.0)


def _fold_bn(gamma, beta, mean, var, eps=_EPS):
    scale = gamma / jnp.sqrt(var + eps)
    bias = beta - mean * scale
    return scale, bias


def _round_up(a, m):
    return ((a + m - 1) // m) * m


# ----------------------------------------------------------------------------
# Kernel
# ----------------------------------------------------------------------------
def _basic_block_kernel(xb_ref, xh_ref, wa_ref, ba_ref, wb_ref, bb_ref, o_ref,
                        xcat_ref, ycat_ref):
    """One (batch, H-tile) step of the fused BasicBlock.

    xb_ref  : (1, TH, Wk+2, Cp) bf16  body rows of the 2-padded input
    xh_ref  : (1, 4,  Wk+2, Cp) bf16  4 halo rows directly below the body rows
    wa_ref  : (3, 3Cp, Cp)      bf16  conv1 3x3 weight, kx-stacked along K, BN folded
    ba_ref  : (1, Cp)           f32   conv1 folded BN bias
    wb_ref  : (3, 3Cp, 2Cp)     bf16  RepVgg weights: [:, :, :Cp] = 3x3 (kx-stacked),
                                      [1, Cp:2Cp, Cp:] = 1x1 branch fused along N
    bb_ref  : (1, 2Cp)          f32   [RepVgg 3x3 bias | RepVgg 1x1 bias]
    o_ref   : (1, TH, W, Cp)    bf16  output tile (x + y)
    xcat_ref: VMEM (TH+4, Wk, 3Cp) bf16  kx-stacked haloed input window
    ycat_ref: VMEM (TH+2, W,  3Cp) bf16  kx-stacked conv1-output window
    """
    _, TH, W, Cp = o_ref.shape
    Wk = xcat_ref.shape[1]
    R1 = TH + 2

    # ---- assemble the kx-stacked haloed input window (bf16 end-to-end: one
    # shifted copy per kx instead of one relayout per conv tap).
    xb = xb_ref[0]                                   # (TH, Wk+2, Cp)
    xh = xh_ref[0]                                   # (4,  Wk+2, Cp)
    for k in range(3):
        lanes = slice(k * Cp, (k + 1) * Cp)
        xcat_ref[0:TH, :, lanes] = xb[:, k:k + Wk, :]
        xcat_ref[TH:TH + 4, :, lanes] = xh[:, k:k + Wk, :]

    # ---- stage 1: conv1 3x3 + folded BN + Hardswish over the (R1, Wk) window.
    # 3 matmuls with K = 3*Cp; LHS windows are contiguous row slices.
    acc1 = jnp.zeros((R1 * Wk, Cp), jnp.float32)
    for ky in range(3):
        patch = xcat_ref[ky:ky + R1].reshape(R1 * Wk, 3 * Cp)        # bf16
        acc1 = acc1 + jnp.dot(patch, wa_ref[ky],
                              preferred_element_type=jnp.float32)
    y1 = _hardswish(acc1 + ba_ref[0]).astype(jnp.bfloat16).reshape(R1, Wk, Cp)

    # Window positions outside the image are the RepVgg convs' zero padding,
    # not conv1 outputs -> mask them to zero (single select, on bf16).
    r0 = pl.program_id(1) * TH
    h_img = TH * pl.num_programs(1)
    row = lax.broadcasted_iota(jnp.int32, (R1, Wk, 1), 0) + (r0 - 1)
    col = lax.broadcasted_iota(jnp.int32, (R1, Wk, 1), 1) - 1
    inside = (row >= 0) & (row < h_img) & (col >= 0) & (col < W)
    y1 = jnp.where(inside, y1, jnp.zeros_like(y1))

    # ---- kx-stack the conv1 output for the RepVgg stage.
    for k in range(3):
        ycat_ref[:, :, k * Cp:(k + 1) * Cp] = y1[:, k:k + W, :]

    # ---- stage 2: RepVgg 3x3 branch (N lanes [0, Cp)) plus, fused along the
    # MXU N dim into the ky=1 tap, the 1x1 branch (N lanes [Cp, 2Cp)).
    acc2 = jnp.zeros((TH * W, 2 * Cp), jnp.float32)
    for ky in range(3):
        patch = ycat_ref[ky:ky + TH].reshape(TH * W, 3 * Cp)          # bf16
        acc2 = acc2 + jnp.dot(patch, wb_ref[ky],
                              preferred_element_type=jnp.float32)
    t = _hardswish(acc2 + bb_ref[0])
    z = jnp.maximum(t[:, :Cp] + t[:, Cp:], 0.0)                       # RepVgg ReLU

    # ---- shortcut + single fused, lane-dense store.  The residual is re-read
    # from the kx=2 block of the stacked window (rows/cols/lanes all aligned).
    x_res = xcat_ref[2:2 + TH, 0:W, 2 * Cp:3 * Cp].reshape(TH * W, Cp)
    o_ref[...] = (x_res + z).astype(o_ref.dtype).reshape(1, TH, W, Cp)


# ----------------------------------------------------------------------------
# Wrapper helpers
# ----------------------------------------------------------------------------
def _fold_conv(w_oihw, bn, cp):
    """PyTorch OIHW conv weight -> HWIO f32, BN scale folded in, channel-padded."""
    scale, bias = _fold_bn(*bn)
    w = jnp.transpose(w_oihw, (2, 3, 1, 0)).astype(jnp.float32) * scale   # HWIO * s[co]
    kh, kw, ci, co = w.shape
    w = jnp.pad(w, ((0, 0), (0, 0), (0, cp - ci), (0, cp - co)))
    b = jnp.pad(bias.astype(jnp.float32), (0, cp - co)).reshape(1, cp)
    return w, b


def _tpu_vmem_limit_bytes():
    """Generation-aware VMEM budget (v5e/v6e: 128 MiB physical, v7x: 64 MiB)."""
    cap = 128 * 1024 * 1024
    try:
        info = pltpu.get_tpu_info()
        cap = int(getattr(info, "vmem_capacity_bytes", cap))
    except Exception:
        pass
    return int(min(cap * 3 // 4, 100 * 1024 * 1024))


def _pick_wk(w):
    """Stage-1 working width: >= W+2 and 8-aligned (16-aligned when the extra
    columns are cheap) so the (rows, cols)->(rows*cols) merges feeding the MXU
    stay layout-preserving instead of relayout copies."""
    wk8 = _round_up(w + 2, 8)
    wk16 = _round_up(w + 2, 16)
    return wk16 if wk16 * 4 <= (w + 2) * 5 else wk8


def _vmem_bytes_estimate(th, w, cp):
    wk = _pick_wk(w)
    wi = wk + 2
    r1 = th + 2
    bf, f32 = 2, 4
    blocks = 2 * bf * (th * wi * cp + 4 * wi * cp + th * w * cp)   # dbl-buffered in/out
    weights = 2 * (bf * (3 * 3 * cp * cp + 3 * 3 * cp * 2 * cp) + f32 * 3 * cp)
    scratch = bf * ((th + 4) * wk * 3 * cp + r1 * w * 3 * cp)
    inter = (r1 * wk * cp * (f32 + bf)            # acc1 + y1
             + th * w * 2 * cp * f32              # acc2
             + th * w * cp * (2 * f32 + bf))      # epilogue temporaries
    return blocks + weights + scratch + (3 * inter) // 2


def _pick_tile_h(h, n, w, cp, vmem_limit):
    cands = [t for t in (64, 32, 16, 8, 4) if h % t == 0]
    if not cands:
        raise ValueError("H must be a multiple of 4")
    budget = (7 * vmem_limit) // 10
    fitting = [t for t in cands if _vmem_bytes_estimate(t, w, cp) <= budget] or [cands[-1]]
    if n == 1:
        # Keep >= 2 grid steps so 2-TensorCore chips (v7x) can split the grid.
        multi = [t for t in fitting if h // t >= 2]
        if multi:
            return multi[0]
    return fitting[0]


# ----------------------------------------------------------------------------
# Forward
# ----------------------------------------------------------------------------
@functools.partial(jax.jit, static_argnums=(2, 3))
def _basic_block_jit(x_nchw, params, tile_h, vmem_limit):
    N, C, H, W = x_nchw.shape
    TH = tile_h
    nH = H // TH
    Cp = max(128, _round_up(C, 128))
    Wk = _pick_wk(W)
    Wi = Wk + 2
    R1 = TH + 2

    # Fold BN into the conv weights; kx-stack along K; fuse the 1x1 along N.
    wa_f, ba = _fold_conv(params["conv1_w"], params["conv1_bn"], Cp)
    wa = wa_f.reshape(3, 3 * Cp, Cp).astype(jnp.bfloat16)

    w3_f, bb3 = _fold_conv(params["rep3_w"], params["rep3_bn"], Cp)
    w1_f, bb1 = _fold_conv(params["rep1_w"], params["rep1_bn"], Cp)
    extra = jnp.zeros((3, 3 * Cp, Cp), jnp.float32)
    extra = extra.at[1, Cp:2 * Cp, :].set(w1_f[0, 0])      # 1x1 hits the centre tap only
    wb = jnp.concatenate([w3_f.reshape(3, 3 * Cp, Cp), extra],
                         axis=-1).astype(jnp.bfloat16)     # (3, 3Cp, 2Cp)
    bb = jnp.concatenate([bb3, bb1], axis=-1)              # (1, 2Cp)

    # NHWC bf16 in HBM.  Rows: 2 on top, TH-2 at the bottom so both the TH-row
    # body view and the 4-row halo view tile exactly.  Cols: 2 left, Wk-W right.
    x = jnp.transpose(x_nchw, (0, 2, 3, 1))
    xpad = jnp.pad(x, ((0, 0), (2, TH - 2), (2, Wk - W), (0, Cp - C)))
    xpad = xpad.astype(jnp.bfloat16)

    flops = N * nH * (2 * R1 * Wk * 3 * Cp * Cp * 3
                      + 2 * TH * W * 3 * Cp * 2 * Cp * 3)
    bytes_accessed = (N * (H + TH) * Wi * Cp * 2          # bf16 padded input
                      + N * nH * 4 * Wi * Cp * 2          # halo re-reads
                      + (wa.size + wb.size) * 2           # bf16 weights
                      + N * H * W * Cp * 2)               # bf16 output

    # NOTE: the constant-index weight operands could be single-buffered
    # (pipeline_mode=pl.Buffered(1)) to save VMEM at large Cp; at Cp=128 the
    # default double-buffering costs < 2 MiB so we keep the default.
    out = pl.pallas_call(
        _basic_block_kernel,
        out_shape=jax.ShapeDtypeStruct((N, H, W, Cp), jnp.bfloat16),
        grid=(N, nH),
        in_specs=[
            # body rows of the padded input: rows [ih*TH, ih*TH + TH)
            pl.BlockSpec((1, TH, Wi, Cp), lambda n, ih: (n, ih, 0, 0)),
            # 4 halo rows directly below the body rows
            pl.BlockSpec((1, 4, Wi, Cp),
                         lambda n, ih: (n, (ih + 1) * (TH // 4), 0, 0)),
            pl.BlockSpec((3, 3 * Cp, Cp), lambda n, ih: (0, 0, 0)),      # wa
            pl.BlockSpec((1, Cp), lambda n, ih: (0, 0)),                 # ba
            pl.BlockSpec((3, 3 * Cp, 2 * Cp), lambda n, ih: (0, 0, 0)),  # wb
            pl.BlockSpec((1, 2 * Cp), lambda n, ih: (0, 0)),             # bb
        ],
        out_specs=pl.BlockSpec((1, TH, W, Cp), lambda n, ih: (n, ih, 0, 0)),
        scratch_shapes=[
            pltpu.VMEM((TH + 4, Wk, 3 * Cp), jnp.bfloat16),   # xcat
            pltpu.VMEM((TH + 2, W, 3 * Cp), jnp.bfloat16),    # ycat
        ],
        compiler_params=pltpu.CompilerParams(
            dimension_semantics=("parallel", "parallel"),
            vmem_limit_bytes=vmem_limit,
        ),
        cost_estimate=pl.CostEstimate(flops=flops, transcendentals=0,
                                      bytes_accessed=bytes_accessed),
    )(xpad, xpad, wa, ba, wb, bb)

    # NOTE: in a full backbone, keep the padded-channel NHWC bf16 layout flowing
    # into the next fused block; the slice/cast/transpose below only exist to
    # present the PyTorch module's NCHW f32 interface.
    out = out[..., :C].astype(jnp.float32)
    return jnp.transpose(out, (0, 3, 1, 2))                 # back to NCHW


def basic_block_forward(x_nchw, params, tile_h=None):
    """BasicBlock forward. x_nchw: (N, C, H, W) f32 -> (N, C, H, W) f32."""
    N, C, H, W = x_nchw.shape
    Cp = max(128, _round_up(C, 128))
    vmem_limit = _tpu_vmem_limit_bytes()
    TH = tile_h if tile_h is not None else _pick_tile_h(H, N, W, Cp, vmem_limit)
    if not (TH >= 4 and TH % 4 == 0 and H % TH == 0):
        raise ValueError("tile_h must be a multiple of 4 that divides H")
    return _basic_block_jit(x_nchw, params, TH, vmem_limit)


# ----------------------------------------------------------------------------
# Pure-JAX reference (mirrors the PyTorch eval-mode forward)
# ----------------------------------------------------------------------------
def _reference(x_nchw, params, mirror_kernel_precision=True):
    if mirror_kernel_precision:
        cast = lambda a: a.astype(jnp.bfloat16).astype(jnp.float32)
    else:
        cast = lambda a: a

    def conv_bn_hs(x, w_oihw, bn):
        scale, bias = _fold_bn(*bn)
        w = jnp.transpose(w_oihw, (2, 3, 1, 0)).astype(jnp.float32) * scale
        dn = lax.conv_dimension_numbers(x.shape, w.shape, ("NHWC", "HWIO", "NHWC"))
        y = lax.conv_general_dilated(cast(x), cast(w), (1, 1), "SAME",
                                     dimension_numbers=dn,
                                     precision=lax.Precision.HIGHEST)
        return _hardswish(y + bias)

    x = jnp.transpose(x_nchw, (0, 2, 3, 1)).astype(jnp.float32)
    y1 = conv_bn_hs(x, params["conv1_w"], params["conv1_bn"])
    z3 = conv_bn_hs(y1, params["rep3_w"], params["rep3_bn"])
    z1 = conv_bn_hs(y1, params["rep1_w"], params["rep1_bn"])
    y = jnp.maximum(z3 + z1, 0.0)
    out = cast(cast(x) + y)          # kernel: bf16 residual read + bf16 output store
    return jnp.transpose(out, (0, 3, 1, 2))


def make_params(key, c):
    ks = jax.random.split(key, 15)

    def bn(k0, k1, k2, k3):
        return (1.0 + 0.1 * jax.random.normal(k0, (c,), jnp.float32),   # gamma
                0.1 * jax.random.normal(k1, (c,), jnp.float32),         # beta
                0.1 * jax.random.normal(k2, (c,), jnp.float32),         # running_mean
                0.5 + jax.random.uniform(k3, (c,), jnp.float32))        # running_var

    return {
        "conv1_w": 0.1 * jax.random.normal(ks[0], (c, c, 3, 3), jnp.float32),
        "conv1_bn": bn(ks[1], ks[2], ks[3], ks[4]),
        "rep3_w": 0.1 * jax.random.normal(ks[5], (c, c, 3, 3), jnp.float32),
        "rep3_bn": bn(ks[6], ks[7], ks[8], ks[9]),
        "rep1_w": 0.1 * jax.random.normal(ks[10], (c, c, 1, 1), jnp.float32),
        "rep1_bn": bn(ks[11], ks[12], ks[13], ks[14]),
    }


if __name__ == "__main__":
    key = jax.random.PRNGKey(0)
    k_x, k_p = jax.random.split(key)

    N, C, H, W = 2, 4, 16, 16                 # BasicBlock requires Cin == Cout
    x = jax.random.normal(k_x, (N, C, H, W), jnp.float32)
    params = make_params(k_p, C)

    y = jax.block_until_ready(basic_block_forward(x, params))
    y_ref = jax.block_until_ready(_reference(x, params, mirror_kernel_precision=True))
    y_f32 = jax.block_until_ready(_reference(x, params, mirror_kernel_precision=False))

    assert y.shape == (N, C, H, W)
    assert jnp.allclose(y, y_ref, atol=2e-2, rtol=2e-2), (
        "mismatch vs precision-matched reference: "
        f"{float(jnp.max(jnp.abs(y - y_ref)))}")
    assert jnp.allclose(y, y_f32, atol=1e-1, rtol=1e-1), "mismatch vs f32 reference"

    # Exercise the multi-tile halo path (grid = (2, 2)) and check it agrees.
    y_tiled = jax.block_until_ready(basic_block_forward(x, params, tile_h=8))
    assert jnp.allclose(y_tiled, y_ref, atol=2e-2, rtol=2e-2), "mismatch in tiled path"

    print("KERNEL_OK")
</pallas_src>

<mosaic_0001>
module attributes {stable_mosaic.version = 11 : i64} {
  func.func @_basic_block_kernel(%arg0: i32, %arg1: i32, %arg2: memref<1x16x26x128xbf16, #tpu.memory_space<vmem>>, %arg3: memref<1x4x26x128xbf16, #tpu.memory_space<vmem>>, %arg4: memref<3x384x128xbf16, #tpu.memory_space<vmem>>, %arg5: memref<1x128xf32, #tpu.memory_space<vmem>>, %arg6: memref<3x384x256xbf16, #tpu.memory_space<vmem>>, %arg7: memref<1x256xf32, #tpu.memory_space<vmem>>, %arg8: memref<1x16x16x128xbf16, #tpu.memory_space<vmem>>, %arg9: memref<20x24x384xbf16, #tpu.memory_space<vmem>>, %arg10: memref<18x16x384xbf16, #tpu.memory_space<vmem>>) attributes {dimension_semantics = [#tpu.dimension_semantics<parallel>, #tpu.dimension_semantics<parallel>], iteration_bounds = array<i64: 2, 1>, scalar_prefetch = 0 : i64, scratch_operands = 2 : i64, tpu.core_type = #tpu.core_type<tc>, window_params = [{transform_indices = @transform_0, window_bounds = array<i64: 1, 16, 26, 128>}, {transform_indices = @transform_1, window_bounds = array<i64: 1, 4, 26, 128>}, {pipeline_mode = #tpu.pipeline_mode<synchronous>, transform_indices = @transform_2, window_bounds = array<i64: 3, 384, 128>}, {pipeline_mode = #tpu.pipeline_mode<synchronous>, transform_indices = @transform_3, window_bounds = array<i64: 1, 128>}, {pipeline_mode = #tpu.pipeline_mode<synchronous>, transform_indices = @transform_4, window_bounds = array<i64: 3, 384, 256>}, {pipeline_mode = #tpu.pipeline_mode<synchronous>, transform_indices = @transform_5, window_bounds = array<i64: 1, 256>}, {transform_indices = @transform_6, window_bounds = array<i64: 1, 16, 16, 128>}]} {
    %c0 = arith.constant 0 : index
    %c0_0 = arith.constant 0 : index
    %c0_1 = arith.constant 0 : index
    %c0_2 = arith.constant 0 : index
    %0 = vector.load %arg2[%c0, %c0_0, %c0_1, %c0_2] : memref<1x16x26x128xbf16, #tpu.memory_space<vmem>>, vector<1x16x26x128xbf16>
    %1 = vector.shape_cast %0 : vector<1x16x26x128xbf16> to vector<16x26x128xbf16>
    %c0_3 = arith.constant 0 : index
    %c0_4 = arith.constant 0 : index
    %c0_5 = arith.constant 0 : index
    %c0_6 = arith.constant 0 : index
    %2 = vector.load %arg3[%c0_3, %c0_4, %c0_5, %c0_6] : memref<1x4x26x128xbf16, #tpu.memory_space<vmem>>, vector<1x4x26x128xbf16>
    %3 = vector.shape_cast %2 : vector<1x4x26x128xbf16> to vector<4x26x128xbf16>
    %4 = vector.extract_strided_slice %1 {offsets = [0, 0, 0], sizes = [16, 24, 128], strides = [1, 1, 1]} : vector<16x26x128xbf16> to vector<16x24x128xbf16>
    %c0_7 = arith.constant 0 : index
    %c0_8 = arith.constant 0 : index
    %c0_9 = arith.constant 0 : index
    %5 = vector.load %arg9[%c0_7, %c0_8, %c0_9] : memref<20x24x384xbf16, #tpu.memory_space<vmem>>, vector<16x24x128xbf16>
    tpu.vector_store %arg9[%c0_7, %c0_8, %c0_9], %4 {strides = array<i32>} : memref<20x24x384xbf16, #tpu.memory_space<vmem>>, vector<16x24x128xbf16>,
    %6 = vector.extract_strided_slice %3 {offsets = [0, 0, 0], sizes = [4, 24, 128], strides = [1, 1, 1]} : vector<4x26x128xbf16> to vector<4x24x128xbf16>
    %c16 = arith.constant 16 : index
    %c0_10 = arith.constant 0 : index
    %c0_11 = arith.constant 0 : index
    %7 = vector.load %arg9[%c16, %c0_10, %c0_11] : memref<20x24x384xbf16, #tpu.memory_space<vmem>>, vector<4x24x128xbf16>
    tpu.vector_store %arg9[%c16, %c0_10, %c0_11], %6 {strides = array<i32>} : memref<20x24x384xbf16, #tpu.memory_space<vmem>>, vector<4x24x128xbf16>,
    %8 = vector.extract_strided_slice %1 {offsets = [0, 1, 0], sizes = [16, 24, 128], strides = [1, 1, 1]} : vector<16x26x128xbf16> to vector<16x24x128xbf16>
    %c0_12 = arith.constant 0 : index
    %c0_13 = arith.constant 0 : index
    %c128 = arith.constant 128 : index
    %9 = vector.load %arg9[%c0_12, %c0_13, %c128] : memref<20x24x384xbf16, #tpu.memory_space<vmem>>, vector<16x24x128xbf16>
    tpu.vector_store %arg9[%c0_12, %c0_13, %c128], %8 {strides = array<i32>} : memref<20x24x384xbf16, #tpu.memory_space<vmem>>, vector<16x24x128xbf16>,
    %10 = vector.extract_strided_slice %3 {offsets = [0, 1, 0], sizes = [4, 24, 128], strides = [1, 1, 1]} : vector<4x26x128xbf16> to vector<4x24x128xbf16>
    %c16_14 = arith.constant 16 : index
    %c0_15 = arith.constant 0 : index
    %c128_16 = arith.constant 128 : index
    %11 = vector.load %arg9[%c16_14, %c0_15, %c128_16] : memref<20x24x384xbf16, #tpu.memory_space<vmem>>, vector<4x24x128xbf16>
    tpu.vector_store %arg9[%c16_14, %c0_15, %c128_16], %10 {strides = array<i32>} : memref<20x24x384xbf16, #tpu.memory_space<vmem>>, vector<4x24x128xbf16>,
    %12 = vector.extract_strided_slice %1 {offsets = [0, 2, 0], sizes = [16, 24, 128], strides = [1, 1, 1]} : vector<16x26x128xbf16> to vector<16x24x128xbf16>
    %c0_17 = arith.constant 0 : index
    %c0_18 = arith.constant 0 : index
    %c256 = arith.constant 256 : index
    %13 = vector.load %arg9[%c0_17, %c0_18, %c256] : memref<20x24x384xbf16, #tpu.memory_space<vmem>>, vector<16x24x128xbf16>
    tpu.vector_store %arg9[%c0_17, %c0_18, %c256], %12 {strides = array<i32>} : memref<20x24x384xbf16, #tpu.memory_space<vmem>>, vector<16x24x128xbf16>,
    %14 = vector.extract_strided_slice %3 {offsets = [0, 2, 0], sizes = [4, 24, 128], strides = [1, 1, 1]} : vector<4x26x128xbf16> to vector<4x24x128xbf16>
    %c16_19 = arith.constant 16 : index
    %c0_20 = arith.constant 0 : index
    %c256_21 = arith.constant 256 : index
    %15 = vector.load %arg9[%c16_19, %c0_20, %c256_21] : memref<20x24x384xbf16, #tpu.memory_space<vmem>>, vector<4x24x128xbf16>
    tpu.vector_store %arg9[%c16_19, %c0_20, %c256_21], %14 {strides = array<i32>} : memref<20x24x384xbf16, #tpu.memory_space<vmem>>, vector<4x24x128xbf16>,
    %cst = arith.constant 0.000000e+00 : f32
    %16 = vector.broadcast %cst : f32 to vector<432x128xf32>
    %c0_22 = arith.constant 0 : index
    %c0_23 = arith.constant 0 : index
    %c0_24 = arith.constant 0 : index
    %17 = vector.load %arg9[%c0_22, %c0_23, %c0_24] : memref<20x24x384xbf16, #tpu.memory_space<vmem>>, vector<18x24x384xbf16>
    %18 = vector.shape_cast %17 : vector<18x24x384xbf16> to vector<432x384xbf16>
    %c0_25 = arith.constant 0 : index
    %c0_26 = arith.constant 0 : index
    %c0_27 = arith.constant 0 : index
    %19 = vector.load %arg4[%c0_25, %c0_26, %c0_27] : memref<3x384x128xbf16, #tpu.memory_space<vmem>>, vector<1x384x128xbf16>
    %20 = vector.shape_cast %19 : vector<1x384x128xbf16> to vector<384x128xbf16>
    %cst_28 = arith.constant dense<0.000000e+00> : vector<432x128xf32>
    %21 = tpu.matmul %18, %20, %cst_28 {dimension_numbers = #tpu.dot_dimension_numbers<[1], [0], [0], [1], [0, 0, 1, 1], [], []>} : vector<432x384xbf16>, vector<384x128xbf16>, vector<432x128xf32> -> vector<432x128xf32>
    %22 = arith.addf %16, %21 : vector<432x128xf32>
    %c1 = arith.constant 1 : index
    %c0_29 = arith.constant 0 : index
    %c0_30 = arith.constant 0 : index
    %23 = vector.load %arg9[%c1, %c0_29, %c0_30] : memref<20x24x384xbf16, #tpu.memory_space<vmem>>, vector<18x24x384xbf16>
    %24 = vector.shape_cast %23 : vector<18x24x384xbf16> to vector<432x384xbf16>
    %c1_31 = arith.constant 1 : index
    %c0_32 = arith.constant 0 : index
    %c0_33 = arith.constant 0 : index
    %25 = vector.load %arg4[%c1_31, %c0_32, %c0_33] : memref<3x384x128xbf16, #tpu.memory_space<vmem>>, vector<1x384x128xbf16>
    %26 = vector.shape_cast %25 : vector<1x384x128xbf16> to vector<384x128xbf16>
    %cst_34 = arith.constant dense<0.000000e+00> : vector<432x128xf32>
    %27 = tpu.matmul %24, %26, %cst_34 {dimension_numbers = #tpu.dot_dimension_numbers<[1], [0], [0], [1], [0, 0, 1, 1], [], []>} : vector<432x384xbf16>, vector<384x128xbf16>, vector<432x128xf32> -> vector<432x128xf32>
    %28 = arith.addf %22, %27 : vector<432x128xf32>
    %c2 = arith.constant 2 : index
    %c0_35 = arith.constant 0 : index
    %c0_36 = arith.constant 0 : index
    %29 = vector.load %arg9[%c2, %c0_35, %c0_36] : memref<20x24x384xbf16, #tpu.memory_space<vmem>>, vector<18x24x384xbf16>
    %30 = vector.shape_cast %29 : vector<18x24x384xbf16> to vector<432x384xbf16>
    %c2_37 = arith.constant 2 : index
    %c0_38 = arith.constant 0 : index
    %c0_39 = arith.constant 0 : index
    %31 = vector.load %arg4[%c2_37, %c0_38, %c0_39] : memref<3x384x128xbf16, #tpu.memory_space<vmem>>, vector<1x384x128xbf16>
    %32 = vector.shape_cast %31 : vector<1x384x128xbf16> to vector<384x128xbf16>
    %cst_40 = arith.constant dense<0.000000e+00> : vector<432x128xf32>
    %33 = tpu.matmul %30, %32, %cst_40 {dimension_numbers = #tpu.dot_dimension_numbers<[1], [0], [0], [1], [0, 0, 1, 1], [], []>} : vector<432x384xbf16>, vector<384x128xbf16>, vector<432x128xf32> -> vector<432x128xf32>
    %34 = arith.addf %28, %33 : vector<432x128xf32>
    %c0_41 = arith.constant 0 : index
    %c0_42 = arith.constant 0 : index
    %35 = vector.load %arg5[%c0_41, %c0_42] : memref<1x128xf32, #tpu.memory_space<vmem>>, vector<1x128xf32>
    %36 = vector.shape_cast %35 : vector<1x128xf32> to vector<128xf32>
    %37 = vector.shape_cast %36 : vector<128xf32> to vector<1x128xf32>
    %38 = vector.broadcast %37 : vector<1x128xf32> to vector<432x128xf32>
    %39 = arith.addf %34, %38 : vector<432x128xf32>
    %cst_43 = arith.constant 3.000000e+00 : f32
    %40 = vector.broadcast %cst_43 : f32 to vector<432x128xf32>
    %41 = arith.addf %39, %40 : vector<432x128xf32>
    %cst_44 = arith.constant 0.000000e+00 : f32
    %cst_45 = arith.constant 6.000000e+00 : f32
    %42 = vector.broadcast %cst_44 : f32 to vector<432x128xf32>
    %43 = arith.maximumf %42, %41 : vector<432x128xf32>
    %44 = vector.broadcast %cst_45 : f32 to vector<432x128xf32>
    %45 = arith.minimumf %44, %43 : vector<432x128xf32>
    %46 = arith.mulf %39, %45 : vector<432x128xf32>
    %cst_46 = arith.constant 0.166666672 : f32
    %47 = vector.broadcast %cst_46 : f32 to vector<432x128xf32>
    %48 = arith.mulf %46, %47 : vector<432x128xf32>
    %49 = arith.truncf %48 : vector<432x128xf32> to vector<432x128xbf16>
    %50 = vector.shape_cast %49 : vector<432x128xbf16> to vector<18x24x128xbf16>
    %c16_i32 = arith.constant 16 : i32
    %51 = arith.muli %arg1, %c16_i32 : i32
    %52 = tpu.iota {dimensions = array<i32: 0>} : vector<18x24x1xi32>
    %c1_i32 = arith.constant 1 : i32
    %53 = arith.subi %51, %c1_i32 : i32
    %54 = vector.broadcast %53 : i32 to vector<18x24x1xi32>
    %55 = arith.addi %52, %54 : vector<18x24x1xi32>
    %56 = tpu.iota {dimensions = array<i32: 1>} : vector<18x24x1xi32>
    %c1_i32_47 = arith.constant 1 : i32
    %57 = vector.broadcast %c1_i32_47 : i32 to vector<18x24x1xi32>
    %58 = arith.subi %56, %57 : vector<18x24x1xi32>
    %c0_i32 = arith.constant 0 : i32
    %59 = vector.broadcast %c0_i32 : i32 to vector<18x24x1xi32>
    %60 = arith.cmpi sge, %55, %59 : vector<18x24x1xi32>
    %c16_i32_48 = arith.constant 16 : i32
    %61 = vector.broadcast %c16_i32_48 : i32 to vector<18x24x1xi32>
    %62 = arith.cmpi slt, %55, %61 : vector<18x24x1xi32>
    %63 = arith.andi %60, %62 : vector<18x24x1xi1>
    %c0_i32_49 = arith.constant 0 : i32
    %64 = vector.broadcast %c0_i32_49 : i32 to vector<18x24x1xi32>
    %65 = arith.cmpi sge, %58, %64 : vector<18x24x1xi32>
    %66 = arith.andi %63, %65 : vector<18x24x1xi1>
    %c16_i32_50 = arith.constant 16 : i32
    %67 = vector.broadcast %c16_i32_50 : i32 to vector<18x24x1xi32>
    %68 = arith.cmpi slt, %58, %67 : vector<18x24x1xi32>
    %69 = arith.andi %66, %68 : vector<18x24x1xi1>
    %cst_51 = arith.constant 0.000000e+00 : bf16
    %70 = vector.broadcast %cst_51 : bf16 to vector<18x24x128xbf16>
    %71 = vector.shape_cast %69 : vector<18x24x1xi1> to vector<18x24x1xi1>
    %72 = vector.broadcast %71 : vector<18x24x1xi1> to vector<18x24x128xi1>
    %73 = arith.select %72, %50, %70 : vector<18x24x128xi1>, vector<18x24x128xbf16>
    %74 = vector.extract_strided_slice %73 {offsets = [0, 0, 0], sizes = [18, 16, 128], strides = [1, 1, 1]} : vector<18x24x128xbf16> to vector<18x16x128xbf16>
    %c0_52 = arith.constant 0 : index
    %c0_53 = arith.constant 0 : index
    %c0_54 = arith.constant 0 : index
    %75 = vector.load %arg10[%c0_52, %c0_53, %c0_54] : memref<18x16x384xbf16, #tpu.memory_space<vmem>>, vector<18x16x128xbf16>
    tpu.vector_store %arg10[%c0_52, %c0_53, %c0_54], %74 {strides = array<i32>} : memref<18x16x384xbf16, #tpu.memory_space<vmem>>, vector<18x16x128xbf16>,
    %76 = vector.extract_strided_slice %73 {offsets = [0, 1, 0], sizes = [18, 16, 128], strides = [1, 1, 1]} : vector<18x24x128xbf16> to vector<18x16x128xbf16>
    %c0_55 = arith.constant 0 : index
    %c0_56 = arith.constant 0 : index
    %c128_57 = arith.constant 128 : index
    %77 = vector.load %arg10[%c0_55, %c0_56, %c128_57] : memref<18x16x384xbf16, #tpu.memory_space<vmem>>, vector<18x16x128xbf16>
    tpu.vector_store %arg10[%c0_55, %c0_56, %c128_57], %76 {strides = array<i32>} : memref<18x16x384xbf16, #tpu.memory_space<vmem>>, vector<18x16x128xbf16>,
    %78 = vector.extract_strided_slice %73 {offsets = [0, 2, 0], sizes = [18, 16, 128], strides = [1, 1, 1]} : vector<18x24x128xbf16> to vector<18x16x128xbf16>
    %c0_58 = arith.constant 0 : index
    %c0_59 = arith.constant 0 : index
    %c256_60 = arith.constant 256 : index
    %79 = vector.load %arg10[%c0_58, %c0_59, %c256_60] : memref<18x16x384xbf16, #tpu.memory_space<vmem>>, vector<18x16x128xbf16>
    tpu.vector_store %arg10[%c0_58, %c0_59, %c256_60], %78 {strides = array<i32>} : memref<18x16x384xbf16, #tpu.memory_space<vmem>>, vector<18x16x128xbf16>,
    %cst_61 = arith.constant 0.000000e+00 : f32
    %80 = vector.broadcast %cst_61 : f32 to vector<256x256xf32>
    %c0_62 = arith.constant 0 : index
    %c0_63 = arith.constant 0 : index
    %c0_64 = arith.constant 0 : index
    %81 = vector.load %arg10[%c0_62, %c0_63, %c0_64] : memref<18x16x384xbf16, #tpu.memory_space<vmem>>, vector<16x16x384xbf16>
    %82 = vector.shape_cast %81 : vector<16x16x384xbf16> to vector<256x384xbf16>
    %c0_65 = arith.constant 0 : index
    %c0_66 = arith.constant 0 : index
    %c0_67 = arith.constant 0 : index
    %83 = vector.load %arg6[%c0_65, %c0_66, %c0_67] : memref<3x384x256xbf16, #tpu.memory_space<vmem>>, vector<1x384x256xbf16>
    %84 = vector.shape_cast %83 : vector<1x384x256xbf16> to vector<384x256xbf16>
    %cst_68 = arith.constant dense<0.000000e+00> : vector<256x256xf32>
    %85 = tpu.matmul %82, %84, %cst_68 {dimension_numbers = #tpu.dot_dimension_numbers<[1], [0], [0], [1], [0, 0, 1, 1], [], []>} : vector<256x384xbf16>, vector<384x256xbf16>, vector<256x256xf32> -> vector<256x256xf32>
    %86 = arith.addf %80, %85 : vector<256x256xf32>
    %c1_69 = arith.constant 1 : index
    %c0_70 = arith.constant 0 : index
    %c0_71 = arith.constant 0 : index
    %87 = vector.load %arg10[%c1_69, %c0_70, %c0_71] : memref<18x16x384xbf16, #tpu.memory_space<vmem>>, vector<16x16x384xbf16>
    %88 = vector.shape_cast %87 : vector<16x16x384xbf16> to vector<256x384xbf16>
    %c1_72 = arith.constant 1 : index
    %c0_73 = arith.constant 0 : index
    %c0_74 = arith.constant 0 : index
    %89 = vector.load %arg6[%c1_72, %c0_73, %c0_74] : memref<3x384x256xbf16, #tpu.memory_space<vmem>>, vector<1x384x256xbf16>
    %90 = vector.shape_cast %89 : vector<1x384x256xbf16> to vector<384x256xbf16>
    %cst_75 = arith.constant dense<0.000000e+00> : vector<256x256xf32>
    %91 = tpu.matmul %88, %90, %cst_75 {dimension_numbers = #tpu.dot_dimension_numbers<[1], [0], [0], [1], [0, 0, 1, 1], [], []>} : vector<256x384xbf16>, vector<384x256xbf16>, vector<256x256xf32> -> vector<256x256xf32>
    %92 = arith.addf %86, %91 : vector<256x256xf32>
    %c2_76 = arith.constant 2 : index
    %c0_77 = arith.constant 0 : index
    %c0_78 = arith.constant 0 : index
    %93 = vector.load %arg10[%c2_76, %c0_77, %c0_78] : memref<18x16x384xbf16, #tpu.memory_space<vmem>>, vector<16x16x384xbf16>
    %94 = vector.shape_cast %93 : vector<16x16x384xbf16> to vector<256x384xbf16>
    %c2_79 = arith.constant 2 : index
    %c0_80 = arith.constant 0 : index
    %c0_81 = arith.constant 0 : index
    %95 = vector.load %arg6[%c2_79, %c0_80, %c0_81] : memref<3x384x256xbf16, #tpu.memory_space<vmem>>, vector<1x384x256xbf16>
    %96 = vector.shape_cast %95 : vector<1x384x256xbf16> to vector<384x256xbf16>
    %cst_82 = arith.constant dense<0.000000e+00> : vector<256x256xf32>
    %97 = tpu.matmul %94, %96, %cst_82 {dimension_numbers = #tpu.dot_dimension_numbers<[1], [0], [0], [1], [0, 0, 1, 1], [], []>} : vector<256x384xbf16>, vector<384x256xbf16>, vector<256x256xf32> -> vector<256x256xf32>
    %98 = arith.addf %92, %97 : vector<256x256xf32>
    %c0_83 = arith.constant 0 : index
    %c0_84 = arith.constant 0 : index
    %99 = vector.load %arg7[%c0_83, %c0_84] : memref<1x256xf32, #tpu.memory_space<vmem>>, vector<1x256xf32>
    %100 = vector.shape_cast %99 : vector<1x256xf32> to vector<256xf32>
    %101 = vector.shape_cast %100 : vector<256xf32> to vector<1x256xf32>
    %102 = vector.broadcast %101 : vector<1x256xf32> to vector<256x256xf32>
    %103 = arith.addf %98, %102 : vector<256x256xf32>
    %cst_85 = arith.constant 3.000000e+00 : f32
    %104 = vector.broadcast %cst_85 : f32 to vector<256x256xf32>
    %105 = arith.addf %103, %104 : vector<256x256xf32>
    %cst_86 = arith.constant 0.000000e+00 : f32
    %cst_87 = arith.constant 6.000000e+00 : f32
    %106 = vector.broadcast %cst_86 : f32 to vector<256x256xf32>
    %107 = arith.maximumf %106, %105 : vector<256x256xf32>
    %108 = vector.broadcast %cst_87 : f32 to vector<256x256xf32>
    %109 = arith.minimumf %108, %107 : vector<256x256xf32>
    %110 = arith.mulf %103, %109 : vector<256x256xf32>
    %cst_88 = arith.constant 0.166666672 : f32
    %111 = vector.broadcast %cst_88 : f32 to vector<256x256xf32>
    %112 = arith.mulf %110, %111 : vector<256x256xf32>
    %113 = vector.extract_strided_slice %112 {offsets = [0, 0], sizes = [256, 128], strides = [1, 1]} : vector<256x256xf32> to vector<256x128xf32>
    %114 = vector.extract_strided_slice %112 {offsets = [0, 128], sizes = [256, 128], strides = [1, 1]} : vector<256x256xf32> to vector<256x128xf32>
    %115 = arith.addf %113, %114 : vector<256x128xf32>
    %cst_89 = arith.constant 0.000000e+00 : f32
    %116 = vector.broadcast %cst_89 : f32 to vector<256x128xf32>
    %117 = arith.maximumf %115, %116 : vector<256x128xf32>
    %c2_90 = arith.constant 2 : index
    %c0_91 = arith.constant 0 : index
    %c256_92 = arith.constant 256 : index
    %118 = vector.load %arg9[%c2_90, %c0_91, %c256_92] : memref<20x24x384xbf16, #tpu.memory_space<vmem>>, vector<16x16x128xbf16>
    %119 = vector.shape_cast %118 : vector<16x16x128xbf16> to vector<256x128xbf16>
    %120 = arith.extf %119 : vector<256x128xbf16> to vector<256x128xf32>
    %121 = arith.addf %120, %117 : vector<256x128xf32>
    %122 = arith.truncf %121 : vector<256x128xf32> to vector<256x128xbf16>
    %123 = vector.shape_cast %122 : vector<256x128xbf16> to vector<1x16x16x128xbf16>
    %c0_93 = arith.constant 0 : index
    %c0_94 = arith.constant 0 : index
    %c0_95 = arith.constant 0 : index
    %c0_96 = arith.constant 0 : index
    %124 = vector.load %arg8[%c0_93, %c0_94, %c0_95, %c0_96] : memref<1x16x16x128xbf16, #tpu.memory_space<vmem>>, vector<1x16x16x128xbf16>
    tpu.vector_store %arg8[%c0_93, %c0_94, %c0_95, %c0_96], %123 {strides = array<i32>} : memref<1x16x16x128xbf16, #tpu.memory_space<vmem>>, vector<1x16x16x128xbf16>,
    return
  }
  func.func @transform_0(%arg0: i32, %arg1: i32) -> (i32, i32, i32, i32) {
    %c0_i32 = arith.constant 0 : i32
    %c0_i32_0 = arith.constant 0 : i32
    %c0_i32_1 = arith.constant 0 : i32
    return %arg0, %arg1, %c0_i32, %c0_i32_0 : i32, i32, i32, i32
  }
  func.func @transform_1(%arg0: i32, %arg1: i32) -> (i32, i32, i32, i32) {
    %c1_i32 = arith.constant 1 : i32
    %0 = arith.addi %arg1, %c1_i32 : i32
    %c4_i32 = arith.constant 4 : i32
    %1 = arith.muli %0, %c4_i32 : i32
    %c0_i32 = arith.constant 0 : i32
    %c0_i32_0 = arith.constant 0 : i32
    %c0_i32_1 = arith.constant 0 : i32
    return %arg0, %1, %c0_i32, %c0_i32_0 : i32, i32, i32, i32
  }
  func.func @transform_2(%arg0: i32, %arg1: i32) -> (i32, i32, i32) {
    %c0_i32 = arith.constant 0 : i32
    %c0_i32_0 = arith.constant 0 : i32
    %c0_i32_1 = arith.constant 0 : i32
    %c0_i32_2 = arith.constant 0 : i32
    return %c0_i32, %c0_i32_0, %c0_i32_1 : i32, i32, i32
  }
  func.func @transform_3(%arg0: i32, %arg1: i32) -> (i32, i32) {
    %c0_i32 = arith.constant 0 : i32
    %c0_i32_0 = arith.constant 0 : i32
    %c0_i32_1 = arith.constant 0 : i32
    return %c0_i32, %c0_i32_0 : i32, i32
  }
  func.func @transform_4(%arg0: i32, %arg1: i32) -> (i32, i32, i32) {
    %c0_i32 = arith.constant 0 : i32
    %c0_i32_0 = arith.constant 0 : i32
    %c0_i32_1 = arith.constant 0 : i32
    %c0_i32_2 = arith.constant 0 : i32
    return %c0_i32, %c0_i32_0, %c0_i32_1 : i32, i32, i32
  }
  func.func @transform_5(%arg0: i32, %arg1: i32) -> (i32, i32) {
    %c0_i32 = arith.constant 0 : i32
    %c0_i32_0 = arith.constant 0 : i32
    %c0_i32_1 = arith.constant 0 : i32
    return %c0_i32, %c0_i32_0 : i32, i32
  }
  func.func @transform_6(%arg0: i32, %arg1: i32) -> (i32, i32, i32, i32) {
    %c0_i32 = arith.constant 0 : i32
    %c0_i32_0 = arith.constant 0 : i32
    %c0_i32_1 = arith.constant 0 : i32
    return %arg0, %arg1, %c0_i32, %c0_i32_0 : i32, i32, i32, i32
  }
}

</mosaic_0001>

<llo_original>
// kernel: _basic_block_jit.1
$region0: #{_basic_block_jit.1}
  #allocation0 [shape = 'u32[]', space=smem, size = 0x4, offset = 0x4, fixed_abs, tag = 'smem constant byte address 0x4 - core index']
  #allocation1 [shape = 'u32[144,128]{1,0:T(1,128)}', space=vmem, size = 0x12000, scoped, tag = 'internal scratch']
  #allocation2 [shape = 'bf16[20,24,384]{2,1,0:T(8,128)(2,1)}', space=vmem, size = 0x5a000, scoped, tag = 'scratch operand']
  #allocation3 [shape = 'bf16[18,16,384]{2,1,0:T(16,128)(2,1)}', space=vmem, size = 0x36000, scoped, tag = 'scratch operand']
  %s0 = inlined_call_operand.hbm [shape: bf16[2,32,26,128], index: 0, kind: input, shape index: {}, may-alias: {0,1}]
  %s1 = inlined_call_operand.hbm [shape: bf16[2,32,26,128], index: 1, kind: input, shape index: {}, may-alias: {0,1}]
  %s2 = inlined_call_operand.hbm [shape: bf16[3,384,128], index: 2, kind: input, shape index: {}]
  %s3 = inlined_call_operand.hbm [shape: f32[1,128], index: 3, kind: input, shape index: {}]
  %s4 = inlined_call_operand.hbm [shape: bf16[3,384,256], index: 4, kind: input, shape index: {}]
  %s5 = inlined_call_operand.hbm [shape: f32[1,256], index: 5, kind: input, shape index: {}]
  %s6 = inlined_call_operand.hbm [shape: bf16[2,16,16,128], index: 6, kind: output, shape index: {}]
  %s7 = sld [smem:[#allocation0]]
  $region81: #{_basic_block_jit.1} parent=0
    _
  %s9 = ssub.s32 1, %s7
  %s10 = scalar_select 0, %s9, %s7
  $region1: #{_basic_block_jit.1} parent=0
    #allocation4 [shape = 'u8[262144]{0}', space=vmem, size = 0x40000, scoped, tag = 'input window, operand 0']
    #allocation5 [shape = 's32[2]{0}', space=sflag, size = 0x8, scoped, tag = 'scoped memory for _basic_block_jit.1']
    #allocation6 [shape = 's32[2]{0}', space=sflag, size = 0x8, scoped, tag = 'scoped memory for _basic_block_jit.1']
    #allocation7 [shape = 'u8[65536]{0}', space=vmem, size = 0x10000, scoped, tag = 'input window, operand 1']
    #allocation8 [shape = 's32[2]{0}', space=sflag, size = 0x8, scoped, tag = 'scoped memory for _basic_block_jit.1']
    #allocation9 [shape = 'u8[294912]{0}', space=vmem, size = 0x48000, scoped, tag = 'input window, operand 2, single buffered']
    #allocation10 [shape = 'u8[512]{0}', space=vmem, size = 0x400, scoped, tag = 'input window, operand 3, single buffered']
    #allocation11 [shape = 's32[1]{0}', space=sflag, size = 0x4, scoped, tag = 'scoped memory for _basic_block_jit.1']
    #allocation12 [shape = 'u8[589824]{0}', space=vmem, size = 0x90000, scoped, tag = 'input window, operand 4, single buffered']
    #allocation13 [shape = 'u8[1024]{0}', space=vmem, size = 0x400, scoped, tag = 'input window, operand 5, single buffered']
    #allocation14 [shape = 's32[1]{0}', space=sflag, size = 0x4, scoped, tag = 'scoped memory for _basic_block_jit.1']
    #allocation15 [shape = 'u8[131072]{0}', space=vmem, size = 0x20000, scoped, tag = 'output window, operand 0']
    %11 = vsyncpa [#allocation5], 0
    %s12 = scalar_lea.sflag [#allocation5], 1
    %13 = vsyncpa %s12, 0
    %14 = vsyncpa [#allocation8], 0
    %s15 = scalar_lea.sflag [#allocation8], 1
    %16 = vsyncpa %s15, 0
    %17 = vsyncpa [#allocation11], 0
    %18 = vsyncpa [#allocation14], 0
    %19 = vsyncpa [#allocation6], 0
    %s20 = scalar_lea.sflag [#allocation6], 1
    %21 = vsyncpa %s20, 0
    loop: start=0, step=1, limit=4
    $region2: #{_basic_block_jit.1} parent=1 // loop_pre_header
      _
    $region3: #{_basic_block_jit.1} parent=1 // loop_header
      %s23 = sphi 0, %s27
      %p24 = scmp.ge.s32.totalorder %s23, 4
      %s30 = sphi 0, %s42
      %s31 = sphi 0, %s38
      %s32 = sphi 0, %s30
      %s33 = sphi 0, %s31
      %s34 = sphi 0, %s32
      %s35 = sphi 0, %s33
      %s47 = sphi 0, %s49
      %s50 = sphi 0, %s47
      %s51 = sphi 0, %s50
      %s67 = sphi 0, %s51
      %s79 = sphi 0, %s81
      %s82 = sphi 0, %s79
      %s83 = sphi 0, %s82
      %s99 = sphi 0, %s83
      %s103 = sphi 0, %s103
      %s105 = sphi 0, %s103
      %s106 = sphi 0, %s105
      %s120 = sphi 0, %s106
      %s124 = sphi 0, %s124
      %s126 = sphi 0, %s124
      %s127 = sphi 0, %s126
      %s141 = sphi 0, %s127
      %s145 = sphi 0, %s145
      %s147 = sphi 0, %s145
      %s148 = sphi 0, %s147
      %s162 = sphi 0, %s148
      %s166 = sphi 0, %s166
      %s168 = sphi 0, %s166
      %s169 = sphi 0, %s168
      %s183 = sphi 0, %s169
      %s191 = sphi 0, %s193
      %s194 = sphi 0, %s191
      %s195 = sphi 0, %s194
      %s211 = sphi 0, %s195
    $region4: #{_basic_block_jit.1} parent=1 // loop_header_branch
      %26 = sbr.rel (%p24) target = $region8
    $region5: #{_basic_block_jit.1} parent=1 // loop_body
      %s28 = ssub.s32 %s23, 1
      %s29 = ssub.s32 %s23, 2
      %s36 = sadd.s32 1, %s31
      %p37 = scmp.ge.s32.totalorder %s36, 1
      %s38 = scalar_select %p37, 0, %s36
      %s39 = sadd.s32 1, %s30
      %s40 = scalar_select %p37, %s39, %s30
      %p41 = scmp.ge.s32.totalorder %s40, 2
      %s42 = scalar_select %p41, 0, %s40
      %s43 = ssub.s32 %s30, %s42
      %s44 = ssub.s32 %s31, %s38
      %s45 = sor.u32 %s43, %s44
      %p46 = scmp.eq.s32.totalorder %s45, 0
      %s48 = sadd.s32 %s47, 1
      %s49 = scalar_select %p46, %s47, %s48
      %p52 = pneg %p46
      %p53 = scmp.eq.s32.totalorder %s23, 1
      %p54 = por %p52, %p53
      %p55 = scmp.ne.s32.totalorder %s47, %s50
      %p56 = scmp.eq.s32.totalorder %s23, 0
      %p57 = por %p55, %p56
      %p58 = scmp.ne.s32.totalorder %s47, %s50
      %p59 = scmp.eq.s32.totalorder %s28, 1
      %p60 = por %p58, %p59
      %p61 = scmp.ne.s32.totalorder %s50, %s51
      %p62 = scmp.eq.s32.totalorder %s28, 0
      %p63 = por %p61, %p62
      %p64 = scmp.ne.s32.totalorder %s50, %s51
      %p65 = scmp.eq.s32.totalorder %s29, 1
      %p66 = por %p64, %p65
      %p68 = scmp.ne.s32.totalorder %s51, %s67
      %p69 = scmp.eq.s32.totalorder %s29, 0
      %p70 = por %p68, %p69
      %s71 = sadd.s32 %s31, 1
      %s72 = smul.u32 %s71, 4
      %s73 = sadd.s32 %s38, 1
      %s74 = smul.u32 %s73, 4
      %s75 = ssub.s32 %s30, %s42
      %s76 = ssub.s32 %s72, %s74
      %s77 = sor.u32 %s75, %s76
      %p78 = scmp.eq.s32.totalorder %s77, 0
      %s80 = sadd.s32 %s79, 1
      %s81 = scalar_select %p78, %s79, %s80
      %p84 = pneg %p78
      %p85 = scmp.eq.s32.totalorder %s23, 1
      %p86 = por %p84, %p85
      %p87 = scmp.ne.s32.totalorder %s79, %s82
      %p88 = scmp.eq.s32.totalorder %s23, 0
      %p89 = por %p87, %p88
      %p90 = scmp.ne.s32.totalorder %s79, %s82
      %p91 = scmp.eq.s32.totalorder %s28, 1
      %p92 = por %p90, %p91
      %p93 = scmp.ne.s32.totalorder %s82, %s83
      %p94 = scmp.eq.s32.totalorder %s28, 0
      %p95 = por %p93, %p94
      %p96 = scmp.ne.s32.totalorder %s82, %s83
      %p97 = scmp.eq.s32.totalorder %s29, 1
      %p98 = por %p96, %p97
      %p100 = scmp.ne.s32.totalorder %s83, %s99
      %p101 = scmp.eq.s32.totalorder %s29, 0
      %p102 = por %p100, %p101
      %s104 = sadd.s32 %s103, 1
      %p107 = scmp.eq.s32.totalorder %s23, 1
      %p108 = scmp.ne.s32.totalorder %s103, %s105
      %p109 = scmp.eq.s32.totalorder %s23, 0
      %p110 = por %p108, %p109
      %p111 = scmp.ne.s32.totalorder %s103, %s105
      %p112 = scmp.eq.s32.totalorder %s28, 1
      %p113 = por %p111, %p112
      %p114 = scmp.ne.s32.totalorder %s105, %s106
      %p115 = scmp.eq.s32.totalorder %s28, 0
      %p116 = por %p114, %p115
      %p117 = scmp.ne.s32.totalorder %s105, %s106
      %p118 = scmp.eq.s32.totalorder %s29, 1
      %p119 = por %p117, %p118
      %p121 = scmp.ne.s32.totalorder %s106, %s120
      %p122 = scmp.eq.s32.totalorder %s29, 0
      %p123 = por %p121, %p122
      %s125 = sadd.s32 %s124, 1
      %p128 = scmp.eq.s32.totalorder %s23, 1
      %p129 = scmp.ne.s32.totalorder %s124, %s126
      %p130 = scmp.eq.s32.totalorder %s23, 0
      %p131 = por %p129, %p130
      %p132 = scmp.ne.s32.totalorder %s124, %s126
      %p133 = scmp.eq.s32.totalorder %s28, 1
      %p134 = por %p132, %p133
      %p135 = scmp.ne.s32.totalorder %s126, %s127
      %p136 = scmp.eq.s32.totalorder %s28, 0
      %p137 = por %p135, %p136
      %p138 = scmp.ne.s32.totalorder %s126, %s127
      %p139 = scmp.eq.s32.totalorder %s29, 1
      %p140 = por %p138, %p139
      %p142 = scmp.ne.s32.totalorder %s127, %s141
      %p143 = scmp.eq.s32.totalorder %s29, 0
      %p144 = por %p142, %p143
      %s146 = sadd.s32 %s145, 1
      %p149 = scmp.eq.s32.totalorder %s23, 1
      %p150 = scmp.ne.s32.totalorder %s145, %s147
      %p151 = scmp.eq.s32.totalorder %s23, 0
      %p152 = por %p150, %p151
      %p153 = scmp.ne.s32.totalorder %s145, %s147
      %p154 = scmp.eq.s32.totalorder %s28, 1
      %p155 = por %p153, %p154
      %p156 = scmp.ne.s32.totalorder %s147, %s148
      %p157 = scmp.eq.s32.totalorder %s28, 0
      %p158 = por %p156, %p157
      %p159 = scmp.ne.s32.totalorder %s147, %s148
      %p160 = scmp.eq.s32.totalorder %s29, 1
      %p161 = por %p159, %p160
      %p163 = scmp.ne.s32.totalorder %s148, %s162
      %p164 = scmp.eq.s32.totalorder %s29, 0
      %p165 = por %p163, %p164
      %s167 = sadd.s32 %s166, 1
      %p170 = scmp.eq.s32.totalorder %s23, 1
      %p171 = scmp.ne.s32.totalorder %s166, %s168
      %p172 = scmp.eq.s32.totalorder %s23, 0
      %p173 = por %p171, %p172
      %p174 = scmp.ne.s32.totalorder %s166, %s168
      %p175 = scmp.eq.s32.totalorder %s28, 1
      %p176 = por %p174, %p175
      %p177 = scmp.ne.s32.totalorder %s168, %s169
      %p178 = scmp.eq.s32.totalorder %s28, 0
      %p179 = por %p177, %p178
      %p180 = scmp.ne.s32.totalorder %s168, %s169
      %p181 = scmp.eq.s32.totalorder %s29, 1
      %p182 = por %p180, %p181
      %p184 = scmp.ne.s32.totalorder %s169, %s183
      %p185 = scmp.eq.s32.totalorder %s29, 0
      %p186 = por %p184, %p185
      %s187 = ssub.s32 %s30, %s42
      %s188 = ssub.s32 %s31, %s38
      %s189 = sor.u32 %s187, %s188
      %p190 = scmp.eq.s32.totalorder %s189, 0
      %s192 = sadd.s32 %s191, 1
      %s193 = scalar_select %p190, %s191, %s192
      %p196 = pneg %p190
      %p197 = scmp.eq.s32.totalorder %s23, 1
      %p198 = por %p196, %p197
      %p199 = scmp.ne.s32.totalorder %s191, %s194
      %p200 = scmp.eq.s32.totalorder %s23, 0
      %p201 = por %p199, %p200
      %p202 = scmp.ne.s32.totalorder %s191, %s194
      %p203 = scmp.eq.s32.totalorder %s28, 1
      %p204 = por %p202, %p203
      %p205 = scmp.ne.s32.totalorder %s194, %s195
      %p206 = scmp.eq.s32.totalorder %s28, 0
      %p207 = por %p205, %p206
      %p208 = scmp.ne.s32.totalorder %s194, %s195
      %p209 = scmp.eq.s32.totalorder %s29, 1
      %p210 = por %p208, %p209
      %p212 = scmp.ne.s32.totalorder %s195, %s211
      %p213 = scmp.eq.s32.totalorder %s29, 0
      %p214 = por %p212, %p213
      %p215 = scmp.le.s32.totalorder 1, %s23
      %p216 = scmp.lt.s32.totalorder %s23, 3
      %p217 = pnand %p215, %p216
      %p218 = pneg %p217
      // Predicated region
      $region9: #{_basic_block_jit.1} parent=5 // pred_check
        _
      $region10: #{_basic_block_jit.1} parent=5 // pred_check_branch
        %220 = sbr.rel (%p217) target = $region12
      $region11: #{_basic_block_jit.1} parent=5 // pred_region
        %s221 = ssub.s32 %s23, 1
        // Predicated region
        $region13: #{_basic_block_jit.1} parent=11 // pred_check
          %p222 = pneg %p116
        $region14: #{_basic_block_jit.1} parent=11 // pred_check_branch
          %224 = sbr.rel (%p222) target = $region16
        $region15: #{_basic_block_jit.1} parent=11 // pred_region
          %s226 = ssub.s32 9216, 9216
          %227 = vsyncadd [#allocation8], %s226
          %s228 = sshll.u32 [#allocation9], 4
          %s229 = int_to_ptr.vmem [resolvable:$true] %s228
          %234 = dma.hbm_to_vmem [thread:$0]  %s2, 9216, %s229, [#allocation8], 64, 64, 4
        $region16: #{_basic_block_jit.1} parent=11 // pred_fallthru
          _
        // Predicated region
        $region17: #{_basic_block_jit.1} parent=11 // pred_check
          %p235 = pneg %p137
        $region18: #{_basic_block_jit.1} parent=11 // pred_check_branch
          %237 = sbr.rel (%p235) target = $region20
        $region19: #{_basic_block_jit.1} parent=11 // pred_region
          %s239 = ssub.s32 16, 16
          %240 = vsyncadd [#allocation11], %s239
          %s242 = sshll.u32 [#allocation10], 4
          %s243 = int_to_ptr.vmem [resolvable:$true] %s242
          %245 = dma.hbm_to_vmem [thread:$0]  %s3, 16, %s243, [#allocation11]
        $region20: #{_basic_block_jit.1} parent=11 // pred_fallthru
          _
        // Predicated region
        $region21: #{_basic_block_jit.1} parent=11 // pred_check
          %p246 = pneg %p158
        $region22: #{_basic_block_jit.1} parent=11 // pred_check_branch
          %248 = sbr.rel (%p246) target = $region24
        $region23: #{_basic_block_jit.1} parent=11 // pred_region
          %s250 = ssub.s32 18432, 18432
          %251 = vsyncadd [#allocation11], %s250
          %s252 = sshll.u32 [#allocation12], 4
          %s253 = int_to_ptr.vmem [resolvable:$true] %s252
          %258 = dma.hbm_to_vmem [thread:$0]  %s4, 18432, %s253, [#allocation11], 128, 128, 8
        $region24: #{_basic_block_jit.1} parent=11 // pred_fallthru
          _
        // Predicated region
        $region25: #{_basic_block_jit.1} parent=11 // pred_check
          %p259 = pneg %p179
        $region26: #{_basic_block_jit.1} parent=11 // pred_check_branch
          %261 = sbr.rel (%p259) target = $region28
        $region27: #{_basic_block_jit.1} parent=11 // pred_region
          %s263 = ssub.s32 32, 32
          %264 = vsyncadd [#allocation14], %s263
          %s266 = sshll.u32 [#allocation13], 4
          %s267 = int_to_ptr.vmem [resolvable:$true] %s266
          %269 = dma.hbm_to_vmem [thread:$0]  %s5, 32, %s267, [#allocation14]
        $region28: #{_basic_block_jit.1} parent=11 // pred_fallthru
          _
      $region12: #{_basic_block_jit.1} parent=5 // pred_fallthru
        _
      %p270 = scmp.lt.s32.totalorder %s23, 2
      // Predicated region
      $region29: #{_basic_block_jit.1} parent=5 // pred_check
        %p271 = pneg %p270
      $region30: #{_basic_block_jit.1} parent=5 // pred_check_branch
        %273 = sbr.rel (%p271) target = $region32
      $region31: #{_basic_block_jit.1} parent=5 // pred_region
        // Predicated region
        $region33: #{_basic_block_jit.1} parent=31 // pred_check
          %p274 = pneg %p57
        $region34: #{_basic_block_jit.1} parent=31 // pred_check_branch
          %276 = sbr.rel (%p274) target = $region36
        $region35: #{_basic_block_jit.1} parent=31 // pred_region
          %s277 = sand.u32 %s47, 1
          %s278 = scalar_lea.sflag [#allocation5], %s277
          %s279 = sand.u32 %s47, 1
          %s280 = smul.addr %s279, 256
          %s281 = scalar_lea.vmem [#allocation4], %s280
          %s282 = smul.u32 16, %s31
          %s284 = ssub.s32 4096, 4096
          %285 = vsyncadd %s278, %s284
          %s286 = smul.addr %s282, 4
          %s287 = smul.addr %s30, 128
          %s288 = sadd.s32 %s286, %s287
          %s289 = smul.addr %s288, 64
          %s290 = scalar_lea.hbm %s0, %s289
          %s291 = sshll.u32 %s281, 4
          %s292 = int_to_ptr.vmem [resolvable:$true] %s291
          %297 = dma.hbm_to_vmem [thread:$0]  %s290, 4096, %s292, %s278, 64, 64, 4
        $region36: #{_basic_block_jit.1} parent=31 // pred_fallthru
          _
        // Predicated region
        $region37: #{_basic_block_jit.1} parent=31 // pred_check
          %p298 = pneg %p89
        $region38: #{_basic_block_jit.1} parent=31 // pred_check_branch
          %300 = sbr.rel (%p298) target = $region40
        $region39: #{_basic_block_jit.1} parent=31 // pred_region
          %s301 = sand.u32 %s23, 1
          %s302 = scalar_lea.sflag [#allocation8], %s301
          %s303 = sand.u32 %s79, 1
          %s304 = smul.addr %s303, 64
          %s305 = scalar_lea.vmem [#allocation7], %s304
          %s306 = sadd.s32 %s31, 1
          %s307 = smul.u32 %s306, 4
          %s308 = smul.u32 4, %s307
          %s310 = ssub.s32 1024, 1024
          %311 = vsyncadd %s302, %s310
          %s312 = smul.addr %s308, 4
          %s313 = smul.addr %s30, 128
          %s314 = sadd.s32 %s312, %s313
          %s315 = smul.addr %s314, 64
          %s316 = scalar_lea.hbm %s1, %s315
          %s317 = sshll.u32 %s305, 4
          %s318 = int_to_ptr.vmem [resolvable:$true] %s317
          %323 = dma.hbm_to_vmem [thread:$0]  %s316, 1024, %s318, %s302, 64, 64, 4
        $region40: #{_basic_block_jit.1} parent=31 // pred_fallthru
          _
      $region32: #{_basic_block_jit.1} parent=5 // pred_fallthru
        _
      %p324 = scmp.le.s32.totalorder 1, %s23
      %p325 = scmp.lt.s32.totalorder %s23, 3
      %p326 = pnand %p324, %p325
      %p327 = pneg %p326
      // Predicated region
      $region41: #{_basic_block_jit.1} parent=5 // pred_check
        _
      $region42: #{_basic_block_jit.1} parent=5 // pred_check_branch
        %329 = sbr.rel (%p326) target = $region44
      $region43: #{_basic_block_jit.1} parent=5 // pred_region
        %s330 = ssub.s32 %s23, 1
        %s331 = sand.u32 %s50, 1
        %s332 = scalar_lea.sflag [#allocation5], %s331
        %s333 = sand.u32 %s50, 1
        %s334 = smul.addr %s333, 256
        %s335 = scalar_lea.vmem [#allocation4], %s334
        // Predicated region
        $region45: #{_basic_block_jit.1} parent=43 // pred_check
          %p336 = pneg %p63
        $region46: #{_basic_block_jit.1} parent=43 // pred_check_branch
          %338 = sbr.rel (%p336) target = $region48
        $region47: #{_basic_block_jit.1} parent=43 // pred_region
          %339 = dma.done %s332, 4096
        $region48: #{_basic_block_jit.1} parent=43 // pred_fallthru
          _
        %s340 = sand.u32 %s28, 1
        %s341 = scalar_lea.sflag [#allocation8], %s340
        %s342 = sand.u32 %s82, 1
        %s343 = smul.addr %s342, 64
        %s344 = scalar_lea.vmem [#allocation7], %s343
        // Predicated region
        $region49: #{_basic_block_jit.1} parent=43 // pred_check
          %p345 = pneg %p95
        $region50: #{_basic_block_jit.1} parent=43 // pred_check_branch
          %347 = sbr.rel (%p345) target = $region52
        $region51: #{_basic_block_jit.1} parent=43 // pred_region
          %348 = dma.done %s341, 1024
        $region52: #{_basic_block_jit.1} parent=43 // pred_fallthru
          _
        // Predicated region
        $region53: #{_basic_block_jit.1} parent=43 // pred_check
          %p349 = pneg %p116
        $region54: #{_basic_block_jit.1} parent=43 // pred_check_branch
          %351 = sbr.rel (%p349) target = $region56
        $region55: #{_basic_block_jit.1} parent=43 // pred_region
          %352 = dma.done [#allocation8], 9216
        $region56: #{_basic_block_jit.1} parent=43 // pred_fallthru
          _
        // Predicated region
        $region57: #{_basic_block_jit.1} parent=43 // pred_check
          %p353 = pneg %p137
        $region58: #{_basic_block_jit.1} parent=43 // pred_check_branch
          %355 = sbr.rel (%p353) target = $region60
        $region59: #{_basic_block_jit.1} parent=43 // pred_region
          %356 = dma.done [#allocation11], 16
        $region60: #{_basic_block_jit.1} parent=43 // pred_fallthru
          _
        // Predicated region
        $region61: #{_basic_block_jit.1} parent=43 // pred_check
          %p357 = pneg %p158
        $region62: #{_basic_block_jit.1} parent=43 // pred_check_branch
          %359 = sbr.rel (%p357) target = $region64
        $region63: #{_basic_block_jit.1} parent=43 // pred_region
          %360 = dma.done [#allocation11], 18432
        $region64: #{_basic_block_jit.1} parent=43 // pred_fallthru
          _
        // Predicated region
        $region65: #{_basic_block_jit.1} parent=43 // pred_check
          %p361 = pneg %p179
        $region66: #{_basic_block_jit.1} parent=43 // pred_check_branch
          %363 = sbr.rel (%p361) target = $region68
        $region67: #{_basic_block_jit.1} parent=43 // pred_region
          %364 = dma.done [#allocation14], 32
        $region68: #{_basic_block_jit.1} parent=43 // pred_fallthru
          _
        %s365 = sand.u32 %s50, 1
        %s366 = scalar_lea.sflag [#allocation5], %s365
        %s367 = sand.u32 %s50, 1
        %s368 = smul.addr %s367, 256
        %s369 = scalar_lea.vmem [#allocation4], %s368
        %p370 = pneg %p63
        %p371 = pneg %p60
        %s372 = sand.u32 %s28, 1
        %s373 = scalar_lea.sflag [#allocation8], %s372
        %s374 = sand.u32 %s82, 1
        %s375 = smul.addr %s374, 64
        %s376 = scalar_lea.vmem [#allocation7], %s375
        %p377 = pneg %p95
        %p378 = pneg %p92
        %p379 = pneg %p116
        %p380 = pneg %p113
        %p381 = pneg %p137
        %p382 = pneg %p134
        %p383 = pneg %p158
        %p384 = pneg %p155
        %p385 = pneg %p179
        %p386 = pneg %p176
        %p387 = pneg %p207
        %p388 = pneg %p204
        %s389 = sand.u32 %s194, 1
        %s390 = scalar_lea.sflag [#allocation6], %s389
        %s391 = sand.u32 %s194, 1
        %s392 = smul.addr %s391, 128
        %s393 = scalar_lea.vmem [#allocation15], %s392
        %s394 = smul.u32 16, %s33
        %s395 = sadd.s32 %s33, 1
        %s396 = smul.u32 %s395, 4
        %s397 = smul.u32 4, %s396
        %s398 = smul.u32 16, %s33
        %v400 = vld [vmem:[%s335] sm:$0xf]
        %v401 = vld [vmem:[%s335 + $0x4] sm:$0xf]
        %v402 = vld [vmem:[%s335 + $0x8] sm:$0xf]
        %v403 = vld [vmem:[%s335 + $0xc] sm:$0x1]
        %v404 = vld [vmem:[%s335 + $0x10] sm:$0xf]
        %v405 = vld [vmem:[%s335 + $0x14] sm:$0xf]
        %v406 = vld [vmem:[%s335 + $0x18] sm:$0xf]
        %v407 = vld [vmem:[%s335 + $0x1c] sm:$0x1]
        %v408 = vld [vmem:[%s335 + $0x20] sm:$0xf]
        %v409 = vld [vmem:[%s335 + $0x24] sm:$0xf]
        %v410 = vld [vmem:[%s335 + $0x28] sm:$0xf]
        %v411 = vld [vmem:[%s335 + $0x2c] sm:$0x1]
        %v412 = vld [vmem:[%s335 + $0x30] sm:$0xf]
        %v413 = vld [vmem:[%s335 + $0x34] sm:$0xf]
        %v414 = vld [vmem:[%s335 + $0x38] sm:$0xf]
        %v415 = vld [vmem:[%s335 + $0x3c] sm:$0x1]
        %v416 = vld [vmem:[%s335 + $0x40] sm:$0xf]
        %v417 = vld [vmem:[%s335 + $0x44] sm:$0xf]
        %v418 = vld [vmem:[%s335 + $0x48] sm:$0xf]
        %v419 = vld [vmem:[%s335 + $0x4c] sm:$0x1]
        %v420 = vld [vmem:[%s335 + $0x50] sm:$0xf]
        %v421 = vld [vmem:[%s335 + $0x54] sm:$0xf]
        %v422 = vld [vmem:[%s335 + $0x58] sm:$0xf]
        %v423 = vld [vmem:[%s335 + $0x5c] sm:$0x1]
        %v424 = vld [vmem:[%s335 + $0x60] sm:$0xf]
        %v425 = vld [vmem:[%s335 + $0x64] sm:$0xf]
        %v426 = vld [vmem:[%s335 + $0x68] sm:$0xf]
        %v427 = vld [vmem:[%s335 + $0x6c] sm:$0x1]
        %v428 = vld [vmem:[%s335 + $0x70] sm:$0xf]
        %v429 = vld [vmem:[%s335 + $0x74] sm:$0xf]
        %v430 = vld [vmem:[%s335 + $0x78] sm:$0xf]
        %v431 = vld [vmem:[%s335 + $0x7c] sm:$0x1]
        %v432 = vld [vmem:[%s335 + $0x80] sm:$0xf]
        %v433 = vld [vmem:[%s335 + $0x84] sm:$0xf]
        %v434 = vld [vmem:[%s335 + $0x88] sm:$0xf]
        %v435 = vld [vmem:[%s335 + $0x8c] sm:$0x1]
        %v436 = vld [vmem:[%s335 + $0x90] sm:$0xf]
        %v437 = vld [vmem:[%s335 + $0x94] sm:$0xf]
        %v438 = vld [vmem:[%s335 + $0x98] sm:$0xf]
        %v439 = vld [vmem:[%s335 + $0x9c] sm:$0x1]
        %v440 = vld [vmem:[%s335 + $0xa0] sm:$0xf]
        %v441 = vld [vmem:[%s335 + $0xa4] sm:$0xf]
        %v442 = vld [vmem:[%s335 + $0xa8] sm:$0xf]
        %v443 = vld [vmem:[%s335 + $0xac] sm:$0x1]
        %v444 = vld [vmem:[%s335 + $0xb0] sm:$0xf]
        %v445 = vld [vmem:[%s335 + $0xb4] sm:$0xf]
        %v446 = vld [vmem:[%s335 + $0xb8] sm:$0xf]
        %v447 = vld [vmem:[%s335 + $0xbc] sm:$0x1]
        %v448 = vld [vmem:[%s335 + $0xc0] sm:$0xf]
        %v449 = vld [vmem:[%s335 + $0xc4] sm:$0xf]
        %v450 = vld [vmem:[%s335 + $0xc8] sm:$0xf]
        %v451 = vld [vmem:[%s335 + $0xcc] sm:$0x1]
        %v452 = vld [vmem:[%s335 + $0xd0] sm:$0xf]
        %v453 = vld [vmem:[%s335 + $0xd4] sm:$0xf]
        %v454 = vld [vmem:[%s335 + $0xd8] sm:$0xf]
        %v455 = vld [vmem:[%s335 + $0xdc] sm:$0x1]
        %v456 = vld [vmem:[%s335 + $0xe0] sm:$0xf]
        %v457 = vld [vmem:[%s335 + $0xe4] sm:$0xf]
        %v458 = vld [vmem:[%s335 + $0xe8] sm:$0xf]
        %v459 = vld [vmem:[%s335 + $0xec] sm:$0x1]
        %v460 = vld [vmem:[%s335 + $0xf0] sm:$0xf]
        %v461 = vld [vmem:[%s335 + $0xf4] sm:$0xf]
        %v462 = vld [vmem:[%s335 + $0xf8] sm:$0xf]
        %v463 = vld [vmem:[%s335 + $0xfc] sm:$0x1]
        %v464 = vld [vmem:[%s344] sm:$0xf]
        %v465 = vld [vmem:[%s344 + $0x4] sm:$0xf]
        %v466 = vld [vmem:[%s344 + $0x8] sm:$0xf]
        %v467 = vld [vmem:[%s344 + $0xc] sm:$0x1]
        %v468 = vld [vmem:[%s344 + $0x10] sm:$0xf]
        %v469 = vld [vmem:[%s344 + $0x14] sm:$0xf]
        %v470 = vld [vmem:[%s344 + $0x18] sm:$0xf]
        %v471 = vld [vmem:[%s344 + $0x1c] sm:$0x1]
        %v472 = vld [vmem:[%s344 + $0x20] sm:$0xf]
        %v473 = vld [vmem:[%s344 + $0x24] sm:$0xf]
        %v474 = vld [vmem:[%s344 + $0x28] sm:$0xf]
        %v475 = vld [vmem:[%s344 + $0x2c] sm:$0x1]
        %v476 = vld [vmem:[%s344 + $0x30] sm:$0xf]
        %v477 = vld [vmem:[%s344 + $0x34] sm:$0xf]
        %v478 = vld [vmem:[%s344 + $0x38] sm:$0xf]
        %v479 = vld [vmem:[%s344 + $0x3c] sm:$0x1]
        %480 = vst [vmem:[#allocation2] sm:$0xf] %v400
        %481 = vst [vmem:[#allocation2 + $0xc] sm:$0xf] %v401
        %482 = vst [vmem:[#allocation2 + $0x18] sm:$0xf] %v402
        %483 = vst [vmem:[#allocation2 + $0x24] sm:$0xf] %v404
        %484 = vst [vmem:[#allocation2 + $0x30] sm:$0xf] %v405
        %485 = vst [vmem:[#allocation2 + $0x3c] sm:$0xf] %v406
        %486 = vst [vmem:[#allocation2 + $0x48] sm:$0xf] %v408
        %487 = vst [vmem:[#allocation2 + $0x54] sm:$0xf] %v409
        %488 = vst [vmem:[#allocation2 + $0x60] sm:$0xf] %v410
        %489 = vst [vmem:[#allocation2 + $0x6c] sm:$0xf] %v412
        %490 = vst [vmem:[#allocation2 + $0x78] sm:$0xf] %v413
        %491 = vst [vmem:[#allocation2 + $0x84] sm:$0xf] %v414
        %492 = vst [vmem:[#allocation2 + $0x90] sm:$0xf] %v416
        %493 = vst [vmem:[#allocation2 + $0x9c] sm:$0xf] %v417
        %494 = vst [vmem:[#allocation2 + $0xa8] sm:$0xf] %v418
        %495 = vst [vmem:[#allocation2 + $0xb4] sm:$0xf] %v420
        %496 = vst [vmem:[#allocation2 + $0xc0] sm:$0xf] %v421
        %497 = vst [vmem:[#allocation2 + $0xcc] sm:$0xf] %v422
        %498 = vst [vmem:[#allocation2 + $0xd8] sm:$0xf] %v424
        %499 = vst [vmem:[#allocation2 + $0xe4] sm:$0xf] %v425
        %500 = vst [vmem:[#allocation2 + $0xf0] sm:$0xf] %v426
        %501 = vst [vmem:[#allocation2 + $0xfc] sm:$0xf] %v428
        %502 = vst [vmem:[#allocation2 + $0x108] sm:$0xf] %v429
        %503 = vst [vmem:[#allocation2 + $0x114] sm:$0xf] %v430
        %504 = vst [vmem:[#allocation2 + $0x120] sm:$0xf] %v432
        %505 = vst [vmem:[#allocation2 + $0x12c] sm:$0xf] %v433
        %506 = vst [vmem:[#allocation2 + $0x138] sm:$0xf] %v434
        %507 = vst [vmem:[#allocation2 + $0x144] sm:$0xf] %v436
        %508 = vst [vmem:[#allocation2 + $0x150] sm:$0xf] %v437
        %509 = vst [vmem:[#allocation2 + $0x15c] sm:$0xf] %v438
        %510 = vst [vmem:[#allocation2 + $0x168] sm:$0xf] %v440
        %511 = vst [vmem:[#allocation2 + $0x174] sm:$0xf] %v441
        %512 = vst [vmem:[#allocation2 + $0x180] sm:$0xf] %v442
        %513 = vst [vmem:[#allocation2 + $0x18c] sm:$0xf] %v444
        %514 = vst [vmem:[#allocation2 + $0x198] sm:$0xf] %v445
        %515 = vst [vmem:[#allocation2 + $0x1a4] sm:$0xf] %v446
        %516 = vst [vmem:[#allocation2 + $0x1b0] sm:$0xf] %v448
        %517 = vst [vmem:[#allocation2 + $0x1bc] sm:$0xf] %v449
        %518 = vst [vmem:[#allocation2 + $0x1c8] sm:$0xf] %v450
        %519 = vst [vmem:[#allocation2 + $0x1d4] sm:$0xf] %v452
        %520 = vst [vmem:[#allocation2 + $0x1e0] sm:$0xf] %v453
        %521 = vst [vmem:[#allocation2 + $0x1ec] sm:$0xf] %v454
        %522 = vst [vmem:[#allocation2 + $0x1f8] sm:$0xf] %v456
        %523 = vst [vmem:[#allocation2 + $0x204] sm:$0xf] %v457
        %524 = vst [vmem:[#allocation2 + $0x210] sm:$0xf] %v458
        %525 = vst [vmem:[#allocation2 + $0x21c] sm:$0xf] %v460
        %526 = vst [vmem:[#allocation2 + $0x228] sm:$0xf] %v461
        %527 = vst [vmem:[#allocation2 + $0x234] sm:$0xf] %v462
        %s528 = scalar_lea.vmem [#allocation2], 576
        %529 = vst [vmem:[%s528] sm:$0xf] %v464
        %530 = vst [vmem:[%s528 + $0xc] sm:$0xf] %v465
        %531 = vst [vmem:[%s528 + $0x18] sm:$0xf] %v466
        %532 = vst [vmem:[%s528 + $0x24] sm:$0xf] %v468
        %533 = vst [vmem:[%s528 + $0x30] sm:$0xf] %v469
        %534 = vst [vmem:[%s528 + $0x3c] sm:$0xf] %v470
        %535 = vst [vmem:[%s528 + $0x48] sm:$0xf] %v472
        %536 = vst [vmem:[%s528 + $0x54] sm:$0xf] %v473
        %537 = vst [vmem:[%s528 + $0x60] sm:$0xf] %v474
        %538 = vst [vmem:[%s528 + $0x6c] sm:$0xf] %v476
        %539 = vst [vmem:[%s528 + $0x78] sm:$0xf] %v477
        %540 = vst [vmem:[%s528 + $0x84] sm:$0xf] %v478
        %vm541 = vsmask.f32 3328
        %vm542 = vsmask.f32 7440
        %vm543 = vmor %vm541, %vm542
        %v545 = vshrl.u32 %v400, 16
        %v547 = vrot.slane %v545, 4
        %v548 = vshll.u32 %v400, 16
        %v550 = vrot.slane %v548, 5
        %v551 = vor.u32 %v547, %v550
        %v552 = vrot.slane %v551, 4
        %v554 = vshll.u32 %v401, 16
        %v556 = vrot.slane %v554, 5
        %v557 = vsel %vm543, %v552, %v556
        %v558 = vshrl.u32 %v401, 16
        %v560 = vrot.slane %v558, 4
        %v561 = vor.u32 %v560, %v556
        %v562 = vrot.slane %v561, 4
        %v564 = vshll.u32 %v402, 16
        %v566 = vrot.slane %v564, 5
        %v567 = vsel %vm543, %v562, %v566
        %v568 = vshrl.u32 %v402, 16
        %v570 = vrot.slane %v568, 4
        %v571 = vor.u32 %v570, %v566
        %v572 = vrot.slane %v571, 4
        %v574 = vshll.u32 %v403, 16
        %v576 = vrot.slane %v574, 5
        %v577 = vsel %vm543, %v572, %v576
        %v579 = vshrl.u32 %v404, 16
        %v581 = vrot.slane %v579, 4
        %v582 = vshll.u32 %v404, 16
        %v584 = vrot.slane %v582, 5
        %v585 = vor.u32 %v581, %v584
        %v586 = vrot.slane %v585, 4
        %v588 = vshll.u32 %v405, 16
        %v590 = vrot.slane %v588, 5
        %v591 = vsel %vm543, %v586, %v590
        %v592 = vshrl.u32 %v405, 16
        %v594 = vrot.slane %v592, 4
        %v595 = vor.u32 %v594, %v590
        %v596 = vrot.slane %v595, 4
        %v598 = vshll.u32 %v406, 16
        %v600 = vrot.slane %v598, 5
        %v601 = vsel %vm543, %v596, %v600
        %v602 = vshrl.u32 %v406, 16
        %v604 = vrot.slane %v602, 4
        %v605 = vor.u32 %v604, %v600
        %v606 = vrot.slane %v605, 4
        %v608 = vshll.u32 %v407, 16
        %v610 = vrot.slane %v608, 5
        %v611 = vsel %vm543, %v606, %v610
        %v613 = vshrl.u32 %v408, 16
        %v615 = vrot.slane %v613, 4
        %v616 = vshll.u32 %v408, 16
        %v618 = vrot.slane %v616, 5
        %v619 = vor.u32 %v615, %v618
        %v620 = vrot.slane %v619, 4
        %v622 = vshll.u32 %v409, 16
        %v624 = vrot.slane %v622, 5
        %v625 = vsel %vm543, %v620, %v624
        %v626 = vshrl.u32 %v409, 16
        %v628 = vrot.slane %v626, 4
        %v629 = vor.u32 %v628, %v624
        %v630 = vrot.slane %v629, 4
        %v632 = vshll.u32 %v410, 16
        %v634 = vrot.slane %v632, 5
        %v635 = vsel %vm543, %v630, %v634
        %v636 = vshrl.u32 %v410, 16
        %v638 = vrot.slane %v636, 4
        %v639 = vor.u32 %v638, %v634
        %v640 = vrot.slane %v639, 4
        %v642 = vshll.u32 %v411, 16
        %v644 = vrot.slane %v642, 5
        %v645 = vsel %vm543, %v640, %v644
        %v647 = vshrl.u32 %v412, 16
        %v649 = vrot.slane %v647, 4
        %v650 = vshll.u32 %v412, 16
        %v652 = vrot.slane %v650, 5
        %v653 = vor.u32 %v649, %v652
        %v654 = vrot.slane %v653, 4
        %v656 = vshll.u32 %v413, 16
        %v658 = vrot.slane %v656, 5
        %v659 = vsel %vm543, %v654, %v658
        %v660 = vshrl.u32 %v413, 16
        %v662 = vrot.slane %v660, 4
        %v663 = vor.u32 %v662, %v658
        %v664 = vrot.slane %v663, 4
        %v666 = vshll.u32 %v414, 16
        %v668 = vrot.slane %v666, 5
        %v669 = vsel %vm543, %v664, %v668
        %v670 = vshrl.u32 %v414, 16
        %v672 = vrot.slane %v670, 4
        %v673 = vor.u32 %v672, %v668
        %v674 = vrot.slane %v673, 4
        %v676 = vshll.u32 %v415, 16
        %v678 = vrot.slane %v676, 5
        %v679 = vsel %vm543, %v674, %v678
        %v681 = vshrl.u32 %v416, 16
        %v683 = vrot.slane %v681, 4
        %v684 = vshll.u32 %v416, 16
        %v686 = vrot.slane %v684, 5
        %v687 = vor.u32 %v683, %v686
        %v688 = vrot.slane %v687, 4
        %v690 = vshll.u32 %v417, 16
        %v692 = vrot.slane %v690, 5
        %v693 = vsel %vm543, %v688, %v692
        %v694 = vshrl.u32 %v417, 16
        %v696 = vrot.slane %v694, 4
        %v697 = vor.u32 %v696, %v692
        %v698 = vrot.slane %v697, 4
        %v700 = vshll.u32 %v418, 16
        %v702 = vrot.slane %v700, 5
        %v703 = vsel %vm543, %v698, %v702
        %v704 = vshrl.u32 %v418, 16
        %v706 = vrot.slane %v704, 4
        %v707 = vor.u32 %v706, %v702
        %v708 = vrot.slane %v707, 4
        %v710 = vshll.u32 %v419, 16
        %v712 = vrot.slane %v710, 5
        %v713 = vsel %vm543, %v708, %v712
        %v715 = vshrl.u32 %v420, 16
        %v717 = vrot.slane %v715, 4
        %v718 = vshll.u32 %v420, 16
        %v720 = vrot.slane %v718, 5
        %v721 = vor.u32 %v717, %v720
        %v722 = vrot.slane %v721, 4
        %v724 = vshll.u32 %v421, 16
        %v726 = vrot.slane %v724, 5
        %v727 = vsel %vm543, %v722, %v726
        %v728 = vshrl.u32 %v421, 16
        %v730 = vrot.slane %v728, 4
        %v731 = vor.u32 %v730, %v726
        %v732 = vrot.slane %v731, 4
        %v734 = vshll.u32 %v422, 16
        %v736 = vrot.slane %v734, 5
        %v737 = vsel %vm543, %v732, %v736
        %v738 = vshrl.u32 %v422, 16
        %v740 = vrot.slane %v738, 4
        %v741 = vor.u32 %v740, %v736
        %v742 = vrot.slane %v741, 4
        %v744 = vshll.u32 %v423, 16
        %v746 = vrot.slane %v744, 5
        %v747 = vsel %vm543, %v742, %v746
        %v749 = vshrl.u32 %v424, 16
        %v751 = vrot.slane %v749, 4
        %v752 = vshll.u32 %v424, 16
        %v754 = vrot.slane %v752, 5
        %v755 = vor.u32 %v751, %v754
        %v756 = vrot.slane %v755, 4
        %v758 = vshll.u32 %v425, 16
        %v760 = vrot.slane %v758, 5
        %v761 = vsel %vm543, %v756, %v760
        %v762 = vshrl.u32 %v425, 16
        %v764 = vrot.slane %v762, 4
        %v765 = vor.u32 %v764, %v760
        %v766 = vrot.slane %v765, 4
        %v768 = vshll.u32 %v426, 16
        %v770 = vrot.slane %v768, 5
        %v771 = vsel %vm543, %v766, %v770
        %v772 = vshrl.u32 %v426, 16
        %v774 = vrot.slane %v772, 4
        %v775 = vor.u32 %v774, %v770
        %v776 = vrot.slane %v775, 4
        %v778 = vshll.u32 %v427, 16
        %v780 = vrot.slane %v778, 5
        %v781 = vsel %vm543, %v776, %v780
        %v783 = vshrl.u32 %v428, 16
        %v785 = vrot.slane %v783, 4
        %v786 = vshll.u32 %v428, 16
        %v788 = vrot.slane %v786, 5
        %v789 = vor.u32 %v785, %v788
        %v790 = vrot.slane %v789, 4
        %v792 = vshll.u32 %v429, 16
        %v794 = vrot.slane %v792, 5
        %v795 = vsel %vm543, %v790, %v794
        %v796 = vshrl.u32 %v429, 16
        %v798 = vrot.slane %v796, 4
        %v799 = vor.u32 %v798, %v794
        %v800 = vrot.slane %v799, 4
        %v802 = vshll.u32 %v430, 16
        %v804 = vrot.slane %v802, 5
        %v805 = vsel %vm543, %v800, %v804
        %v806 = vshrl.u32 %v430, 16
        %v808 = vrot.slane %v806, 4
        %v809 = vor.u32 %v808, %v804
        %v810 = vrot.slane %v809, 4
        %v812 = vshll.u32 %v431, 16
        %v814 = vrot.slane %v812, 5
        %v815 = vsel %vm543, %v810, %v814
        %v817 = vshrl.u32 %v432, 16
        %v819 = vrot.slane %v817, 4
        %v820 = vshll.u32 %v432, 16
        %v822 = vrot.slane %v820, 5
        %v823 = vor.u32 %v819, %v822
        %v824 = vrot.slane %v823, 4
        %v826 = vshll.u32 %v433, 16
        %v828 = vrot.slane %v826, 5
        %v829 = vsel %vm543, %v824, %v828
        %v830 = vshrl.u32 %v433, 16
        %v832 = vrot.slane %v830, 4
        %v833 = vor.u32 %v832, %v828
        %v834 = vrot.slane %v833, 4
        %v836 = vshll.u32 %v434, 16
        %v838 = vrot.slane %v836, 5
        %v839 = vsel %vm543, %v834, %v838
        %v840 = vshrl.u32 %v434, 16
        %v842 = vrot.slane %v840, 4
        %v843 = vor.u32 %v842, %v838
        %v844 = vrot.slane %v843, 4
        %v846 = vshll.u32 %v435, 16
        %v848 = vrot.slane %v846, 5
        %v849 = vsel %vm543, %v844, %v848
        %v851 = vshrl.u32 %v436, 16
        %v853 = vrot.slane %v851, 4
        %v854 = vshll.u32 %v436, 16
        %v856 = vrot.slane %v854, 5
        %v857 = vor.u32 %v853, %v856
        %v858 = vrot.slane %v857, 4
        %v860 = vshll.u32 %v437, 16
        %v862 = vrot.slane %v860, 5
        %v863 = vsel %vm543, %v858, %v862
        %v864 = vshrl.u32 %v437, 16
        %v866 = vrot.slane %v864, 4
        %v867 = vor.u32 %v866, %v862
        %v868 = vrot.slane %v867, 4
        %v870 = vshll.u32 %v438, 16
        %v872 = vrot.slane %v870, 5
        %v873 = vsel %vm543, %v868, %v872
        %v874 = vshrl.u32 %v438, 16
        %v876 = vrot.slane %v874, 4
        %v877 = vor.u32 %v876, %v872
        %v878 = vrot.slane %v877, 4
        %v880 = vshll.u32 %v439, 16
        %v882 = vrot.slane %v880, 5
        %v883 = vsel %vm543, %v878, %v882
        %v885 = vshrl.u32 %v440, 16
        %v887 = vrot.slane %v885, 4
        %v888 = vshll.u32 %v440, 16
        %v890 = vrot.slane %v888, 5
        %v891 = vor.u32 %v887, %v890
        %v892 = vrot.slane %v891, 4
        %v894 = vshll.u32 %v441, 16
        %v896 = vrot.slane %v894, 5
        %v897 = vsel %vm543, %v892, %v896
        %v898 = vshrl.u32 %v441, 16
        %v900 = vrot.slane %v898, 4
        %v901 = vor.u32 %v900, %v896
        %v902 = vrot.slane %v901, 4
        %v904 = vshll.u32 %v442, 16
        %v906 = vrot.slane %v904, 5
        %v907 = vsel %vm543, %v902, %v906
        %v908 = vshrl.u32 %v442, 16
        %v910 = vrot.slane %v908, 4
        %v911 = vor.u32 %v910, %v906
        %v912 = vrot.slane %v911, 4
        %v914 = vshll.u32 %v443, 16
        %v916 = vrot.slane %v914, 5
        %v917 = vsel %vm543, %v912, %v916
        %v919 = vshrl.u32 %v444, 16
        %v921 = vrot.slane %v919, 4
        %v922 = vshll.u32 %v444, 16
        %v924 = vrot.slane %v922, 5
        %v925 = vor.u32 %v921, %v924
        %v926 = vrot.slane %v925, 4
        %v928 = vshll.u32 %v445, 16
        %v930 = vrot.slane %v928, 5
        %v931 = vsel %vm543, %v926, %v930
        %v932 = vshrl.u32 %v445, 16
        %v934 = vrot.slane %v932, 4
        %v935 = vor.u32 %v934, %v930
        %v936 = vrot.slane %v935, 4
        %v938 = vshll.u32 %v446, 16
        %v940 = vrot.slane %v938, 5
        %v941 = vsel %vm543, %v936, %v940
        %v942 = vshrl.u32 %v446, 16
        %v944 = vrot.slane %v942, 4
        %v945 = vor.u32 %v944, %v940
        %v946 = vrot.slane %v945, 4
        %v948 = vshll.u32 %v447, 16
        %v950 = vrot.slane %v948, 5
        %v951 = vsel %vm543, %v946, %v950
        %v953 = vshrl.u32 %v448, 16
        %v955 = vrot.slane %v953, 4
        %v956 = vshll.u32 %v448, 16
        %v958 = vrot.slane %v956, 5
        %v959 = vor.u32 %v955, %v958
        %v960 = vrot.slane %v959, 4
        %v962 = vshll.u32 %v449, 16
        %v964 = vrot.slane %v962, 5
        %v965 = vsel %vm543, %v960, %v964
        %v966 = vshrl.u32 %v449, 16
        %v968 = vrot.slane %v966, 4
        %v969 = vor.u32 %v968, %v964
        %v970 = vrot.slane %v969, 4
        %v972 = vshll.u32 %v450, 16
        %v974 = vrot.slane %v972, 5
        %v975 = vsel %vm543, %v970, %v974
        %v976 = vshrl.u32 %v450, 16
        %v978 = vrot.slane %v976, 4
        %v979 = vor.u32 %v978, %v974
        %v980 = vrot.slane %v979, 4
        %v982 = vshll.u32 %v451, 16
        %v984 = vrot.slane %v982, 5
        %v985 = vsel %vm543, %v980, %v984
        %v987 = vshrl.u32 %v452, 16
        %v989 = vrot.slane %v987, 4
        %v990 = vshll.u32 %v452, 16
        %v992 = vrot.slane %v990, 5
        %v993 = vor.u32 %v989, %v992
        %v994 = vrot.slane %v993, 4
        %v996 = vshll.u32 %v453, 16
        %v998 = vrot.slane %v996, 5
        %v999 = vsel %vm543, %v994, %v998
        %v1000 = vshrl.u32 %v453, 16
        %v1002 = vrot.slane %v1000, 4
        %v1003 = vor.u32 %v1002, %v998
        %v1004 = vrot.slane %v1003, 4
        %v1006 = vshll.u32 %v454, 16
        %v1008 = vrot.slane %v1006, 5
        %v1009 = vsel %vm543, %v1004, %v1008
        %v1010 = vshrl.u32 %v454, 16
        %v1012 = vrot.slane %v1010, 4
        %v1013 = vor.u32 %v1012, %v1008
        %v1014 = vrot.slane %v1013, 4
        %v1016 = vshll.u32 %v455, 16
        %v1018 = vrot.slane %v1016, 5
        %v1019 = vsel %vm543, %v1014, %v1018
        %v1021 = vshrl.u32 %v456, 16
        %v1023 = vrot.slane %v1021, 4
        %v1024 = vshll.u32 %v456, 16
        %v1026 = vrot.slane %v1024, 5
        %v1027 = vor.u32 %v1023, %v1026
        %v1028 = vrot.slane %v1027, 4
        %v1030 = vshll.u32 %v457, 16
        %v1032 = vrot.slane %v1030, 5
        %v1033 = vsel %vm543, %v1028, %v1032
        %v1034 = vshrl.u32 %v457, 16
        %v1036 = vrot.slane %v1034, 4
        %v1037 = vor.u32 %v1036, %v1032
        %v1038 = vrot.slane %v1037, 4
        %v1040 = vshll.u32 %v458, 16
        %v1042 = vrot.slane %v1040, 5
        %v1043 = vsel %vm543, %v1038, %v1042
        %v1044 = vshrl.u32 %v458, 16
        %v1046 = vrot.slane %v1044, 4
        %v1047 = vor.u32 %v1046, %v1042
        %v1048 = vrot.slane %v1047, 4
        %v1050 = vshll.u32 %v459, 16
        %v1052 = vrot.slane %v1050, 5
        %v1053 = vsel %vm543, %v1048, %v1052
        %v1055 = vshrl.u32 %v460, 16
        %v1057 = vrot.slane %v1055, 4
        %v1058 = vshll.u32 %v460, 16
        %v1060 = vrot.slane %v1058, 5
        %v1061 = vor.u32 %v1057, %v1060
        %v1062 = vrot.slane %v1061, 4
        %v1064 = vshll.u32 %v461, 16
        %v1066 = vrot.slane %v1064, 5
        %v1067 = vsel %vm543, %v1062, %v1066
        %v1068 = vshrl.u32 %v461, 16
        %v1070 = vrot.slane %v1068, 4
        %v1071 = vor.u32 %v1070, %v1066
        %v1072 = vrot.slane %v1071, 4
        %v1074 = vshll.u32 %v462, 16
        %v1076 = vrot.slane %v1074, 5
        %v1077 = vsel %vm543, %v1072, %v1076
        %v1078 = vshrl.u32 %v462, 16
        %v1080 = vrot.slane %v1078, 4
        %v1081 = vor.u32 %v1080, %v1076
        %v1082 = vrot.slane %v1081, 4
        %v1084 = vshll.u32 %v463, 16
        %v1086 = vrot.slane %v1084, 5
        %v1087 = vsel %vm543, %v1082, %v1086
        %1136 = vst [vmem:[#allocation2 + $0x4] sm:$0xf] %v557
        %1137 = vst [vmem:[#allocation2 + $0x10] sm:$0xf] %v567
        %1138 = vst [vmem:[#allocation2 + $0x1c] sm:$0xf] %v577
        %1139 = vst [vmem:[#allocation2 + $0x28] sm:$0xf] %v591
        %1140 = vst [vmem:[#allocation2 + $0x34] sm:$0xf] %v601
        %1141 = vst [vmem:[#allocation2 + $0x40] sm:$0xf] %v611
        %1142 = vst [vmem:[#allocation2 + $0x4c] sm:$0xf] %v625
        %1143 = vst [vmem:[#allocation2 + $0x58] sm:$0xf] %v635
        %1144 = vst [vmem:[#allocation2 + $0x64] sm:$0xf] %v645
        %1145 = vst [vmem:[#allocation2 + $0x70] sm:$0xf] %v659
        %1146 = vst [vmem:[#allocation2 + $0x7c] sm:$0xf] %v669
        %1147 = vst [vmem:[#allocation2 + $0x88] sm:$0xf] %v679
        %1148 = vst [vmem:[#allocation2 + $0x94] sm:$0xf] %v693
        %1149 = vst [vmem:[#allocation2 + $0xa0] sm:$0xf] %v703
        %1150 = vst [vmem:[#allocation2 + $0xac] sm:$0xf] %v713
        %1151 = vst [vmem:[#allocation2 + $0xb8] sm:$0xf] %v727
        %1152 = vst [vmem:[#allocation2 + $0xc4] sm:$0xf] %v737
        %1153 = vst [vmem:[#allocation2 + $0xd0] sm:$0xf] %v747
        %1154 = vst [vmem:[#allocation2 + $0xdc] sm:$0xf] %v761
        %1155 = vst [vmem:[#allocation2 + $0xe8] sm:$0xf] %v771
        %1156 = vst [vmem:[#allocation2 + $0xf4] sm:$0xf] %v781
        %1157 = vst [vmem:[#allocation2 + $0x100] sm:$0xf] %v795
        %1158 = vst [vmem:[#allocation2 + $0x10c] sm:$0xf] %v805
        %1159 = vst [vmem:[#allocation2 + $0x118] sm:$0xf] %v815
        %1160 = vst [vmem:[#allocation2 + $0x124] sm:$0xf] %v829
        %1161 = vst [vmem:[#allocation2 + $0x130] sm:$0xf] %v839
        %1162 = vst [vmem:[#allocation2 + $0x13c] sm:$0xf] %v849
        %1163 = vst [vmem:[#allocation2 + $0x148] sm:$0xf] %v863
        %1164 = vst [vmem:[#allocation2 + $0x154] sm:$0xf] %v873
        %1165 = vst [vmem:[#allocation2 + $0x160] sm:$0xf] %v883
        %1166 = vst [vmem:[#allocation2 + $0x16c] sm:$0xf] %v897
        %1167 = vst [vmem:[#allocation2 + $0x178] sm:$0xf] %v907
        %1168 = vst [vmem:[#allocation2 + $0x184] sm:$0xf] %v917
        %1169 = vst [vmem:[#allocation2 + $0x190] sm:$0xf] %v931
        %1170 = vst [vmem:[#allocation2 + $0x19c] sm:$0xf] %v941
        %1171 = vst [vmem:[#allocation2 + $0x1a8] sm:$0xf] %v951
        %1172 = vst [vmem:[#allocation2 + $0x1b4] sm:$0xf] %v965
        %1173 = vst [vmem:[#allocation2 + $0x1c0] sm:$0xf] %v975
        %1174 = vst [vmem:[#allocation2 + $0x1cc] sm:$0xf] %v985
        %1175 = vst [vmem:[#allocation2 + $0x1d8] sm:$0xf] %v999
        %1176 = vst [vmem:[#allocation2 + $0x1e4] sm:$0xf] %v1009
        %1177 = vst [vmem:[#allocation2 + $0x1f0] sm:$0xf] %v1019
        %1178 = vst [vmem:[#allocation2 + $0x1fc] sm:$0xf] %v1033
        %1179 = vst [vmem:[#allocation2 + $0x208] sm:$0xf] %v1043
        %1180 = vst [vmem:[#allocation2 + $0x214] sm:$0xf] %v1053
        %1181 = vst [vmem:[#allocation2 + $0x220] sm:$0xf] %v1067
        %1182 = vst [vmem:[#allocation2 + $0x22c] sm:$0xf] %v1077
        %1183 = vst [vmem:[#allocation2 + $0x238] sm:$0xf] %v1087
        %v1185 = vshrl.u32 %v464, 16
        %v1187 = vrot.slane %v1185, 4
        %v1188 = vshll.u32 %v464, 16
        %v1190 = vrot.slane %v1188, 5
        %v1191 = vor.u32 %v1187, %v1190
        %v1192 = vrot.slane %v1191, 4
        %v1194 = vshll.u32 %v465, 16
        %v1196 = vrot.slane %v1194, 5
        %v1197 = vsel %vm543, %v1192, %v1196
        %v1198 = vshrl.u32 %v465, 16
        %v1200 = vrot.slane %v1198, 4
        %v1201 = vor.u32 %v1200, %v1196
        %v1202 = vrot.slane %v1201, 4
        %v1204 = vshll.u32 %v466, 16
        %v1206 = vrot.slane %v1204, 5
        %v1207 = vsel %vm543, %v1202, %v1206
        %v1208 = vshrl.u32 %v466, 16
        %v1210 = vrot.slane %v1208, 4
        %v1211 = vor.u32 %v1210, %v1206
        %v1212 = vrot.slane %v1211, 4
        %v1214 = vshll.u32 %v467, 16
        %v1216 = vrot.slane %v1214, 5
        %v1217 = vsel %vm543, %v1212, %v1216
        %v1219 = vshrl.u32 %v468, 16
        %v1221 = vrot.slane %v1219, 4
        %v1222 = vshll.u32 %v468, 16
        %v1224 = vrot.slane %v1222, 5
        %v1225 = vor.u32 %v1221, %v1224
        %v1226 = vrot.slane %v1225, 4
        %v1228 = vshll.u32 %v469, 16
        %v1230 = vrot.slane %v1228, 5
        %v1231 = vsel %vm543, %v1226, %v1230
        %v1232 = vshrl.u32 %v469, 16
        %v1234 = vrot.slane %v1232, 4
        %v1235 = vor.u32 %v1234, %v1230
        %v1236 = vrot.slane %v1235, 4
        %v1238 = vshll.u32 %v470, 16
        %v1240 = vrot.slane %v1238, 5
        %v1241 = vsel %vm543, %v1236, %v1240
        %v1242 = vshrl.u32 %v470, 16
        %v1244 = vrot.slane %v1242, 4
        %v1245 = vor.u32 %v1244, %v1240
        %v1246 = vrot.slane %v1245, 4
        %v1248 = vshll.u32 %v471, 16
        %v1250 = vrot.slane %v1248, 5
        %v1251 = vsel %vm543, %v1246, %v1250
        %v1253 = vshrl.u32 %v472, 16
        %v1255 = vrot.slane %v1253, 4
        %v1256 = vshll.u32 %v472, 16
        %v1258 = vrot.slane %v1256, 5
        %v1259 = vor.u32 %v1255, %v1258
        %v1260 = vrot.slane %v1259, 4
        %v1262 = vshll.u32 %v473, 16
        %v1264 = vrot.slane %v1262, 5
        %v1265 = vsel %vm543, %v1260, %v1264
        %v1266 = vshrl.u32 %v473, 16
        %v1268 = vrot.slane %v1266, 4
        %v1269 = vor.u32 %v1268, %v1264
        %v1270 = vrot.slane %v1269, 4
        %v1272 = vshll.u32 %v474, 16
        %v1274 = vrot.slane %v1272, 5
        %v1275 = vsel %vm543, %v1270, %v1274
        %v1276 = vshrl.u32 %v474, 16
        %v1278 = vrot.slane %v1276, 4
        %v1279 = vor.u32 %v1278, %v1274
        %v1280 = vrot.slane %v1279, 4
        %v1282 = vshll.u32 %v475, 16
        %v1284 = vrot.slane %v1282, 5
        %v1285 = vsel %vm543, %v1280, %v1284
        %v1287 = vshrl.u32 %v476, 16
        %v1289 = vrot.slane %v1287, 4
        %v1290 = vshll.u32 %v476, 16
        %v1292 = vrot.slane %v1290, 5
        %v1293 = vor.u32 %v1289, %v1292
        %v1294 = vrot.slane %v1293, 4
        %v1296 = vshll.u32 %v477, 16
        %v1298 = vrot.slane %v1296, 5
        %v1299 = vsel %vm543, %v1294, %v1298
        %v1300 = vshrl.u32 %v477, 16
        %v1302 = vrot.slane %v1300, 4
        %v1303 = vor.u32 %v1302, %v1298
        %v1304 = vrot.slane %v1303, 4
        %v1306 = vshll.u32 %v478, 16
        %v1308 = vrot.slane %v1306, 5
        %v1309 = vsel %vm543, %v1304, %v1308
        %v1310 = vshrl.u32 %v478, 16
        %v1312 = vrot.slane %v1310, 4
        %v1313 = vor.u32 %v1312, %v1308
        %v1314 = vrot.slane %v1313, 4
        %v1316 = vshll.u32 %v479, 16
        %v1318 = vrot.slane %v1316, 5
        %v1319 = vsel %vm543, %v1314, %v1318
        %1332 = vst [vmem:[%s528 + $0x4] sm:$0xf] %v1197
        %1333 = vst [vmem:[%s528 + $0x10] sm:$0xf] %v1207
        %1334 = vst [vmem:[%s528 + $0x1c] sm:$0xf] %v1217
        %1335 = vst [vmem:[%s528 + $0x28] sm:$0xf] %v1231
        %1336 = vst [vmem:[%s528 + $0x34] sm:$0xf] %v1241
        %1337 = vst [vmem:[%s528 + $0x40] sm:$0xf] %v1251
        %1338 = vst [vmem:[%s528 + $0x4c] sm:$0xf] %v1265
        %1339 = vst [vmem:[%s528 + $0x58] sm:$0xf] %v1275
        %1340 = vst [vmem:[%s528 + $0x64] sm:$0xf] %v1285
        %1341 = vst [vmem:[%s528 + $0x70] sm:$0xf] %v1299
        %1342 = vst [vmem:[%s528 + $0x7c] sm:$0xf] %v1309
        %1343 = vst [vmem:[%s528 + $0x88] sm:$0xf] %v1319
        %vm1408 = vcmask 1042432
        %vm1409 = vcmask 1046532
        %vm1410 = vmor %vm1408, %vm1409
        %v1411 = vrot.slane %v400, 5
        %v1412 = vrot.slane %v1411, 4
        %v1413 = vrot.slane %v401, 5
        %v1414 = vsel %vm1410, %v1412, %v1413
        %v1415 = vrot.slane %v1413, 4
        %v1416 = vrot.slane %v402, 5
        %v1417 = vsel %vm1410, %v1415, %v1416
        %v1418 = vrot.slane %v1416, 4
        %v1419 = vrot.slane %v403, 5
        %v1420 = vsel %vm1410, %v1418, %v1419
        %v1421 = vrot.slane %v404, 5
        %v1422 = vrot.slane %v1421, 4
        %v1423 = vrot.slane %v405, 5
        %v1424 = vsel %vm1410, %v1422, %v1423
        %v1425 = vrot.slane %v1423, 4
        %v1426 = vrot.slane %v406, 5
        %v1427 = vsel %vm1410, %v1425, %v1426
        %v1428 = vrot.slane %v1426, 4
        %v1429 = vrot.slane %v407, 5
        %v1430 = vsel %vm1410, %v1428, %v1429
        %v1431 = vrot.slane %v408, 5
        %v1432 = vrot.slane %v1431, 4
        %v1433 = vrot.slane %v409, 5
        %v1434 = vsel %vm1410, %v1432, %v1433
        %v1435 = vrot.slane %v1433, 4
        %v1436 = vrot.slane %v410, 5
        %v1437 = vsel %vm1410, %v1435, %v1436
        %v1438 = vrot.slane %v1436, 4
        %v1439 = vrot.slane %v411, 5
        %v1440 = vsel %vm1410, %v1438, %v1439
        %v1441 = vrot.slane %v412, 5
        %v1442 = vrot.slane %v1441, 4
        %v1443 = vrot.slane %v413, 5
        %v1444 = vsel %vm1410, %v1442, %v1443
        %v1445 = vrot.slane %v1443, 4
        %v1446 = vrot.slane %v414, 5
        %v1447 = vsel %vm1410, %v1445, %v1446
        %v1448 = vrot.slane %v1446, 4
        %v1449 = vrot.slane %v415, 5
        %v1450 = vsel %vm1410, %v1448, %v1449
        %v1451 = vrot.slane %v416, 5
        %v1452 = vrot.slane %v1451, 4
        %v1453 = vrot.slane %v417, 5
        %v1454 = vsel %vm1410, %v1452, %v1453
        %v1455 = vrot.slane %v1453, 4
        %v1456 = vrot.slane %v418, 5
        %v1457 = vsel %vm1410, %v1455, %v1456
        %v1458 = vrot.slane %v1456, 4
        %v1459 = vrot.slane %v419, 5
        %v1460 = vsel %vm1410, %v1458, %v1459
        %v1461 = vrot.slane %v420, 5
        %v1462 = vrot.slane %v1461, 4
        %v1463 = vrot.slane %v421, 5
        %v1464 = vsel %vm1410, %v1462, %v1463
        %v1465 = vrot.slane %v1463, 4
        %v1466 = vrot.slane %v422, 5
        %v1467 = vsel %vm1410, %v1465, %v1466
        %v1468 = vrot.slane %v1466, 4
        %v1469 = vrot.slane %v423, 5
        %v1470 = vsel %vm1410, %v1468, %v1469
        %v1471 = vrot.slane %v424, 5
        %v1472 = vrot.slane %v1471, 4
        %v1473 = vrot.slane %v425, 5
        %v1474 = vsel %vm1410, %v1472, %v1473
        %v1475 = vrot.slane %v1473, 4
        %v1476 = vrot.slane %v426, 5
        %v1477 = vsel %vm1410, %v1475, %v1476
        %v1478 = vrot.slane %v1476, 4
        %v1479 = vrot.slane %v427, 5
        %v1480 = vsel %vm1410, %v1478, %v1479
        %v1481 = vrot.slane %v428, 5
        %v1482 = vrot.slane %v1481, 4
        %v1483 = vrot.slane %v429, 5
        %v1484 = vsel %vm1410, %v1482, %v1483
        %v1485 = vrot.slane %v1483, 4
        %v1486 = vrot.slane %v430, 5
        %v1487 = vsel %vm1410, %v1485, %v1486
        %v1488 = vrot.slane %v1486, 4
        %v1489 = vrot.slane %v431, 5
        %v1490 = vsel %vm1410, %v1488, %v1489
        %v1491 = vrot.slane %v432, 5
        %v1492 = vrot.slane %v1491, 4
        %v1493 = vrot.slane %v433, 5
        %v1494 = vsel %vm1410, %v1492, %v1493
        %v1495 = vrot.slane %v1493, 4
        %v1496 = vrot.slane %v434, 5
        %v1497 = vsel %vm1410, %v1495, %v1496
        %v1498 = vrot.slane %v1496, 4
        %v1499 = vrot.slane %v435, 5
        %v1500 = vsel %vm1410, %v1498, %v1499
        %v1501 = vrot.slane %v436, 5
        %v1502 = vrot.slane %v1501, 4
        %v1503 = vrot.slane %v437, 5
        %v1504 = vsel %vm1410, %v1502, %v1503
        %v1505 = vrot.slane %v1503, 4
        %v1506 = vrot.slane %v438, 5
        %v1507 = vsel %vm1410, %v1505, %v1506
        %v1508 = vrot.slane %v1506, 4
        %v1509 = vrot.slane %v439, 5
        %v1510 = vsel %vm1410, %v1508, %v1509
        %v1511 = vrot.slane %v440, 5
        %v1512 = vrot.slane %v1511, 4
        %v1513 = vrot.slane %v441, 5
        %v1514 = vsel %vm1410, %v1512, %v1513
        %v1515 = vrot.slane %v1513, 4
        %v1516 = vrot.slane %v442, 5
        %v1517 = vsel %vm1410, %v1515, %v1516
        %v1518 = vrot.slane %v1516, 4
        %v1519 = vrot.slane %v443, 5
        %v1520 = vsel %vm1410, %v1518, %v1519
        %v1521 = vrot.slane %v444, 5
        %v1522 = vrot.slane %v1521, 4
        %v1523 = vrot.slane %v445, 5
        %v1524 = vsel %vm1410, %v1522, %v1523
        %v1525 = vrot.slane %v1523, 4
        %v1526 = vrot.slane %v446, 5
        %v1527 = vsel %vm1410, %v1525, %v1526
        %v1528 = vrot.slane %v1526, 4
        %v1529 = vrot.slane %v447, 5
        %v1530 = vsel %vm1410, %v1528, %v1529
        %v1531 = vrot.slane %v448, 5
        %v1532 = vrot.slane %v1531, 4
        %v1533 = vrot.slane %v449, 5
        %v1534 = vsel %vm1410, %v1532, %v1533
        %v1535 = vrot.slane %v1533, 4
        %v1536 = vrot.slane %v450, 5
        %v1537 = vsel %vm1410, %v1535, %v1536
        %v1538 = vrot.slane %v1536, 4
        %v1539 = vrot.slane %v451, 5
        %v1540 = vsel %vm1410, %v1538, %v1539
        %v1541 = vrot.slane %v452, 5
        %v1542 = vrot.slane %v1541, 4
        %v1543 = vrot.slane %v453, 5
        %v1544 = vsel %vm1410, %v1542, %v1543
        %v1545 = vrot.slane %v1543, 4
        %v1546 = vrot.slane %v454, 5
        %v1547 = vsel %vm1410, %v1545, %v1546
        %v1548 = vrot.slane %v1546, 4
        %v1549 = vrot.slane %v455, 5
        %v1550 = vsel %vm1410, %v1548, %v1549
        %v1551 = vrot.slane %v456, 5
        %v1552 = vrot.slane %v1551, 4
        %v1553 = vrot.slane %v457, 5
        %v1554 = vsel %vm1410, %v1552, %v1553
        %v1555 = vrot.slane %v1553, 4
        %v1556 = vrot.slane %v458, 5
        %v1557 = vsel %vm1410, %v1555, %v1556
        %v1558 = vrot.slane %v1556, 4
        %v1559 = vrot.slane %v459, 5
        %v1560 = vsel %vm1410, %v1558, %v1559
        %v1561 = vrot.slane %v460, 5
        %v1562 = vrot.slane %v1561, 4
        %v1563 = vrot.slane %v461, 5
        %v1564 = vsel %vm1410, %v1562, %v1563
        %v1565 = vrot.slane %v1563, 4
        %v1566 = vrot.slane %v462, 5
        %v1567 = vsel %vm1410, %v1565, %v1566
        %v1568 = vrot.slane %v1566, 4
        %v1569 = vrot.slane %v463, 5
        %v1570 = vsel %vm1410, %v1568, %v1569
        %1619 = vst [vmem:[#allocation2 + $0x8] sm:$0xf] %v1414
        %1620 = vst [vmem:[#allocation2 + $0x14] sm:$0xf] %v1417
        %1621 = vst [vmem:[#allocation2 + $0x20] sm:$0xf] %v1420
        %1622 = vst [vmem:[#allocation2 + $0x2c] sm:$0xf] %v1424
        %1623 = vst [vmem:[#allocation2 + $0x38] sm:$0xf] %v1427
        %1624 = vst [vmem:[#allocation2 + $0x44] sm:$0xf] %v1430
        %1625 = vst [vmem:[#allocation2 + $0x50] sm:$0xf] %v1434
        %1626 = vst [vmem:[#allocation2 + $0x5c] sm:$0xf] %v1437
        %1627 = vst [vmem:[#allocation2 + $0x68] sm:$0xf] %v1440
        %1628 = vst [vmem:[#allocation2 + $0x74] sm:$0xf] %v1444
        %1629 = vst [vmem:[#allocation2 + $0x80] sm:$0xf] %v1447
        %1630 = vst [vmem:[#allocation2 + $0x8c] sm:$0xf] %v1450
        %1631 = vst [vmem:[#allocation2 + $0x98] sm:$0xf] %v1454
        %1632 = vst [vmem:[#allocation2 + $0xa4] sm:$0xf] %v1457
        %1633 = vst [vmem:[#allocation2 + $0xb0] sm:$0xf] %v1460
        %1634 = vst [vmem:[#allocation2 + $0xbc] sm:$0xf] %v1464
        %1635 = vst [vmem:[#allocation2 + $0xc8] sm:$0xf] %v1467
        %1636 = vst [vmem:[#allocation2 + $0xd4] sm:$0xf] %v1470
        %1637 = vst [vmem:[#allocation2 + $0xe0] sm:$0xf] %v1474
        %1638 = vst [vmem:[#allocation2 + $0xec] sm:$0xf] %v1477
        %1639 = vst [vmem:[#allocation2 + $0xf8] sm:$0xf] %v1480
        %1640 = vst [vmem:[#allocation2 + $0x104] sm:$0xf] %v1484
        %1641 = vst [vmem:[#allocation2 + $0x110] sm:$0xf] %v1487
        %1642 = vst [vmem:[#allocation2 + $0x11c] sm:$0xf] %v1490
        %1643 = vst [vmem:[#allocation2 + $0x128] sm:$0xf] %v1494
        %1644 = vst [vmem:[#allocation2 + $0x134] sm:$0xf] %v1497
        %1645 = vst [vmem:[#allocation2 + $0x140] sm:$0xf] %v1500
        %1646 = vst [vmem:[#allocation2 + $0x14c] sm:$0xf] %v1504
        %1647 = vst [vmem:[#allocation2 + $0x158] sm:$0xf] %v1507
        %1648 = vst [vmem:[#allocation2 + $0x164] sm:$0xf] %v1510
        %1649 = vst [vmem:[#allocation2 + $0x170] sm:$0xf] %v1514
        %1650 = vst [vmem:[#allocation2 + $0x17c] sm:$0xf] %v1517
        %1651 = vst [vmem:[#allocation2 + $0x188] sm:$0xf] %v1520
        %1652 = vst [vmem:[#allocation2 + $0x194] sm:$0xf] %v1524
        %1653 = vst [vmem:[#allocation2 + $0x1a0] sm:$0xf] %v1527
        %1654 = vst [vmem:[#allocation2 + $0x1ac] sm:$0xf] %v1530
        %1655 = vst [vmem:[#allocation2 + $0x1b8] sm:$0xf] %v1534
        %1656 = vst [vmem:[#allocation2 + $0x1c4] sm:$0xf] %v1537
        %1657 = vst [vmem:[#allocation2 + $0x1d0] sm:$0xf] %v1540
        %1658 = vst [vmem:[#allocation2 + $0x1dc] sm:$0xf] %v1544
        %1659 = vst [vmem:[#allocation2 + $0x1e8] sm:$0xf] %v1547
        %1660 = vst [vmem:[#allocation2 + $0x1f4] sm:$0xf] %v1550
        %1661 = vst [vmem:[#allocation2 + $0x200] sm:$0xf] %v1554
        %1662 = vst [vmem:[#allocation2 + $0x20c] sm:$0xf] %v1557
        %1663 = vst [vmem:[#allocation2 + $0x218] sm:$0xf] %v1560
        %1664 = vst [vmem:[#allocation2 + $0x224] sm:$0xf] %v1564
        %1665 = vst [vmem:[#allocation2 + $0x230] sm:$0xf] %v1567
        %1666 = vst [vmem:[#allocation2 + $0x23c] sm:$0xf] %v1570
        %v1683 = vrot.slane %v464, 5
        %v1684 = vrot.slane %v1683, 4
        %v1685 = vrot.slane %v465, 5
        %v1686 = vsel %vm1410, %v1684, %v1685
        %v1687 = vrot.slane %v1685, 4
        %v1688 = vrot.slane %v466, 5
        %v1689 = vsel %vm1410, %v1687, %v1688
        %v1690 = vrot.slane %v1688, 4
        %v1691 = vrot.slane %v467, 5
        %v1692 = vsel %vm1410, %v1690, %v1691
        %v1693 = vrot.slane %v468, 5
        %v1694 = vrot.slane %v1693, 4
        %v1695 = vrot.slane %v469, 5
        %v1696 = vsel %vm1410, %v1694, %v1695
        %v1697 = vrot.slane %v1695, 4
        %v1698 = vrot.slane %v470, 5
        %v1699 = vsel %vm1410, %v1697, %v1698
        %v1700 = vrot.slane %v1698, 4
        %v1701 = vrot.slane %v471, 5
        %v1702 = vsel %vm1410, %v1700, %v1701
        %v1703 = vrot.slane %v472, 5
        %v1704 = vrot.slane %v1703, 4
        %v1705 = vrot.slane %v473, 5
        %v1706 = vsel %vm1410, %v1704, %v1705
        %v1707 = vrot.slane %v1705, 4
        %v1708 = vrot.slane %v474, 5
        %v1709 = vsel %vm1410, %v1707, %v1708
        %v1710 = vrot.slane %v1708, 4
        %v1711 = vrot.slane %v475, 5
        %v1712 = vsel %vm1410, %v1710, %v1711
        %v1713 = vrot.slane %v476, 5
        %v1714 = vrot.slane %v1713, 4
        %v1715 = vrot.slane %v477, 5
        %v1716 = vsel %vm1410, %v1714, %v1715
        %v1717 = vrot.slane %v1715, 4
        %v1718 = vrot.slane %v478, 5
        %v1719 = vsel %vm1410, %v1717, %v1718
        %v1720 = vrot.slane %v1718, 4
        %v1721 = vrot.slane %v479, 5
        %v1722 = vsel %vm1410, %v1720, %v1721
        %1735 = vst [vmem:[%s528 + $0x8] sm:$0xf] %v1686
        %1736 = vst [vmem:[%s528 + $0x14] sm:$0xf] %v1689
        %1737 = vst [vmem:[%s528 + $0x20] sm:$0xf] %v1692
        %1738 = vst [vmem:[%s528 + $0x2c] sm:$0xf] %v1696
        %1739 = vst [vmem:[%s528 + $0x38] sm:$0xf] %v1699
        %1740 = vst [vmem:[%s528 + $0x44] sm:$0xf] %v1702
        %1741 = vst [vmem:[%s528 + $0x50] sm:$0xf] %v1706
        %1742 = vst [vmem:[%s528 + $0x5c] sm:$0xf] %v1709
        %1743 = vst [vmem:[%s528 + $0x68] sm:$0xf] %v1712
        %1744 = vst [vmem:[%s528 + $0x74] sm:$0xf] %v1716
        %1745 = vst [vmem:[%s528 + $0x80] sm:$0xf] %v1719
        %1746 = vst [vmem:[%s528 + $0x8c] sm:$0xf] %v1722
        %v1747 = vld [vmem:[#allocation2] sm:$0xff]
        %v1748 = vld [vmem:[#allocation2 + $0x8] sm:$0xf]
        %v1749 = vld [vmem:[#allocation2 + $0xc] sm:$0xff]
        %v1750 = vld [vmem:[#allocation2 + $0x14] sm:$0xf]
        %v1751 = vld [vmem:[#allocation2 + $0x18] sm:$0xff]
        %v1752 = vld [vmem:[#allocation2 + $0x20] sm:$0xf]
        %v1753 = vld [vmem:[#allocation2 + $0x24] sm:$0xff]
        %v1754 = vld [vmem:[#allocation2 + $0x2c] sm:$0xf]
        %v1755 = vld [vmem:[#allocation2 + $0x30] sm:$0xff]
        %v1756 = vld [vmem:[#allocation2 + $0x38] sm:$0xf]
        %v1757 = vld [vmem:[#allocation2 + $0x3c] sm:$0xff]
        %v1758 = vld [vmem:[#allocation2 + $0x44] sm:$0xf]
        %v1759 = vld [vmem:[#allocation2 + $0x48] sm:$0xff]
        %v1760 = vld [vmem:[#allocation2 + $0x50] sm:$0xf]
        %v1761 = vld [vmem:[#allocation2 + $0x54] sm:$0xff]
        %v1762 = vld [vmem:[#allocation2 + $0x5c] sm:$0xf]
        %v1763 = vld [vmem:[#allocation2 + $0x60] sm:$0xff]
        %v1764 = vld [vmem:[#allocation2 + $0x68] sm:$0xf]
        %v1765 = vld [vmem:[#allocation2 + $0x6c] sm:$0xff]
        %v1766 = vld [vmem:[#allocation2 + $0x74] sm:$0xf]
        %v1767 = vld [vmem:[#allocation2 + $0x78] sm:$0xff]
        %v1768 = vld [vmem:[#allocation2 + $0x80] sm:$0xf]
        %v1769 = vld [vmem:[#allocation2 + $0x84] sm:$0xff]
        %v1770 = vld [vmem:[#allocation2 + $0x8c] sm:$0xf]
        %v1771 = vld [vmem:[#allocation2 + $0x90] sm:$0xff]
        %v1772 = vld [vmem:[#allocation2 + $0x98] sm:$0xf]
        %v1773 = vld [vmem:[#allocation2 + $0x9c] sm:$0xff]
        %v1774 = vld [vmem:[#allocation2 + $0xa4] sm:$0xf]
        %v1775 = vld [vmem:[#allocation2 + $0xa8] sm:$0xff]
        %v1776 = vld [vmem:[#allocation2 + $0xb0] sm:$0xf]
        %v1777 = vld [vmem:[#allocation2 + $0xb4] sm:$0xff]
        %v1778 = vld [vmem:[#allocation2 + $0xbc] sm:$0xf]
        %v1779 = vld [vmem:[#allocation2 + $0xc0] sm:$0xff]
        %v1780 = vld [vmem:[#allocation2 + $0xc8] sm:$0xf]
        %v1781 = vld [vmem:[#allocation2 + $0xcc] sm:$0xff]
        %v1782 = vld [vmem:[#allocation2 + $0xd4] sm:$0xf]
        %v1783 = vld [vmem:[#allocation2 + $0xd8] sm:$0xff]
        %v1784 = vld [vmem:[#allocation2 + $0xe0] sm:$0xf]
        %v1785 = vld [vmem:[#allocation2 + $0xe4] sm:$0xff]
        %v1786 = vld [vmem:[#allocation2 + $0xec] sm:$0xf]
        %v1787 = vld [vmem:[#allocation2 + $0xf0] sm:$0xff]
        %v1788 = vld [vmem:[#allocation2 + $0xf8] sm:$0xf]
        %v1789 = vld [vmem:[#allocation2 + $0xfc] sm:$0xff]
        %v1790 = vld [vmem:[#allocation2 + $0x104] sm:$0xf]
        %v1791 = vld [vmem:[#allocation2 + $0x108] sm:$0xff]
        %v1792 = vld [vmem:[#allocation2 + $0x110] sm:$0xf]
        %v1793 = vld [vmem:[#allocation2 + $0x114] sm:$0xff]
        %v1794 = vld [vmem:[#allocation2 + $0x11c] sm:$0xf]
        %v1795 = vld [vmem:[#allocation2 + $0x120] sm:$0xff]
        %v1796 = vld [vmem:[#allocation2 + $0x128] sm:$0xf]
        %v1797 = vld [vmem:[#allocation2 + $0x12c] sm:$0xff]
        %v1798 = vld [vmem:[#allocation2 + $0x134] sm:$0xf]
        %v1799 = vld [vmem:[#allocation2 + $0x138] sm:$0xff]
        %v1800 = vld [vmem:[#allocation2 + $0x140] sm:$0xf]
        %v1801 = vld [vmem:[#allocation2 + $0x144] sm:$0xff]
        %v1802 = vld [vmem:[#allocation2 + $0x14c] sm:$0xf]
        %v1803 = vld [vmem:[#allocation2 + $0x150] sm:$0xff]
        %v1804 = vld [vmem:[#allocation2 + $0x158] sm:$0xf]
        %v1805 = vld [vmem:[#allocation2 + $0x15c] sm:$0xff]
        %v1806 = vld [vmem:[#allocation2 + $0x164] sm:$0xf]
        %v1807 = vld [vmem:[#allocation2 + $0x168] sm:$0xff]
        %v1808 = vld [vmem:[#allocation2 + $0x170] sm:$0xf]
        %v1809 = vld [vmem:[#allocation2 + $0x174] sm:$0xff]
        %v1810 = vld [vmem:[#allocation2 + $0x17c] sm:$0xf]
        %v1811 = vld [vmem:[#allocation2 + $0x180] sm:$0xff]
        %v1812 = vld [vmem:[#allocation2 + $0x188] sm:$0xf]
        %v1813 = vld [vmem:[#allocation2 + $0x18c] sm:$0xff]
        %v1814 = vld [vmem:[#allocation2 + $0x194] sm:$0xf]
        %v1815 = vld [vmem:[#allocation2 + $0x198] sm:$0xff]
        %v1816 = vld [vmem:[#allocation2 + $0x1a0] sm:$0xf]
        %v1817 = vld [vmem:[#allocation2 + $0x1a4] sm:$0xff]
        %v1818 = vld [vmem:[#allocation2 + $0x1ac] sm:$0xf]
        %v1819 = vld [vmem:[#allocation2 + $0x1b0] sm:$0xff]
        %v1820 = vld [vmem:[#allocation2 + $0x1b8] sm:$0xf]
        %v1821 = vld [vmem:[#allocation2 + $0x1bc] sm:$0xff]
        %v1822 = vld [vmem:[#allocation2 + $0x1c4] sm:$0xf]
        %v1823 = vld [vmem:[#allocation2 + $0x1c8] sm:$0xff]
        %v1824 = vld [vmem:[#allocation2 + $0x1d0] sm:$0xf]
        %v1825 = vld [vmem:[#allocation2 + $0x1d4] sm:$0xff]
        %v1826 = vld [vmem:[#allocation2 + $0x1dc] sm:$0xf]
        %v1827 = vld [vmem:[#allocation2 + $0x1e0] sm:$0xff]
        %v1828 = vld [vmem:[#allocation2 + $0x1e8] sm:$0xf]
        %v1829 = vld [vmem:[#allocation2 + $0x1ec] sm:$0xff]
        %v1830 = vld [vmem:[#allocation2 + $0x1f4] sm:$0xf]
        %v1831 = vld [vmem:[#allocation2 + $0x1f8] sm:$0xff]
        %v1832 = vld [vmem:[#allocation2 + $0x200] sm:$0xf]
        %v1833 = vld [vmem:[#allocation2 + $0x204] sm:$0xff]
        %v1834 = vld [vmem:[#allocation2 + $0x20c] sm:$0xf]
        %v1835 = vld [vmem:[#allocation2 + $0x210] sm:$0xff]
        %v1836 = vld [vmem:[#allocation2 + $0x218] sm:$0xf]
        %v1837 = vld [vmem:[#allocation2 + $0x21c] sm:$0xff]
        %v1838 = vld [vmem:[#allocation2 + $0x224] sm:$0xf]
        %v1839 = vld [vmem:[#allocation2 + $0x228] sm:$0xff]
        %v1840 = vld [vmem:[#allocation2 + $0x230] sm:$0xf]
        %v1841 = vld [vmem:[#allocation2 + $0x234] sm:$0xff]
        %v1842 = vld [vmem:[#allocation2 + $0x23c] sm:$0xf]
        %v1843 = vld [vmem:[#allocation2 + $0x240] sm:$0xff]
        %v1844 = vld [vmem:[#allocation2 + $0x248] sm:$0xf]
        %v1845 = vld [vmem:[#allocation2 + $0x24c] sm:$0xff]
        %v1846 = vld [vmem:[#allocation2 + $0x254] sm:$0xf]
        %v1847 = vld [vmem:[#allocation2 + $0x258] sm:$0xff]
        %v1848 = vld [vmem:[#allocation2 + $0x260] sm:$0xf]
        %v1849 = vld [vmem:[#allocation2 + $0x264] sm:$0xff]
        %v1850 = vld [vmem:[#allocation2 + $0x26c] sm:$0xf]
        %v1851 = vld [vmem:[#allocation2 + $0x270] sm:$0xff]
        %v1852 = vld [vmem:[#allocation2 + $0x278] sm:$0xf]
        %v1853 = vld [vmem:[#allocation2 + $0x27c] sm:$0xff]
        %v1854 = vld [vmem:[#allocation2 + $0x284] sm:$0xf]
        %v1855 = vld [vmem:[#allocation9] sm:$0xf]
        %v1856 = vld [vmem:[#allocation9 + $0x4] sm:$0xf]
        %v1857 = vld [vmem:[#allocation9 + $0x8] sm:$0xf]
        %v1858 = vld [vmem:[#allocation9 + $0xc] sm:$0xf]
        %v1859 = vld [vmem:[#allocation9 + $0x10] sm:$0xf]
        %v1860 = vld [vmem:[#allocation9 + $0x14] sm:$0xf]
        %v1861 = vld [vmem:[#allocation9 + $0x18] sm:$0xf]
        %v1862 = vld [vmem:[#allocation9 + $0x1c] sm:$0xf]
        %v1863 = vld [vmem:[#allocation9 + $0x20] sm:$0xf]
        %v1864 = vld [vmem:[#allocation9 + $0x24] sm:$0xf]
        %v1865 = vld [vmem:[#allocation9 + $0x28] sm:$0xf]
        %v1866 = vld [vmem:[#allocation9 + $0x2c] sm:$0xf]
        %v1867 = vld [vmem:[#allocation9 + $0x30] sm:$0xf]
        %v1868 = vld [vmem:[#allocation9 + $0x34] sm:$0xf]
        %v1869 = vld [vmem:[#allocation9 + $0x38] sm:$0xf]
        %v1870 = vld [vmem:[#allocation9 + $0x3c] sm:$0xf]
        %v1871 = vld [vmem:[#allocation9 + $0x40] sm:$0xf]
        %v1872 = vld [vmem:[#allocation9 + $0x44] sm:$0xf]
        %v1873 = vld [vmem:[#allocation9 + $0x48] sm:$0xf]
        %v1874 = vld [vmem:[#allocation9 + $0x4c] sm:$0xf]
        %v1875 = vld [vmem:[#allocation9 + $0x50] sm:$0xf]
        %v1876 = vld [vmem:[#allocation9 + $0x54] sm:$0xf]
        %v1877 = vld [vmem:[#allocation9 + $0x58] sm:$0xf]
        %v1878 = vld [vmem:[#allocation9 + $0x5c] sm:$0xf]
        %v1879 = vld [vmem:[#allocation9 + $0x60] sm:$0xf]
        %v1880 = vld [vmem:[#allocation9 + $0x64] sm:$0xf]
        %v1881 = vld [vmem:[#allocation9 + $0x68] sm:$0xf]
        %v1882 = vld [vmem:[#allocation9 + $0x6c] sm:$0xf]
        %v1883 = vld [vmem:[#allocation9 + $0x70] sm:$0xf]
        %v1884 = vld [vmem:[#allocation9 + $0x74] sm:$0xf]
        %v1885 = vld [vmem:[#allocation9 + $0x78] sm:$0xf]
        %v1886 = vld [vmem:[#allocation9 + $0x7c] sm:$0xf]
        %v1887 = vld [vmem:[#allocation9 + $0x80] sm:$0xf]
        %v1888 = vld [vmem:[#allocation9 + $0x84] sm:$0xf]
        %v1889 = vld [vmem:[#allocation9 + $0x88] sm:$0xf]
        %v1890 = vld [vmem:[#allocation9 + $0x8c] sm:$0xf]
        %v1891 = vld [vmem:[#allocation9 + $0x90] sm:$0xf]
        %v1892 = vld [vmem:[#allocation9 + $0x94] sm:$0xf]
        %v1893 = vld [vmem:[#allocation9 + $0x98] sm:$0xf]
        %v1894 = vld [vmem:[#allocation9 + $0x9c] sm:$0xf]
        %v1895 = vld [vmem:[#allocation9 + $0xa0] sm:$0xf]
        %v1896 = vld [vmem:[#allocation9 + $0xa4] sm:$0xf]
        %v1897 = vld [vmem:[#allocation9 + $0xa8] sm:$0xf]
        %v1898 = vld [vmem:[#allocation9 + $0xac] sm:$0xf]
        %v1899 = vld [vmem:[#allocation9 + $0xb0] sm:$0xf]
        %v1900 = vld [vmem:[#allocation9 + $0xb4] sm:$0xf]
        %v1901 = vld [vmem:[#allocation9 + $0xb8] sm:$0xf]
        %v1902 = vld [vmem:[#allocation9 + $0xbc] sm:$0xf]
        %s1903 = scalar_lea.vmem [#allocation2], 36
        %v1904 = vld [vmem:[%s1903] sm:$0xff]
        %v1905 = vld [vmem:[%s1903 + $0x8] sm:$0xf]
        %v1906 = vld [vmem:[%s1903 + $0xc] sm:$0xff]
        %v1907 = vld [vmem:[%s1903 + $0x14] sm:$0xf]
        %v1908 = vld [vmem:[%s1903 + $0x18] sm:$0xff]
        %v1909 = vld [vmem:[%s1903 + $0x20] sm:$0xf]
        %v1910 = vld [vmem:[%s1903 + $0x24] sm:$0xff]
        %v1911 = vld [vmem:[%s1903 + $0x2c] sm:$0xf]
        %v1912 = vld [vmem:[%s1903 + $0x30] sm:$0xff]
        %v1913 = vld [vmem:[%s1903 + $0x38] sm:$0xf]
        %v1914 = vld [vmem:[%s1903 + $0x3c] sm:$0xff]
        %v1915 = vld [vmem:[%s1903 + $0x44] sm:$0xf]
        %v1916 = vld [vmem:[%s1903 + $0x48] sm:$0xff]
        %v1917 = vld [vmem:[%s1903 + $0x50] sm:$0xf]
        %v1918 = vld [vmem:[%s1903 + $0x54] sm:$0xff]
        %v1919 = vld [vmem:[%s1903 + $0x5c] sm:$0xf]
        %v1920 = vld [vmem:[%s1903 + $0x60] sm:$0xff]
        %v1921 = vld [vmem:[%s1903 + $0x68] sm:$0xf]
        %v1922 = vld [vmem:[%s1903 + $0x6c] sm:$0xff]
        %v1923 = vld [vmem:[%s1903 + $0x74] sm:$0xf]
        %v1924 = vld [vmem:[%s1903 + $0x78] sm:$0xff]
        %v1925 = vld [vmem:[%s1903 + $0x80] sm:$0xf]
        %v1926 = vld [vmem:[%s1903 + $0x84] sm:$0xff]
        %v1927 = vld [vmem:[%s1903 + $0x8c] sm:$0xf]
        %v1928 = vld [vmem:[%s1903 + $0x90] sm:$0xff]
        %v1929 = vld [vmem:[%s1903 + $0x98] sm:$0xf]
        %v1930 = vld [vmem:[%s1903 + $0x9c] sm:$0xff]
        %v1931 = vld [vmem:[%s1903 + $0xa4] sm:$0xf]
        %v1932 = vld [vmem:[%s1903 + $0xa8] sm:$0xff]
        %v1933 = vld [vmem:[%s1903 + $0xb0] sm:$0xf]
        %v1934 = vld [vmem:[%s1903 + $0xb4] sm:$0xff]
        %v1935 = vld [vmem:[%s1903 + $0xbc] sm:$0xf]
        %v1936 = vld [vmem:[%s1903 + $0xc0] sm:$0xff]
        %v1937 = vld [vmem:[%s1903 + $0xc8] sm:$0xf]
        %v1938 = vld [vmem:[%s1903 + $0xcc] sm:$0xff]
        %v1939 = vld [vmem:[%s1903 + $0xd4] sm:$0xf]
        %v1940 = vld [vmem:[%s1903 + $0xd8] sm:$0xff]
        %v1941 = vld [vmem:[%s1903 + $0xe0] sm:$0xf]
        %v1942 = vld [vmem:[%s1903 + $0xe4] sm:$0xff]
        %v1943 = vld [vmem:[%s1903 + $0xec] sm:$0xf]
        %v1944 = vld [vmem:[%s1903 + $0xf0] sm:$0xff]
        %v1945 = vld [vmem:[%s1903 + $0xf8] sm:$0xf]
        %v1946 = vld [vmem:[%s1903 + $0xfc] sm:$0xff]
        %v1947 = vld [vmem:[%s1903 + $0x104] sm:$0xf]
        %v1948 = vld [vmem:[%s1903 + $0x108] sm:$0xff]
        %v1949 = vld [vmem:[%s1903 + $0x110] sm:$0xf]
        %v1950 = vld [vmem:[%s1903 + $0x114] sm:$0xff]
        %v1951 = vld [vmem:[%s1903 + $0x11c] sm:$0xf]
        %v1952 = vld [vmem:[%s1903 + $0x120] sm:$0xff]
        %v1953 = vld [vmem:[%s1903 + $0x128] sm:$0xf]
        %v1954 = vld [vmem:[%s1903 + $0x12c] sm:$0xff]
        %v1955 = vld [vmem:[%s1903 + $0x134] sm:$0xf]
        %v1956 = vld [vmem:[%s1903 + $0x138] sm:$0xff]
        %v1957 = vld [vmem:[%s1903 + $0x140] sm:$0xf]
        %v1958 = vld [vmem:[%s1903 + $0x144] sm:$0xff]
        %v1959 = vld [vmem:[%s1903 + $0x14c] sm:$0xf]
        %v1960 = vld [vmem:[%s1903 + $0x150] sm:$0xff]
        %v1961 = vld [vmem:[%s1903 + $0x158] sm:$0xf]
        %v1962 = vld [vmem:[%s1903 + $0x15c] sm:$0xff]
        %v1963 = vld [vmem:[%s1903 + $0x164] sm:$0xf]
        %v1964 = vld [vmem:[%s1903 + $0x168] sm:$0xff]
        %v1965 = vld [vmem:[%s1903 + $0x170] sm:$0xf]
        %v1966 = vld [vmem:[%s1903 + $0x174] sm:$0xff]
        %v1967 = vld [vmem:[%s1903 + $0x17c] sm:$0xf]
        %v1968 = vld [vmem:[%s1903 + $0x180] sm:$0xff]
        %v1969 = vld [vmem:[%s1903 + $0x188] sm:$0xf]
        %v1970 = vld [vmem:[%s1903 + $0x18c] sm:$0xff]
        %v1971 = vld [vmem:[%s1903 + $0x194] sm:$0xf]
        %v1972 = vld [vmem:[%s1903 + $0x198] sm:$0xff]
        %v1973 = vld [vmem:[%s1903 + $0x1a0] sm:$0xf]
        %v1974 = vld [vmem:[%s1903 + $0x1a4] sm:$0xff]
        %v1975 = vld [vmem:[%s1903 + $0x1ac] sm:$0xf]
        %v1976 = vld [vmem:[%s1903 + $0x1b0] sm:$0xff]
        %v1977 = vld [vmem:[%s1903 + $0x1b8] sm:$0xf]
        %v1978 = vld [vmem:[%s1903 + $0x1bc] sm:$0xff]
        %v1979 = vld [vmem:[%s1903 + $0x1c4] sm:$0xf]
        %v1980 = vld [vmem:[%s1903 + $0x1c8] sm:$0xff]
        %v1981 = vld [vmem:[%s1903 + $0x1d0] sm:$0xf]
        %v1982 = vld [vmem:[%s1903 + $0x1d4] sm:$0xff]
        %v1983 = vld [vmem:[%s1903 + $0x1dc] sm:$0xf]
        %v1984 = vld [vmem:[%s1903 + $0x1e0] sm:$0xff]
        %v1985 = vld [vmem:[%s1903 + $0x1e8] sm:$0xf]
        %v1986 = vld [vmem:[%s1903 + $0x1ec] sm:$0xff]
        %v1987 = vld [vmem:[%s1903 + $0x1f4] sm:$0xf]
        %v1988 = vld [vmem:[%s1903 + $0x1f8] sm:$0xff]
        %v1989 = vld [vmem:[%s1903 + $0x200] sm:$0xf]
        %v1990 = vld [vmem:[%s1903 + $0x204] sm:$0xff]
        %v1991 = vld [vmem:[%s1903 + $0x20c] sm:$0xf]
        %v1992 = vld [vmem:[%s1903 + $0x210] sm:$0xff]
        %v1993 = vld [vmem:[%s1903 + $0x218] sm:$0xf]
        %v1994 = vld [vmem:[%s1903 + $0x21c] sm:$0xff]
        %v1995 = vld [vmem:[%s1903 + $0x224] sm:$0xf]
        %v1996 = vld [vmem:[%s1903 + $0x228] sm:$0xff]
        %v1997 = vld [vmem:[%s1903 + $0x230] sm:$0xf]
        %v1998 = vld [vmem:[%s1903 + $0x234] sm:$0xff]
        %v1999 = vld [vmem:[%s1903 + $0x23c] sm:$0xf]
        %v2000 = vld [vmem:[%s1903 + $0x240] sm:$0xff]
        %v2001 = vld [vmem:[%s1903 + $0x248] sm:$0xf]
        %v2002 = vld [vmem:[%s1903 + $0x24c] sm:$0xff]
        %v2003 = vld [vmem:[%s1903 + $0x254] sm:$0xf]
        %v2004 = vld [vmem:[%s1903 + $0x258] sm:$0xff]
        %v2005 = vld [vmem:[%s1903 + $0x260] sm:$0xf]
        %v2006 = vld [vmem:[%s1903 + $0x264] sm:$0xff]
        %v2007 = vld [vmem:[%s1903 + $0x26c] sm:$0xf]
        %v2008 = vld [vmem:[%s1903 + $0x270] sm:$0xff]
        %v2009 = vld [vmem:[%s1903 + $0x278] sm:$0xf]
        %v2010 = vld [vmem:[%s1903 + $0x27c] sm:$0xff]
        %v2011 = vld [vmem:[%s1903 + $0x284] sm:$0xf]
        %s2012 = scalar_lea.vmem [#allocation9], 192
        %v2013 = vld [vmem:[%s2012] sm:$0xf]
        %v2014 = vld [vmem:[%s2012 + $0x4] sm:$0xf]
        %v2015 = vld [vmem:[%s2012 + $0x8] sm:$0xf]
        %v2016 = vld [vmem:[%s2012 + $0xc] sm:$0xf]
        %v2017 = vld [vmem:[%s2012 + $0x10] sm:$0xf]
        %v2018 = vld [vmem:[%s2012 + $0x14] sm:$0xf]
        %v2019 = vld [vmem:[%s2012 + $0x18] sm:$0xf]
        %v2020 = vld [vmem:[%s2012 + $0x1c] sm:$0xf]
        %v2021 = vld [vmem:[%s2012 + $0x20] sm:$0xf]
        %v2022 = vld [vmem:[%s2012 + $0x24] sm:$0xf]
        %v2023 = vld [vmem:[%s2012 + $0x28] sm:$0xf]
        %v2024 = vld [vmem:[%s2012 + $0x2c] sm:$0xf]
        %v2025 = vld [vmem:[%s2012 + $0x30] sm:$0xf]
        %v2026 = vld [vmem:[%s2012 + $0x34] sm:$0xf]
        %v2027 = vld [vmem:[%s2012 + $0x38] sm:$0xf]
        %v2028 = vld [vmem:[%s2012 + $0x3c] sm:$0xf]
        %v2029 = vld [vmem:[%s2012 + $0x40] sm:$0xf]
        %v2030 = vld [vmem:[%s2012 + $0x44] sm:$0xf]
        %v2031 = vld [vmem:[%s2012 + $0x48] sm:$0xf]
        %v2032 = vld [vmem:[%s2012 + $0x4c] sm:$0xf]
        %v2033 = vld [vmem:[%s2012 + $0x50] sm:$0xf]
        %v2034 = vld [vmem:[%s2012 + $0x54] sm:$0xf]
        %v2035 = vld [vmem:[%s2012 + $0x58] sm:$0xf]
        %v2036 = vld [vmem:[%s2012 + $0x5c] sm:$0xf]
        %v2037 = vld [vmem:[%s2012 + $0x60] sm:$0xf]
        %v2038 = vld [vmem:[%s2012 + $0x64] sm:$0xf]
        %v2039 = vld [vmem:[%s2012 + $0x68] sm:$0xf]
        %v2040 = vld [vmem:[%s2012 + $0x6c] sm:$0xf]
        %v2041 = vld [vmem:[%s2012 + $0x70] sm:$0xf]
        %v2042 = vld [vmem:[%s2012 + $0x74] sm:$0xf]
        %v2043 = vld [vmem:[%s2012 + $0x78] sm:$0xf]
        %v2044 = vld [vmem:[%s2012 + $0x7c] sm:$0xf]
        %v2045 = vld [vmem:[%s2012 + $0x80] sm:$0xf]
        %v2046 = vld [vmem:[%s2012 + $0x84] sm:$0xf]
        %v2047 = vld [vmem:[%s2012 + $0x88] sm:$0xf]
        %v2048 = vld [vmem:[%s2012 + $0x8c] sm:$0xf]
        %v2049 = vld [vmem:[%s2012 + $0x90] sm:$0xf]
        %v2050 = vld [vmem:[%s2012 + $0x94] sm:$0xf]
        %v2051 = vld [vmem:[%s2012 + $0x98] sm:$0xf]
        %v2052 = vld [vmem:[%s2012 + $0x9c] sm:$0xf]
        %v2053 = vld [vmem:[%s2012 + $0xa0] sm:$0xf]
        %v2054 = vld [vmem:[%s2012 + $0xa4] sm:$0xf]
        %v2055 = vld [vmem:[%s2012 + $0xa8] sm:$0xf]
        %v2056 = vld [vmem:[%s2012 + $0xac] sm:$0xf]
        %v2057 = vld [vmem:[%s2012 + $0xb0] sm:$0xf]
        %v2058 = vld [vmem:[%s2012 + $0xb4] sm:$0xf]
        %v2059 = vld [vmem:[%s2012 + $0xb8] sm:$0xf]
        %v2060 = vld [vmem:[%s2012 + $0xbc] sm:$0xf]
        %v2169 = vunpack.c.l.b16 %v1904
        %v2170 = vunpack.c.h.b16 %v1904
        %v2171 = vunpack.c.l.b16 %v1905
        %v2172 = vunpack.c.l.b16 %v1906
        %v2173 = vunpack.c.h.b16 %v1906
        %v2174 = vunpack.c.l.b16 %v1907
        %v2175 = vunpack.c.l.b16 %v1908
        %v2176 = vunpack.c.h.b16 %v1908
        %v2177 = vunpack.c.l.b16 %v1909
        %v2178 = vunpack.c.l.b16 %v1910
        %v2179 = vunpack.c.h.b16 %v1910
        %v2180 = vunpack.c.l.b16 %v1911
        %v2181 = vunpack.c.l.b16 %v1912
        %v2182 = vunpack.c.h.b16 %v1912
        %v2183 = vunpack.c.l.b16 %v1913
        %v2184 = vunpack.c.l.b16 %v1914
        %v2185 = vunpack.c.h.b16 %v1914
        %v2186 = vunpack.c.l.b16 %v1915
        %v2187 = vunpack.c.l.b16 %v1916
        %v2188 = vunpack.c.h.b16 %v1916
        %v2189 = vunpack.c.l.b16 %v1917
        %v2190 = vunpack.c.l.b16 %v1918
        %v2191 = vunpack.c.h.b16 %v1918
        %v2192 = vunpack.c.l.b16 %v1919
        %v2193 = vunpack.c.l.b16 %v1920
        %v2194 = vunpack.c.h.b16 %v1920
        %v2195 = vunpack.c.l.b16 %v1921
        %v2196 = vunpack.c.l.b16 %v1922
        %v2197 = vunpack.c.h.b16 %v1922
        %v2198 = vunpack.c.l.b16 %v1923
        %v2199 = vunpack.c.l.b16 %v1924
        %v2200 = vunpack.c.h.b16 %v1924
        %v2201 = vunpack.c.l.b16 %v1925
        %v2202 = vunpack.c.l.b16 %v1926
        %v2203 = vunpack.c.h.b16 %v1926
        %v2204 = vunpack.c.l.b16 %v1927
        %v2205 = vunpack.c.l.b16 %v1928
        %v2206 = vunpack.c.h.b16 %v1928
        %v2207 = vunpack.c.l.b16 %v1929
        %v2208 = vunpack.c.l.b16 %v1930
        %v2209 = vunpack.c.h.b16 %v1930
        %v2210 = vunpack.c.l.b16 %v1931
        %v2211 = vunpack.c.l.b16 %v1932
        %v2212 = vunpack.c.h.b16 %v1932
        %v2213 = vunpack.c.l.b16 %v1933
        %v2214 = vunpack.c.l.b16 %v1934
        %v2215 = vunpack.c.h.b16 %v1934
        %v2216 = vunpack.c.l.b16 %v1935
        %v2217 = vunpack.c.l.b16 %v1936
        %v2218 = vunpack.c.h.b16 %v1936
        %v2219 = vunpack.c.l.b16 %v1937
        %v2220 = vunpack.c.l.b16 %v1938
        %v2221 = vunpack.c.h.b16 %v1938
        %v2222 = vunpack.c.l.b16 %v1939
        %v2223 = vunpack.c.l.b16 %v1940
        %v2224 = vunpack.c.h.b16 %v1940
        %v2225 = vunpack.c.l.b16 %v1941
        %v2226 = vunpack.c.l.b16 %v1942
        %v2227 = vunpack.c.h.b16 %v1942
        %v2228 = vunpack.c.l.b16 %v1943
        %v2229 = vunpack.c.l.b16 %v1944
        %v2230 = vunpack.c.h.b16 %v1944
        %v2231 = vunpack.c.l.b16 %v1945
        %v2232 = vunpack.c.l.b16 %v1946
        %v2233 = vunpack.c.h.b16 %v1946
        %v2234 = vunpack.c.l.b16 %v1947
        %v2235 = vunpack.c.l.b16 %v1948
        %v2236 = vunpack.c.h.b16 %v1948
        %v2237 = vunpack.c.l.b16 %v1949
        %v2238 = vunpack.c.l.b16 %v1950
        %v2239 = vunpack.c.h.b16 %v1950
        %v2240 = vunpack.c.l.b16 %v1951
        %v2241 = vunpack.c.l.b16 %v1952
        %v2242 = vunpack.c.h.b16 %v1952
        %v2243 = vunpack.c.l.b16 %v1953
        %v2244 = vunpack.c.l.b16 %v1954
        %v2245 = vunpack.c.h.b16 %v1954
        %v2246 = vunpack.c.l.b16 %v1955
        %v2247 = vunpack.c.l.b16 %v1956
        %v2248 = vunpack.c.h.b16 %v1956
        %v2249 = vunpack.c.l.b16 %v1957
        %v2250 = vunpack.c.l.b16 %v1958
        %v2251 = vunpack.c.h.b16 %v1958
        %v2252 = vunpack.c.l.b16 %v1959
        %v2253 = vunpack.c.l.b16 %v1960
        %v2254 = vunpack.c.h.b16 %v1960
        %v2255 = vunpack.c.l.b16 %v1961
        %v2256 = vunpack.c.l.b16 %v1962
        %v2257 = vunpack.c.h.b16 %v1962
        %v2258 = vunpack.c.l.b16 %v1963
        %v2259 = vunpack.c.l.b16 %v1964
        %v2260 = vunpack.c.h.b16 %v1964
        %v2261 = vunpack.c.l.b16 %v1965
        %v2262 = vunpack.c.l.b16 %v1966
        %v2263 = vunpack.c.h.b16 %v1966
        %v2264 = vunpack.c.l.b16 %v1967
        %v2265 = vunpack.c.l.b16 %v1968
        %v2266 = vunpack.c.h.b16 %v1968
        %v2267 = vunpack.c.l.b16 %v1969
        %v2268 = vunpack.c.l.b16 %v1970
        %v2269 = vunpack.c.h.b16 %v1970
        %v2270 = vunpack.c.l.b16 %v1971
        %v2271 = vunpack.c.l.b16 %v1972
        %v2272 = vunpack.c.h.b16 %v1972
        %v2273 = vunpack.c.l.b16 %v1973
        %v2274 = vunpack.c.l.b16 %v1974
        %v2275 = vunpack.c.h.b16 %v1974
        %v2276 = vunpack.c.l.b16 %v1975
        %v2277 = vunpack.c.l.b16 %v1976
        %v2278 = vunpack.c.h.b16 %v1976
        %v2279 = vunpack.c.l.b16 %v1977
        %v2280 = vunpack.c.l.b16 %v1978
        %v2281 = vunpack.c.h.b16 %v1978
        %v2282 = vunpack.c.l.b16 %v1979
        %v2283 = vunpack.c.l.b16 %v1980
        %v2284 = vunpack.c.h.b16 %v1980
        %v2285 = vunpack.c.l.b16 %v1981
        %v2286 = vunpack.c.l.b16 %v1982
        %v2287 = vunpack.c.h.b16 %v1982
        %v2288 = vunpack.c.l.b16 %v1983
        %v2289 = vunpack.c.l.b16 %v1984
        %v2290 = vunpack.c.h.b16 %v1984
        %v2291 = vunpack.c.l.b16 %v1985
        %v2292 = vunpack.c.l.b16 %v1986
        %v2293 = vunpack.c.h.b16 %v1986
        %v2294 = vunpack.c.l.b16 %v1987
        %v2295 = vunpack.c.l.b16 %v1988
        %v2296 = vunpack.c.h.b16 %v1988
        %v2297 = vunpack.c.l.b16 %v1989
        %v2298 = vunpack.c.l.b16 %v1990
        %v2299 = vunpack.c.h.b16 %v1990
        %v2300 = vunpack.c.l.b16 %v1991
        %v2301 = vunpack.c.l.b16 %v1992
        %v2302 = vunpack.c.h.b16 %v1992
        %v2303 = vunpack.c.l.b16 %v1993
        %v2304 = vunpack.c.l.b16 %v1994
        %v2305 = vunpack.c.h.b16 %v1994
        %v2306 = vunpack.c.l.b16 %v1995
        %v2307 = vunpack.c.l.b16 %v1996
        %v2308 = vunpack.c.h.b16 %v1996
        %v2309 = vunpack.c.l.b16 %v1997
        %v2310 = vunpack.c.l.b16 %v1998
        %v2311 = vunpack.c.h.b16 %v1998
        %v2312 = vunpack.c.l.b16 %v1999
        %v2313 = vunpack.c.l.b16 %v2000
        %v2314 = vunpack.c.h.b16 %v2000
        %v2315 = vunpack.c.l.b16 %v2001
        %v2316 = vunpack.c.l.b16 %v2002
        %v2317 = vunpack.c.h.b16 %v2002
        %v2318 = vunpack.c.l.b16 %v2003
        %v2319 = vunpack.c.l.b16 %v2004
        %v2320 = vunpack.c.h.b16 %v2004
        %v2321 = vunpack.c.l.b16 %v2005
        %v2322 = vunpack.c.l.b16 %v2006
        %v2323 = vunpack.c.h.b16 %v2006
        %v2324 = vunpack.c.l.b16 %v2007
        %v2325 = vunpack.c.l.b16 %v2008
        %v2326 = vunpack.c.h.b16 %v2008
        %v2327 = vunpack.c.l.b16 %v2009
        %v2328 = vunpack.c.l.b16 %v2010
        %v2329 = vunpack.c.h.b16 %v2010
        %v2330 = vunpack.c.l.b16 %v2011
        %v2331 = vpack.c.b16 %v2172, %v2169
        %v2332 = vpack.c.b16 %v2173, %v2170
        %v2333 = vpack.c.b16 %v2174, %v2171
        %v2334 = vpack.c.b16 %v2178, %v2175
        %v2335 = vpack.c.b16 %v2179, %v2176
        %v2336 = vpack.c.b16 %v2180, %v2177
        %v2337 = vpack.c.b16 %v2184, %v2181
        %v2338 = vpack.c.b16 %v2185, %v2182
        %v2339 = vpack.c.b16 %v2186, %v2183
        %v2340 = vpack.c.b16 %v2190, %v2187
        %v2341 = vpack.c.b16 %v2191, %v2188
        %v2342 = vpack.c.b16 %v2192, %v2189
        %v2343 = vpack.c.b16 %v2196, %v2193
        %v2344 = vpack.c.b16 %v2197, %v2194
        %v2345 = vpack.c.b16 %v2198, %v2195
        %v2346 = vpack.c.b16 %v2202, %v2199
        %v2347 = vpack.c.b16 %v2203, %v2200
        %v2348 = vpack.c.b16 %v2204, %v2201
        %v2349 = vpack.c.b16 %v2208, %v2205
        %v2350 = vpack.c.b16 %v2209, %v2206
        %v2351 = vpack.c.b16 %v2210, %v2207
        %v2352 = vpack.c.b16 %v2214, %v2211
        %v2353 = vpack.c.b16 %v2215, %v2212
        %v2354 = vpack.c.b16 %v2216, %v2213
        %v2355 = vpack.c.b16 %v2220, %v2217
        %v2356 = vpack.c.b16 %v2221, %v2218
        %v2357 = vpack.c.b16 %v2222, %v2219
        %v2358 = vpack.c.b16 %v2226, %v2223
        %v2359 = vpack.c.b16 %v2227, %v2224
        %v2360 = vpack.c.b16 %v2228, %v2225
        %v2361 = vpack.c.b16 %v2232, %v2229
        %v2362 = vpack.c.b16 %v2233, %v2230
        %v2363 = vpack.c.b16 %v2234, %v2231
        %v2364 = vpack.c.b16 %v2238, %v2235
        %v2365 = vpack.c.b16 %v2239, %v2236
        %v2366 = vpack.c.b16 %v2240, %v2237
        %v2367 = vpack.c.b16 %v2244, %v2241
        %v2368 = vpack.c.b16 %v2245, %v2242
        %v2369 = vpack.c.b16 %v2246, %v2243
        %v2370 = vpack.c.b16 %v2250, %v2247
        %v2371 = vpack.c.b16 %v2251, %v2248
        %v2372 = vpack.c.b16 %v2252, %v2249
        %v2373 = vpack.c.b16 %v2256, %v2253
        %v2374 = vpack.c.b16 %v2257, %v2254
        %v2375 = vpack.c.b16 %v2258, %v2255
        %v2376 = vpack.c.b16 %v2262, %v2259
        %v2377 = vpack.c.b16 %v2263, %v2260
        %v2378 = vpack.c.b16 %v2264, %v2261
        %v2379 = vpack.c.b16 %v2268, %v2265
        %v2380 = vpack.c.b16 %v2269, %v2266
        %v2381 = vpack.c.b16 %v2270, %v2267
        %v2382 = vpack.c.b16 %v2274, %v2271
        %v2383 = vpack.c.b16 %v2275, %v2272
        %v2384 = vpack.c.b16 %v2276, %v2273
        %v2385 = vpack.c.b16 %v2280, %v2277
        %v2386 = vpack.c.b16 %v2281, %v2278
        %v2387 = vpack.c.b16 %v2282, %v2279
        %v2388 = vpack.c.b16 %v2286, %v2283
        %v2389 = vpack.c.b16 %v2287, %v2284
        %v2390 = vpack.c.b16 %v2288, %v2285
        %v2391 = vpack.c.b16 %v2292, %v2289
        %v2392 = vpack.c.b16 %v2293, %v2290
        %v2393 = vpack.c.b16 %v2294, %v2291
        %v2394 = vpack.c.b16 %v2298, %v2295
        %v2395 = vpack.c.b16 %v2299, %v2296
        %v2396 = vpack.c.b16 %v2300, %v2297
        %v2397 = vpack.c.b16 %v2304, %v2301
        %v2398 = vpack.c.b16 %v2305, %v2302
        %v2399 = vpack.c.b16 %v2306, %v2303
        %v2400 = vpack.c.b16 %v2310, %v2307
        %v2401 = vpack.c.b16 %v2311, %v2308
        %v2402 = vpack.c.b16 %v2312, %v2309
        %v2403 = vpack.c.b16 %v2316, %v2313
        %v2404 = vpack.c.b16 %v2317, %v2314
        %v2405 = vpack.c.b16 %v2318, %v2315
        %v2406 = vpack.c.b16 %v2322, %v2319
        %v2407 = vpack.c.b16 %v2323, %v2320
        %v2408 = vpack.c.b16 %v2324, %v2321
        %v2409 = vpack.c.b16 %v2328, %v2325
        %v2410 = vpack.c.b16 %v2329, %v2326
        %v2411 = vpack.c.b16 %v2330, %v2327
        %v2541 = vunpack.c.l.b16 %v2013
        %v2542 = vunpack.c.l.b16 %v2014
        %v2543 = vunpack.c.l.b16 %v2015
        %v2544 = vunpack.c.l.b16 %v2016
        %v2545 = vunpack.c.l.b16 %v2017
        %v2546 = vunpack.c.l.b16 %v2018
        %v2547 = vunpack.c.l.b16 %v2019
        %v2548 = vunpack.c.l.b16 %v2020
        %v2549 = vunpack.c.l.b16 %v2021
        %v2550 = vunpack.c.l.b16 %v2022
        %v2551 = vunpack.c.l.b16 %v2023
        %v2552 = vunpack.c.l.b16 %v2024
        %v2553 = vunpack.c.l.b16 %v2025
        %v2554 = vunpack.c.l.b16 %v2026
        %v2555 = vunpack.c.l.b16 %v2027
        %v2556 = vunpack.c.l.b16 %v2028
        %v2557 = vunpack.c.l.b16 %v2029
        %v2558 = vunpack.c.l.b16 %v2030
        %v2559 = vunpack.c.l.b16 %v2031
        %v2560 = vunpack.c.l.b16 %v2032
        %v2561 = vunpack.c.l.b16 %v2033
        %v2562 = vunpack.c.l.b16 %v2034
        %v2563 = vunpack.c.l.b16 %v2035
        %v2564 = vunpack.c.l.b16 %v2036
        %v2565 = vunpack.c.l.b16 %v2037
        %v2566 = vunpack.c.l.b16 %v2038
        %v2567 = vunpack.c.l.b16 %v2039
        %v2568 = vunpack.c.l.b16 %v2040
        %v2569 = vunpack.c.l.b16 %v2041
        %v2570 = vunpack.c.l.b16 %v2042
        %v2571 = vunpack.c.l.b16 %v2043
        %v2572 = vunpack.c.l.b16 %v2044
        %v2573 = vunpack.c.l.b16 %v2045
        %v2574 = vunpack.c.l.b16 %v2046
        %v2575 = vunpack.c.l.b16 %v2047
        %v2576 = vunpack.c.l.b16 %v2048
        %v2577 = vunpack.c.l.b16 %v2049
        %v2578 = vunpack.c.l.b16 %v2050
        %v2579 = vunpack.c.l.b16 %v2051
        %v2580 = vunpack.c.l.b16 %v2052
        %v2581 = vunpack.c.l.b16 %v2053
        %v2582 = vunpack.c.l.b16 %v2054
        %v2583 = vunpack.c.l.b16 %v2055
        %v2584 = vunpack.c.l.b16 %v2056
        %v2585 = vunpack.c.l.b16 %v2057
        %v2586 = vunpack.c.l.b16 %v2058
        %v2587 = vunpack.c.l.b16 %v2059
        %v2588 = vunpack.c.l.b16 %v2060
        %v2589 = vpack.c.b16 %v2542, %v2541
        %v2590 = vpack.c.b16 %v2544, %v2543
        %v2591 = vpack.c.b16 %v2546, %v2545
        %v2592 = vpack.c.b16 %v2548, %v2547
        %v2593 = vpack.c.b16 %v2550, %v2549
        %v2594 = vpack.c.b16 %v2552, %v2551
        %v2595 = vpack.c.b16 %v2554, %v2553
        %v2596 = vpack.c.b16 %v2556, %v2555
        %v2597 = vpack.c.b16 %v2558, %v2557
        %v2598 = vpack.c.b16 %v2560, %v2559
        %v2599 = vpack.c.b16 %v2562, %v2561
        %v2600 = vpack.c.b16 %v2564, %v2563
        %v2601 = vpack.c.b16 %v2566, %v2565
        %v2602 = vpack.c.b16 %v2568, %v2567
        %v2603 = vpack.c.b16 %v2570, %v2569
        %v2604 = vpack.c.b16 %v2572, %v2571
        %v2605 = vpack.c.b16 %v2574, %v2573
        %v2606 = vpack.c.b16 %v2576, %v2575
        %v2607 = vpack.c.b16 %v2578, %v2577
        %v2608 = vpack.c.b16 %v2580, %v2579
        %v2609 = vpack.c.b16 %v2582, %v2581
        %v2610 = vpack.c.b16 %v2584, %v2583
        %v2611 = vpack.c.b16 %v2586, %v2585
        %v2612 = vpack.c.b16 %v2588, %v2587
        %2637 = vmatprep.subr.bf16.mxu0 0
        %2638 = vmatpush1.bf16.msra.mxu0 %v2589
        %2639 = vmatprep.subr.bf16.mxu0 0
        %2640 = vmatpush1.bf16.msra.mxu0 %v2590
        %2641 = vmatprep.subr.bf16.mxu0 0
        %2642 = vmatpush1.bf16.msra.mxu0 %v2591
        %2643 = vmatprep.subr.bf16.mxu0 0
        %2644 = vmatpush1.bf16.msra.mxu0 %v2592
        %2645 = vmatprep.subr.bf16.mxu0 0
        %2646 = vmatpush1.bf16.msra.mxu0 %v2593
        %2647 = vmatprep.subr.bf16.mxu0 0
        %2648 = vmatpush1.bf16.msra.mxu0 %v2594
        %2649 = vmatprep.subr.bf16.mxu0 0
        %2650 = vmatpush1.bf16.msra.mxu0 %v2595
        %2651 = vmatprep.subr.bf16.mxu0 0
        %2652 = vmatpush1.bf16.msra.mxu0 %v2596
        %2653 = vmatprep.subr.bf16.mxu0 0
        %2654 = vmatpush1.bf16.msra.mxu0 %v2597
        %2655 = vmatprep.subr.bf16.mxu0 0
        %2656 = vmatpush1.bf16.msra.mxu0 %v2598
        %2657 = vmatprep.subr.bf16.mxu0 0
        %2658 = vmatpush1.bf16.msra.mxu0 %v2599
        %2659 = vmatprep.subr.bf16.mxu0 0
        %2660 = vmatpush1.bf16.msra.mxu0 %v2600
        %2661 = vmatprep.subr.bf16.mxu0 0
        %2662 = vmatpush1.bf16.msra.mxu0 %v2601
        %2663 = vmatprep.subr.bf16.mxu0 0
        %2664 = vmatpush1.bf16.msra.mxu0 %v2602
        %2665 = vmatprep.subr.bf16.mxu0 0
        %2666 = vmatpush1.bf16.msra.mxu0 %v2603
        %2667 = vmatprep.subr.bf16.mxu0 0
        %2668 = vmatpush1.bf16.msra.mxu0 %v2604
        %2669 = vmatprep.mubr.bf16.mxu0 %v2332
        %2670 = vmatmul.mubr.bf16.gmra.mrb[0].mxu0 %v2331
        %v2671 = vpop.f32.mrb[0].mxu0
        %v2672 = vadd.f32 0.0, %v2671
        %v2673 = vpop.f32.mrb[0].mxu0
        %v2674 = vpop.f32.mrb[0].mxu0
        %v2675 = vadd.f32 0.0, %v2674
        %v2676 = vpop.f32.mrb[0].mxu0
        %2677 = vmatprep.mubr.bf16.mxu0 %v2335
        %2678 = vmatmul.mubr.bf16.gmra.mrb[0].mxu0 %v2334
        %v2679 = vpop.f32.mrb[0].mxu0
        %v2680 = vadd.f32 0.0, %v2679
        %v2681 = vpop.f32.mrb[0].mxu0
        %v2682 = vpop.f32.mrb[0].mxu0
        %v2683 = vadd.f32 0.0, %v2682
        %v2684 = vpop.f32.mrb[0].mxu0
        %2685 = vmatprep.mubr.bf16.mxu0 %v2338
        %2686 = vmatmul.mubr.bf16.gmra.mrb[0].mxu0 %v2337
        %v2687 = vpop.f32.mrb[0].mxu0
        %v2688 = vadd.f32 0.0, %v2687
        %v2689 = vpop.f32.mrb[0].mxu0
        %v2690 = vpop.f32.mrb[0].mxu0
        %v2691 = vadd.f32 0.0, %v2690
        %v2692 = vpop.f32.mrb[0].mxu0
        %2693 = vmatprep.mubr.bf16.mxu0 %v2341
        %2694 = vmatmul.mubr.bf16.gmra.mrb[0].mxu0 %v2340
        %v2695 = vpop.f32.mrb[0].mxu0
        %v2696 = vadd.f32 0.0, %v2695
        %v2697 = vpop.f32.mrb[0].mxu0
        %v2698 = vpop.f32.mrb[0].mxu0
        %v2699 = vadd.f32 0.0, %v2698
        %v2700 = vpop.f32.mrb[0].mxu0
        %2701 = vmatprep.mubr.bf16.mxu0 %v2344
        %2702 = vmatmul.mubr.bf16.gmra.mrb[0].mxu0 %v2343
        %v2703 = vpop.f32.mrb[0].mxu0
        %v2704 = vadd.f32 0.0, %v2703
        %v2705 = vpop.f32.mrb[0].mxu0
        %v2706 = vpop.f32.mrb[0].mxu0
        %v2707 = vadd.f32 0.0, %v2706
        %v2708 = vpop.f32.mrb[0].mxu0
        %2709 = vmatprep.mubr.bf16.mxu0 %v2347
        %2710 = vmatmul.mubr.bf16.gmra.mrb[0].mxu0 %v2346
        %v2711 = vpop.f32.mrb[0].mxu0
        %v2712 = vadd.f32 0.0, %v2711
        %v2713 = vpop.f32.mrb[0].mxu0
        %v2714 = vpop.f32.mrb[0].mxu0
        %v2715 = vadd.f32 0.0, %v2714
        %v2716 = vpop.f32.mrb[0].mxu0
        %2717 = vmatprep.mubr.bf16.mxu0 %v2350
        %2718 = vmatmul.mubr.bf16.gmra.mrb[0].mxu0 %v2349
        %v2719 = vpop.f32.mrb[0].mxu0
        %v2720 = vadd.f32 0.0, %v2719
        %v2721 = vpop.f32.mrb[0].mxu0
        %v2722 = vpop.f32.mrb[0].mxu0
        %v2723 = vadd.f32 0.0, %v2722
        %v2724 = vpop.f32.mrb[0].mxu0
        %2725 = vmatprep.mubr.bf16.mxu0 %v2353
        %2726 = vmatmul.mubr.bf16.gmra.mrb[0].mxu0 %v2352
        %v2727 = vpop.f32.mrb[0].mxu0
        %v2728 = vadd.f32 0.0, %v2727
        %v2729 = vpop.f32.mrb[0].mxu0
        %v2730 = vpop.f32.mrb[0].mxu0
        %v2731 = vadd.f32 0.0, %v2730
        %v2732 = vpop.f32.mrb[0].mxu0
        %2733 = vmatprep.mubr.bf16.mxu0 %v2356
        %2734 = vmatmul.mubr.bf16.gmra.mrb[0].mxu0 %v2355
        %v2735 = vpop.f32.mrb[0].mxu0
        %v2736 = vadd.f32 0.0, %v2735
        %v2737 = vpop.f32.mrb[0].mxu0
        %v2738 = vpop.f32.mrb[0].mxu0
        %v2739 = vadd.f32 0.0, %v2738
        %v2740 = vpop.f32.mrb[0].mxu0
        %2741 = vmatprep.mubr.bf16.mxu0 %v2359
        %2742 = vmatmul.mubr.bf16.gmra.mrb[0].mxu0 %v2358
        %v2743 = vpop.f32.mrb[0].mxu0
        %v2744 = vadd.f32 0.0, %v2743
        %v2745 = vpop.f32.mrb[0].mxu0
        %v2746 = vpop.f32.mrb[0].mxu0
        %v2747 = vadd.f32 0.0, %v2746
        %v2748 = vpop.f32.mrb[0].mxu0
        %2749 = vmatprep.mubr.bf16.mxu0 %v2362
        %2750 = vmatmul.mubr.bf16.gmra.mrb[0].mxu0 %v2361
        %v2751 = vpop.f32.mrb[0].mxu0
        %v2752 = vadd.f32 0.0, %v2751
        %v2753 = vpop.f32.mrb[0].mxu0
        %v2754 = vpop.f32.mrb[0].mxu0
        %v2755 = vadd.f32 0.0, %v2754
        %v2756 = vpop.f32.mrb[0].mxu0
        %2757 = vmatprep.mubr.bf16.mxu0 %v2365
        %2758 = vmatmul.mubr.bf16.gmra.mrb[0].mxu0 %v2364
        %v2759 = vpop.f32.mrb[0].mxu0
        %v2760 = vadd.f32 0.0, %v2759
        %v2761 = vpop.f32.mrb[0].mxu0
        %v2762 = vpop.f32.mrb[0].mxu0
        %v2763 = vadd.f32 0.0, %v2762
        %v2764 = vpop.f32.mrb[0].mxu0
        %2765 = vmatprep.mubr.bf16.mxu0 %v2368
        %2766 = vmatmul.mubr.bf16.gmra.mrb[0].mxu0 %v2367
        %v2767 = vpop.f32.mrb[0].mxu0
        %v2768 = vadd.f32 0.0, %v2767
        %v2769 = vpop.f32.mrb[0].mxu0
        %v2770 = vpop.f32.mrb[0].mxu0
        %v2771 = vadd.f32 0.0, %v2770
        %v2772 = vpop.f32.mrb[0].mxu0
        %2773 = vmatprep.mubr.bf16.mxu0 %v2371
        %2774 = vmatmul.mubr.bf16.gmra.mrb[0].mxu0 %v2370
        %v2775 = vpop.f32.mrb[0].mxu0
        %v2776 = vadd.f32 0.0, %v2775
        %v2777 = vpop.f32.mrb[0].mxu0
        %v2778 = vpop.f32.mrb[0].mxu0
        %v2779 = vadd.f32 0.0, %v2778
        %v2780 = vpop.f32.mrb[0].mxu0
        %2781 = vmatprep.mubr.bf16.mxu0 %v2374
        %2782 = vmatmul.mubr.bf16.gmra.mrb[0].mxu0 %v2373
        %v2783 = vpop.f32.mrb[0].mxu0
        %v2784 = vadd.f32 0.0, %v2783
        %v2785 = vpop.f32.mrb[0].mxu0
        %v2786 = vpop.f32.mrb[0].mxu0
        %v2787 = vadd.f32 0.0, %v2786
        %v2788 = vpop.f32.mrb[0].mxu0
        %2789 = vmatprep.mubr.bf16.mxu0 %v2377
        %2790 = vmatmul.mubr.bf16.gmra.mrb[0].mxu0 %v2376
        %v2791 = vpop.f32.mrb[0].mxu0
        %v2792 = vadd.f32 0.0, %v2791
        %v2793 = vpop.f32.mrb[0].mxu0
        %v2794 = vpop.f32.mrb[0].mxu0
        %v2795 = vadd.f32 0.0, %v2794
        %v2796 = vpop.f32.mrb[0].mxu0
        %2797 = vmatprep.mubr.bf16.mxu0 %v2380
        %2798 = vmatmul.mubr.bf16.gmra.mrb[0].mxu0 %v2379
        %v2799 = vpop.f32.mrb[0].mxu0
        %v2800 = vadd.f32 0.0, %v2799
        %v2801 = vpop.f32.mrb[0].mxu0
        %v2802 = vpop.f32.mrb[0].mxu0
        %v2803 = vadd.f32 0.0, %v2802
        %v2804 = vpop.f32.mrb[0].mxu0
        %2805 = vmatprep.mubr.bf16.mxu0 %v2383
        %2806 = vmatmul.mubr.bf16.gmra.mrb[0].mxu0 %v2382
        %v2807 = vpop.f32.mrb[0].mxu0
        %v2808 = vadd.f32 0.0, %v2807
        %v2809 = vpop.f32.mrb[0].mxu0
        %v2810 = vpop.f32.mrb[0].mxu0
        %v2811 = vadd.f32 0.0, %v2810
        %v2812 = vpop.f32.mrb[0].mxu0
        %2813 = vmatprep.mubr.bf16.mxu0 %v2386
        %2814 = vmatmul.mubr.bf16.gmra.mrb[0].mxu0 %v2385
        %v2815 = vpop.f32.mrb[0].mxu0
        %v2816 = vadd.f32 0.0, %v2815
        %v2817 = vpop.f32.mrb[0].mxu0
        %v2818 = vpop.f32.mrb[0].mxu0
        %v2819 = vadd.f32 0.0, %v2818
        %v2820 = vpop.f32.mrb[0].mxu0
        %2821 = vmatprep.mubr.bf16.mxu0 %v2389
        %2822 = vmatmul.mubr.bf16.gmra.mrb[0].mxu0 %v2388
        %v2823 = vpop.f32.mrb[0].mxu0
        %v2824 = vadd.f32 0.0, %v2823
        %v2825 = vpop.f32.mrb[0].mxu0
        %v2826 = vpop.f32.mrb[0].mxu0
        %v2827 = vadd.f32 0.0, %v2826
        %v2828 = vpop.f32.mrb[0].mxu0
        %2829 = vmatprep.mubr.bf16.mxu0 %v2392
        %2830 = vmatmul.mubr.bf16.gmra.mrb[0].mxu0 %v2391
        %v2831 = vpop.f32.mrb[0].mxu0
        %v2832 = vadd.f32 0.0, %v2831
        %v2833 = vpop.f32.mrb[0].mxu0
        %v2834 = vpop.f32.mrb[0].mxu0
        %v2835 = vadd.f32 0.0, %v2834
        %v2836 = vpop.f32.mrb[0].mxu0
        %2837 = vmatprep.mubr.bf16.mxu0 %v2395
        %2838 = vmatmul.mubr.bf16.gmra.mrb[0].mxu0 %v2394
        %v2839 = vpop.f32.mrb[0].mxu0
        %v2840 = vadd.f32 0.0, %v2839
        %v2841 = vpop.f32.mrb[0].mxu0
        %v2842 = vpop.f32.mrb[0].mxu0
        %v2843 = vadd.f32 0.0, %v2842
        %v2844 = vpop.f32.mrb[0].mxu0
        %2845 = vmatprep.mubr.bf16.mxu0 %v2398
        %2846 = vmatmul.mubr.bf16.gmra.mrb[0].mxu0 %v2397
        %v2847 = vpop.f32.mrb[0].mxu0
        %v2848 = vadd.f32 0.0, %v2847
        %v2849 = vpop.f32.mrb[0].mxu0
        %v2850 = vpop.f32.mrb[0].mxu0
        %v2851 = vadd.f32 0.0, %v2850
        %v2852 = vpop.f32.mrb[0].mxu0
        %2853 = vmatprep.mubr.bf16.mxu0 %v2401
        %2854 = vmatmul.mubr.bf16.gmra.mrb[0].mxu0 %v2400
        %v2855 = vpop.f32.mrb[0].mxu0
        %v2856 = vadd.f32 0.0, %v2855
        %v2857 = vpop.f32.mrb[0].mxu0
        %v2858 = vpop.f32.mrb[0].mxu0
        %v2859 = vadd.f32 0.0, %v2858
        %v2860 = vpop.f32.mrb[0].mxu0
        %2861 = vmatprep.mubr.bf16.mxu0 %v2404
        %2862 = vmatmul.mubr.bf16.gmra.mrb[0].mxu0 %v2403
        %v2863 = vpop.f32.mrb[0].mxu0
        %v2864 = vadd.f32 0.0, %v2863
        %v2865 = vpop.f32.mrb[0].mxu0
        %v2866 = vpop.f32.mrb[0].mxu0
        %v2867 = vadd.f32 0.0, %v2866
        %v2868 = vpop.f32.mrb[0].mxu0
        %2869 = vmatprep.mubr.bf16.mxu0 %v2407
        %2870 = vmatmul.mubr.bf16.gmra.mrb[0].mxu0 %v2406
        %v2871 = vpop.f32.mrb[0].mxu0
        %v2872 = vadd.f32 0.0, %v2871
        %v2873 = vpop.f32.mrb[0].mxu0
        %v2874 = vpop.f32.mrb[0].mxu0
        %v2875 = vadd.f32 0.0, %v2874
        %v2876 = vpop.f32.mrb[0].mxu0
        %2877 = vmatprep.mubr.bf16.mxu0 %v2410
        %2878 = vmatmul.mubr.bf16.gmra.mrb[0].mxu0 %v2409
        %v2879 = vpop.f32.mrb[0].mxu0
        %v2880 = vadd.f32 0.0, %v2879
        %v2881 = vpop.f32.mrb[0].mxu0
        %v2882 = vpop.f32.mrb[0].mxu0
        %v2883 = vadd.f32 0.0, %v2882
        %v2884 = vpop.f32.mrb[0].mxu0
        %2885 = vdwg.mxu0
        %2886 = vmatprep.subr.bf16.mxu0 0
        %2887 = vmatpush1.bf16.msra.mxu0 %v2605
        %2888 = vmatprep.subr.bf16.mxu0 0
        %2889 = vmatpush1.bf16.msra.mxu0 %v2606
        %2890 = vmatprep.subr.bf16.mxu0 0
        %2891 = vmatpush1.bf16.msra.mxu0 %v2607
        %2892 = vmatprep.subr.bf16.mxu0 0
        %2893 = vmatpush1.bf16.msra.mxu0 %v2608
        %2894 = vmatprep.subr.bf16.mxu0 0
        %2895 = vmatpush1.bf16.msra.mxu0 %v2609
        %2896 = vmatprep.subr.bf16.mxu0 0
        %2897 = vmatpush1.bf16.msra.mxu0 %v2610
        %2898 = vmatprep.subr.bf16.mxu0 0
        %2899 = vmatpush1.bf16.msra.mxu0 %v2611
        %2900 = vmatprep.subr.bf16.mxu0 0
        %2901 = vmatpush1.bf16.msra.mxu0 %v2612
        %2902 = vmatprep.subr.bf16.mxu0 0
        %2903 = vmatpush1.bf16.msra.mxu0 0
        %2904 = vmatprep.subr.bf16.mxu0 0
        %2905 = vmatpush1.bf16.msra.mxu0 0
        %2906 = vmatprep.subr.bf16.mxu0 0
        %2907 = vmatpush1.bf16.msra.mxu0 0
        %2908 = vmatprep.subr.bf16.mxu0 0
        %2909 = vmatpush1.bf16.msra.mxu0 0
        %2910 = vmatprep.subr.bf16.mxu0 0
        %2911 = vmatpush1.bf16.msra.mxu0 0
        %2912 = vmatprep.subr.bf16.mxu0 0
        %2913 = vmatpush1.bf16.msra.mxu0 0
        %2914 = vmatprep.subr.bf16.mxu0 0
        %2915 = vmatpush1.bf16.msra.mxu0 0
        %2916 = vmatprep.subr.bf16.mxu0 0
        %2917 = vmatpush1.bf16.msra.mxu0 0
        %2918 = vmatprep.mubr.bf16.mxu0 0
        %2919 = vmatmul.mubr.bf16.gmra.mrb[0].mxu0 %v2333
        %v2920 = vpop.f32.mrb[0].mxu0
        %v2921 = vadd.f32 %v2672, %v2920
        %v2922 = vpop.f32.mrb[0].mxu0
        %v2923 = vpop.f32.mrb[0].mxu0
        %v2924 = vadd.f32 %v2675, %v2923
        %v2925 = vpop.f32.mrb[0].mxu0
        %2926 = vmatprep.mubr.bf16.mxu0 0
        %2927 = vmatmul.mubr.bf16.gmra.mrb[0].mxu0 %v2336
        %v2928 = vpop.f32.mrb[0].mxu0
        %v2929 = vadd.f32 %v2680, %v2928
        %v2930 = vpop.f32.mrb[0].mxu0
        %v2931 = vpop.f32.mrb[0].mxu0
        %v2932 = vadd.f32 %v2683, %v2931
        %v2933 = vpop.f32.mrb[0].mxu0
        %2934 = vmatprep.mubr.bf16.mxu0 0
        %2935 = vmatmul.mubr.bf16.gmra.mrb[0].mxu0 %v2339
        %v2936 = vpop.f32.mrb[0].mxu0
        %v2937 = vadd.f32 %v2688, %v2936
        %v2938 = vpop.f32.mrb[0].mxu0
        %v2939 = vpop.f32.mrb[0].mxu0
        %v2940 = vadd.f32 %v2691, %v2939
        %v2941 = vpop.f32.mrb[0].mxu0
        %2942 = vmatprep.mubr.bf16.mxu0 0
        %2943 = vmatmul.mubr.bf16.gmra.mrb[0].mxu0 %v2342
        %v2944 = vpop.f32.mrb[0].mxu0
        %v2945 = vadd.f32 %v2696, %v2944
        %v2946 = vpop.f32.mrb[0].mxu0
        %v2947 = vpop.f32.mrb[0].mxu0
        %v2948 = vadd.f32 %v2699, %v2947
        %v2949 = vpop.f32.mrb[0].mxu0
        %2950 = vmatprep.mubr.bf16.mxu0 0
        %2951 = vmatmul.mubr.bf16.gmra.mrb[0].mxu0 %v2345
        %v2952 = vpop.f32.mrb[0].mxu0
        %v2953 = vadd.f32 %v2704, %v2952
        %v2954 = vpop.f32.mrb[0].mxu0
        %v2955 = vpop.f32.mrb[0].mxu0
        %v2956 = vadd.f32 %v2707, %v2955
        %v2957 = vpop.f32.mrb[0].mxu0
        %2958 = vmatprep.mubr.bf16.mxu0 0
        %2959 = vmatmul.mubr.bf16.gmra.mrb[0].mxu0 %v2348
        %v2960 = vpop.f32.mrb[0].mxu0
        %v2961 = vadd.f32 %v2712, %v2960
        %v2962 = vpop.f32.mrb[0].mxu0
        %v2963 = vpop.f32.mrb[0].mxu0
        %v2964 = vadd.f32 %v2715, %v2963
        %v2965 = vpop.f32.mrb[0].mxu0
        %2966 = vmatprep.mubr.bf16.mxu0 0
        %2967 = vmatmul.mubr.bf16.gmra.mrb[0].mxu0 %v2351
        %v2968 = vpop.f32.mrb[0].mxu0
        %v2969 = vadd.f32 %v2720, %v2968
        %v2970 = vpop.f32.mrb[0].mxu0
        %v2971 = vpop.f32.mrb[0].mxu0
        %v2972 = vadd.f32 %v2723, %v2971
        %v2973 = vpop.f32.mrb[0].mxu0
        %2974 = vmatprep.mubr.bf16.mxu0 0
        %2975 = vmatmul.mubr.bf16.gmra.mrb[0].mxu0 %v2354
        %v2976 = vpop.f32.mrb[0].mxu0
        %v2977 = vadd.f32 %v2728, %v2976
        %v2978 = vpop.f32.mrb[0].mxu0
        %v2979 = vpop.f32.mrb[0].mxu0
        %v2980 = vadd.f32 %v2731, %v2979
        %v2981 = vpop.f32.mrb[0].mxu0
        %2982 = vmatprep.mubr.bf16.mxu0 0
        %2983 = vmatmul.mubr.bf16.gmra.mrb[0].mxu0 %v2357
        %v2984 = vpop.f32.mrb[0].mxu0
        %v2985 = vadd.f32 %v2736, %v2984
        %v2986 = vpop.f32.mrb[0].mxu0
        %v2987 = vpop.f32.mrb[0].mxu0
        %v2988 = vadd.f32 %v2739, %v2987
        %v2989 = vpop.f32.mrb[0].mxu0
        %2990 = vmatprep.mubr.bf16.mxu0 0
        %2991 = vmatmul.mubr.bf16.gmra.mrb[0].mxu0 %v2360
        %v2992 = vpop.f32.mrb[0].mxu0
        %v2993 = vadd.f32 %v2744, %v2992
        %v2994 = vpop.f32.mrb[0].mxu0
        %v2995 = vpop.f32.mrb[0].mxu0
        %v2996 = vadd.f32 %v2747, %v2995
        %v2997 = vpop.f32.mrb[0].mxu0
        %2998 = vmatprep.mubr.bf16.mxu0 0
        %2999 = vmatmul.mubr.bf16.gmra.mrb[0].mxu0 %v2363
        %v3000 = vpop.f32.mrb[0].mxu0
        %v3001 = vadd.f32 %v2752, %v3000
        %v3002 = vpop.f32.mrb[0].mxu0
        %v3003 = vpop.f32.mrb[0].mxu0
        %v3004 = vadd.f32 %v2755, %v3003
        %v3005 = vpop.f32.mrb[0].mxu0
        %3006 = vmatprep.mubr.bf16.mxu0 0
        %3007 = vmatmul.mubr.bf16.gmra.mrb[0].mxu0 %v2366
        %v3008 = vpop.f32.mrb[0].mxu0
        %v3009 = vadd.f32 %v2760, %v3008
        %v3010 = vpop.f32.mrb[0].mxu0
        %v3011 = vpop.f32.mrb[0].mxu0
        %v3012 = vadd.f32 %v2763, %v3011
        %v3013 = vpop.f32.mrb[0].mxu0
        %3014 = vmatprep.mubr.bf16.mxu0 0
        %3015 = vmatmul.mubr.bf16.gmra.mrb[0].mxu0 %v2369
        %v3016 = vpop.f32.mrb[0].mxu0
        %v3017 = vadd.f32 %v2768, %v3016
        %v3018 = vpop.f32.mrb[0].mxu0
        %v3019 = vpop.f32.mrb[0].mxu0
        %v3020 = vadd.f32 %v2771, %v3019
        %v3021 = vpop.f32.mrb[0].mxu0
        %3022 = vmatprep.mubr.bf16.mxu0 0
        %3023 = vmatmul.mubr.bf16.gmra.mrb[0].mxu0 %v2372
        %v3024 = vpop.f32.mrb[0].mxu0
        %v3025 = vadd.f32 %v2776, %v3024
        %v3026 = vpop.f32.mrb[0].mxu0
        %v3027 = vpop.f32.mrb[0].mxu0
        %v3028 = vadd.f32 %v2779, %v3027
        %v3029 = vpop.f32.mrb[0].mxu0
        %3030 = vmatprep.mubr.bf16.mxu0 0
        %3031 = vmatmul.mubr.bf16.gmra.mrb[0].mxu0 %v2375
        %v3032 = vpop.f32.mrb[0].mxu0
        %v3033 = vadd.f32 %v2784, %v3032
        %v3034 = vpop.f32.mrb[0].mxu0
        %v3035 = vpop.f32.mrb[0].mxu0
        %v3036 = vadd.f32 %v2787, %v3035
        %v3037 = vpop.f32.mrb[0].mxu0
        %3038 = vmatprep.mubr.bf16.mxu0 0
        %3039 = vmatmul.mubr.bf16.gmra.mrb[0].mxu0 %v2378
        %v3040 = vpop.f32.mrb[0].mxu0
        %v3041 = vadd.f32 %v2792, %v3040
        %v3042 = vpop.f32.mrb[0].mxu0
        %v3043 = vpop.f32.mrb[0].mxu0
        %v3044 = vadd.f32 %v2795, %v3043
        %v3045 = vpop.f32.mrb[0].mxu0
        %3046 = vmatprep.mubr.bf16.mxu0 0
        %3047 = vmatmul.mubr.bf16.gmra.mrb[0].mxu0 %v2381
        %v3048 = vpop.f32.mrb[0].mxu0
        %v3049 = vadd.f32 %v2800, %v3048
        %v3050 = vpop.f32.mrb[0].mxu0
        %v3051 = vpop.f32.mrb[0].mxu0
        %v3052 = vadd.f32 %v2803, %v3051
        %v3053 = vpop.f32.mrb[0].mxu0
        %3054 = vmatprep.mubr.bf16.mxu0 0
        %3055 = vmatmul.mubr.bf16.gmra.mrb[0].mxu0 %v2384
        %v3056 = vpop.f32.mrb[0].mxu0
        %v3057 = vadd.f32 %v2808, %v3056
        %v3058 = vpop.f32.mrb[0].mxu0
        %v3059 = vpop.f32.mrb[0].mxu0
        %v3060 = vadd.f32 %v2811, %v3059
        %v3061 = vpop.f32.mrb[0].mxu0
        %3062 = vmatprep.mubr.bf16.mxu0 0
        %3063 = vmatmul.mubr.bf16.gmra.mrb[0].mxu0 %v2387
        %v3064 = vpop.f32.mrb[0].mxu0
        %v3065 = vadd.f32 %v2816, %v3064
        %v3066 = vpop.f32.mrb[0].mxu0
        %v3067 = vpop.f32.mrb[0].mxu0
        %v3068 = vadd.f32 %v2819, %v3067
        %v3069 = vpop.f32.mrb[0].mxu0
        %3070 = vmatprep.mubr.bf16.mxu0 0
        %3071 = vmatmul.mubr.bf16.gmra.mrb[0].mxu0 %v2390
        %v3072 = vpop.f32.mrb[0].mxu0
        %v3073 = vadd.f32 %v2824, %v3072
        %v3074 = vpop.f32.mrb[0].mxu0
        %v3075 = vpop.f32.mrb[0].mxu0
        %v3076 = vadd.f32 %v2827, %v3075
        %v3077 = vpop.f32.mrb[0].mxu0
        %3078 = vmatprep.mubr.bf16.mxu0 0
        %3079 = vmatmul.mubr.bf16.gmra.mrb[0].mxu0 %v2393
        %v3080 = vpop.f32.mrb[0].mxu0
        %v3081 = vadd.f32 %v2832, %v3080
        %v3082 = vpop.f32.mrb[0].mxu0
        %v3083 = vpop.f32.mrb[0].mxu0
        %v3084 = vadd.f32 %v2835, %v3083
        %v3085 = vpop.f32.mrb[0].mxu0
        %3086 = vmatprep.mubr.bf16.mxu0 0
        %3087 = vmatmul.mubr.bf16.gmra.mrb[0].mxu0 %v2396
        %v3088 = vpop.f32.mrb[0].mxu0
        %v3089 = vadd.f32 %v2840, %v3088
        %v3090 = vpop.f32.mrb[0].mxu0
        %v3091 = vpop.f32.mrb[0].mxu0
        %v3092 = vadd.f32 %v2843, %v3091
        %v3093 = vpop.f32.mrb[0].mxu0
        %3094 = vmatprep.mubr.bf16.mxu0 0
        %3095 = vmatmul.mubr.bf16.gmra.mrb[0].mxu0 %v2399
        %v3096 = vpop.f32.mrb[0].mxu0
        %v3097 = vadd.f32 %v2848, %v3096
        %v3098 = vpop.f32.mrb[0].mxu0
        %v3099 = vpop.f32.mrb[0].mxu0
        %v3100 = vadd.f32 %v2851, %v3099
        %v3101 = vpop.f32.mrb[0].mxu0
        %3102 = vmatprep.mubr.bf16.mxu0 0
        %3103 = vmatmul.mubr.bf16.gmra.mrb[0].mxu0 %v2402
        %v3104 = vpop.f32.mrb[0].mxu0
        %v3105 = vadd.f32 %v2856, %v3104
        %v3106 = vpop.f32.mrb[0].mxu0
        %v3107 = vpop.f32.mrb[0].mxu0
        %v3108 = vadd.f32 %v2859, %v3107
        %v3109 = vpop.f32.mrb[0].mxu0
        %3110 = vmatprep.mubr.bf16.mxu0 0
        %3111 = vmatmul.mubr.bf16.gmra.mrb[0].mxu0 %v2405
        %v3112 = vpop.f32.mrb[0].mxu0
        %v3113 = vadd.f32 %v2864, %v3112
        %v3114 = vpop.f32.mrb[0].mxu0
        %v3115 = vpop.f32.mrb[0].mxu0
        %v3116 = vadd.f32 %v2867, %v3115
        %v3117 = vpop.f32.mrb[0].mxu0
        %3118 = vmatprep.mubr.bf16.mxu0 0
        %3119 = vmatmul.mubr.bf16.gmra.mrb[0].mxu0 %v2408
        %v3120 = vpop.f32.mrb[0].mxu0
        %v3121 = vadd.f32 %v2872, %v3120
        %v3122 = vpop.f32.mrb[0].mxu0
        %v3123 = vpop.f32.mrb[0].mxu0
        %v3124 = vadd.f32 %v2875, %v3123
        %v3125 = vpop.f32.mrb[0].mxu0
        %3126 = vmatprep.mubr.bf16.mxu0 0
        %3127 = vmatmul.mubr.bf16.gmra.mrb[0].mxu0 %v2411
        %v3128 = vpop.f32.mrb[0].mxu0
        %v3129 = vadd.f32 %v2880, %v3128
        %v3130 = vpop.f32.mrb[0].mxu0
        %v3131 = vpop.f32.mrb[0].mxu0
        %v3132 = vadd.f32 %v2883, %v3131
        %v3133 = vpop.f32.mrb[0].mxu0
        %3134 = vdwg.mxu0
        %v3243 = vunpack.c.l.b16 %v1747
        %v3244 = vunpack.c.h.b16 %v1747
        %v3245 = vunpack.c.l.b16 %v1748
        %v3246 = vunpack.c.l.b16 %v1749
        %v3247 = vunpack.c.h.b16 %v1749
        %v3248 = vunpack.c.l.b16 %v1750
        %v3249 = vunpack.c.l.b16 %v1751
        %v3250 = vunpack.c.h.b16 %v1751
        %v3251 = vunpack.c.l.b16 %v1752
        %v3252 = vunpack.c.l.b16 %v1753
        %v3253 = vunpack.c.h.b16 %v1753
        %v3254 = vunpack.c.l.b16 %v1754
        %v3255 = vunpack.c.l.b16 %v1755
        %v3256 = vunpack.c.h.b16 %v1755
        %v3257 = vunpack.c.l.b16 %v1756
        %v3258 = vunpack.c.l.b16 %v1757
        %v3259 = vunpack.c.h.b16 %v1757
        %v3260 = vunpack.c.l.b16 %v1758
        %v3261 = vunpack.c.l.b16 %v1759
        %v3262 = vunpack.c.h.b16 %v1759
        %v3263 = vunpack.c.l.b16 %v1760
        %v3264 = vunpack.c.l.b16 %v1761
        %v3265 = vunpack.c.h.b16 %v1761
        %v3266 = vunpack.c.l.b16 %v1762
        %v3267 = vunpack.c.l.b16 %v1763
        %v3268 = vunpack.c.h.b16 %v1763
        %v3269 = vunpack.c.l.b16 %v1764
        %v3270 = vunpack.c.l.b16 %v1765
        %v3271 = vunpack.c.h.b16 %v1765
        %v3272 = vunpack.c.l.b16 %v1766
        %v3273 = vunpack.c.l.b16 %v1767
        %v3274 = vunpack.c.h.b16 %v1767
        %v3275 = vunpack.c.l.b16 %v1768
        %v3276 = vunpack.c.l.b16 %v1769
        %v3277 = vunpack.c.h.b16 %v1769
        %v3278 = vunpack.c.l.b16 %v1770
        %v3279 = vunpack.c.l.b16 %v1771
        %v3280 = vunpack.c.h.b16 %v1771
        %v3281 = vunpack.c.l.b16 %v1772
        %v3282 = vunpack.c.l.b16 %v1773
        %v3283 = vunpack.c.h.b16 %v1773
        %v3284 = vunpack.c.l.b16 %v1774
        %v3285 = vunpack.c.l.b16 %v1775
        %v3286 = vunpack.c.h.b16 %v1775
        %v3287 = vunpack.c.l.b16 %v1776
        %v3288 = vunpack.c.l.b16 %v1777
        %v3289 = vunpack.c.h.b16 %v1777
        %v3290 = vunpack.c.l.b16 %v1778
        %v3291 = vunpack.c.l.b16 %v1779
        %v3292 = vunpack.c.h.b16 %v1779
        %v3293 = vunpack.c.l.b16 %v1780
        %v3294 = vunpack.c.l.b16 %v1781
        %v3295 = vunpack.c.h.b16 %v1781
        %v3296 = vunpack.c.l.b16 %v1782
        %v3297 = vunpack.c.l.b16 %v1783
        %v3298 = vunpack.c.h.b16 %v1783
        %v3299 = vunpack.c.l.b16 %v1784
        %v3300 = vunpack.c.l.b16 %v1785
        %v3301 = vunpack.c.h.b16 %v1785
        %v3302 = vunpack.c.l.b16 %v1786
        %v3303 = vunpack.c.l.b16 %v1787
        %v3304 = vunpack.c.h.b16 %v1787
        %v3305 = vunpack.c.l.b16 %v1788
        %v3306 = vunpack.c.l.b16 %v1789
        %v3307 = vunpack.c.h.b16 %v1789
        %v3308 = vunpack.c.l.b16 %v1790
        %v3309 = vunpack.c.l.b16 %v1791
        %v3310 = vunpack.c.h.b16 %v1791
        %v3311 = vunpack.c.l.b16 %v1792
        %v3312 = vunpack.c.l.b16 %v1793
        %v3313 = vunpack.c.h.b16 %v1793
        %v3314 = vunpack.c.l.b16 %v1794
        %v3315 = vunpack.c.l.b16 %v1795
        %v3316 = vunpack.c.h.b16 %v1795
        %v3317 = vunpack.c.l.b16 %v1796
        %v3318 = vunpack.c.l.b16 %v1797
        %v3319 = vunpack.c.h.b16 %v1797
        %v3320 = vunpack.c.l.b16 %v1798
        %v3321 = vunpack.c.l.b16 %v1799
        %v3322 = vunpack.c.h.b16 %v1799
        %v3323 = vunpack.c.l.b16 %v1800
        %v3324 = vunpack.c.l.b16 %v1801
        %v3325 = vunpack.c.h.b16 %v1801
        %v3326 = vunpack.c.l.b16 %v1802
        %v3327 = vunpack.c.l.b16 %v1803
        %v3328 = vunpack.c.h.b16 %v1803
        %v3329 = vunpack.c.l.b16 %v1804
        %v3330 = vunpack.c.l.b16 %v1805
        %v3331 = vunpack.c.h.b16 %v1805
        %v3332 = vunpack.c.l.b16 %v1806
        %v3333 = vunpack.c.l.b16 %v1807
        %v3334 = vunpack.c.h.b16 %v1807
        %v3335 = vunpack.c.l.b16 %v1808
        %v3336 = vunpack.c.l.b16 %v1809
        %v3337 = vunpack.c.h.b16 %v1809
        %v3338 = vunpack.c.l.b16 %v1810
        %v3339 = vunpack.c.l.b16 %v1811
        %v3340 = vunpack.c.h.b16 %v1811
        %v3341 = vunpack.c.l.b16 %v1812
        %v3342 = vunpack.c.l.b16 %v1813
        %v3343 = vunpack.c.h.b16 %v1813
        %v3344 = vunpack.c.l.b16 %v1814
        %v3345 = vunpack.c.l.b16 %v1815
        %v3346 = vunpack.c.h.b16 %v1815
        %v3347 = vunpack.c.l.b16 %v1816
        %v3348 = vunpack.c.l.b16 %v1817
        %v3349 = vunpack.c.h.b16 %v1817
        %v3350 = vunpack.c.l.b16 %v1818
        %v3351 = vunpack.c.l.b16 %v1819
        %v3352 = vunpack.c.h.b16 %v1819
        %v3353 = vunpack.c.l.b16 %v1820
        %v3354 = vunpack.c.l.b16 %v1821
        %v3355 = vunpack.c.h.b16 %v1821
        %v3356 = vunpack.c.l.b16 %v1822
        %v3357 = vunpack.c.l.b16 %v1823
        %v3358 = vunpack.c.h.b16 %v1823
        %v3359 = vunpack.c.l.b16 %v1824
        %v3360 = vunpack.c.l.b16 %v1825
        %v3361 = vunpack.c.h.b16 %v1825
        %v3362 = vunpack.c.l.b16 %v1826
        %v3363 = vunpack.c.l.b16 %v1827
        %v3364 = vunpack.c.h.b16 %v1827
        %v3365 = vunpack.c.l.b16 %v1828
        %v3366 = vunpack.c.l.b16 %v1829
        %v3367 = vunpack.c.h.b16 %v1829
        %v3368 = vunpack.c.l.b16 %v1830
        %v3369 = vunpack.c.l.b16 %v1831
        %v3370 = vunpack.c.h.b16 %v1831
        %v3371 = vunpack.c.l.b16 %v1832
        %v3372 = vunpack.c.l.b16 %v1833
        %v3373 = vunpack.c.h.b16 %v1833
        %v3374 = vunpack.c.l.b16 %v1834
        %v3375 = vunpack.c.l.b16 %v1835
        %v3376 = vunpack.c.h.b16 %v1835
        %v3377 = vunpack.c.l.b16 %v1836
        %v3378 = vunpack.c.l.b16 %v1837
        %v3379 = vunpack.c.h.b16 %v1837
        %v3380 = vunpack.c.l.b16 %v1838
        %v3381 = vunpack.c.l.b16 %v1839
        %v3382 = vunpack.c.h.b16 %v1839
        %v3383 = vunpack.c.l.b16 %v1840
        %v3384 = vunpack.c.l.b16 %v1841
        %v3385 = vunpack.c.h.b16 %v1841
        %v3386 = vunpack.c.l.b16 %v1842
        %v3387 = vunpack.c.l.b16 %v1843
        %v3388 = vunpack.c.h.b16 %v1843
        %v3389 = vunpack.c.l.b16 %v1844
        %v3390 = vunpack.c.l.b16 %v1845
        %v3391 = vunpack.c.h.b16 %v1845
        %v3392 = vunpack.c.l.b16 %v1846
        %v3393 = vunpack.c.l.b16 %v1847
        %v3394 = vunpack.c.h.b16 %v1847
        %v3395 = vunpack.c.l.b16 %v1848
        %v3396 = vunpack.c.l.b16 %v1849
        %v3397 = vunpack.c.h.b16 %v1849
        %v3398 = vunpack.c.l.b16 %v1850
        %v3399 = vunpack.c.l.b16 %v1851
        %v3400 = vunpack.c.h.b16 %v1851
        %v3401 = vunpack.c.l.b16 %v1852
        %v3402 = vunpack.c.l.b16 %v1853
        %v3403 = vunpack.c.h.b16 %v1853
        %v3404 = vunpack.c.l.b16 %v1854
        %v3405 = vpack.c.b16 %v3246, %v3243
        %v3406 = vpack.c.b16 %v3247, %v3244
        %v3407 = vpack.c.b16 %v3248, %v3245
        %v3408 = vpack.c.b16 %v3252, %v3249
        %v3409 = vpack.c.b16 %v3253, %v3250
        %v3410 = vpack.c.b16 %v3254, %v3251
        %v3411 = vpack.c.b16 %v3258, %v3255
        %v3412 = vpack.c.b16 %v3259, %v3256
        %v3413 = vpack.c.b16 %v3260, %v3257
        %v3414 = vpack.c.b16 %v3264, %v3261
        %v3415 = vpack.c.b16 %v3265, %v3262
        %v3416 = vpack.c.b16 %v3266, %v3263
        %v3417 = vpack.c.b16 %v3270, %v3267
        %v3418 = vpack.c.b16 %v3271, %v3268
        %v3419 = vpack.c.b16 %v3272, %v3269
        %v3420 = vpack.c.b16 %v3276, %v3273
        %v3421 = vpack.c.b16 %v3277, %v3274
        %v3422 = vpack.c.b16 %v3278, %v3275
        %v3423 = vpack.c.b16 %v3282, %v3279
        %v3424 = vpack.c.b16 %v3283, %v3280
        %v3425 = vpack.c.b16 %v3284, %v3281
        %v3426 = vpack.c.b16 %v3288, %v3285
        %v3427 = vpack.c.b16 %v3289, %v3286
        %v3428 = vpack.c.b16 %v3290, %v3287
        %v3429 = vpack.c.b16 %v3294, %v3291
        %v3430 = vpack.c.b16 %v3295, %v3292
        %v3431 = vpack.c.b16 %v3296, %v3293
        %v3432 = vpack.c.b16 %v3300, %v3297
        %v3433 = vpack.c.b16 %v3301, %v3298
        %v3434 = vpack.c.b16 %v3302, %v3299
        %v3435 = vpack.c.b16 %v3306, %v3303
        %v3436 = vpack.c.b16 %v3307, %v3304
        %v3437 = vpack.c.b16 %v3308, %v3305
        %v3438 = vpack.c.b16 %v3312, %v3309
        %v3439 = vpack.c.b16 %v3313, %v3310
        %v3440 = vpack.c.b16 %v3314, %v3311
        %v3441 = vpack.c.b16 %v3318, %v3315
        %v3442 = vpack.c.b16 %v3319, %v3316
        %v3443 = vpack.c.b16 %v3320, %v3317
        %v3444 = vpack.c.b16 %v3324, %v3321
        %v3445 = vpack.c.b16 %v3325, %v3322
        %v3446 = vpack.c.b16 %v3326, %v3323
        %v3447 = vpack.c.b16 %v3330, %v3327
        %v3448 = vpack.c.b16 %v3331, %v3328
        %v3449 = vpack.c.b16 %v3332, %v3329
        %v3450 = vpack.c.b16 %v3336, %v3333
        %v3451 = vpack.c.b16 %v3337, %v3334
        %v3452 = vpack.c.b16 %v3338, %v3335
        %v3453 = vpack.c.b16 %v3342, %v3339
        %v3454 = vpack.c.b16 %v3343, %v3340
        %v3455 = vpack.c.b16 %v3344, %v3341
        %v3456 = vpack.c.b16 %v3348, %v3345
        %v3457 = vpack.c.b16 %v3349, %v3346
        %v3458 = vpack.c.b16 %v3350, %v3347
        %v3459 = vpack.c.b16 %v3354, %v3351
        %v3460 = vpack.c.b16 %v3355, %v3352
        %v3461 = vpack.c.b16 %v3356, %v3353
        %v3462 = vpack.c.b16 %v3360, %v3357
        %v3463 = vpack.c.b16 %v3361, %v3358
        %v3464 = vpack.c.b16 %v3362, %v3359
        %v3465 = vpack.c.b16 %v3366, %v3363
        %v3466 = vpack.c.b16 %v3367, %v3364
        %v3467 = vpack.c.b16 %v3368, %v3365
        %v3468 = vpack.c.b16 %v3372, %v3369
        %v3469 = vpack.c.b16 %v3373, %v3370
        %v3470 = vpack.c.b16 %v3374, %v3371
        %v3471 = vpack.c.b16 %v3378, %v3375
        %v3472 = vpack.c.b16 %v3379, %v3376
        %v3473 = vpack.c.b16 %v3380, %v3377
        %v3474 = vpack.c.b16 %v3384, %v3381
        %v3475 = vpack.c.b16 %v3385, %v3382
        %v3476 = vpack.c.b16 %v3386, %v3383
        %v3477 = vpack.c.b16 %v3390, %v3387
        %v3478 = vpack.c.b16 %v3391, %v3388
        %v3479 = vpack.c.b16 %v3392, %v3389
        %v3480 = vpack.c.b16 %v3396, %v3393
        %v3481 = vpack.c.b16 %v3397, %v3394
        %v3482 = vpack.c.b16 %v3398, %v3395
        %v3483 = vpack.c.b16 %v3402, %v3399
        %v3484 = vpack.c.b16 %v3403, %v3400
        %v3485 = vpack.c.b16 %v3404, %v3401
        %v3615 = vunpack.c.l.b16 %v1855
        %v3616 = vunpack.c.l.b16 %v1856
        %v3617 = vunpack.c.l.b16 %v1857
        %v3618 = vunpack.c.l.b16 %v1858
        %v3619 = vunpack.c.l.b16 %v1859
        %v3620 = vunpack.c.l.b16 %v1860
        %v3621 = vunpack.c.l.b16 %v1861
        %v3622 = vunpack.c.l.b16 %v1862
        %v3623 = vunpack.c.l.b16 %v1863
        %v3624 = vunpack.c.l.b16 %v1864
        %v3625 = vunpack.c.l.b16 %v1865
        %v3626 = vunpack.c.l.b16 %v1866
        %v3627 = vunpack.c.l.b16 %v1867
        %v3628 = vunpack.c.l.b16 %v1868
        %v3629 = vunpack.c.l.b16 %v1869
        %v3630 = vunpack.c.l.b16 %v1870
        %v3631 = vunpack.c.l.b16 %v1871
        %v3632 = vunpack.c.l.b16 %v1872
        %v3633 = vunpack.c.l.b16 %v1873
        %v3634 = vunpack.c.l.b16 %v1874
        %v3635 = vunpack.c.l.b16 %v1875
        %v3636 = vunpack.c.l.b16 %v1876
        %v3637 = vunpack.c.l.b16 %v1877
        %v3638 = vunpack.c.l.b16 %v1878
        %v3639 = vunpack.c.l.b16 %v1879
        %v3640 = vunpack.c.l.b16 %v1880
        %v3641 = vunpack.c.l.b16 %v1881
        %v3642 = vunpack.c.l.b16 %v1882
        %v3643 = vunpack.c.l.b16 %v1883
        %v3644 = vunpack.c.l.b16 %v1884
        %v3645 = vunpack.c.l.b16 %v1885
        %v3646 = vunpack.c.l.b16 %v1886
        %v3647 = vunpack.c.l.b16 %v1887
        %v3648 = vunpack.c.l.b16 %v1888
        %v3649 = vunpack.c.l.b16 %v1889
        %v3650 = vunpack.c.l.b16 %v1890
        %v3651 = vunpack.c.l.b16 %v1891
        %v3652 = vunpack.c.l.b16 %v1892
        %v3653 = vunpack.c.l.b16 %v1893
        %v3654 = vunpack.c.l.b16 %v1894
        %v3655 = vunpack.c.l.b16 %v1895
        %v3656 = vunpack.c.l.b16 %v1896
        %v3657 = vunpack.c.l.b16 %v1897
        %v3658 = vunpack.c.l.b16 %v1898
        %v3659 = vunpack.c.l.b16 %v1899
        %v3660 = vunpack.c.l.b16 %v1900
        %v3661 = vunpack.c.l.b16 %v1901
        %v3662 = vunpack.c.l.b16 %v1902
        %v3663 = vpack.c.b16 %v3616, %v3615
        %v3664 = vpack.c.b16 %v3618, %v3617
        %v3665 = vpack.c.b16 %v3620, %v3619
        %v3666 = vpack.c.b16 %v3622, %v3621
        %v3667 = vpack.c.b16 %v3624, %v3623
        %v3668 = vpack.c.b16 %v3626, %v3625
        %v3669 = vpack.c.b16 %v3628, %v3627
        %v3670 = vpack.c.b16 %v3630, %v3629
        %v3671 = vpack.c.b16 %v3632, %v3631
        %v3672 = vpack.c.b16 %v3634, %v3633
        %v3673 = vpack.c.b16 %v3636, %v3635
        %v3674 = vpack.c.b16 %v3638, %v3637
        %v3675 = vpack.c.b16 %v3640, %v3639
        %v3676 = vpack.c.b16 %v3642, %v3641
        %v3677 = vpack.c.b16 %v3644, %v3643
        %v3678 = vpack.c.b16 %v3646, %v3645
        %v3679 = vpack.c.b16 %v3648, %v3647
        %v3680 = vpack.c.b16 %v3650, %v3649
        %v3681 = vpack.c.b16 %v3652, %v3651
        %v3682 = vpack.c.b16 %v3654, %v3653
        %v3683 = vpack.c.b16 %v3656, %v3655
        %v3684 = vpack.c.b16 %v3658, %v3657
        %v3685 = vpack.c.b16 %v3660, %v3659
        %v3686 = vpack.c.b16 %v3662, %v3661
        %3711 = vmatprep.subr.bf16.mxu0 0
        %3712 = vmatpush1.bf16.msra.mxu0 %v3663
        %3713 = vmatprep.subr.bf16.mxu0 0
        %3714 = vmatpush1.bf16.msra.mxu0 %v3664
        %3715 = vmatprep.subr.bf16.mxu0 0
        %3716 = vmatpush1.bf16.msra.mxu0 %v3665
        %3717 = vmatprep.subr.bf16.mxu0 0
        %3718 = vmatpush1.bf16.msra.mxu0 %v3666
        %3719 = vmatprep.subr.bf16.mxu0 0
        %3720 = vmatpush1.bf16.msra.mxu0 %v3667
        %3721 = vmatprep.subr.bf16.mxu0 0
        %3722 = vmatpush1.bf16.msra.mxu0 %v3668
        %3723 = vmatprep.subr.bf16.mxu0 0
        %3724 = vmatpush1.bf16.msra.mxu0 %v3669
        %3725 = vmatprep.subr.bf16.mxu0 0
        %3726 = vmatpush1.bf16.msra.mxu0 %v3670
        %3727 = vmatprep.subr.bf16.mxu0 0
        %3728 = vmatpush1.bf16.msra.mxu0 %v3671
        %3729 = vmatprep.subr.bf16.mxu0 0
        %3730 = vmatpush1.bf16.msra.mxu0 %v3672
        %3731 = vmatprep.subr.bf16.mxu0 0
        %3732 = vmatpush1.bf16.msra.mxu0 %v3673
        %3733 = vmatprep.subr.bf16.mxu0 0
        %3734 = vmatpush1.bf16.msra.mxu0 %v3674
        %3735 = vmatprep.subr.bf16.mxu0 0
        %3736 = vmatpush1.bf16.msra.mxu0 %v3675
        %3737 = vmatprep.subr.bf16.mxu0 0
        %3738 = vmatpush1.bf16.msra.mxu0 %v3676
        %3739 = vmatprep.subr.bf16.mxu0 0
        %3740 = vmatpush1.bf16.msra.mxu0 %v3677
        %3741 = vmatprep.subr.bf16.mxu0 0
        %3742 = vmatpush1.bf16.msra.mxu0 %v3678
        %3743 = vmatprep.mubr.bf16.mxu0 %v3406
        %3744 = vmatmul.mubr.bf16.gmra.mrb[0].mxu0 %v3405
        %v3745 = vpop.f32.mrb[0].mxu0
        %v3746 = vadd.f32 %v2921, %v3745
        %v3747 = vpop.f32.mrb[0].mxu0
        %v3748 = vpop.f32.mrb[0].mxu0
        %v3749 = vadd.f32 %v2924, %v3748
        %v3750 = vpop.f32.mrb[0].mxu0
        %3751 = vmatprep.mubr.bf16.mxu0 %v3409
        %3752 = vmatmul.mubr.bf16.gmra.mrb[0].mxu0 %v3408
        %v3753 = vpop.f32.mrb[0].mxu0
        %v3754 = vadd.f32 %v2929, %v3753
        %v3755 = vpop.f32.mrb[0].mxu0
        %v3756 = vpop.f32.mrb[0].mxu0
        %v3757 = vadd.f32 %v2932, %v3756
        %v3758 = vpop.f32.mrb[0].mxu0
        %3759 = vmatprep.mubr.bf16.mxu0 %v3412
        %3760 = vmatmul.mubr.bf16.gmra.mrb[0].mxu0 %v3411
        %v3761 = vpop.f32.mrb[0].mxu0
        %v3762 = vadd.f32 %v2937, %v3761
        %v3763 = vpop.f32.mrb[0].mxu0
        %v3764 = vpop.f32.mrb[0].mxu0
        %v3765 = vadd.f32 %v2940, %v3764
        %v3766 = vpop.f32.mrb[0].mxu0
        %3767 = vmatprep.mubr.bf16.mxu0 %v3415
        %3768 = vmatmul.mubr.bf16.gmra.mrb[0].mxu0 %v3414
        %v3769 = vpop.f32.mrb[0].mxu0
        %v3770 = vadd.f32 %v2945, %v3769
        %v3771 = vpop.f32.mrb[0].mxu0
        %v3772 = vpop.f32.mrb[0].mxu0
        %v3773 = vadd.f32 %v2948, %v3772
        %v3774 = vpop.f32.mrb[0].mxu0
        %3775 = vmatprep.mubr.bf16.mxu0 %v3418
        %3776 = vmatmul.mubr.bf16.gmra.mrb[0].mxu0 %v3417
        %v3777 = vpop.f32.mrb[0].mxu0
        %v3778 = vadd.f32 %v2953, %v3777
        %v3779 = vpop.f32.mrb[0].mxu0
        %v3780 = vpop.f32.mrb[0].mxu0
        %v3781 = vadd.f32 %v2956, %v3780
        %v3782 = vpop.f32.mrb[0].mxu0
        %3783 = vmatprep.mubr.bf16.mxu0 %v3421
        %3784 = vmatmul.mubr.bf16.gmra.mrb[0].mxu0 %v3420
        %v3785 = vpop.f32.mrb[0].mxu0
        %v3786 = vadd.f32 %v2961, %v3785
        %v3787 = vpop.f32.mrb[0].mxu0
        %v3788 = vpop.f32.mrb[0].mxu0
        %v3789 = vadd.f32 %v2964, %v3788
        %v3790 = vpop.f32.mrb[0].mxu0
        %3791 = vmatprep.mubr.bf16.mxu0 %v3424
        %3792 = vmatmul.mubr.bf16.gmra.mrb[0].mxu0 %v3423
        %v3793 = vpop.f32.mrb[0].mxu0
        %v3794 = vadd.f32 %v2969, %v3793
        %v3795 = vpop.f32.mrb[0].mxu0
        %v3796 = vpop.f32.mrb[0].mxu0
        %v3797 = vadd.f32 %v2972, %v3796
        %v3798 = vpop.f32.mrb[0].mxu0
        %3799 = vmatprep.mubr.bf16.mxu0 %v3427
        %3800 = vmatmul.mubr.bf16.gmra.mrb[0].mxu0 %v3426
        %v3801 = vpop.f32.mrb[0].mxu0
        %v3802 = vadd.f32 %v2977, %v3801
        %v3803 = vpop.f32.mrb[0].mxu0
        %v3804 = vpop.f32.mrb[0].mxu0
        %v3805 = vadd.f32 %v2980, %v3804
        %v3806 = vpop.f32.mrb[0].mxu0
        %3807 = vmatprep.mubr.bf16.mxu0 %v3430
        %3808 = vmatmul.mubr.bf16.gmra.mrb[0].mxu0 %v3429
        %v3809 = vpop.f32.mrb[0].mxu0
        %v3810 = vadd.f32 %v2985, %v3809
        %v3811 = vpop.f32.mrb[0].mxu0
        %v3812 = vpop.f32.mrb[0].mxu0
        %v3813 = vadd.f32 %v2988, %v3812
        %v3814 = vpop.f32.mrb[0].mxu0
        %3815 = vmatprep.mubr.bf16.mxu0 %v3433
        %3816 = vmatmul.mubr.bf16.gmra.mrb[0].mxu0 %v3432
        %v3817 = vpop.f32.mrb[0].mxu0
        %v3818 = vadd.f32 %v2993, %v3817
        %v3819 = vpop.f32.mrb[0].mxu0
        %v3820 = vpop.f32.mrb[0].mxu0
        %v3821 = vadd.f32 %v2996, %v3820
        %v3822 = vpop.f32.mrb[0].mxu0
        %3823 = vmatprep.mubr.bf16.mxu0 %v3436
        %3824 = vmatmul.mubr.bf16.gmra.mrb[0].mxu0 %v3435
        %v3825 = vpop.f32.mrb[0].mxu0
        %v3826 = vadd.f32 %v3001, %v3825
        %v3827 = vpop.f32.mrb[0].mxu0
        %v3828 = vpop.f32.mrb[0].mxu0
        %v3829 = vadd.f32 %v3004, %v3828
        %v3830 = vpop.f32.mrb[0].mxu0
        %3831 = vmatprep.mubr.bf16.mxu0 %v3439
        %3832 = vmatmul.mubr.bf16.gmra.mrb[0].mxu0 %v3438
        %v3833 = vpop.f32.mrb[0].mxu0
        %v3834 = vadd.f32 %v3009, %v3833
        %v3835 = vpop.f32.mrb[0].mxu0
        %v3836 = vpop.f32.mrb[0].mxu0
        %v3837 = vadd.f32 %v3012, %v3836
        %v3838 = vpop.f32.mrb[0].mxu0
        %3839 = vmatprep.mubr.bf16.mxu0 %v3442
        %3840 = vmatmul.mubr.bf16.gmra.mrb[0].mxu0 %v3441
        %v3841 = vpop.f32.mrb[0].mxu0
        %v3842 = vadd.f32 %v3017, %v3841
        %v3843 = vpop.f32.mrb[0].mxu0
        %v3844 = vpop.f32.mrb[0].mxu0
        %v3845 = vadd.f32 %v3020, %v3844
        %v3846 = vpop.f32.mrb[0].mxu0
        %3847 = vmatprep.mubr.bf16.mxu0 %v3445
        %3848 = vmatmul.mubr.bf16.gmra.mrb[0].mxu0 %v3444
        %v3849 = vpop.f32.mrb[0].mxu0
        %v3850 = vadd.f32 %v3025, %v3849
        %v3851 = vpop.f32.mrb[0].mxu0
        %v3852 = vpop.f32.mrb[0].mxu0
        %v3853 = vadd.f32 %v3028, %v3852
        %v3854 = vpop.f32.mrb[0].mxu0
        %3855 = vmatprep.mubr.bf16.mxu0 %v3448
        %3856 = vmatmul.mubr.bf16.gmra.mrb[0].mxu0 %v3447
        %v3857 = vpop.f32.mrb[0].mxu0
        %v3858 = vadd.f32 %v3033, %v3857
        %v3859 = vpop.f32.mrb[0].mxu0
        %v3860 = vpop.f32.mrb[0].mxu0
        %v3861 = vadd.f32 %v3036, %v3860
        %v3862 = vpop.f32.mrb[0].mxu0
        %3863 = vmatprep.mubr.bf16.mxu0 %v3451
        %3864 = vmatmul.mubr.bf16.gmra.mrb[0].mxu0 %v3450
        %v3865 = vpop.f32.mrb[0].mxu0
        %v3866 = vadd.f32 %v3041, %v3865
        %v3867 = vpop.f32.mrb[0].mxu0
        %v3868 = vpop.f32.mrb[0].mxu0
        %v3869 = vadd.f32 %v3044, %v3868
        %v3870 = vpop.f32.mrb[0].mxu0
        %3871 = vmatprep.mubr.bf16.mxu0 %v3454
        %3872 = vmatmul.mubr.bf16.gmra.mrb[0].mxu0 %v3453
        %v3873 = vpop.f32.mrb[0].mxu0
        %v3874 = vadd.f32 %v3049, %v3873
        %v3875 = vpop.f32.mrb[0].mxu0
        %v3876 = vpop.f32.mrb[0].mxu0
        %v3877 = vadd.f32 %v3052, %v3876
        %v3878 = vpop.f32.mrb[0].mxu0
        %3879 = vmatprep.mubr.bf16.mxu0 %v3457
        %3880 = vmatmul.mubr.bf16.gmra.mrb[0].mxu0 %v3456
        %v3881 = vpop.f32.mrb[0].mxu0
        %v3882 = vadd.f32 %v3057, %v3881
        %v3883 = vpop.f32.mrb[0].mxu0
        %v3884 = vpop.f32.mrb[0].mxu0
        %v3885 = vadd.f32 %v3060, %v3884
        %v3886 = vpop.f32.mrb[0].mxu0
        %3887 = vmatprep.mubr.bf16.mxu0 %v3460
        %3888 = vmatmul.mubr.bf16.gmra.mrb[0].mxu0 %v3459
        %v3889 = vpop.f32.mrb[0].mxu0
        %v3890 = vadd.f32 %v3065, %v3889
        %v3891 = vpop.f32.mrb[0].mxu0
        %v3892 = vpop.f32.mrb[0].mxu0
        %v3893 = vadd.f32 %v3068, %v3892
        %v3894 = vpop.f32.mrb[0].mxu0
        %3895 = vmatprep.mubr.bf16.mxu0 %v3463
        %3896 = vmatmul.mubr.bf16.gmra.mrb[0].mxu0 %v3462
        %v3897 = vpop.f32.mrb[0].mxu0
        %v3898 = vadd.f32 %v3073, %v3897
        %v3899 = vpop.f32.mrb[0].mxu0
        %v3900 = vpop.f32.mrb[0].mxu0
        %v3901 = vadd.f32 %v3076, %v3900
        %v3902 = vpop.f32.mrb[0].mxu0
        %3903 = vmatprep.mubr.bf16.mxu0 %v3466
        %3904 = vmatmul.mubr.bf16.gmra.mrb[0].mxu0 %v3465
        %v3905 = vpop.f32.mrb[0].mxu0
        %v3906 = vadd.f32 %v3081, %v3905
        %v3907 = vpop.f32.mrb[0].mxu0
        %v3908 = vpop.f32.mrb[0].mxu0
        %v3909 = vadd.f32 %v3084, %v3908
        %v3910 = vpop.f32.mrb[0].mxu0
        %3911 = vmatprep.mubr.bf16.mxu0 %v3469
        %3912 = vmatmul.mubr.bf16.gmra.mrb[0].mxu0 %v3468
        %v3913 = vpop.f32.mrb[0].mxu0
        %v3914 = vadd.f32 %v3089, %v3913
        %v3915 = vpop.f32.mrb[0].mxu0
        %v3916 = vpop.f32.mrb[0].mxu0
        %v3917 = vadd.f32 %v3092, %v3916
        %v3918 = vpop.f32.mrb[0].mxu0
        %3919 = vmatprep.mubr.bf16.mxu0 %v3472
        %3920 = vmatmul.mubr.bf16.gmra.mrb[0].mxu0 %v3471
        %v3921 = vpop.f32.mrb[0].mxu0
        %v3922 = vadd.f32 %v3097, %v3921
        %v3923 = vpop.f32.mrb[0].mxu0
        %v3924 = vpop.f32.mrb[0].mxu0
        %v3925 = vadd.f32 %v3100, %v3924
        %v3926 = vpop.f32.mrb[0].mxu0
        %3927 = vmatprep.mubr.bf16.mxu0 %v3475
        %3928 = vmatmul.mubr.bf16.gmra.mrb[0].mxu0 %v3474
        %v3929 = vpop.f32.mrb[0].mxu0
        %v3930 = vadd.f32 %v3105, %v3929
        %v3931 = vpop.f32.mrb[0].mxu0
        %v3932 = vpop.f32.mrb[0].mxu0
        %v3933 = vadd.f32 %v3108, %v3932
        %v3934 = vpop.f32.mrb[0].mxu0
        %3935 = vmatprep.mubr.bf16.mxu0 %v3478
        %3936 = vmatmul.mubr.bf16.gmra.mrb[0].mxu0 %v3477
        %v3937 = vpop.f32.mrb[0].mxu0
        %v3938 = vadd.f32 %v3113, %v3937
        %v3939 = vpop.f32.mrb[0].mxu0
        %v3940 = vpop.f32.mrb[0].mxu0
        %v3941 = vadd.f32 %v3116, %v3940
        %v3942 = vpop.f32.mrb[0].mxu0
        %3943 = vmatprep.mubr.bf16.mxu0 %v3481
        %3944 = vmatmul.mubr.bf16.gmra.mrb[0].mxu0 %v3480
        %v3945 = vpop.f32.mrb[0].mxu0
        %v3946 = vadd.f32 %v3121, %v3945
        %v3947 = vpop.f32.mrb[0].mxu0
        %v3948 = vpop.f32.mrb[0].mxu0
        %v3949 = vadd.f32 %v3124, %v3948
        %v3950 = vpop.f32.mrb[0].mxu0
        %3951 = vmatprep.mubr.bf16.mxu0 %v3484
        %3952 = vmatmul.mubr.bf16.gmra.mrb[0].mxu0 %v3483
        %v3953 = vpop.f32.mrb[0].mxu0
        %v3954 = vadd.f32 %v3129, %v3953
        %v3955 = vpop.f32.mrb[0].mxu0
        %v3956 = vpop.f32.mrb[0].mxu0
        %v3957 = vadd.f32 %v3132, %v3956
        %v3958 = vpop.f32.mrb[0].mxu0
        %3959 = vdwg.mxu0
        %3960 = vmatprep.subr.bf16.mxu0 0
        %3961 = vmatpush1.bf16.msra.mxu0 %v3679
        %3962 = vmatprep.subr.bf16.mxu0 0
        %3963 = vmatpush1.bf16.msra.mxu0 %v3680
        %3964 = vmatprep.subr.bf16.mxu0 0
        %3965 = vmatpush1.bf16.msra.mxu0 %v3681
        %3966 = vmatprep.subr.bf16.mxu0 0
        %3967 = vmatpush1.bf16.msra.mxu0 %v3682
        %3968 = vmatprep.subr.bf16.mxu0 0
        %3969 = vmatpush1.bf16.msra.mxu0 %v3683
        %3970 = vmatprep.subr.bf16.mxu0 0
        %3971 = vmatpush1.bf16.msra.mxu0 %v3684
        %3972 = vmatprep.subr.bf16.mxu0 0
        %3973 = vmatpush1.bf16.msra.mxu0 %v3685
        %3974 = vmatprep.subr.bf16.mxu0 0
        %3975 = vmatpush1.bf16.msra.mxu0 %v3686
        %3976 = vmatprep.subr.bf16.mxu0 0
        %3977 = vmatpush1.bf16.msra.mxu0 0
        %3978 = vmatprep.subr.bf16.mxu0 0
        %3979 = vmatpush1.bf16.msra.mxu0 0
        %3980 = vmatprep.subr.bf16.mxu0 0
        %3981 = vmatpush1.bf16.msra.mxu0 0
        %3982 = vmatprep.subr.bf16.mxu0 0
        %3983 = vmatpush1.bf16.msra.mxu0 0
        %3984 = vmatprep.subr.bf16.mxu0 0
        %3985 = vmatpush1.bf16.msra.mxu0 0
        %3986 = vmatprep.subr.bf16.mxu0 0
        %3987 = vmatpush1.bf16.msra.mxu0 0
        %3988 = vmatprep.subr.bf16.mxu0 0
        %3989 = vmatpush1.bf16.msra.mxu0 0
        %3990 = vmatprep.subr.bf16.mxu0 0
        %3991 = vmatpush1.bf16.msra.mxu0 0
        %3992 = vmatprep.mubr.bf16.mxu0 0
        %3993 = vmatmul.mubr.bf16.gmra.mrb[0].mxu0 %v3407
        %v3994 = vpop.f32.mrb[0].mxu0
        %v3995 = vadd.f32 %v3746, %v3994
        %v3996 = vpop.f32.mrb[0].mxu0
        %v3997 = vpop.f32.mrb[0].mxu0
        %v3998 = vadd.f32 %v3749, %v3997
        %v3999 = vpop.f32.mrb[0].mxu0
        %4000 = vmatprep.mubr.bf16.mxu0 0
        %4001 = vmatmul.mubr.bf16.gmra.mrb[0].mxu0 %v3410
        %v4002 = vpop.f32.mrb[0].mxu0
        %v4003 = vadd.f32 %v3754, %v4002
        %v4004 = vpop.f32.mrb[0].mxu0
        %v4005 = vpop.f32.mrb[0].mxu0
        %v4006 = vadd.f32 %v3757, %v4005
        %v4007 = vpop.f32.mrb[0].mxu0
        %4008 = vmatprep.mubr.bf16.mxu0 0
        %4009 = vmatmul.mubr.bf16.gmra.mrb[0].mxu0 %v3413
        %v4010 = vpop.f32.mrb[0].mxu0
        %v4011 = vadd.f32 %v3762, %v4010
        %v4012 = vpop.f32.mrb[0].mxu0
        %v4013 = vpop.f32.mrb[0].mxu0
        %v4014 = vadd.f32 %v3765, %v4013
        %v4015 = vpop.f32.mrb[0].mxu0
        %4016 = vmatprep.mubr.bf16.mxu0 0
        %4017 = vmatmul.mubr.bf16.gmra.mrb[0].mxu0 %v3416
        %v4018 = vpop.f32.mrb[0].mxu0
        %v4019 = vadd.f32 %v3770, %v4018
        %v4020 = vpop.f32.mrb[0].mxu0
        %v4021 = vpop.f32.mrb[0].mxu0
        %v4022 = vadd.f32 %v3773, %v4021
        %v4023 = vpop.f32.mrb[0].mxu0
        %4024 = vmatprep.mubr.bf16.mxu0 0
        %4025 = vmatmul.mubr.bf16.gmra.mrb[0].mxu0 %v3419
        %v4026 = vpop.f32.mrb[0].mxu0
        %v4027 = vadd.f32 %v3778, %v4026
        %v4028 = vpop.f32.mrb[0].mxu0
        %v4029 = vpop.f32.mrb[0].mxu0
        %v4030 = vadd.f32 %v3781, %v4029
        %v4031 = vpop.f32.mrb[0].mxu0
        %4032 = vmatprep.mubr.bf16.mxu0 0
        %4033 = vmatmul.mubr.bf16.gmra.mrb[0].mxu0 %v3422
        %v4034 = vpop.f32.mrb[0].mxu0
        %v4035 = vadd.f32 %v3786, %v4034
        %v4036 = vpop.f32.mrb[0].mxu0
        %v4037 = vpop.f32.mrb[0].mxu0
        %v4038 = vadd.f32 %v3789, %v4037
        %v4039 = vpop.f32.mrb[0].mxu0
        %4040 = vmatprep.mubr.bf16.mxu0 0
        %4041 = vmatmul.mubr.bf16.gmra.mrb[0].mxu0 %v3425
        %v4042 = vpop.f32.mrb[0].mxu0
        %v4043 = vadd.f32 %v3794, %v4042
        %v4044 = vpop.f32.mrb[0].mxu0
        %v4045 = vpop.f32.mrb[0].mxu0
        %v4046 = vadd.f32 %v3797, %v4045
        %v4047 = vpop.f32.mrb[0].mxu0
        %4048 = vmatprep.mubr.bf16.mxu0 0
        %4049 = vmatmul.mubr.bf16.gmra.mrb[0].mxu0 %v3428
        %v4050 = vpop.f32.mrb[0].mxu0
        %v4051 = vadd.f32 %v3802, %v4050
        %v4052 = vpop.f32.mrb[0].mxu0
        %v4053 = vpop.f32.mrb[0].mxu0
        %v4054 = vadd.f32 %v3805, %v4053
        %v4055 = vpop.f32.mrb[0].mxu0
        %4056 = vmatprep.mubr.bf16.mxu0 0
        %4057 = vmatmul.mubr.bf16.gmra.mrb[0].mxu0 %v3431
        %v4058 = vpop.f32.mrb[0].mxu0
        %v4059 = vadd.f32 %v3810, %v4058
        %v4060 = vpop.f32.mrb[0].mxu0
        %v4061 = vpop.f32.mrb[0].mxu0
        %v4062 = vadd.f32 %v3813, %v4061
        %v4063 = vpop.f32.mrb[0].mxu0
        %4064 = vmatprep.mubr.bf16.mxu0 0
        %4065 = vmatmul.mubr.bf16.gmra.mrb[0].mxu0 %v3434
        %v4066 = vpop.f32.mrb[0].mxu0
        %v4067 = vadd.f32 %v3818, %v4066
        %v4068 = vpop.f32.mrb[0].mxu0
        %v4069 = vpop.f32.mrb[0].mxu0
        %v4070 = vadd.f32 %v3821, %v4069
        %v4071 = vpop.f32.mrb[0].mxu0
        %4072 = vmatprep.mubr.bf16.mxu0 0
        %4073 = vmatmul.mubr.bf16.gmra.mrb[0].mxu0 %v3437
        %v4074 = vpop.f32.mrb[0].mxu0
        %v4075 = vadd.f32 %v3826, %v4074
        %v4076 = vpop.f32.mrb[0].mxu0
        %v4077 = vpop.f32.mrb[0].mxu0
        %v4078 = vadd.f32 %v3829, %v4077
        %v4079 = vpop.f32.mrb[0].mxu0
        %4080 = vmatprep.mubr.bf16.mxu0 0
        %4081 = vmatmul.mubr.bf16.gmra.mrb[0].mxu0 %v3440
        %v4082 = vpop.f32.mrb[0].mxu0
        %v4083 = vadd.f32 %v3834, %v4082
        %v4084 = vpop.f32.mrb[0].mxu0
        %v4085 = vpop.f32.mrb[0].mxu0
        %v4086 = vadd.f32 %v3837, %v4085
        %v4087 = vpop.f32.mrb[0].mxu0
        %4088 = vmatprep.mubr.bf16.mxu0 0
        %4089 = vmatmul.mubr.bf16.gmra.mrb[0].mxu0 %v3443
        %v4090 = vpop.f32.mrb[0].mxu0
        %v4091 = vadd.f32 %v3842, %v4090
        %v4092 = vpop.f32.mrb[0].mxu0
        %v4093 = vpop.f32.mrb[0].mxu0
        %v4094 = vadd.f32 %v3845, %v4093
        %v4095 = vpop.f32.mrb[0].mxu0
        %4096 = vmatprep.mubr.bf16.mxu0 0
        %4097 = vmatmul.mubr.bf16.gmra.mrb[0].mxu0 %v3446
        %v4098 = vpop.f32.mrb[0].mxu0
        %v4099 = vadd.f32 %v3850, %v4098
        %v4100 = vpop.f32.mrb[0].mxu0
        %v4101 = vpop.f32.mrb[0].mxu0
        %v4102 = vadd.f32 %v3853, %v4101
        %v4103 = vpop.f32.mrb[0].mxu0
        %4104 = vmatprep.mubr.bf16.mxu0 0
        %4105 = vmatmul.mubr.bf16.gmra.mrb[0].mxu0 %v3449
        %v4106 = vpop.f32.mrb[0].mxu0
        %v4107 = vadd.f32 %v3858, %v4106
        %v4108 = vpop.f32.mrb[0].mxu0
        %v4109 = vpop.f32.mrb[0].mxu0
        %v4110 = vadd.f32 %v3861, %v4109
        %v4111 = vpop.f32.mrb[0].mxu0
        %4112 = vmatprep.mubr.bf16.mxu0 0
        %4113 = vmatmul.mubr.bf16.gmra.mrb[0].mxu0 %v3452
        %v4114 = vpop.f32.mrb[0].mxu0
        %v4115 = vadd.f32 %v3866, %v4114
        %v4116 = vpop.f32.mrb[0].mxu0
        %v4117 = vpop.f32.mrb[0].mxu0
        %v4118 = vadd.f32 %v3869, %v4117
        %v4119 = vpop.f32.mrb[0].mxu0
        %4120 = vmatprep.mubr.bf16.mxu0 0
        %4121 = vmatmul.mubr.bf16.gmra.mrb[0].mxu0 %v3455
        %v4122 = vpop.f32.mrb[0].mxu0
        %v4123 = vadd.f32 %v3874, %v4122
        %v4124 = vpop.f32.mrb[0].mxu0
        %v4125 = vpop.f32.mrb[0].mxu0
        %v4126 = vadd.f32 %v3877, %v4125
        %v4127 = vpop.f32.mrb[0].mxu0
        %4128 = vmatprep.mubr.bf16.mxu0 0
        %4129 = vmatmul.mubr.bf16.gmra.mrb[0].mxu0 %v3458
        %v4130 = vpop.f32.mrb[0].mxu0
        %v4131 = vadd.f32 %v3882, %v4130
        %v4132 = vpop.f32.mrb[0].mxu0
        %v4133 = vpop.f32.mrb[0].mxu0
        %v4134 = vadd.f32 %v3885, %v4133
        %v4135 = vpop.f32.mrb[0].mxu0
        %4136 = vmatprep.mubr.bf16.mxu0 0
        %4137 = vmatmul.mubr.bf16.gmra.mrb[0].mxu0 %v3461
        %v4138 = vpop.f32.mrb[0].mxu0
        %v4139 = vadd.f32 %v3890, %v4138
        %v4140 = vpop.f32.mrb[0].mxu0
        %v4141 = vpop.f32.mrb[0].mxu0
        %v4142 = vadd.f32 %v3893, %v4141
        %v4143 = vpop.f32.mrb[0].mxu0
        %4144 = vmatprep.mubr.bf16.mxu0 0
        %4145 = vmatmul.mubr.bf16.gmra.mrb[0].mxu0 %v3464
        %v4146 = vpop.f32.mrb[0].mxu0
        %v4147 = vadd.f32 %v3898, %v4146
        %v4148 = vpop.f32.mrb[0].mxu0
        %v4149 = vpop.f32.mrb[0].mxu0
        %v4150 = vadd.f32 %v3901, %v4149
        %v4151 = vpop.f32.mrb[0].mxu0
        %4152 = vmatprep.mubr.bf16.mxu0 0
        %4153 = vmatmul.mubr.bf16.gmra.mrb[0].mxu0 %v3467
        %v4154 = vpop.f32.mrb[0].mxu0
        %v4155 = vadd.f32 %v3906, %v4154
        %v4156 = vpop.f32.mrb[0].mxu0
        %v4157 = vpop.f32.mrb[0].mxu0
        %v4158 = vadd.f32 %v3909, %v4157
        %v4159 = vpop.f32.mrb[0].mxu0
        %4160 = vmatprep.mubr.bf16.mxu0 0
        %4161 = vmatmul.mubr.bf16.gmra.mrb[0].mxu0 %v3470
        %v4162 = vpop.f32.mrb[0].mxu0
        %v4163 = vadd.f32 %v3914, %v4162
        %v4164 = vpop.f32.mrb[0].mxu0
        %v4165 = vpop.f32.mrb[0].mxu0
        %v4166 = vadd.f32 %v3917, %v4165
        %v4167 = vpop.f32.mrb[0].mxu0
        %4168 = vmatprep.mubr.bf16.mxu0 0
        %4169 = vmatmul.mubr.bf16.gmra.mrb[0].mxu0 %v3473
        %v4170 = vpop.f32.mrb[0].mxu0
        %v4171 = vadd.f32 %v3922, %v4170
        %v4172 = vpop.f32.mrb[0].mxu0
        %v4173 = vpop.f32.mrb[0].mxu0
        %v4174 = vadd.f32 %v3925, %v4173
        %v4175 = vpop.f32.mrb[0].mxu0
        %4176 = vmatprep.mubr.bf16.mxu0 0
        %4177 = vmatmul.mubr.bf16.gmra.mrb[0].mxu0 %v3476
        %v4178 = vpop.f32.mrb[0].mxu0
        %v4179 = vadd.f32 %v3930, %v4178
        %v4180 = vpop.f32.mrb[0].mxu0
        %v4181 = vpop.f32.mrb[0].mxu0
        %v4182 = vadd.f32 %v3933, %v4181
        %v4183 = vpop.f32.mrb[0].mxu0
        %4184 = vmatprep.mubr.bf16.mxu0 0
        %4185 = vmatmul.mubr.bf16.gmra.mrb[0].mxu0 %v3479
        %v4186 = vpop.f32.mrb[0].mxu0
        %v4187 = vadd.f32 %v3938, %v4186
        %v4188 = vpop.f32.mrb[0].mxu0
        %v4189 = vpop.f32.mrb[0].mxu0
        %v4190 = vadd.f32 %v3941, %v4189
        %v4191 = vpop.f32.mrb[0].mxu0
        %4192 = vmatprep.mubr.bf16.mxu0 0
        %4193 = vmatmul.mubr.bf16.gmra.mrb[0].mxu0 %v3482
        %v4194 = vpop.f32.mrb[0].mxu0
        %v4195 = vadd.f32 %v3946, %v4194
        %v4196 = vpop.f32.mrb[0].mxu0
        %v4197 = vpop.f32.mrb[0].mxu0
        %v4198 = vadd.f32 %v3949, %v4197
        %v4199 = vpop.f32.mrb[0].mxu0
        %4200 = vmatprep.mubr.bf16.mxu0 0
        %4201 = vmatmul.mubr.bf16.gmra.mrb[0].mxu0 %v3485
        %v4202 = vpop.f32.mrb[0].mxu0
        %v4203 = vadd.f32 %v3954, %v4202
        %v4204 = vpop.f32.mrb[0].mxu0
        %v4205 = vpop.f32.mrb[0].mxu0
        %v4206 = vadd.f32 %v3957, %v4205
        %v4207 = vpop.f32.mrb[0].mxu0
        %4208 = vdwg.mxu0
        %s4209 = scalar_lea.vmem [#allocation2], 72
        %v4210 = vld [vmem:[%s4209] sm:$0xff]
        %v4211 = vld [vmem:[%s4209 + $0x8] sm:$0xf]
        %v4212 = vld [vmem:[%s4209 + $0xc] sm:$0xff]
        %v4213 = vld [vmem:[%s4209 + $0x14] sm:$0xf]
        %v4214 = vld [vmem:[%s4209 + $0x18] sm:$0xff]
        %v4215 = vld [vmem:[%s4209 + $0x20] sm:$0xf]
        %v4216 = vld [vmem:[%s4209 + $0x24] sm:$0xff]
        %v4217 = vld [vmem:[%s4209 + $0x2c] sm:$0xf]
        %v4218 = vld [vmem:[%s4209 + $0x30] sm:$0xff]
        %v4219 = vld [vmem:[%s4209 + $0x38] sm:$0xf]
        %v4220 = vld [vmem:[%s4209 + $0x3c] sm:$0xff]
        %v4221 = vld [vmem:[%s4209 + $0x44] sm:$0xf]
        %v4222 = vld [vmem:[%s4209 + $0x48] sm:$0xff]
        %v4223 = vld [vmem:[%s4209 + $0x50] sm:$0xf]
        %v4224 = vld [vmem:[%s4209 + $0x54] sm:$0xff]
        %v4225 = vld [vmem:[%s4209 + $0x5c] sm:$0xf]
        %v4226 = vld [vmem:[%s4209 + $0x60] sm:$0xff]
        %v4227 = vld [vmem:[%s4209 + $0x68] sm:$0xf]
        %v4228 = vld [vmem:[%s4209 + $0x6c] sm:$0xff]
        %v4229 = vld [vmem:[%s4209 + $0x74] sm:$0xf]
        %v4230 = vld [vmem:[%s4209 + $0x78] sm:$0xff]
        %v4231 = vld [vmem:[%s4209 + $0x80] sm:$0xf]
        %v4232 = vld [vmem:[%s4209 + $0x84] sm:$0xff]
        %v4233 = vld [vmem:[%s4209 + $0x8c] sm:$0xf]
        %v4234 = vld [vmem:[%s4209 + $0x90] sm:$0xff]
        %v4235 = vld [vmem:[%s4209 + $0x98] sm:$0xf]
        %v4236 = vld [vmem:[%s4209 + $0x9c] sm:$0xff]
        %v4237 = vld [vmem:[%s4209 + $0xa4] sm:$0xf]
        %v4238 = vld [vmem:[%s4209 + $0xa8] sm:$0xff]
        %v4239 = vld [vmem:[%s4209 + $0xb0] sm:$0xf]
        %v4240 = vld [vmem:[%s4209 + $0xb4] sm:$0xff]
        %v4241 = vld [vmem:[%s4209 + $0xbc] sm:$0xf]
        %v4242 = vld [vmem:[%s4209 + $0xc0] sm:$0xff]
        %v4243 = vld [vmem:[%s4209 + $0xc8] sm:$0xf]
        %v4244 = vld [vmem:[%s4209 + $0xcc] sm:$0xff]
        %v4245 = vld [vmem:[%s4209 + $0xd4] sm:$0xf]
        %v4246 = vld [vmem:[%s4209 + $0xd8] sm:$0xff]
        %v4247 = vld [vmem:[%s4209 + $0xe0] sm:$0xf]
        %v4248 = vld [vmem:[%s4209 + $0xe4] sm:$0xff]
        %v4249 = vld [vmem:[%s4209 + $0xec] sm:$0xf]
        %v4250 = vld [vmem:[%s4209 + $0xf0] sm:$0xff]
        %v4251 = vld [vmem:[%s4209 + $0xf8] sm:$0xf]
        %v4252 = vld [vmem:[%s4209 + $0xfc] sm:$0xff]
        %v4253 = vld [vmem:[%s4209 + $0x104] sm:$0xf]
        %v4254 = vld [vmem:[%s4209 + $0x108] sm:$0xff]
        %v4255 = vld [vmem:[%s4209 + $0x110] sm:$0xf]
        %v4256 = vld [vmem:[%s4209 + $0x114] sm:$0xff]
        %v4257 = vld [vmem:[%s4209 + $0x11c] sm:$0xf]
        %v4258 = vld [vmem:[%s4209 + $0x120] sm:$0xff]
        %v4259 = vld [vmem:[%s4209 + $0x128] sm:$0xf]
        %v4260 = vld [vmem:[%s4209 + $0x12c] sm:$0xff]
        %v4261 = vld [vmem:[%s4209 + $0x134] sm:$0xf]
        %v4262 = vld [vmem:[%s4209 + $0x138] sm:$0xff]
        %v4263 = vld [vmem:[%s4209 + $0x140] sm:$0xf]
        %v4264 = vld [vmem:[%s4209 + $0x144] sm:$0xff]
        %v4265 = vld [vmem:[%s4209 + $0x14c] sm:$0xf]
        %v4266 = vld [vmem:[%s4209 + $0x150] sm:$0xff]
        %v4267 = vld [vmem:[%s4209 + $0x158] sm:$0xf]
        %v4268 = vld [vmem:[%s4209 + $0x15c] sm:$0xff]
        %v4269 = vld [vmem:[%s4209 + $0x164] sm:$0xf]
        %v4270 = vld [vmem:[%s4209 + $0x168] sm:$0xff]
        %v4271 = vld [vmem:[%s4209 + $0x170] sm:$0xf]
        %v4272 = vld [vmem:[%s4209 + $0x174] sm:$0xff]
        %v4273 = vld [vmem:[%s4209 + $0x17c] sm:$0xf]
        %v4274 = vld [vmem:[%s4209 + $0x180] sm:$0xff]
        %v4275 = vld [vmem:[%s4209 + $0x188] sm:$0xf]
        %v4276 = vld [vmem:[%s4209 + $0x18c] sm:$0xff]
        %v4277 = vld [vmem:[%s4209 + $0x194] sm:$0xf]
        %v4278 = vld [vmem:[%s4209 + $0x198] sm:$0xff]
        %v4279 = vld [vmem:[%s4209 + $0x1a0] sm:$0xf]
        %v4280 = vld [vmem:[%s4209 + $0x1a4] sm:$0xff]
        %v4281 = vld [vmem:[%s4209 + $0x1ac] sm:$0xf]
        %v4282 = vld [vmem:[%s4209 + $0x1b0] sm:$0xff]
        %v4283 = vld [vmem:[%s4209 + $0x1b8] sm:$0xf]
        %v4284 = vld [vmem:[%s4209 + $0x1bc] sm:$0xff]
        %v4285 = vld [vmem:[%s4209 + $0x1c4] sm:$0xf]
        %v4286 = vld [vmem:[%s4209 + $0x1c8] sm:$0xff]
        %v4287 = vld [vmem:[%s4209 + $0x1d0] sm:$0xf]
        %v4288 = vld [vmem:[%s4209 + $0x1d4] sm:$0xff]
        %v4289 = vld [vmem:[%s4209 + $0x1dc] sm:$0xf]
        %v4290 = vld [vmem:[%s4209 + $0x1e0] sm:$0xff]
        %v4291 = vld [vmem:[%s4209 + $0x1e8] sm:$0xf]
        %v4292 = vld [vmem:[%s4209 + $0x1ec] sm:$0xff]
        %v4293 = vld [vmem:[%s4209 + $0x1f4] sm:$0xf]
        %v4294 = vld [vmem:[%s4209 + $0x1f8] sm:$0xff]
        %v4295 = vld [vmem:[%s4209 + $0x200] sm:$0xf]
        %v4296 = vld [vmem:[%s4209 + $0x204] sm:$0xff]
        %v4297 = vld [vmem:[%s4209 + $0x20c] sm:$0xf]
        %v4298 = vld [vmem:[%s4209 + $0x210] sm:$0xff]
        %v4299 = vld [vmem:[%s4209 + $0x218] sm:$0xf]
        %v4300 = vld [vmem:[%s4209 + $0x21c] sm:$0xff]
        %v4301 = vld [vmem:[%s4209 + $0x224] sm:$0xf]
        %v4302 = vld [vmem:[%s4209 + $0x228] sm:$0xff]
        %v4303 = vld [vmem:[%s4209 + $0x230] sm:$0xf]
        %v4304 = vld [vmem:[%s4209 + $0x234] sm:$0xff]
        %v4305 = vld [vmem:[%s4209 + $0x23c] sm:$0xf]
        %v4306 = vld [vmem:[%s4209 + $0x240] sm:$0xff]
        %v4307 = vld [vmem:[%s4209 + $0x248] sm:$0xf]
        %v4308 = vld [vmem:[%s4209 + $0x24c] sm:$0xff]
        %v4309 = vld [vmem:[%s4209 + $0x254] sm:$0xf]
        %v4310 = vld [vmem:[%s4209 + $0x258] sm:$0xff]
        %v4311 = vld [vmem:[%s4209 + $0x260] sm:$0xf]
        %v4312 = vld [vmem:[%s4209 + $0x264] sm:$0xff]
        %v4313 = vld [vmem:[%s4209 + $0x26c] sm:$0xf]
        %v4314 = vld [vmem:[%s4209 + $0x270] sm:$0xff]
        %v4315 = vld [vmem:[%s4209 + $0x278] sm:$0xf]
        %v4316 = vld [vmem:[%s4209 + $0x27c] sm:$0xff]
        %v4317 = vld [vmem:[%s4209 + $0x284] sm:$0xf]
        %s4318 = scalar_lea.vmem [#allocation9], 384
        %v4319 = vld [vmem:[%s4318] sm:$0xf]
        %v4320 = vld [vmem:[%s4318 + $0x4] sm:$0xf]
        %v4321 = vld [vmem:[%s4318 + $0x8] sm:$0xf]
        %v4322 = vld [vmem:[%s4318 + $0xc] sm:$0xf]
        %v4323 = vld [vmem:[%s4318 + $0x10] sm:$0xf]
        %v4324 = vld [vmem:[%s4318 + $0x14] sm:$0xf]
        %v4325 = vld [vmem:[%s4318 + $0x18] sm:$0xf]
        %v4326 = vld [vmem:[%s4318 + $0x1c] sm:$0xf]
        %v4327 = vld [vmem:[%s4318 + $0x20] sm:$0xf]
        %v4328 = vld [vmem:[%s4318 + $0x24] sm:$0xf]
        %v4329 = vld [vmem:[%s4318 + $0x28] sm:$0xf]
        %v4330 = vld [vmem:[%s4318 + $0x2c] sm:$0xf]
        %v4331 = vld [vmem:[%s4318 + $0x30] sm:$0xf]
        %v4332 = vld [vmem:[%s4318 + $0x34] sm:$0xf]
        %v4333 = vld [vmem:[%s4318 + $0x38] sm:$0xf]
        %v4334 = vld [vmem:[%s4318 + $0x3c] sm:$0xf]
        %v4335 = vld [vmem:[%s4318 + $0x40] sm:$0xf]
        %v4336 = vld [vmem:[%s4318 + $0x44] sm:$0xf]
        %v4337 = vld [vmem:[%s4318 + $0x48] sm:$0xf]
        %v4338 = vld [vmem:[%s4318 + $0x4c] sm:$0xf]
        %v4339 = vld [vmem:[%s4318 + $0x50] sm:$0xf]
        %v4340 = vld [vmem:[%s4318 + $0x54] sm:$0xf]
        %v4341 = vld [vmem:[%s4318 + $0x58] sm:$0xf]
        %v4342 = vld [vmem:[%s4318 + $0x5c] sm:$0xf]
        %v4343 = vld [vmem:[%s4318 + $0x60] sm:$0xf]
        %v4344 = vld [vmem:[%s4318 + $0x64] sm:$0xf]
        %v4345 = vld [vmem:[%s4318 + $0x68] sm:$0xf]
        %v4346 = vld [vmem:[%s4318 + $0x6c] sm:$0xf]
        %v4347 = vld [vmem:[%s4318 + $0x70] sm:$0xf]
        %v4348 = vld [vmem:[%s4318 + $0x74] sm:$0xf]
        %v4349 = vld [vmem:[%s4318 + $0x78] sm:$0xf]
        %v4350 = vld [vmem:[%s4318 + $0x7c] sm:$0xf]
        %v4351 = vld [vmem:[%s4318 + $0x80] sm:$0xf]
        %v4352 = vld [vmem:[%s4318 + $0x84] sm:$0xf]
        %v4353 = vld [vmem:[%s4318 + $0x88] sm:$0xf]
        %v4354 = vld [vmem:[%s4318 + $0x8c] sm:$0xf]
        %v4355 = vld [vmem:[%s4318 + $0x90] sm:$0xf]
        %v4356 = vld [vmem:[%s4318 + $0x94] sm:$0xf]
        %v4357 = vld [vmem:[%s4318 + $0x98] sm:$0xf]
        %v4358 = vld [vmem:[%s4318 + $0x9c] sm:$0xf]
        %v4359 = vld [vmem:[%s4318 + $0xa0] sm:$0xf]
        %v4360 = vld [vmem:[%s4318 + $0xa4] sm:$0xf]
        %v4361 = vld [vmem:[%s4318 + $0xa8] sm:$0xf]
        %v4362 = vld [vmem:[%s4318 + $0xac] sm:$0xf]
        %v4363 = vld [vmem:[%s4318 + $0xb0] sm:$0xf]
        %v4364 = vld [vmem:[%s4318 + $0xb4] sm:$0xf]
        %v4365 = vld [vmem:[%s4318 + $0xb8] sm:$0xf]
        %v4366 = vld [vmem:[%s4318 + $0xbc] sm:$0xf]
        %v4475 = vunpack.c.l.b16 %v4210
        %v4476 = vunpack.c.h.b16 %v4210
        %v4477 = vunpack.c.l.b16 %v4211
        %v4478 = vunpack.c.l.b16 %v4212
        %v4479 = vunpack.c.h.b16 %v4212
        %v4480 = vunpack.c.l.b16 %v4213
        %v4481 = vunpack.c.l.b16 %v4214
        %v4482 = vunpack.c.h.b16 %v4214
        %v4483 = vunpack.c.l.b16 %v4215
        %v4484 = vunpack.c.l.b16 %v4216
        %v4485 = vunpack.c.h.b16 %v4216
        %v4486 = vunpack.c.l.b16 %v4217
        %v4487 = vunpack.c.l.b16 %v4218
        %v4488 = vunpack.c.h.b16 %v4218
        %v4489 = vunpack.c.l.b16 %v4219
        %v4490 = vunpack.c.l.b16 %v4220
        %v4491 = vunpack.c.h.b16 %v4220
        %v4492 = vunpack.c.l.b16 %v4221
        %v4493 = vunpack.c.l.b16 %v4222
        %v4494 = vunpack.c.h.b16 %v4222
        %v4495 = vunpack.c.l.b16 %v4223
        %v4496 = vunpack.c.l.b16 %v4224
        %v4497 = vunpack.c.h.b16 %v4224
        %v4498 = vunpack.c.l.b16 %v4225
        %v4499 = vunpack.c.l.b16 %v4226
        %v4500 = vunpack.c.h.b16 %v4226
        %v4501 = vunpack.c.l.b16 %v4227
        %v4502 = vunpack.c.l.b16 %v4228
        %v4503 = vunpack.c.h.b16 %v4228
        %v4504 = vunpack.c.l.b16 %v4229
        %v4505 = vunpack.c.l.b16 %v4230
        %v4506 = vunpack.c.h.b16 %v4230
        %v4507 = vunpack.c.l.b16 %v4231
        %v4508 = vunpack.c.l.b16 %v4232
        %v4509 = vunpack.c.h.b16 %v4232
        %v4510 = vunpack.c.l.b16 %v4233
        %v4511 = vunpack.c.l.b16 %v4234
        %v4512 = vunpack.c.h.b16 %v4234
        %v4513 = vunpack.c.l.b16 %v4235
        %v4514 = vunpack.c.l.b16 %v4236
        %v4515 = vunpack.c.h.b16 %v4236
        %v4516 = vunpack.c.l.b16 %v4237
        %v4517 = vunpack.c.l.b16 %v4238
        %v4518 = vunpack.c.h.b16 %v4238
        %v4519 = vunpack.c.l.b16 %v4239
        %v4520 = vunpack.c.l.b16 %v4240
        %v4521 = vunpack.c.h.b16 %v4240
        %v4522 = vunpack.c.l.b16 %v4241
        %v4523 = vunpack.c.l.b16 %v4242
        %v4524 = vunpack.c.h.b16 %v4242
        %v4525 = vunpack.c.l.b16 %v4243
        %v4526 = vunpack.c.l.b16 %v4244
        %v4527 = vunpack.c.h.b16 %v4244
        %v4528 = vunpack.c.l.b16 %v4245
        %v4529 = vunpack.c.l.b16 %v4246
        %v4530 = vunpack.c.h.b16 %v4246
        %v4531 = vunpack.c.l.b16 %v4247
        %v4532 = vunpack.c.l.b16 %v4248
        %v4533 = vunpack.c.h.b16 %v4248
        %v4534 = vunpack.c.l.b16 %v4249
        %v4535 = vunpack.c.l.b16 %v4250
        %v4536 = vunpack.c.h.b16 %v4250
        %v4537 = vunpack.c.l.b16 %v4251
        %v4538 = vunpack.c.l.b16 %v4252
        %v4539 = vunpack.c.h.b16 %v4252
        %v4540 = vunpack.c.l.b16 %v4253
        %v4541 = vunpack.c.l.b16 %v4254
        %v4542 = vunpack.c.h.b16 %v4254
        %v4543 = vunpack.c.l.b16 %v4255
        %v4544 = vunpack.c.l.b16 %v4256
        %v4545 = vunpack.c.h.b16 %v4256
        %v4546 = vunpack.c.l.b16 %v4257
        %v4547 = vunpack.c.l.b16 %v4258
        %v4548 = vunpack.c.h.b16 %v4258
        %v4549 = vunpack.c.l.b16 %v4259
        %v4550 = vunpack.c.l.b16 %v4260
        %v4551 = vunpack.c.h.b16 %v4260
        %v4552 = vunpack.c.l.b16 %v4261
        %v4553 = vunpack.c.l.b16 %v4262
        %v4554 = vunpack.c.h.b16 %v4262
        %v4555 = vunpack.c.l.b16 %v4263
        %v4556 = vunpack.c.l.b16 %v4264
        %v4557 = vunpack.c.h.b16 %v4264
        %v4558 = vunpack.c.l.b16 %v4265
        %v4559 = vunpack.c.l.b16 %v4266
        %v4560 = vunpack.c.h.b16 %v4266
        %v4561 = vunpack.c.l.b16 %v4267
        %v4562 = vunpack.c.l.b16 %v4268
        %v4563 = vunpack.c.h.b16 %v4268
        %v4564 = vunpack.c.l.b16 %v4269
        %v4565 = vunpack.c.l.b16 %v4270
        %v4566 = vunpack.c.h.b16 %v4270
        %v4567 = vunpack.c.l.b16 %v4271
        %v4568 = vunpack.c.l.b16 %v4272
        %v4569 = vunpack.c.h.b16 %v4272
        %v4570 = vunpack.c.l.b16 %v4273
        %v4571 = vunpack.c.l.b16 %v4274
        %v4572 = vunpack.c.h.b16 %v4274
        %v4573 = vunpack.c.l.b16 %v4275
        %v4574 = vunpack.c.l.b16 %v4276
        %v4575 = vunpack.c.h.b16 %v4276
        %v4576 = vunpack.c.l.b16 %v4277
        %v4577 = vunpack.c.l.b16 %v4278
        %v4578 = vunpack.c.h.b16 %v4278
        %v4579 = vunpack.c.l.b16 %v4279
        %v4580 = vunpack.c.l.b16 %v4280
        %v4581 = vunpack.c.h.b16 %v4280
        %v4582 = vunpack.c.l.b16 %v4281
        %v4583 = vunpack.c.l.b16 %v4282
        %v4584 = vunpack.c.h.b16 %v4282
        %v4585 = vunpack.c.l.b16 %v4283
        %v4586 = vunpack.c.l.b16 %v4284
        %v4587 = vunpack.c.h.b16 %v4284
        %v4588 = vunpack.c.l.b16 %v4285
        %v4589 = vunpack.c.l.b16 %v4286
        %v4590 = vunpack.c.h.b16 %v4286
        %v4591 = vunpack.c.l.b16 %v4287
        %v4592 = vunpack.c.l.b16 %v4288
        %v4593 = vunpack.c.h.b16 %v4288
        %v4594 = vunpack.c.l.b16 %v4289
        %v4595 = vunpack.c.l.b16 %v4290
        %v4596 = vunpack.c.h.b16 %v4290
        %v4597 = vunpack.c.l.b16 %v4291
        %v4598 = vunpack.c.l.b16 %v4292
        %v4599 = vunpack.c.h.b16 %v4292
        %v4600 = vunpack.c.l.b16 %v4293
        %v4601 = vunpack.c.l.b16 %v4294
        %v4602 = vunpack.c.h.b16 %v4294
        %v4603 = vunpack.c.l.b16 %v4295
        %v4604 = vunpack.c.l.b16 %v4296
        %v4605 = vunpack.c.h.b16 %v4296
        %v4606 = vunpack.c.l.b16 %v4297
        %v4607 = vunpack.c.l.b16 %v4298
        %v4608 = vunpack.c.h.b16 %v4298
        %v4609 = vunpack.c.l.b16 %v4299
        %v4610 = vunpack.c.l.b16 %v4300
        %v4611 = vunpack.c.h.b16 %v4300
        %v4612 = vunpack.c.l.b16 %v4301
        %v4613 = vunpack.c.l.b16 %v4302
        %v4614 = vunpack.c.h.b16 %v4302
        %v4615 = vunpack.c.l.b16 %v4303
        %v4616 = vunpack.c.l.b16 %v4304
        %v4617 = vunpack.c.h.b16 %v4304
        %v4618 = vunpack.c.l.b16 %v4305
        %v4619 = vunpack.c.l.b16 %v4306
        %v4620 = vunpack.c.h.b16 %v4306
        %v4621 = vunpack.c.l.b16 %v4307
        %v4622 = vunpack.c.l.b16 %v4308
        %v4623 = vunpack.c.h.b16 %v4308
        %v4624 = vunpack.c.l.b16 %v4309
        %v4625 = vunpack.c.l.b16 %v4310
        %v4626 = vunpack.c.h.b16 %v4310
        %v4627 = vunpack.c.l.b16 %v4311
        %v4628 = vunpack.c.l.b16 %v4312
        %v4629 = vunpack.c.h.b16 %v4312
        %v4630 = vunpack.c.l.b16 %v4313
        %v4631 = vunpack.c.l.b16 %v4314
        %v4632 = vunpack.c.h.b16 %v4314
        %v4633 = vunpack.c.l.b16 %v4315
        %v4634 = vunpack.c.l.b16 %v4316
        %v4635 = vunpack.c.h.b16 %v4316
        %v4636 = vunpack.c.l.b16 %v4317
        %v4637 = vpack.c.b16 %v4478, %v4475
        %v4638 = vpack.c.b16 %v4479, %v4476
        %v4639 = vpack.c.b16 %v4480, %v4477
        %v4640 = vpack.c.b16 %v4484, %v4481
        %v4641 = vpack.c.b16 %v4485, %v4482
        %v4642 = vpack.c.b16 %v4486, %v4483
        %v4643 = vpack.c.b16 %v4490, %v4487
        %v4644 = vpack.c.b16 %v4491, %v4488
        %v4645 = vpack.c.b16 %v4492, %v4489
        %v4646 = vpack.c.b16 %v4496, %v4493
        %v4647 = vpack.c.b16 %v4497, %v4494
        %v4648 = vpack.c.b16 %v4498, %v4495
        %v4649 = vpack.c.b16 %v4502, %v4499
        %v4650 = vpack.c.b16 %v4503, %v4500
        %v4651 = vpack.c.b16 %v4504, %v4501
        %v4652 = vpack.c.b16 %v4508, %v4505
        %v4653 = vpack.c.b16 %v4509, %v4506
        %v4654 = vpack.c.b16 %v4510, %v4507
        %v4655 = vpack.c.b16 %v4514, %v4511
        %v4656 = vpack.c.b16 %v4515, %v4512
        %v4657 = vpack.c.b16 %v4516, %v4513
        %v4658 = vpack.c.b16 %v4520, %v4517
        %v4659 = vpack.c.b16 %v4521, %v4518
        %v4660 = vpack.c.b16 %v4522, %v4519
        %v4661 = vpack.c.b16 %v4526, %v4523
        %v4662 = vpack.c.b16 %v4527, %v4524
        %v4663 = vpack.c.b16 %v4528, %v4525
        %v4664 = vpack.c.b16 %v4532, %v4529
        %v4665 = vpack.c.b16 %v4533, %v4530
        %v4666 = vpack.c.b16 %v4534, %v4531
        %v4667 = vpack.c.b16 %v4538, %v4535
        %v4668 = vpack.c.b16 %v4539, %v4536
        %v4669 = vpack.c.b16 %v4540, %v4537
        %v4670 = vpack.c.b16 %v4544, %v4541
        %v4671 = vpack.c.b16 %v4545, %v4542
        %v4672 = vpack.c.b16 %v4546, %v4543
        %v4673 = vpack.c.b16 %v4550, %v4547
        %v4674 = vpack.c.b16 %v4551, %v4548
        %v4675 = vpack.c.b16 %v4552, %v4549
        %v4676 = vpack.c.b16 %v4556, %v4553
        %v4677 = vpack.c.b16 %v4557, %v4554
        %v4678 = vpack.c.b16 %v4558, %v4555
        %v4679 = vpack.c.b16 %v4562, %v4559
        %v4680 = vpack.c.b16 %v4563, %v4560
        %v4681 = vpack.c.b16 %v4564, %v4561
        %v4682 = vpack.c.b16 %v4568, %v4565
        %v4683 = vpack.c.b16 %v4569, %v4566
        %v4684 = vpack.c.b16 %v4570, %v4567
        %v4685 = vpack.c.b16 %v4574, %v4571
        %v4686 = vpack.c.b16 %v4575, %v4572
        %v4687 = vpack.c.b16 %v4576, %v4573
        %v4688 = vpack.c.b16 %v4580, %v4577
        %v4689 = vpack.c.b16 %v4581, %v4578
        %v4690 = vpack.c.b16 %v4582, %v4579
        %v4691 = vpack.c.b16 %v4586, %v4583
        %v4692 = vpack.c.b16 %v4587, %v4584
        %v4693 = vpack.c.b16 %v4588, %v4585
        %v4694 = vpack.c.b16 %v4592, %v4589
        %v4695 = vpack.c.b16 %v4593, %v4590
        %v4696 = vpack.c.b16 %v4594, %v4591
        %v4697 = vpack.c.b16 %v4598, %v4595
        %v4698 = vpack.c.b16 %v4599, %v4596
        %v4699 = vpack.c.b16 %v4600, %v4597
        %v4700 = vpack.c.b16 %v4604, %v4601
        %v4701 = vpack.c.b16 %v4605, %v4602
        %v4702 = vpack.c.b16 %v4606, %v4603
        %v4703 = vpack.c.b16 %v4610, %v4607
        %v4704 = vpack.c.b16 %v4611, %v4608
        %v4705 = vpack.c.b16 %v4612, %v4609
        %v4706 = vpack.c.b16 %v4616, %v4613
        %v4707 = vpack.c.b16 %v4617, %v4614
        %v4708 = vpack.c.b16 %v4618, %v4615
        %v4709 = vpack.c.b16 %v4622, %v4619
        %v4710 = vpack.c.b16 %v4623, %v4620
        %v4711 = vpack.c.b16 %v4624, %v4621
        %v4712 = vpack.c.b16 %v4628, %v4625
        %v4713 = vpack.c.b16 %v4629, %v4626
        %v4714 = vpack.c.b16 %v4630, %v4627
        %v4715 = vpack.c.b16 %v4634, %v4631
        %v4716 = vpack.c.b16 %v4635, %v4632
        %v4717 = vpack.c.b16 %v4636, %v4633
        %v4847 = vunpack.c.l.b16 %v4319
        %v4848 = vunpack.c.l.b16 %v4320
        %v4849 = vunpack.c.l.b16 %v4321
        %v4850 = vunpack.c.l.b16 %v4322
        %v4851 = vunpack.c.l.b16 %v4323
        %v4852 = vunpack.c.l.b16 %v4324
        %v4853 = vunpack.c.l.b16 %v4325
        %v4854 = vunpack.c.l.b16 %v4326
        %v4855 = vunpack.c.l.b16 %v4327
        %v4856 = vunpack.c.l.b16 %v4328
        %v4857 = vunpack.c.l.b16 %v4329
        %v4858 = vunpack.c.l.b16 %v4330
        %v4859 = vunpack.c.l.b16 %v4331
        %v4860 = vunpack.c.l.b16 %v4332
        %v4861 = vunpack.c.l.b16 %v4333
        %v4862 = vunpack.c.l.b16 %v4334
        %v4863 = vunpack.c.l.b16 %v4335
        %v4864 = vunpack.c.l.b16 %v4336
        %v4865 = vunpack.c.l.b16 %v4337
        %v4866 = vunpack.c.l.b16 %v4338
        %v4867 = vunpack.c.l.b16 %v4339
        %v4868 = vunpack.c.l.b16 %v4340
        %v4869 = vunpack.c.l.b16 %v4341
        %v4870 = vunpack.c.l.b16 %v4342
        %v4871 = vunpack.c.l.b16 %v4343
        %v4872 = vunpack.c.l.b16 %v4344
        %v4873 = vunpack.c.l.b16 %v4345
        %v4874 = vunpack.c.l.b16 %v4346
        %v4875 = vunpack.c.l.b16 %v4347
        %v4876 = vunpack.c.l.b16 %v4348
        %v4877 = vunpack.c.l.b16 %v4349
        %v4878 = vunpack.c.l.b16 %v4350
        %v4879 = vunpack.c.l.b16 %v4351
        %v4880 = vunpack.c.l.b16 %v4352
        %v4881 = vunpack.c.l.b16 %v4353
        %v4882 = vunpack.c.l.b16 %v4354
        %v4883 = vunpack.c.l.b16 %v4355
        %v4884 = vunpack.c.l.b16 %v4356
        %v4885 = vunpack.c.l.b16 %v4357
        %v4886 = vunpack.c.l.b16 %v4358
        %v4887 = vunpack.c.l.b16 %v4359
        %v4888 = vunpack.c.l.b16 %v4360
        %v4889 = vunpack.c.l.b16 %v4361
        %v4890 = vunpack.c.l.b16 %v4362
        %v4891 = vunpack.c.l.b16 %v4363
        %v4892 = vunpack.c.l.b16 %v4364
        %v4893 = vunpack.c.l.b16 %v4365
        %v4894 = vunpack.c.l.b16 %v4366
        %v4895 = vpack.c.b16 %v4848, %v4847
        %v4896 = vpack.c.b16 %v4850, %v4849
        %v4897 = vpack.c.b16 %v4852, %v4851
        %v4898 = vpack.c.b16 %v4854, %v4853
        %v4899 = vpack.c.b16 %v4856, %v4855
        %v4900 = vpack.c.b16 %v4858, %v4857
        %v4901 = vpack.c.b16 %v4860, %v4859
        %v4902 = vpack.c.b16 %v4862, %v4861
        %v4903 = vpack.c.b16 %v4864, %v4863
        %v4904 = vpack.c.b16 %v4866, %v4865
        %v4905 = vpack.c.b16 %v4868, %v4867
        %v4906 = vpack.c.b16 %v4870, %v4869
        %v4907 = vpack.c.b16 %v4872, %v4871
        %v4908 = vpack.c.b16 %v4874, %v4873
        %v4909 = vpack.c.b16 %v4876, %v4875
        %v4910 = vpack.c.b16 %v4878, %v4877
        %v4911 = vpack.c.b16 %v4880, %v4879
        %v4912 = vpack.c.b16 %v4882, %v4881
        %v4913 = vpack.c.b16 %v4884, %v4883
        %v4914 = vpack.c.b16 %v4886, %v4885
        %v4915 = vpack.c.b16 %v4888, %v4887
        %v4916 = vpack.c.b16 %v4890, %v4889
        %v4917 = vpack.c.b16 %v4892, %v4891
        %v4918 = vpack.c.b16 %v4894, %v4893
        %4943 = vmatprep.subr.bf16.mxu0 0
        %4944 = vmatpush1.bf16.msra.mxu0 %v4895
        %4945 = vmatprep.subr.bf16.mxu0 0
        %4946 = vmatpush1.bf16.msra.mxu0 %v4896
        %4947 = vmatprep.subr.bf16.mxu0 0
        %4948 = vmatpush1.bf16.msra.mxu0 %v4897
        %4949 = vmatprep.subr.bf16.mxu0 0
        %4950 = vmatpush1.bf16.msra.mxu0 %v4898
        %4951 = vmatprep.subr.bf16.mxu0 0
        %4952 = vmatpush1.bf16.msra.mxu0 %v4899
        %4953 = vmatprep.subr.bf16.mxu0 0
        %4954 = vmatpush1.bf16.msra.mxu0 %v4900
        %4955 = vmatprep.subr.bf16.mxu0 0
        %4956 = vmatpush1.bf16.msra.mxu0 %v4901
        %4957 = vmatprep.subr.bf16.mxu0 0
        %4958 = vmatpush1.bf16.msra.mxu0 %v4902
        %4959 = vmatprep.subr.bf16.mxu0 0
        %4960 = vmatpush1.bf16.msra.mxu0 %v4903
        %4961 = vmatprep.subr.bf16.mxu0 0
        %4962 = vmatpush1.bf16.msra.mxu0 %v4904
        %4963 = vmatprep.subr.bf16.mxu0 0
        %4964 = vmatpush1.bf16.msra.mxu0 %v4905
        %4965 = vmatprep.subr.bf16.mxu0 0
        %4966 = vmatpush1.bf16.msra.mxu0 %v4906
        %4967 = vmatprep.subr.bf16.mxu0 0
        %4968 = vmatpush1.bf16.msra.mxu0 %v4907
        %4969 = vmatprep.subr.bf16.mxu0 0
        %4970 = vmatpush1.bf16.msra.mxu0 %v4908
        %4971 = vmatprep.subr.bf16.mxu0 0
        %4972 = vmatpush1.bf16.msra.mxu0 %v4909
        %4973 = vmatprep.subr.bf16.mxu0 0
        %4974 = vmatpush1.bf16.msra.mxu0 %v4910
        %4975 = vmatprep.mubr.bf16.mxu0 %v4638
        %4976 = vmatmul.mubr.bf16.gmra.mrb[0].mxu0 %v4637
        %v4977 = vpop.f32.mrb[0].mxu0
        %v4978 = vadd.f32 0.0, %v4977
        %v4979 = vpop.f32.mrb[0].mxu0
        %v4980 = vpop.f32.mrb[0].mxu0
        %v4981 = vadd.f32 0.0, %v4980
        %v4982 = vpop.f32.mrb[0].mxu0
        %4983 = vmatprep.mubr.bf16.mxu0 %v4641
        %4984 = vmatmul.mubr.bf16.gmra.mrb[0].mxu0 %v4640
        %v4985 = vpop.f32.mrb[0].mxu0
        %v4986 = vadd.f32 0.0, %v4985
        %v4987 = vpop.f32.mrb[0].mxu0
        %v4988 = vpop.f32.mrb[0].mxu0
        %v4989 = vadd.f32 0.0, %v4988
        %v4990 = vpop.f32.mrb[0].mxu0
        %4991 = vmatprep.mubr.bf16.mxu0 %v4644
        %4992 = vmatmul.mubr.bf16.gmra.mrb[0].mxu0 %v4643
        %v4993 = vpop.f32.mrb[0].mxu0
        %v4994 = vadd.f32 0.0, %v4993
        %v4995 = vpop.f32.mrb[0].mxu0
        %v4996 = vpop.f32.mrb[0].mxu0
        %v4997 = vadd.f32 0.0, %v4996
        %v4998 = vpop.f32.mrb[0].mxu0
        %4999 = vmatprep.mubr.bf16.mxu0 %v4647
        %5000 = vmatmul.mubr.bf16.gmra.mrb[0].mxu0 %v4646
        %v5001 = vpop.f32.mrb[0].mxu0
        %v5002 = vadd.f32 0.0, %v5001
        %v5003 = vpop.f32.mrb[0].mxu0
        %v5004 = vpop.f32.mrb[0].mxu0
        %v5005 = vadd.f32 0.0, %v5004
        %v5006 = vpop.f32.mrb[0].mxu0
        %5007 = vmatprep.mubr.bf16.mxu0 %v4650
        %5008 = vmatmul.mubr.bf16.gmra.mrb[0].mxu0 %v4649
        %v5009 = vpop.f32.mrb[0].mxu0
        %v5010 = vadd.f32 0.0, %v5009
        %v5011 = vpop.f32.mrb[0].mxu0
        %v5012 = vpop.f32.mrb[0].mxu0
        %v5013 = vadd.f32 0.0, %v5012
        %v5014 = vpop.f32.mrb[0].mxu0
        %5015 = vmatprep.mubr.bf16.mxu0 %v4653
        %5016 = vmatmul.mubr.bf16.gmra.mrb[0].mxu0 %v4652
        %v5017 = vpop.f32.mrb[0].mxu0
        %v5018 = vadd.f32 0.0, %v5017
        %v5019 = vpop.f32.mrb[0].mxu0
        %v5020 = vpop.f32.mrb[0].mxu0
        %v5021 = vadd.f32 0.0, %v5020
        %v5022 = vpop.f32.mrb[0].mxu0
        %5023 = vmatprep.mubr.bf16.mxu0 %v4656
        %5024 = vmatmul.mubr.bf16.gmra.mrb[0].mxu0 %v4655
        %v5025 = vpop.f32.mrb[0].mxu0
        %v5026 = vadd.f32 0.0, %v5025
        %v5027 = vpop.f32.mrb[0].mxu0
        %v5028 = vpop.f32.mrb[0].mxu0
        %v5029 = vadd.f32 0.0, %v5028
        %v5030 = vpop.f32.mrb[0].mxu0
        %5031 = vmatprep.mubr.bf16.mxu0 %v4659
        %5032 = vmatmul.mubr.bf16.gmra.mrb[0].mxu0 %v4658
        %v5033 = vpop.f32.mrb[0].mxu0
        %v5034 = vadd.f32 0.0, %v5033
        %v5035 = vpop.f32.mrb[0].mxu0
        %v5036 = vpop.f32.mrb[0].mxu0
        %v5037 = vadd.f32 0.0, %v5036
        %v5038 = vpop.f32.mrb[0].mxu0
        %5039 = vmatprep.mubr.bf16.mxu0 %v4662
        %5040 = vmatmul.mubr.bf16.gmra.mrb[0].mxu0 %v4661
        %v5041 = vpop.f32.mrb[0].mxu0
        %v5042 = vadd.f32 0.0, %v5041
        %v5043 = vpop.f32.mrb[0].mxu0
        %v5044 = vpop.f32.mrb[0].mxu0
        %v5045 = vadd.f32 0.0, %v5044
        %v5046 = vpop.f32.mrb[0].mxu0
        %5047 = vmatprep.mubr.bf16.mxu0 %v4665
        %5048 = vmatmul.mubr.bf16.gmra.mrb[0].mxu0 %v4664
        %v5049 = vpop.f32.mrb[0].mxu0
        %v5050 = vadd.f32 0.0, %v5049
        %v5051 = vpop.f32.mrb[0].mxu0
        %v5052 = vpop.f32.mrb[0].mxu0
        %v5053 = vadd.f32 0.0, %v5052
        %v5054 = vpop.f32.mrb[0].mxu0
        %5055 = vmatprep.mubr.bf16.mxu0 %v4668
        %5056 = vmatmul.mubr.bf16.gmra.mrb[0].mxu0 %v4667
        %v5057 = vpop.f32.mrb[0].mxu0
        %v5058 = vadd.f32 0.0, %v5057
        %v5059 = vpop.f32.mrb[0].mxu0
        %v5060 = vpop.f32.mrb[0].mxu0
        %v5061 = vadd.f32 0.0, %v5060
        %v5062 = vpop.f32.mrb[0].mxu0
        %5063 = vmatprep.mubr.bf16.mxu0 %v4671
        %5064 = vmatmul.mubr.bf16.gmra.mrb[0].mxu0 %v4670
        %v5065 = vpop.f32.mrb[0].mxu0
        %v5066 = vadd.f32 0.0, %v5065
        %v5067 = vpop.f32.mrb[0].mxu0
        %v5068 = vpop.f32.mrb[0].mxu0
        %v5069 = vadd.f32 0.0, %v5068
        %v5070 = vpop.f32.mrb[0].mxu0
        %5071 = vmatprep.mubr.bf16.mxu0 %v4674
        %5072 = vmatmul.mubr.bf16.gmra.mrb[0].mxu0 %v4673
        %v5073 = vpop.f32.mrb[0].mxu0
        %v5074 = vadd.f32 0.0, %v5073
        %v5075 = vpop.f32.mrb[0].mxu0
        %v5076 = vpop.f32.mrb[0].mxu0
        %v5077 = vadd.f32 0.0, %v5076
        %v5078 = vpop.f32.mrb[0].mxu0
        %5079 = vmatprep.mubr.bf16.mxu0 %v4677
        %5080 = vmatmul.mubr.bf16.gmra.mrb[0].mxu0 %v4676
        %v5081 = vpop.f32.mrb[0].mxu0
        %v5082 = vadd.f32 0.0, %v5081
        %v5083 = vpop.f32.mrb[0].mxu0
        %v5084 = vpop.f32.mrb[0].mxu0
        %v5085 = vadd.f32 0.0, %v5084
        %v5086 = vpop.f32.mrb[0].mxu0
        %5087 = vmatprep.mubr.bf16.mxu0 %v4680
        %5088 = vmatmul.mubr.bf16.gmra.mrb[0].mxu0 %v4679
        %v5089 = vpop.f32.mrb[0].mxu0
        %v5090 = vadd.f32 0.0, %v5089
        %v5091 = vpop.f32.mrb[0].mxu0
        %v5092 = vpop.f32.mrb[0].mxu0
        %v5093 = vadd.f32 0.0, %v5092
        %v5094 = vpop.f32.mrb[0].mxu0
        %5095 = vmatprep.mubr.bf16.mxu0 %v4683
        %5096 = vmatmul.mubr.bf16.gmra.mrb[0].mxu0 %v4682
        %v5097 = vpop.f32.mrb[0].mxu0
        %v5098 = vadd.f32 0.0, %v5097
        %v5099 = vpop.f32.mrb[0].mxu0
        %v5100 = vpop.f32.mrb[0].mxu0
        %v5101 = vadd.f32 0.0, %v5100
        %v5102 = vpop.f32.mrb[0].mxu0
        %5103 = vmatprep.mubr.bf16.mxu0 %v4686
        %5104 = vmatmul.mubr.bf16.gmra.mrb[0].mxu0 %v4685
        %v5105 = vpop.f32.mrb[0].mxu0
        %v5106 = vadd.f32 0.0, %v5105
        %v5107 = vpop.f32.mrb[0].mxu0
        %v5108 = vpop.f32.mrb[0].mxu0
        %v5109 = vadd.f32 0.0, %v5108
        %v5110 = vpop.f32.mrb[0].mxu0
        %5111 = vmatprep.mubr.bf16.mxu0 %v4689
        %5112 = vmatmul.mubr.bf16.gmra.mrb[0].mxu0 %v4688
        %v5113 = vpop.f32.mrb[0].mxu0
        %v5114 = vadd.f32 0.0, %v5113
        %v5115 = vpop.f32.mrb[0].mxu0
        %v5116 = vpop.f32.mrb[0].mxu0
        %v5117 = vadd.f32 0.0, %v5116
        %v5118 = vpop.f32.mrb[0].mxu0
        %5119 = vmatprep.mubr.bf16.mxu0 %v4692
        %5120 = vmatmul.mubr.bf16.gmra.mrb[0].mxu0 %v4691
        %v5121 = vpop.f32.mrb[0].mxu0
        %v5122 = vadd.f32 0.0, %v5121
        %v5123 = vpop.f32.mrb[0].mxu0
        %v5124 = vpop.f32.mrb[0].mxu0
        %v5125 = vadd.f32 0.0, %v5124
        %v5126 = vpop.f32.mrb[0].mxu0
        %5127 = vmatprep.mubr.bf16.mxu0 %v4695
        %5128 = vmatmul.mubr.bf16.gmra.mrb[0].mxu0 %v4694
        %v5129 = vpop.f32.mrb[0].mxu0
        %v5130 = vadd.f32 0.0, %v5129
        %v5131 = vpop.f32.mrb[0].mxu0
        %v5132 = vpop.f32.mrb[0].mxu0
        %v5133 = vadd.f32 0.0, %v5132
        %v5134 = vpop.f32.mrb[0].mxu0
        %5135 = vmatprep.mubr.bf16.mxu0 %v4698
        %5136 = vmatmul.mubr.bf16.gmra.mrb[0].mxu0 %v4697
        %v5137 = vpop.f32.mrb[0].mxu0
        %v5138 = vadd.f32 0.0, %v5137
        %v5139 = vpop.f32.mrb[0].mxu0
        %v5140 = vpop.f32.mrb[0].mxu0
        %v5141 = vadd.f32 0.0, %v5140
        %v5142 = vpop.f32.mrb[0].mxu0
        %5143 = vmatprep.mubr.bf16.mxu0 %v4701
        %5144 = vmatmul.mubr.bf16.gmra.mrb[0].mxu0 %v4700
        %v5145 = vpop.f32.mrb[0].mxu0
        %v5146 = vadd.f32 0.0, %v5145
        %v5147 = vpop.f32.mrb[0].mxu0
        %v5148 = vpop.f32.mrb[0].mxu0
        %v5149 = vadd.f32 0.0, %v5148
        %v5150 = vpop.f32.mrb[0].mxu0
        %5151 = vmatprep.mubr.bf16.mxu0 %v4704
        %5152 = vmatmul.mubr.bf16.gmra.mrb[0].mxu0 %v4703
        %v5153 = vpop.f32.mrb[0].mxu0
        %v5154 = vadd.f32 0.0, %v5153
        %v5155 = vpop.f32.mrb[0].mxu0
        %v5156 = vpop.f32.mrb[0].mxu0
        %v5157 = vadd.f32 0.0, %v5156
        %v5158 = vpop.f32.mrb[0].mxu0
        %5159 = vmatprep.mubr.bf16.mxu0 %v4707
        %5160 = vmatmul.mubr.bf16.gmra.mrb[0].mxu0 %v4706
        %v5161 = vpop.f32.mrb[0].mxu0
        %v5162 = vadd.f32 0.0, %v5161
        %v5163 = vpop.f32.mrb[0].mxu0
        %v5164 = vpop.f32.mrb[0].mxu0
        %v5165 = vadd.f32 0.0, %v5164
        %v5166 = vpop.f32.mrb[0].mxu0
        %5167 = vmatprep.mubr.bf16.mxu0 %v4710
        %5168 = vmatmul.mubr.bf16.gmra.mrb[0].mxu0 %v4709
        %v5169 = vpop.f32.mrb[0].mxu0
        %v5170 = vadd.f32 0.0, %v5169
        %v5171 = vpop.f32.mrb[0].mxu0
        %v5172 = vpop.f32.mrb[0].mxu0
        %v5173 = vadd.f32 0.0, %v5172
        %v5174 = vpop.f32.mrb[0].mxu0
        %5175 = vmatprep.mubr.bf16.mxu0 %v4713
        %5176 = vmatmul.mubr.bf16.gmra.mrb[0].mxu0 %v4712
        %v5177 = vpop.f32.mrb[0].mxu0
        %v5178 = vadd.f32 0.0, %v5177
        %v5179 = vpop.f32.mrb[0].mxu0
        %v5180 = vpop.f32.mrb[0].mxu0
        %v5181 = vadd.f32 0.0, %v5180
        %v5182 = vpop.f32.mrb[0].mxu0
        %5183 = vmatprep.mubr.bf16.mxu0 %v4716
        %5184 = vmatmul.mubr.bf16.gmra.mrb[0].mxu0 %v4715
        %v5185 = vpop.f32.mrb[0].mxu0
        %v5186 = vadd.f32 0.0, %v5185
        %v5187 = vpop.f32.mrb[0].mxu0
        %v5188 = vpop.f32.mrb[0].mxu0
        %v5189 = vadd.f32 0.0, %v5188
        %v5190 = vpop.f32.mrb[0].mxu0
        %5191 = vdwg.mxu0
        %5192 = vmatprep.subr.bf16.mxu0 0
        %5193 = vmatpush1.bf16.msra.mxu0 %v4911
        %5194 = vmatprep.subr.bf16.mxu0 0
        %5195 = vmatpush1.bf16.msra.mxu0 %v4912
        %5196 = vmatprep.subr.bf16.mxu0 0
        %5197 = vmatpush1.bf16.msra.mxu0 %v4913
        %5198 = vmatprep.subr.bf16.mxu0 0
        %5199 = vmatpush1.bf16.msra.mxu0 %v4914
        %5200 = vmatprep.subr.bf16.mxu0 0
        %5201 = vmatpush1.bf16.msra.mxu0 %v4915
        %5202 = vmatprep.subr.bf16.mxu0 0
        %5203 = vmatpush1.bf16.msra.mxu0 %v4916
        %5204 = vmatprep.subr.bf16.mxu0 0
        %5205 = vmatpush1.bf16.msra.mxu0 %v4917
        %5206 = vmatprep.subr.bf16.mxu0 0
        %5207 = vmatpush1.bf16.msra.mxu0 %v4918
        %5208 = vmatprep.subr.bf16.mxu0 0
        %5209 = vmatpush1.bf16.msra.mxu0 0
        %5210 = vmatprep.subr.bf16.mxu0 0
        %5211 = vmatpush1.bf16.msra.mxu0 0
        %5212 = vmatprep.subr.bf16.mxu0 0
        %5213 = vmatpush1.bf16.msra.mxu0 0
        %5214 = vmatprep.subr.bf16.mxu0 0
        %5215 = vmatpush1.bf16.msra.mxu0 0
        %5216 = vmatprep.subr.bf16.mxu0 0
        %5217 = vmatpush1.bf16.msra.mxu0 0
        %5218 = vmatprep.subr.bf16.mxu0 0
        %5219 = vmatpush1.bf16.msra.mxu0 0
        %5220 = vmatprep.subr.bf16.mxu0 0
        %5221 = vmatpush1.bf16.msra.mxu0 0
        %5222 = vmatprep.subr.bf16.mxu0 0
        %5223 = vmatpush1.bf16.msra.mxu0 0
        %5224 = vmatprep.mubr.bf16.mxu0 0
        %5225 = vmatmul.mubr.bf16.gmra.mrb[0].mxu0 %v4639
        %v5226 = vpop.f32.mrb[0].mxu0
        %v5227 = vadd.f32 %v4978, %v5226
        %v5228 = vpop.f32.mrb[0].mxu0
        %v5229 = vpop.f32.mrb[0].mxu0
        %v5230 = vadd.f32 %v4981, %v5229
        %v5231 = vpop.f32.mrb[0].mxu0
        %5232 = vmatprep.mubr.bf16.mxu0 0
        %5233 = vmatmul.mubr.bf16.gmra.mrb[0].mxu0 %v4642
        %v5234 = vpop.f32.mrb[0].mxu0
        %v5235 = vadd.f32 %v4986, %v5234
        %v5236 = vpop.f32.mrb[0].mxu0
        %v5237 = vpop.f32.mrb[0].mxu0
        %v5238 = vadd.f32 %v4989, %v5237
        %v5239 = vpop.f32.mrb[0].mxu0
        %5240 = vmatprep.mubr.bf16.mxu0 0
        %5241 = vmatmul.mubr.bf16.gmra.mrb[0].mxu0 %v4645
        %v5242 = vpop.f32.mrb[0].mxu0
        %v5243 = vadd.f32 %v4994, %v5242
        %v5244 = vpop.f32.mrb[0].mxu0
        %v5245 = vpop.f32.mrb[0].mxu0
        %v5246 = vadd.f32 %v4997, %v5245
        %v5247 = vpop.f32.mrb[0].mxu0
        %5248 = vmatprep.mubr.bf16.mxu0 0
        %5249 = vmatmul.mubr.bf16.gmra.mrb[0].mxu0 %v4648
        %v5250 = vpop.f32.mrb[0].mxu0
        %v5251 = vadd.f32 %v5002, %v5250
        %v5252 = vpop.f32.mrb[0].mxu0
        %v5253 = vpop.f32.mrb[0].mxu0
        %v5254 = vadd.f32 %v5005, %v5253
        %v5255 = vpop.f32.mrb[0].mxu0
        %5256 = vmatprep.mubr.bf16.mxu0 0
        %5257 = vmatmul.mubr.bf16.gmra.mrb[0].mxu0 %v4651
        %v5258 = vpop.f32.mrb[0].mxu0
        %v5259 = vadd.f32 %v5010, %v5258
        %v5260 = vpop.f32.mrb[0].mxu0
        %v5261 = vpop.f32.mrb[0].mxu0
        %v5262 = vadd.f32 %v5013, %v5261
        %v5263 = vpop.f32.mrb[0].mxu0
        %5264 = vmatprep.mubr.bf16.mxu0 0
        %5265 = vmatmul.mubr.bf16.gmra.mrb[0].mxu0 %v4654
        %v5266 = vpop.f32.mrb[0].mxu0
        %v5267 = vadd.f32 %v5018, %v5266
        %v5268 = vpop.f32.mrb[0].mxu0
        %v5269 = vpop.f32.mrb[0].mxu0
        %v5270 = vadd.f32 %v5021, %v5269
        %v5271 = vpop.f32.mrb[0].mxu0
        %5272 = vmatprep.mubr.bf16.mxu0 0
        %5273 = vmatmul.mubr.bf16.gmra.mrb[0].mxu0 %v4657
        %v5274 = vpop.f32.mrb[0].mxu0
        %v5275 = vadd.f32 %v5026, %v5274
        %v5276 = vpop.f32.mrb[0].mxu0
        %v5277 = vpop.f32.mrb[0].mxu0
        %v5278 = vadd.f32 %v5029, %v5277
        %v5279 = vpop.f32.mrb[0].mxu0
        %5280 = vmatprep.mubr.bf16.mxu0 0
        %5281 = vmatmul.mubr.bf16.gmra.mrb[0].mxu0 %v4660
        %v5282 = vpop.f32.mrb[0].mxu0
        %v5283 = vadd.f32 %v5034, %v5282
        %v5284 = vpop.f32.mrb[0].mxu0
        %v5285 = vpop.f32.mrb[0].mxu0
        %v5286 = vadd.f32 %v5037, %v5285
        %v5287 = vpop.f32.mrb[0].mxu0
        %5288 = vmatprep.mubr.bf16.mxu0 0
        %5289 = vmatmul.mubr.bf16.gmra.mrb[0].mxu0 %v4663
        %v5290 = vpop.f32.mrb[0].mxu0
        %v5291 = vadd.f32 %v5042, %v5290
        %v5292 = vpop.f32.mrb[0].mxu0
        %v5293 = vpop.f32.mrb[0].mxu0
        %v5294 = vadd.f32 %v5045, %v5293
        %v5295 = vpop.f32.mrb[0].mxu0
        %5296 = vmatprep.mubr.bf16.mxu0 0
        %5297 = vmatmul.mubr.bf16.gmra.mrb[0].mxu0 %v4666
        %v5298 = vpop.f32.mrb[0].mxu0
        %v5299 = vadd.f32 %v5050, %v5298
        %v5300 = vpop.f32.mrb[0].mxu0
        %v5301 = vpop.f32.mrb[0].mxu0
        %v5302 = vadd.f32 %v5053, %v5301
        %v5303 = vpop.f32.mrb[0].mxu0
        %5304 = vmatprep.mubr.bf16.mxu0 0
        %5305 = vmatmul.mubr.bf16.gmra.mrb[0].mxu0 %v4669
        %v5306 = vpop.f32.mrb[0].mxu0
        %v5307 = vadd.f32 %v5058, %v5306
        %v5308 = vpop.f32.mrb[0].mxu0
        %v5309 = vpop.f32.mrb[0].mxu0
        %v5310 = vadd.f32 %v5061, %v5309
        %v5311 = vpop.f32.mrb[0].mxu0
        %5312 = vmatprep.mubr.bf16.mxu0 0
        %5313 = vmatmul.mubr.bf16.gmra.mrb[0].mxu0 %v4672
        %v5314 = vpop.f32.mrb[0].mxu0
        %v5315 = vadd.f32 %v5066, %v5314
        %v5316 = vpop.f32.mrb[0].mxu0
        %v5317 = vpop.f32.mrb[0].mxu0
        %v5318 = vadd.f32 %v5069, %v5317
        %v5319 = vpop.f32.mrb[0].mxu0
        %5320 = vmatprep.mubr.bf16.mxu0 0
        %5321 = vmatmul.mubr.bf16.gmra.mrb[0].mxu0 %v4675
        %v5322 = vpop.f32.mrb[0].mxu0
        %v5323 = vadd.f32 %v5074, %v5322
        %v5324 = vpop.f32.mrb[0].mxu0
        %v5325 = vpop.f32.mrb[0].mxu0
        %v5326 = vadd.f32 %v5077, %v5325
        %v5327 = vpop.f32.mrb[0].mxu0
        %5328 = vmatprep.mubr.bf16.mxu0 0
        %5329 = vmatmul.mubr.bf16.gmra.mrb[0].mxu0 %v4678
        %v5330 = vpop.f32.mrb[0].mxu0
        %v5331 = vadd.f32 %v5082, %v5330
        %v5332 = vpop.f32.mrb[0].mxu0
        %v5333 = vpop.f32.mrb[0].mxu0
        %v5334 = vadd.f32 %v5085, %v5333
        %v5335 = vpop.f32.mrb[0].mxu0
        %5336 = vmatprep.mubr.bf16.mxu0 0
        %5337 = vmatmul.mubr.bf16.gmra.mrb[0].mxu0 %v4681
        %v5338 = vpop.f32.mrb[0].mxu0
        %v5339 = vadd.f32 %v5090, %v5338
        %v5340 = vpop.f32.mrb[0].mxu0
        %v5341 = vpop.f32.mrb[0].mxu0
        %v5342 = vadd.f32 %v5093, %v5341
        %v5343 = vpop.f32.mrb[0].mxu0
        %5344 = vmatprep.mubr.bf16.mxu0 0
        %5345 = vmatmul.mubr.bf16.gmra.mrb[0].mxu0 %v4684
        %v5346 = vpop.f32.mrb[0].mxu0
        %v5347 = vadd.f32 %v5098, %v5346
        %v5348 = vpop.f32.mrb[0].mxu0
        %v5349 = vpop.f32.mrb[0].mxu0
        %v5350 = vadd.f32 %v5101, %v5349
        %v5351 = vpop.f32.mrb[0].mxu0
        %5352 = vmatprep.mubr.bf16.mxu0 0
        %5353 = vmatmul.mubr.bf16.gmra.mrb[0].mxu0 %v4687
        %v5354 = vpop.f32.mrb[0].mxu0
        %v5355 = vadd.f32 %v5106, %v5354
        %v5356 = vpop.f32.mrb[0].mxu0
        %v5357 = vpop.f32.mrb[0].mxu0
        %v5358 = vadd.f32 %v5109, %v5357
        %v5359 = vpop.f32.mrb[0].mxu0
        %5360 = vmatprep.mubr.bf16.mxu0 0
        %5361 = vmatmul.mubr.bf16.gmra.mrb[0].mxu0 %v4690
        %v5362 = vpop.f32.mrb[0].mxu0
        %v5363 = vadd.f32 %v5114, %v5362
        %v5364 = vpop.f32.mrb[0].mxu0
        %v5365 = vpop.f32.mrb[0].mxu0
        %v5366 = vadd.f32 %v5117, %v5365
        %v5367 = vpop.f32.mrb[0].mxu0
        %5368 = vmatprep.mubr.bf16.mxu0 0
        %5369 = vmatmul.mubr.bf16.gmra.mrb[0].mxu0 %v4693
        %v5370 = vpop.f32.mrb[0].mxu0
        %v5371 = vadd.f32 %v5122, %v5370
        %v5372 = vpop.f32.mrb[0].mxu0
        %v5373 = vpop.f32.mrb[0].mxu0
        %v5374 = vadd.f32 %v5125, %v5373
        %v5375 = vpop.f32.mrb[0].mxu0
        %5376 = vmatprep.mubr.bf16.mxu0 0
        %5377 = vmatmul.mubr.bf16.gmra.mrb[0].mxu0 %v4696
        %v5378 = vpop.f32.mrb[0].mxu0
        %v5379 = vadd.f32 %v5130, %v5378
        %v5380 = vpop.f32.mrb[0].mxu0
        %v5381 = vpop.f32.mrb[0].mxu0
        %v5382 = vadd.f32 %v5133, %v5381
        %v5383 = vpop.f32.mrb[0].mxu0
        %5384 = vmatprep.mubr.bf16.mxu0 0
        %5385 = vmatmul.mubr.bf16.gmra.mrb[0].mxu0 %v4699
        %v5386 = vpop.f32.mrb[0].mxu0
        %v5387 = vadd.f32 %v5138, %v5386
        %v5388 = vpop.f32.mrb[0].mxu0
        %v5389 = vpop.f32.mrb[0].mxu0
        %v5390 = vadd.f32 %v5141, %v5389
        %v5391 = vpop.f32.mrb[0].mxu0
        %5392 = vmatprep.mubr.bf16.mxu0 0
        %5393 = vmatmul.mubr.bf16.gmra.mrb[0].mxu0 %v4702
        %v5394 = vpop.f32.mrb[0].mxu0
        %v5395 = vadd.f32 %v5146, %v5394
        %v5396 = vpop.f32.mrb[0].mxu0
        %v5397 = vpop.f32.mrb[0].mxu0
        %v5398 = vadd.f32 %v5149, %v5397
        %v5399 = vpop.f32.mrb[0].mxu0
        %5400 = vmatprep.mubr.bf16.mxu0 0
        %5401 = vmatmul.mubr.bf16.gmra.mrb[0].mxu0 %v4705
        %v5402 = vpop.f32.mrb[0].mxu0
        %v5403 = vadd.f32 %v5154, %v5402
        %v5404 = vpop.f32.mrb[0].mxu0
        %v5405 = vpop.f32.mrb[0].mxu0
        %v5406 = vadd.f32 %v5157, %v5405
        %v5407 = vpop.f32.mrb[0].mxu0
        %5408 = vmatprep.mubr.bf16.mxu0 0
        %5409 = vmatmul.mubr.bf16.gmra.mrb[0].mxu0 %v4708
        %v5410 = vpop.f32.mrb[0].mxu0
        %v5411 = vadd.f32 %v5162, %v5410
        %v5412 = vpop.f32.mrb[0].mxu0
        %v5413 = vpop.f32.mrb[0].mxu0
        %v5414 = vadd.f32 %v5165, %v5413
        %v5415 = vpop.f32.mrb[0].mxu0
        %5416 = vmatprep.mubr.bf16.mxu0 0
        %5417 = vmatmul.mubr.bf16.gmra.mrb[0].mxu0 %v4711
        %v5418 = vpop.f32.mrb[0].mxu0
        %v5419 = vadd.f32 %v5170, %v5418
        %v5420 = vpop.f32.mrb[0].mxu0
        %v5421 = vpop.f32.mrb[0].mxu0
        %v5422 = vadd.f32 %v5173, %v5421
        %v5423 = vpop.f32.mrb[0].mxu0
        %5424 = vmatprep.mubr.bf16.mxu0 0
        %5425 = vmatmul.mubr.bf16.gmra.mrb[0].mxu0 %v4714
        %v5426 = vpop.f32.mrb[0].mxu0
        %v5427 = vadd.f32 %v5178, %v5426
        %v5428 = vpop.f32.mrb[0].mxu0
        %v5429 = vpop.f32.mrb[0].mxu0
        %v5430 = vadd.f32 %v5181, %v5429
        %v5431 = vpop.f32.mrb[0].mxu0
        %5432 = vmatprep.mubr.bf16.mxu0 0
        %5433 = vmatmul.mubr.bf16.gmra.mrb[0].mxu0 %v4717
        %v5434 = vpop.f32.mrb[0].mxu0
        %v5435 = vadd.f32 %v5186, %v5434
        %v5436 = vpop.f32.mrb[0].mxu0
        %v5437 = vpop.f32.mrb[0].mxu0
        %v5438 = vadd.f32 %v5189, %v5437
        %v5439 = vpop.f32.mrb[0].mxu0
        %5440 = vdwg.mxu0
        %v5441 = vadd.f32 %v3995, %v5227
        %v5442 = vadd.f32 %v3998, %v5230
        %v5443 = vadd.f32 %v4003, %v5235
        %v5444 = vadd.f32 %v4006, %v5238
        %v5445 = vadd.f32 %v4011, %v5243
        %v5446 = vadd.f32 %v4014, %v5246
        %v5447 = vadd.f32 %v4019, %v5251
        %v5448 = vadd.f32 %v4022, %v5254
        %v5449 = vadd.f32 %v4027, %v5259
        %v5450 = vadd.f32 %v4030, %v5262
        %v5451 = vadd.f32 %v4035, %v5267
        %v5452 = vadd.f32 %v4038, %v5270
        %v5453 = vadd.f32 %v4043, %v5275
        %v5454 = vadd.f32 %v4046, %v5278
        %v5455 = vadd.f32 %v4051, %v5283
        %v5456 = vadd.f32 %v4054, %v5286
        %v5457 = vadd.f32 %v4059, %v5291
        %v5458 = vadd.f32 %v4062, %v5294
        %v5459 = vadd.f32 %v4067, %v5299
        %v5460 = vadd.f32 %v4070, %v5302
        %v5461 = vadd.f32 %v4075, %v5307
        %v5462 = vadd.f32 %v4078, %v5310
        %v5463 = vadd.f32 %v4083, %v5315
        %v5464 = vadd.f32 %v4086, %v5318
        %v5465 = vadd.f32 %v4091, %v5323
        %v5466 = vadd.f32 %v4094, %v5326
        %v5467 = vadd.f32 %v4099, %v5331
        %v5468 = vadd.f32 %v4102, %v5334
        %v5469 = vadd.f32 %v4107, %v5339
        %v5470 = vadd.f32 %v4110, %v5342
        %v5471 = vadd.f32 %v4115, %v5347
        %v5472 = vadd.f32 %v4118, %v5350
        %v5473 = vadd.f32 %v4123, %v5355
        %v5474 = vadd.f32 %v4126, %v5358
        %v5475 = vadd.f32 %v4131, %v5363
        %v5476 = vadd.f32 %v4134, %v5366
        %v5477 = vadd.f32 %v4139, %v5371
        %v5478 = vadd.f32 %v4142, %v5374
        %v5479 = vadd.f32 %v4147, %v5379
        %v5480 = vadd.f32 %v4150, %v5382
        %v5481 = vadd.f32 %v4155, %v5387
        %v5482 = vadd.f32 %v4158, %v5390
        %v5483 = vadd.f32 %v4163, %v5395
        %v5484 = vadd.f32 %v4166, %v5398
        %v5485 = vadd.f32 %v4171, %v5403
        %v5486 = vadd.f32 %v4174, %v5406
        %v5487 = vadd.f32 %v4179, %v5411
        %v5488 = vadd.f32 %v4182, %v5414
        %v5489 = vadd.f32 %v4187, %v5419
        %v5490 = vadd.f32 %v4190, %v5422
        %v5491 = vadd.f32 %v4195, %v5427
        %v5492 = vadd.f32 %v4198, %v5430
        %v5493 = vadd.f32 %v4203, %v5435
        %v5494 = vadd.f32 %v4206, %v5438
        %v5495 = vld [vmem:[#allocation10] sm:$0x1]
        %v5497 = vlaneseq
        %v5498 = vshrl.u32 %v5497, 7
        %v5499 = vsub.s32 0, %v5498
        %v5500 = vrot.slane %v5495, %v5499
        %v5502 = vadd.f32 %v5441, %v5500
        %v5503 = vadd.f32 %v5442, %v5500
        %v5504 = vadd.f32 %v5443, %v5500
        %v5505 = vadd.f32 %v5444, %v5500
        %v5506 = vadd.f32 %v5445, %v5500
        %v5507 = vadd.f32 %v5446, %v5500
        %v5508 = vadd.f32 %v5447, %v5500
        %v5509 = vadd.f32 %v5448, %v5500
        %v5510 = vadd.f32 %v5449, %v5500
        %v5511 = vadd.f32 %v5450, %v5500
        %v5512 = vadd.f32 %v5451, %v5500
        %v5513 = vadd.f32 %v5452, %v5500
        %v5514 = vadd.f32 %v5453, %v5500
        %v5515 = vadd.f32 %v5454, %v5500
        %v5516 = vadd.f32 %v5455, %v5500
        %v5517 = vadd.f32 %v5456, %v5500
        %v5518 = vadd.f32 %v5457, %v5500
        %v5519 = vadd.f32 %v5458, %v5500
        %v5520 = vadd.f32 %v5459, %v5500
        %v5521 = vadd.f32 %v5460, %v5500
        %v5522 = vadd.f32 %v5461, %v5500
        %v5523 = vadd.f32 %v5462, %v5500
        %v5524 = vadd.f32 %v5463, %v5500
        %v5525 = vadd.f32 %v5464, %v5500
        %v5526 = vadd.f32 %v5465, %v5500
        %v5527 = vadd.f32 %v5466, %v5500
        %v5528 = vadd.f32 %v5467, %v5500
        %v5529 = vadd.f32 %v5468, %v5500
        %v5530 = vadd.f32 %v5469, %v5500
        %v5531 = vadd.f32 %v5470, %v5500
        %v5532 = vadd.f32 %v5471, %v5500
        %v5533 = vadd.f32 %v5472, %v5500
        %v5534 = vadd.f32 %v5473, %v5500
        %v5535 = vadd.f32 %v5474, %v5500
        %v5536 = vadd.f32 %v5475, %v5500
        %v5537 = vadd.f32 %v5476, %v5500
        %v5538 = vadd.f32 %v5477, %v5500
        %v5539 = vadd.f32 %v5478, %v5500
        %v5540 = vadd.f32 %v5479, %v5500
        %v5541 = vadd.f32 %v5480, %v5500
        %v5542 = vadd.f32 %v5481, %v5500
        %v5543 = vadd.f32 %v5482, %v5500
        %v5544 = vadd.f32 %v5483, %v5500
        %v5545 = vadd.f32 %v5484, %v5500
        %v5546 = vadd.f32 %v5485, %v5500
        %v5547 = vadd.f32 %v5486, %v5500
        %v5548 = vadd.f32 %v5487, %v5500
        %v5549 = vadd.f32 %v5488, %v5500
        %v5550 = vadd.f32 %v5489, %v5500
        %v5551 = vadd.f32 %v5490, %v5500
        %v5552 = vadd.f32 %v5491, %v5500
        %v5553 = vadd.f32 %v5492, %v5500
        %v5554 = vadd.f32 %v5493, %v5500
        %v5555 = vadd.f32 %v5494, %v5500
        %v5556 = vadd.f32 %v5502, 3.0
        %v5557 = vadd.f32 %v5503, 3.0
        %v5558 = vadd.f32 %v5504, 3.0
        %v5559 = vadd.f32 %v5505, 3.0
        %v5560 = vadd.f32 %v5506, 3.0
        %v5561 = vadd.f32 %v5507, 3.0
        %v5562 = vadd.f32 %v5508, 3.0
        %v5563 = vadd.f32 %v5509, 3.0
        %v5564 = vadd.f32 %v5510, 3.0
        %v5565 = vadd.f32 %v5511, 3.0
        %v5566 = vadd.f32 %v5512, 3.0
        %v5567 = vadd.f32 %v5513, 3.0
        %v5568 = vadd.f32 %v5514, 3.0
        %v5569 = vadd.f32 %v5515, 3.0
        %v5570 = vadd.f32 %v5516, 3.0
        %v5571 = vadd.f32 %v5517, 3.0
        %v5572 = vadd.f32 %v5518, 3.0
        %v5573 = vadd.f32 %v5519, 3.0
        %v5574 = vadd.f32 %v5520, 3.0
        %v5575 = vadd.f32 %v5521, 3.0
        %v5576 = vadd.f32 %v5522, 3.0
        %v5577 = vadd.f32 %v5523, 3.0
        %v5578 = vadd.f32 %v5524, 3.0
        %v5579 = vadd.f32 %v5525, 3.0
        %v5580 = vadd.f32 %v5526, 3.0
        %v5581 = vadd.f32 %v5527, 3.0
        %v5582 = vadd.f32 %v5528, 3.0
        %v5583 = vadd.f32 %v5529, 3.0
        %v5584 = vadd.f32 %v5530, 3.0
        %v5585 = vadd.f32 %v5531, 3.0
        %v5586 = vadd.f32 %v5532, 3.0
        %v5587 = vadd.f32 %v5533, 3.0
        %v5588 = vadd.f32 %v5534, 3.0
        %v5589 = vadd.f32 %v5535, 3.0
        %v5590 = vadd.f32 %v5536, 3.0
        %v5591 = vadd.f32 %v5537, 3.0
        %v5592 = vadd.f32 %v5538, 3.0
        %v5593 = vadd.f32 %v5539, 3.0
        %v5594 = vadd.f32 %v5540, 3.0
        %v5595 = vadd.f32 %v5541, 3.0
        %v5596 = vadd.f32 %v5542, 3.0
        %v5597 = vadd.f32 %v5543, 3.0
        %v5598 = vadd.f32 %v5544, 3.0
        %v5599 = vadd.f32 %v5545, 3.0
        %v5600 = vadd.f32 %v5546, 3.0
        %v5601 = vadd.f32 %v5547, 3.0
        %v5602 = vadd.f32 %v5548, 3.0
        %v5603 = vadd.f32 %v5549, 3.0
        %v5604 = vadd.f32 %v5550, 3.0
        %v5605 = vadd.f32 %v5551, 3.0
        %v5606 = vadd.f32 %v5552, 3.0
        %v5607 = vadd.f32 %v5553, 3.0
        %v5608 = vadd.f32 %v5554, 3.0
        %v5609 = vadd.f32 %v5555, 3.0
        %v5610 = vmax.f32 %v5556, 0.0
        %v5611 = vmax.f32 %v5557, 0.0
        %v5612 = vmax.f32 %v5558, 0.0
        %v5613 = vmax.f32 %v5559, 0.0
        %v5614 = vmax.f32 %v5560, 0.0
        %v5615 = vmax.f32 %v5561, 0.0
        %v5616 = vmax.f32 %v5562, 0.0
        %v5617 = vmax.f32 %v5563, 0.0
        %v5618 = vmax.f32 %v5564, 0.0
        %v5619 = vmax.f32 %v5565, 0.0
        %v5620 = vmax.f32 %v5566, 0.0
        %v5621 = vmax.f32 %v5567, 0.0
        %v5622 = vmax.f32 %v5568, 0.0
        %v5623 = vmax.f32 %v5569, 0.0
        %v5624 = vmax.f32 %v5570, 0.0
        %v5625 = vmax.f32 %v5571, 0.0
        %v5626 = vmax.f32 %v5572, 0.0
        %v5627 = vmax.f32 %v5573, 0.0
        %v5628 = vmax.f32 %v5574, 0.0
        %v5629 = vmax.f32 %v5575, 0.0
        %v5630 = vmax.f32 %v5576, 0.0
        %v5631 = vmax.f32 %v5577, 0.0
        %v5632 = vmax.f32 %v5578, 0.0
        %v5633 = vmax.f32 %v5579, 0.0
        %v5634 = vmax.f32 %v5580, 0.0
        %v5635 = vmax.f32 %v5581, 0.0
        %v5636 = vmax.f32 %v5582, 0.0
        %v5637 = vmax.f32 %v5583, 0.0
        %v5638 = vmax.f32 %v5584, 0.0
        %v5639 = vmax.f32 %v5585, 0.0
        %v5640 = vmax.f32 %v5586, 0.0
        %v5641 = vmax.f32 %v5587, 0.0
        %v5642 = vmax.f32 %v5588, 0.0
        %v5643 = vmax.f32 %v5589, 0.0
        %v5644 = vmax.f32 %v5590, 0.0
        %v5645 = vmax.f32 %v5591, 0.0
        %v5646 = vmax.f32 %v5592, 0.0
        %v5647 = vmax.f32 %v5593, 0.0
        %v5648 = vmax.f32 %v5594, 0.0
        %v5649 = vmax.f32 %v5595, 0.0
        %v5650 = vmax.f32 %v5596, 0.0
        %v5651 = vmax.f32 %v5597, 0.0
        %v5652 = vmax.f32 %v5598, 0.0
        %v5653 = vmax.f32 %v5599, 0.0
        %v5654 = vmax.f32 %v5600, 0.0
        %v5655 = vmax.f32 %v5601, 0.0
        %v5656 = vmax.f32 %v5602, 0.0
        %v5657 = vmax.f32 %v5603, 0.0
        %v5658 = vmax.f32 %v5604, 0.0
        %v5659 = vmax.f32 %v5605, 0.0
        %v5660 = vmax.f32 %v5606, 0.0
        %v5661 = vmax.f32 %v5607, 0.0
        %v5662 = vmax.f32 %v5608, 0.0
        %v5663 = vmax.f32 %v5609, 0.0
        %v5664 = vmin.f32 %v5610, 6.0
        %v5665 = vmin.f32 %v5611, 6.0
        %v5666 = vmin.f32 %v5612, 6.0
        %v5667 = vmin.f32 %v5613, 6.0
        %v5668 = vmin.f32 %v5614, 6.0
        %v5669 = vmin.f32 %v5615, 6.0
        %v5670 = vmin.f32 %v5616, 6.0
        %v5671 = vmin.f32 %v5617, 6.0
        %v5672 = vmin.f32 %v5618, 6.0
        %v5673 = vmin.f32 %v5619, 6.0
        %v5674 = vmin.f32 %v5620, 6.0
        %v5675 = vmin.f32 %v5621, 6.0
        %v5676 = vmin.f32 %v5622, 6.0
        %v5677 = vmin.f32 %v5623, 6.0
        %v5678 = vmin.f32 %v5624, 6.0
        %v5679 = vmin.f32 %v5625, 6.0
        %v5680 = vmin.f32 %v5626, 6.0
        %v5681 = vmin.f32 %v5627, 6.0
        %v5682 = vmin.f32 %v5628, 6.0
        %v5683 = vmin.f32 %v5629, 6.0
        %v5684 = vmin.f32 %v5630, 6.0
        %v5685 = vmin.f32 %v5631, 6.0
        %v5686 = vmin.f32 %v5632, 6.0
        %v5687 = vmin.f32 %v5633, 6.0
        %v5688 = vmin.f32 %v5634, 6.0
        %v5689 = vmin.f32 %v5635, 6.0
        %v5690 = vmin.f32 %v5636, 6.0
        %v5691 = vmin.f32 %v5637, 6.0
        %v5692 = vmin.f32 %v5638, 6.0
        %v5693 = vmin.f32 %v5639, 6.0
        %v5694 = vmin.f32 %v5640, 6.0
        %v5695 = vmin.f32 %v5641, 6.0
        %v5696 = vmin.f32 %v5642, 6.0
        %v5697 = vmin.f32 %v5643, 6.0
        %v5698 = vmin.f32 %v5644, 6.0
        %v5699 = vmin.f32 %v5645, 6.0
        %v5700 = vmin.f32 %v5646, 6.0
        %v5701 = vmin.f32 %v5647, 6.0
        %v5702 = vmin.f32 %v5648, 6.0
        %v5703 = vmin.f32 %v5649, 6.0
        %v5704 = vmin.f32 %v5650, 6.0
        %v5705 = vmin.f32 %v5651, 6.0
        %v5706 = vmin.f32 %v5652, 6.0
        %v5707 = vmin.f32 %v5653, 6.0
        %v5708 = vmin.f32 %v5654, 6.0
        %v5709 = vmin.f32 %v5655, 6.0
        %v5710 = vmin.f32 %v5656, 6.0
        %v5711 = vmin.f32 %v5657, 6.0
        %v5712 = vmin.f32 %v5658, 6.0
        %v5713 = vmin.f32 %v5659, 6.0
        %v5714 = vmin.f32 %v5660, 6.0
        %v5715 = vmin.f32 %v5661, 6.0
        %v5716 = vmin.f32 %v5662, 6.0
        %v5717 = vmin.f32 %v5663, 6.0
        %v5718 = vmul.f32 %v5502, %v5664
        %v5719 = vmul.f32 %v5503, %v5665
        %v5720 = vmul.f32 %v5504, %v5666
        %v5721 = vmul.f32 %v5505, %v5667
        %v5722 = vmul.f32 %v5506, %v5668
        %v5723 = vmul.f32 %v5507, %v5669
        %v5724 = vmul.f32 %v5508, %v5670
        %v5725 = vmul.f32 %v5509, %v5671
        %v5726 = vmul.f32 %v5510, %v5672
        %v5727 = vmul.f32 %v5511, %v5673
        %v5728 = vmul.f32 %v5512, %v5674
        %v5729 = vmul.f32 %v5513, %v5675
        %v5730 = vmul.f32 %v5514, %v5676
        %v5731 = vmul.f32 %v5515, %v5677
        %v5732 = vmul.f32 %v5516, %v5678
        %v5733 = vmul.f32 %v5517, %v5679
        %v5734 = vmul.f32 %v5518, %v5680
        %v5735 = vmul.f32 %v5519, %v5681
        %v5736 = vmul.f32 %v5520, %v5682
        %v5737 = vmul.f32 %v5521, %v5683
        %v5738 = vmul.f32 %v5522, %v5684
        %v5739 = vmul.f32 %v5523, %v5685
        %v5740 = vmul.f32 %v5524, %v5686
        %v5741 = vmul.f32 %v5525, %v5687
        %v5742 = vmul.f32 %v5526, %v5688
        %v5743 = vmul.f32 %v5527, %v5689
        %v5744 = vmul.f32 %v5528, %v5690
        %v5745 = vmul.f32 %v5529, %v5691
        %v5746 = vmul.f32 %v5530, %v5692
        %v5747 = vmul.f32 %v5531, %v5693
        %v5748 = vmul.f32 %v5532, %v5694
        %v5749 = vmul.f32 %v5533, %v5695
        %v5750 = vmul.f32 %v5534, %v5696
        %v5751 = vmul.f32 %v5535, %v5697
        %v5752 = vmul.f32 %v5536, %v5698
        %v5753 = vmul.f32 %v5537, %v5699
        %v5754 = vmul.f32 %v5538, %v5700
        %v5755 = vmul.f32 %v5539, %v5701
        %v5756 = vmul.f32 %v5540, %v5702
        %v5757 = vmul.f32 %v5541, %v5703
        %v5758 = vmul.f32 %v5542, %v5704
        %v5759 = vmul.f32 %v5543, %v5705
        %v5760 = vmul.f32 %v5544, %v5706
        %v5761 = vmul.f32 %v5545, %v5707
        %v5762 = vmul.f32 %v5546, %v5708
        %v5763 = vmul.f32 %v5547, %v5709
        %v5764 = vmul.f32 %v5548, %v5710
        %v5765 = vmul.f32 %v5549, %v5711
        %v5766 = vmul.f32 %v5550, %v5712
        %v5767 = vmul.f32 %v5551, %v5713
        %v5768 = vmul.f32 %v5552, %v5714
        %v5769 = vmul.f32 %v5553, %v5715
        %v5770 = vmul.f32 %v5554, %v5716
        %v5771 = vmul.f32 %v5555, %v5717
        %v5772 = vmul.f32 %v5718, 0.16666667
        %v5773 = vmul.f32 %v5719, 0.16666667
        %v5774 = vmul.f32 %v5720, 0.16666667
        %v5775 = vmul.f32 %v5721, 0.16666667
        %v5776 = vmul.f32 %v5722, 0.16666667
        %v5777 = vmul.f32 %v5723, 0.16666667
        %v5778 = vmul.f32 %v5724, 0.16666667
        %v5779 = vmul.f32 %v5725, 0.16666667
        %v5780 = vmul.f32 %v5726, 0.16666667
        %v5781 = vmul.f32 %v5727, 0.16666667
        %v5782 = vmul.f32 %v5728, 0.16666667
        %v5783 = vmul.f32 %v5729, 0.16666667
        %v5784 = vmul.f32 %v5730, 0.16666667
        %v5785 = vmul.f32 %v5731, 0.16666667
        %v5786 = vmul.f32 %v5732, 0.16666667
        %v5787 = vmul.f32 %v5733, 0.16666667
        %v5788 = vmul.f32 %v5734, 0.16666667
        %v5789 = vmul.f32 %v5735, 0.16666667
        %v5790 = vmul.f32 %v5736, 0.16666667
        %v5791 = vmul.f32 %v5737, 0.16666667
        %v5792 = vmul.f32 %v5738, 0.16666667
        %v5793 = vmul.f32 %v5739, 0.16666667
        %v5794 = vmul.f32 %v5740, 0.16666667
        %v5795 = vmul.f32 %v5741, 0.16666667
        %v5796 = vmul.f32 %v5742, 0.16666667
        %v5797 = vmul.f32 %v5743, 0.16666667
        %v5798 = vmul.f32 %v5744, 0.16666667
        %v5799 = vmul.f32 %v5745, 0.16666667
        %v5800 = vmul.f32 %v5746, 0.16666667
        %v5801 = vmul.f32 %v5747, 0.16666667
        %v5802 = vmul.f32 %v5748, 0.16666667
        %v5803 = vmul.f32 %v5749, 0.16666667
        %v5804 = vmul.f32 %v5750, 0.16666667
        %v5805 = vmul.f32 %v5751, 0.16666667
        %v5806 = vmul.f32 %v5752, 0.16666667
        %v5807 = vmul.f32 %v5753, 0.16666667
        %v5808 = vmul.f32 %v5754, 0.16666667
        %v5809 = vmul.f32 %v5755, 0.16666667
        %v5810 = vmul.f32 %v5756, 0.16666667
        %v5811 = vmul.f32 %v5757, 0.16666667
        %v5812 = vmul.f32 %v5758, 0.16666667
        %v5813 = vmul.f32 %v5759, 0.16666667
        %v5814 = vmul.f32 %v5760, 0.16666667
        %v5815 = vmul.f32 %v5761, 0.16666667
        %v5816 = vmul.f32 %v5762, 0.16666667
        %v5817 = vmul.f32 %v5763, 0.16666667
        %v5818 = vmul.f32 %v5764, 0.16666667
        %v5819 = vmul.f32 %v5765, 0.16666667
        %v5820 = vmul.f32 %v5766, 0.16666667
        %v5821 = vmul.f32 %v5767, 0.16666667
        %v5822 = vmul.f32 %v5768, 0.16666667
        %v5823 = vmul.f32 %v5769, 0.16666667
        %v5824 = vmul.f32 %v5770, 0.16666667
        %v5825 = vmul.f32 %v5771, 0.16666667
        %v5826 = vpack.c.bf16 %v5773, %v5772
        %v5827 = vpack.c.bf16 %v5775, %v5774
        %v5828 = vpack.c.bf16 %v5777, %v5776
        %v5829 = vpack.c.bf16 %v5779, %v5778
        %v5830 = vpack.c.bf16 %v5781, %v5780
        %v5831 = vpack.c.bf16 %v5783, %v5782
        %v5832 = vpack.c.bf16 %v5785, %v5784
        %v5833 = vpack.c.bf16 %v5787, %v5786
        %v5834 = vpack.c.bf16 %v5789, %v5788
        %v5835 = vpack.c.bf16 %v5791, %v5790
        %v5836 = vpack.c.bf16 %v5793, %v5792
        %v5837 = vpack.c.bf16 %v5795, %v5794
        %v5838 = vpack.c.bf16 %v5797, %v5796
        %v5839 = vpack.c.bf16 %v5799, %v5798
        %v5840 = vpack.c.bf16 %v5801, %v5800
        %v5841 = vpack.c.bf16 %v5803, %v5802
        %v5842 = vpack.c.bf16 %v5805, %v5804
        %v5843 = vpack.c.bf16 %v5807, %v5806
        %v5844 = vpack.c.bf16 %v5809, %v5808
        %v5845 = vpack.c.bf16 %v5811, %v5810
        %v5846 = vpack.c.bf16 %v5813, %v5812
        %v5847 = vpack.c.bf16 %v5815, %v5814
        %v5848 = vpack.c.bf16 %v5817, %v5816
        %v5849 = vpack.c.bf16 %v5819, %v5818
        %v5850 = vpack.c.bf16 %v5821, %v5820
        %v5851 = vpack.c.bf16 %v5823, %v5822
        %v5852 = vpack.c.bf16 %v5825, %v5824
        %v5880 = vunpack.c.l.b16 %v5826
        %v5881 = vunpack.c.h.b16 %v5826
        %v5882 = vunpack.c.l.b16 %v5827
        %v5883 = vunpack.c.h.b16 %v5827
        %v5884 = vunpack.c.l.b16 %v5828
        %v5885 = vunpack.c.h.b16 %v5828
        %v5886 = vunpack.c.l.b16 %v5829
        %v5887 = vunpack.c.h.b16 %v5829
        %v5888 = vunpack.c.l.b16 %v5830
        %v5889 = vunpack.c.h.b16 %v5830
        %v5890 = vunpack.c.l.b16 %v5831
        %v5891 = vunpack.c.h.b16 %v5831
        %v5892 = vunpack.c.l.b16 %v5832
        %v5893 = vunpack.c.h.b16 %v5832
        %v5894 = vunpack.c.l.b16 %v5833
        %v5895 = vunpack.c.h.b16 %v5833
        %v5896 = vunpack.c.l.b16 %v5834
        %v5897 = vunpack.c.h.b16 %v5834
        %v5898 = vunpack.c.l.b16 %v5835
        %v5899 = vunpack.c.h.b16 %v5835
        %v5900 = vunpack.c.l.b16 %v5836
        %v5901 = vunpack.c.h.b16 %v5836
        %v5902 = vunpack.c.l.b16 %v5837
        %v5903 = vunpack.c.h.b16 %v5837
        %v5904 = vunpack.c.l.b16 %v5838
        %v5905 = vunpack.c.h.b16 %v5838
        %v5906 = vunpack.c.l.b16 %v5839
        %v5907 = vunpack.c.h.b16 %v5839
        %v5908 = vunpack.c.l.b16 %v5840
        %v5909 = vunpack.c.h.b16 %v5840
        %v5910 = vunpack.c.l.b16 %v5841
        %v5911 = vunpack.c.h.b16 %v5841
        %v5912 = vunpack.c.l.b16 %v5842
        %v5913 = vunpack.c.h.b16 %v5842
        %v5914 = vunpack.c.l.b16 %v5843
        %v5915 = vunpack.c.h.b16 %v5843
        %v5916 = vunpack.c.l.b16 %v5844
        %v5917 = vunpack.c.h.b16 %v5844
        %v5918 = vunpack.c.l.b16 %v5845
        %v5919 = vunpack.c.h.b16 %v5845
        %v5920 = vunpack.c.l.b16 %v5846
        %v5921 = vunpack.c.h.b16 %v5846
        %v5922 = vunpack.c.l.b16 %v5847
        %v5923 = vunpack.c.h.b16 %v5847
        %v5924 = vunpack.c.l.b16 %v5848
        %v5925 = vunpack.c.h.b16 %v5848
        %v5926 = vunpack.c.l.b16 %v5849
        %v5927 = vunpack.c.h.b16 %v5849
        %v5928 = vunpack.c.l.b16 %v5850
        %v5929 = vunpack.c.h.b16 %v5850
        %v5930 = vunpack.c.l.b16 %v5851
        %v5931 = vunpack.c.h.b16 %v5851
        %v5932 = vunpack.c.l.b16 %v5852
        %v5933 = vunpack.c.h.b16 %v5852
        %v5934 = vpack.c.b16 %v5880, %v5880
        %v5935 = vpack.c.b16 %v5881, %v5881
        %v5936 = vpack.c.b16 %v5882, %v5882
        %v5937 = vpack.c.b16 %v5883, %v5883
        %v5938 = vpack.c.b16 %v5884, %v5884
        %v5939 = vpack.c.b16 %v5885, %v5885
        %v5940 = vpack.c.b16 %v5886, %v5886
        %v5941 = vpack.c.b16 %v5887, %v5887
        %v5942 = vpack.c.b16 %v5888, %v5888
        %v5943 = vpack.c.b16 %v5889, %v5889
        %v5944 = vpack.c.b16 %v5890, %v5890
        %v5945 = vpack.c.b16 %v5891, %v5891
        %v5946 = vpack.c.b16 %v5892, %v5892
        %v5947 = vpack.c.b16 %v5893, %v5893
        %v5948 = vpack.c.b16 %v5894, %v5894
        %v5949 = vpack.c.b16 %v5895, %v5895
        %v5950 = vpack.c.b16 %v5896, %v5896
        %v5951 = vpack.c.b16 %v5897, %v5897
        %v5952 = vpack.c.b16 %v5898, %v5898
        %v5953 = vpack.c.b16 %v5899, %v5899
        %v5954 = vpack.c.b16 %v5900, %v5900
        %v5955 = vpack.c.b16 %v5901, %v5901
        %v5956 = vpack.c.b16 %v5902, %v5902
        %v5957 = vpack.c.b16 %v5903, %v5903
        %v5958 = vpack.c.b16 %v5904, %v5904
        %v5959 = vpack.c.b16 %v5905, %v5905
        %v5960 = vpack.c.b16 %v5906, %v5906
        %v5961 = vpack.c.b16 %v5907, %v5907
        %v5962 = vpack.c.b16 %v5908, %v5908
        %v5963 = vpack.c.b16 %v5909, %v5909
        %v5964 = vpack.c.b16 %v5910, %v5910
        %v5965 = vpack.c.b16 %v5911, %v5911
        %v5966 = vpack.c.b16 %v5912, %v5912
        %v5967 = vpack.c.b16 %v5913, %v5913
        %v5968 = vpack.c.b16 %v5914, %v5914
        %v5969 = vpack.c.b16 %v5915, %v5915
        %v5970 = vpack.c.b16 %v5916, %v5916
        %v5971 = vpack.c.b16 %v5917, %v5917
        %v5972 = vpack.c.b16 %v5918, %v5918
        %v5973 = vpack.c.b16 %v5919, %v5919
        %v5974 = vpack.c.b16 %v5920, %v5920
        %v5975 = vpack.c.b16 %v5921, %v5921
        %v5976 = vpack.c.b16 %v5922, %v5922
        %v5977 = vpack.c.b16 %v5923, %v5923
        %v5978 = vpack.c.b16 %v5924, %v5924
        %v5979 = vpack.c.b16 %v5925, %v5925
        %v5980 = vpack.c.b16 %v5926, %v5926
        %v5981 = vpack.c.b16 %v5927, %v5927
        %v5982 = vpack.c.b16 %v5928, %v5928
        %v5983 = vpack.c.b16 %v5929, %v5929
        %v5984 = vpack.c.b16 %v5930, %v5930
        %v5985 = vpack.c.b16 %v5931, %v5931
        %v5986 = vpack.c.b16 %v5932, %v5932
        %v5987 = vpack.c.b16 %v5933, %v5933
        %s6042 = smul.u32 %s33, 16
        %s6043 = ssub.s32 %s6042, 1
        %v6044 = vstv %s6043
        %v6045 = vadd.s32 %v6044, 1
        %v6046 = vadd.s32 %v6044, 2
        %v6047 = vadd.s32 %v6044, 3
        %v6048 = vadd.s32 %v6044, 4
        %v6049 = vadd.s32 %v6044, 5
        %v6050 = vadd.s32 %v6044, 6
        %v6051 = vadd.s32 %v6044, 7
        %v6052 = vadd.s32 %v6044, 8
        %v6053 = vadd.s32 %v6044, 9
        %v6054 = vadd.s32 %v6044, 10
        %v6055 = vadd.s32 %v6044, 11
        %v6056 = vadd.s32 %v6044, 12
        %v6057 = vadd.s32 %v6044, 13
        %v6058 = vadd.s32 %v6044, 14
        %v6059 = vadd.s32 %v6044, 15
        %v6060 = vadd.s32 %v6044, 16
        %v6061 = vadd.s32 %v6044, 17
        %v6062 = vlaneseq
        %v6063 = vshrl.u32 %v6062, 7
        %v6064 = vadd.s32 %v6063, 8
        %v6065 = vadd.s32 %v6063, 16
        %v6066 = vsub.s32 %v6063, 1
        %v6067 = vsub.s32 %v6064, 1
        %v6068 = vsub.s32 %v6065, 1
        %vm6069 = vcmp.ge.s32.totalorder %v6044, 0
        %vm6070 = vcmp.ge.s32.totalorder %v6045, 0
        %vm6071 = vcmp.ge.s32.totalorder %v6046, 0
        %vm6072 = vcmp.ge.s32.totalorder %v6047, 0
        %vm6073 = vcmp.ge.s32.totalorder %v6048, 0
        %vm6074 = vcmp.ge.s32.totalorder %v6049, 0
        %vm6075 = vcmp.ge.s32.totalorder %v6050, 0
        %vm6076 = vcmp.ge.s32.totalorder %v6051, 0
        %vm6077 = vcmp.ge.s32.totalorder %v6052, 0
        %vm6078 = vcmp.ge.s32.totalorder %v6053, 0
        %vm6079 = vcmp.ge.s32.totalorder %v6054, 0
        %vm6080 = vcmp.ge.s32.totalorder %v6055, 0
        %vm6081 = vcmp.ge.s32.totalorder %v6056, 0
        %vm6082 = vcmp.ge.s32.totalorder %v6057, 0
        %vm6083 = vcmp.ge.s32.totalorder %v6058, 0
        %vm6084 = vcmp.ge.s32.totalorder %v6059, 0
        %vm6085 = vcmp.ge.s32.totalorder %v6060, 0
        %vm6086 = vcmp.ge.s32.totalorder %v6061, 0
        %vm6087 = vcmp.lt.s32.totalorder %v6044, 16
        %vm6088 = vcmp.lt.s32.totalorder %v6045, 16
        %vm6089 = vcmp.lt.s32.totalorder %v6046, 16
        %vm6090 = vcmp.lt.s32.totalorder %v6047, 16
        %vm6091 = vcmp.lt.s32.totalorder %v6048, 16
        %vm6092 = vcmp.lt.s32.totalorder %v6049, 16
        %vm6093 = vcmp.lt.s32.totalorder %v6050, 16
        %vm6094 = vcmp.lt.s32.totalorder %v6051, 16
        %vm6095 = vcmp.lt.s32.totalorder %v6052, 16
        %vm6096 = vcmp.lt.s32.totalorder %v6053, 16
        %vm6097 = vcmp.lt.s32.totalorder %v6054, 16
        %vm6098 = vcmp.lt.s32.totalorder %v6055, 16
        %vm6099 = vcmp.lt.s32.totalorder %v6056, 16
        %vm6100 = vcmp.lt.s32.totalorder %v6057, 16
        %vm6101 = vcmp.lt.s32.totalorder %v6058, 16
        %vm6102 = vcmp.lt.s32.totalorder %v6059, 16
        %vm6103 = vcmp.lt.s32.totalorder %v6060, 16
        %vm6104 = vcmp.lt.s32.totalorder %v6061, 16
        %vm6105 = vmand %vm6069, %vm6087
        %vm6106 = vmand %vm6070, %vm6088
        %vm6107 = vmand %vm6071, %vm6089
        %vm6108 = vmand %vm6072, %vm6090
        %vm6109 = vmand %vm6073, %vm6091
        %vm6110 = vmand %vm6074, %vm6092
        %vm6111 = vmand %vm6075, %vm6093
        %vm6112 = vmand %vm6076, %vm6094
        %vm6113 = vmand %vm6077, %vm6095
        %vm6114 = vmand %vm6078, %vm6096
        %vm6115 = vmand %vm6079, %vm6097
        %vm6116 = vmand %vm6080, %vm6098
        %vm6117 = vmand %vm6081, %vm6099
        %vm6118 = vmand %vm6082, %vm6100
        %vm6119 = vmand %vm6083, %vm6101
        %vm6120 = vmand %vm6084, %vm6102
        %vm6121 = vmand %vm6085, %vm6103
        %vm6122 = vmand %vm6086, %vm6104
        %vm6123 = vcmp.ge.s32.totalorder %v6066, 0
        %vm6124 = vcmp.ge.s32.totalorder %v6067, 0
        %vm6125 = vcmp.ge.s32.totalorder %v6068, 0
        %vm6126 = vmand %vm6105, %vm6123
        %vm6127 = vmand %vm6105, %vm6124
        %vm6128 = vmand %vm6105, %vm6125
        %vm6129 = vmand %vm6106, %vm6123
        %vm6130 = vmand %vm6106, %vm6124
        %vm6131 = vmand %vm6106, %vm6125
        %vm6132 = vmand %vm6107, %vm6123
        %vm6133 = vmand %vm6107, %vm6124
        %vm6134 = vmand %vm6107, %vm6125
        %vm6135 = vmand %vm6108, %vm6123
        %vm6136 = vmand %vm6108, %vm6124
        %vm6137 = vmand %vm6108, %vm6125
        %vm6138 = vmand %vm6109, %vm6123
        %vm6139 = vmand %vm6109, %vm6124
        %vm6140 = vmand %vm6109, %vm6125
        %vm6141 = vmand %vm6110, %vm6123
        %vm6142 = vmand %vm6110, %vm6124
        %vm6143 = vmand %vm6110, %vm6125
        %vm6144 = vmand %vm6111, %vm6123
        %vm6145 = vmand %vm6111, %vm6124
        %vm6146 = vmand %vm6111, %vm6125
        %vm6147 = vmand %vm6112, %vm6123
        %vm6148 = vmand %vm6112, %vm6124
        %vm6149 = vmand %vm6112, %vm6125
        %vm6150 = vmand %vm6113, %vm6123
        %vm6151 = vmand %vm6113, %vm6124
        %vm6152 = vmand %vm6113, %vm6125
        %vm6153 = vmand %vm6114, %vm6123
        %vm6154 = vmand %vm6114, %vm6124
        %vm6155 = vmand %vm6114, %vm6125
        %vm6156 = vmand %vm6115, %vm6123
        %vm6157 = vmand %vm6115, %vm6124
        %vm6158 = vmand %vm6115, %vm6125
        %vm6159 = vmand %vm6116, %vm6123
        %vm6160 = vmand %vm6116, %vm6124
        %vm6161 = vmand %vm6116, %vm6125
        %vm6162 = vmand %vm6117, %vm6123
        %vm6163 = vmand %vm6117, %vm6124
        %vm6164 = vmand %vm6117, %vm6125
        %vm6165 = vmand %vm6118, %vm6123
        %vm6166 = vmand %vm6118, %vm6124
        %vm6167 = vmand %vm6118, %vm6125
        %vm6168 = vmand %vm6119, %vm6123
        %vm6169 = vmand %vm6119, %vm6124
        %vm6170 = vmand %vm6119, %vm6125
        %vm6171 = vmand %vm6120, %vm6123
        %vm6172 = vmand %vm6120, %vm6124
        %vm6173 = vmand %vm6120, %vm6125
        %vm6174 = vmand %vm6121, %vm6123
        %vm6175 = vmand %vm6121, %vm6124
        %vm6176 = vmand %vm6121, %vm6125
        %vm6177 = vmand %vm6122, %vm6123
        %vm6178 = vmand %vm6122, %vm6124
        %vm6179 = vmand %vm6122, %vm6125
        %vm6180 = vcmp.lt.s32.totalorder %v6066, 16
        %vm6181 = vcmp.lt.s32.totalorder %v6067, 16
        %vm6182 = vcmp.lt.s32.totalorder %v6068, 16
        %vm6183 = vmand %vm6126, %vm6180
        %vm6184 = vmand %vm6127, %vm6181
        %vm6185 = vmand %vm6128, %vm6182
        %vm6186 = vmand %vm6129, %vm6180
        %vm6187 = vmand %vm6130, %vm6181
        %vm6188 = vmand %vm6131, %vm6182
        %vm6189 = vmand %vm6132, %vm6180
        %vm6190 = vmand %vm6133, %vm6181
        %vm6191 = vmand %vm6134, %vm6182
        %vm6192 = vmand %vm6135, %vm6180
        %vm6193 = vmand %vm6136, %vm6181
        %vm6194 = vmand %vm6137, %vm6182
        %vm6195 = vmand %vm6138, %vm6180
        %vm6196 = vmand %vm6139, %vm6181
        %vm6197 = vmand %vm6140, %vm6182
        %vm6198 = vmand %vm6141, %vm6180
        %vm6199 = vmand %vm6142, %vm6181
        %vm6200 = vmand %vm6143, %vm6182
        %vm6201 = vmand %vm6144, %vm6180
        %vm6202 = vmand %vm6145, %vm6181
        %vm6203 = vmand %vm6146, %vm6182
        %vm6204 = vmand %vm6147, %vm6180
        %vm6205 = vmand %vm6148, %vm6181
        %vm6206 = vmand %vm6149, %vm6182
        %vm6207 = vmand %vm6150, %vm6180
        %vm6208 = vmand %vm6151, %vm6181
        %vm6209 = vmand %vm6152, %vm6182
        %vm6210 = vmand %vm6153, %vm6180
        %vm6211 = vmand %vm6154, %vm6181
        %vm6212 = vmand %vm6155, %vm6182
        %vm6213 = vmand %vm6156, %vm6180
        %vm6214 = vmand %vm6157, %vm6181
        %vm6215 = vmand %vm6158, %vm6182
        %vm6216 = vmand %vm6159, %vm6180
        %vm6217 = vmand %vm6160, %vm6181
        %vm6218 = vmand %vm6161, %vm6182
        %vm6219 = vmand %vm6162, %vm6180
        %vm6220 = vmand %vm6163, %vm6181
        %vm6221 = vmand %vm6164, %vm6182
        %vm6222 = vmand %vm6165, %vm6180
        %vm6223 = vmand %vm6166, %vm6181
        %vm6224 = vmand %vm6167, %vm6182
        %vm6225 = vmand %vm6168, %vm6180
        %vm6226 = vmand %vm6169, %vm6181
        %vm6227 = vmand %vm6170, %vm6182
        %vm6228 = vmand %vm6171, %vm6180
        %vm6229 = vmand %vm6172, %vm6181
        %vm6230 = vmand %vm6173, %vm6182
        %vm6231 = vmand %vm6174, %vm6180
        %vm6232 = vmand %vm6175, %vm6181
        %vm6233 = vmand %vm6176, %vm6182
        %vm6234 = vmand %vm6177, %vm6180
        %vm6235 = vmand %vm6178, %vm6181
        %vm6236 = vmand %vm6179, %vm6182
        %v6237 = vsel %vm6183, 1, 0
        %v6238 = vsel %vm6184, 1, 0
        %v6239 = vsel %vm6185, 1, 0
        %v6240 = vsel %vm6186, 1, 0
        %v6241 = vsel %vm6187, 1, 0
        %v6242 = vsel %vm6188, 1, 0
        %v6243 = vsel %vm6189, 1, 0
        %v6244 = vsel %vm6190, 1, 0
        %v6245 = vsel %vm6191, 1, 0
        %v6246 = vsel %vm6192, 1, 0
        %v6247 = vsel %vm6193, 1, 0
        %v6248 = vsel %vm6194, 1, 0
        %v6249 = vsel %vm6195, 1, 0
        %v6250 = vsel %vm6196, 1, 0
        %v6251 = vsel %vm6197, 1, 0
        %v6252 = vsel %vm6198, 1, 0
        %v6253 = vsel %vm6199, 1, 0
        %v6254 = vsel %vm6200, 1, 0
        %v6255 = vsel %vm6201, 1, 0
        %v6256 = vsel %vm6202, 1, 0
        %v6257 = vsel %vm6203, 1, 0
        %v6258 = vsel %vm6204, 1, 0
        %v6259 = vsel %vm6205, 1, 0
        %v6260 = vsel %vm6206, 1, 0
        %v6261 = vsel %vm6207, 1, 0
        %v6262 = vsel %vm6208, 1, 0
        %v6263 = vsel %vm6209, 1, 0
        %v6264 = vsel %vm6210, 1, 0
        %v6265 = vsel %vm6211, 1, 0
        %v6266 = vsel %vm6212, 1, 0
        %v6267 = vsel %vm6213, 1, 0
        %v6268 = vsel %vm6214, 1, 0
        %v6269 = vsel %vm6215, 1, 0
        %v6270 = vsel %vm6216, 1, 0
        %v6271 = vsel %vm6217, 1, 0
        %v6272 = vsel %vm6218, 1, 0
        %v6273 = vsel %vm6219, 1, 0
        %v6274 = vsel %vm6220, 1, 0
        %v6275 = vsel %vm6221, 1, 0
        %v6276 = vsel %vm6222, 1, 0
        %v6277 = vsel %vm6223, 1, 0
        %v6278 = vsel %vm6224, 1, 0
        %v6279 = vsel %vm6225, 1, 0
        %v6280 = vsel %vm6226, 1, 0
        %v6281 = vsel %vm6227, 1, 0
        %v6282 = vsel %vm6228, 1, 0
        %v6283 = vsel %vm6229, 1, 0
        %v6284 = vsel %vm6230, 1, 0
        %v6285 = vsel %vm6231, 1, 0
        %v6286 = vsel %vm6232, 1, 0
        %v6287 = vsel %vm6233, 1, 0
        %v6288 = vsel %vm6234, 1, 0
        %v6289 = vsel %vm6235, 1, 0
        %v6290 = vsel %vm6236, 1, 0
        %vm6291 = vcmp.eq.s32.totalorder %v6237, 1
        %vm6292 = vcmp.eq.s32.totalorder %v6238, 1
        %vm6293 = vcmp.eq.s32.totalorder %v6239, 1
        %vm6294 = vcmp.eq.s32.totalorder %v6240, 1
        %vm6295 = vcmp.eq.s32.totalorder %v6241, 1
        %vm6296 = vcmp.eq.s32.totalorder %v6242, 1
        %vm6297 = vcmp.eq.s32.totalorder %v6243, 1
        %vm6298 = vcmp.eq.s32.totalorder %v6244, 1
        %vm6299 = vcmp.eq.s32.totalorder %v6245, 1
        %vm6300 = vcmp.eq.s32.totalorder %v6246, 1
        %vm6301 = vcmp.eq.s32.totalorder %v6247, 1
        %vm6302 = vcmp.eq.s32.totalorder %v6248, 1
        %vm6303 = vcmp.eq.s32.totalorder %v6249, 1
        %vm6304 = vcmp.eq.s32.totalorder %v6250, 1
        %vm6305 = vcmp.eq.s32.totalorder %v6251, 1
        %vm6306 = vcmp.eq.s32.totalorder %v6252, 1
        %vm6307 = vcmp.eq.s32.totalorder %v6253, 1
        %vm6308 = vcmp.eq.s32.totalorder %v6254, 1
        %vm6309 = vcmp.eq.s32.totalorder %v6255, 1
        %vm6310 = vcmp.eq.s32.totalorder %v6256, 1
        %vm6311 = vcmp.eq.s32.totalorder %v6257, 1
        %vm6312 = vcmp.eq.s32.totalorder %v6258, 1
        %vm6313 = vcmp.eq.s32.totalorder %v6259, 1
        %vm6314 = vcmp.eq.s32.totalorder %v6260, 1
        %vm6315 = vcmp.eq.s32.totalorder %v6261, 1
        %vm6316 = vcmp.eq.s32.totalorder %v6262, 1
        %vm6317 = vcmp.eq.s32.totalorder %v6263, 1
        %vm6318 = vcmp.eq.s32.totalorder %v6264, 1
        %vm6319 = vcmp.eq.s32.totalorder %v6265, 1
        %vm6320 = vcmp.eq.s32.totalorder %v6266, 1
        %vm6321 = vcmp.eq.s32.totalorder %v6267, 1
        %vm6322 = vcmp.eq.s32.totalorder %v6268, 1
        %vm6323 = vcmp.eq.s32.totalorder %v6269, 1
        %vm6324 = vcmp.eq.s32.totalorder %v6270, 1
        %vm6325 = vcmp.eq.s32.totalorder %v6271, 1
        %vm6326 = vcmp.eq.s32.totalorder %v6272, 1
        %vm6327 = vcmp.eq.s32.totalorder %v6273, 1
        %vm6328 = vcmp.eq.s32.totalorder %v6274, 1
        %vm6329 = vcmp.eq.s32.totalorder %v6275, 1
        %vm6330 = vcmp.eq.s32.totalorder %v6276, 1
        %vm6331 = vcmp.eq.s32.totalorder %v6277, 1
        %vm6332 = vcmp.eq.s32.totalorder %v6278, 1
        %vm6333 = vcmp.eq.s32.totalorder %v6279, 1
        %vm6334 = vcmp.eq.s32.totalorder %v6280, 1
        %vm6335 = vcmp.eq.s32.totalorder %v6281, 1
        %vm6336 = vcmp.eq.s32.totalorder %v6282, 1
        %vm6337 = vcmp.eq.s32.totalorder %v6283, 1
        %vm6338 = vcmp.eq.s32.totalorder %v6284, 1
        %vm6339 = vcmp.eq.s32.totalorder %v6285, 1
        %vm6340 = vcmp.eq.s32.totalorder %v6286, 1
        %vm6341 = vcmp.eq.s32.totalorder %v6287, 1
        %vm6342 = vcmp.eq.s32.totalorder %v6288, 1
        %vm6343 = vcmp.eq.s32.totalorder %v6289, 1
        %vm6344 = vcmp.eq.s32.totalorder %v6290, 1
        %vm6345 = vmpackc.low %vm6291, %vm6291
        %vm6346 = vmpackc.low %vm6292, %vm6292
        %vm6347 = vmpackc.low %vm6293, %vm6293
        %vm6348 = vmpackc.low %vm6294, %vm6294
        %vm6349 = vmpackc.low %vm6295, %vm6295
        %vm6350 = vmpackc.low %vm6296, %vm6296
        %vm6351 = vmpackc.low %vm6297, %vm6297
        %vm6352 = vmpackc.low %vm6298, %vm6298
        %vm6353 = vmpackc.low %vm6299, %vm6299
        %vm6354 = vmpackc.low %vm6300, %vm6300
        %vm6355 = vmpackc.low %vm6301, %vm6301
        %vm6356 = vmpackc.low %vm6302, %vm6302
        %vm6357 = vmpackc.low %vm6303, %vm6303
        %vm6358 = vmpackc.low %vm6304, %vm6304
        %vm6359 = vmpackc.low %vm6305, %vm6305
        %vm6360 = vmpackc.low %vm6306, %vm6306
        %vm6361 = vmpackc.low %vm6307, %vm6307
        %vm6362 = vmpackc.low %vm6308, %vm6308
        %vm6363 = vmpackc.low %vm6309, %vm6309
        %vm6364 = vmpackc.low %vm6310, %vm6310
        %vm6365 = vmpackc.low %vm6311, %vm6311
        %vm6366 = vmpackc.low %vm6312, %vm6312
        %vm6367 = vmpackc.low %vm6313, %vm6313
        %vm6368 = vmpackc.low %vm6314, %vm6314
        %vm6369 = vmpackc.low %vm6315, %vm6315
        %vm6370 = vmpackc.low %vm6316, %vm6316
        %vm6371 = vmpackc.low %vm6317, %vm6317
        %vm6372 = vmpackc.low %vm6318, %vm6318
        %vm6373 = vmpackc.low %vm6319, %vm6319
        %vm6374 = vmpackc.low %vm6320, %vm6320
        %vm6375 = vmpackc.low %vm6321, %vm6321
        %vm6376 = vmpackc.low %vm6322, %vm6322
        %vm6377 = vmpackc.low %vm6323, %vm6323
        %vm6378 = vmpackc.low %vm6324, %vm6324
        %vm6379 = vmpackc.low %vm6325, %vm6325
        %vm6380 = vmpackc.low %vm6326, %vm6326
        %vm6381 = vmpackc.low %vm6327, %vm6327
        %vm6382 = vmpackc.low %vm6328, %vm6328
        %vm6383 = vmpackc.low %vm6329, %vm6329
        %vm6384 = vmpackc.low %vm6330, %vm6330
        %vm6385 = vmpackc.low %vm6331, %vm6331
        %vm6386 = vmpackc.low %vm6332, %vm6332
        %vm6387 = vmpackc.low %vm6333, %vm6333
        %vm6388 = vmpackc.low %vm6334, %vm6334
        %vm6389 = vmpackc.low %vm6335, %vm6335
        %vm6390 = vmpackc.low %vm6336, %vm6336
        %vm6391 = vmpackc.low %vm6337, %vm6337
        %vm6392 = vmpackc.low %vm6338, %vm6338
        %vm6393 = vmpackc.low %vm6339, %vm6339
        %vm6394 = vmpackc.low %vm6340, %vm6340
        %vm6395 = vmpackc.low %vm6341, %vm6341
        %vm6396 = vmpackc.low %vm6342, %vm6342
        %vm6397 = vmpackc.low %vm6343, %vm6343
        %vm6398 = vmpackc.low %vm6344, %vm6344
        %v6399 = vsel %vm6345, %v5934, 0
        %v6400 = vsel %vm6346, %v5935, 0
        %v6401 = vsel %vm6347, %v5936, 0
        %v6402 = vsel %vm6348, %v5937, 0
        %v6403 = vsel %vm6349, %v5938, 0
        %v6404 = vsel %vm6350, %v5939, 0
        %v6405 = vsel %vm6351, %v5940, 0
        %v6406 = vsel %vm6352, %v5941, 0
        %v6407 = vsel %vm6353, %v5942, 0
        %v6408 = vsel %vm6354, %v5943, 0
        %v6409 = vsel %vm6355, %v5944, 0
        %v6410 = vsel %vm6356, %v5945, 0
        %v6411 = vsel %vm6357, %v5946, 0
        %v6412 = vsel %vm6358, %v5947, 0
        %v6413 = vsel %vm6359, %v5948, 0
        %v6414 = vsel %vm6360, %v5949, 0
        %v6415 = vsel %vm6361, %v5950, 0
        %v6416 = vsel %vm6362, %v5951, 0
        %v6417 = vsel %vm6363, %v5952, 0
        %v6418 = vsel %vm6364, %v5953, 0
        %v6419 = vsel %vm6365, %v5954, 0
        %v6420 = vsel %vm6366, %v5955, 0
        %v6421 = vsel %vm6367, %v5956, 0
        %v6422 = vsel %vm6368, %v5957, 0
        %v6423 = vsel %vm6369, %v5958, 0
        %v6424 = vsel %vm6370, %v5959, 0
        %v6425 = vsel %vm6371, %v5960, 0
        %v6426 = vsel %vm6372, %v5961, 0
        %v6427 = vsel %vm6373, %v5962, 0
        %v6428 = vsel %vm6374, %v5963, 0
        %v6429 = vsel %vm6375, %v5964, 0
        %v6430 = vsel %vm6376, %v5965, 0
        %v6431 = vsel %vm6377, %v5966, 0
        %v6432 = vsel %vm6378, %v5967, 0
        %v6433 = vsel %vm6379, %v5968, 0
        %v6434 = vsel %vm6380, %v5969, 0
        %v6435 = vsel %vm6381, %v5970, 0
        %v6436 = vsel %vm6382, %v5971, 0
        %v6437 = vsel %vm6383, %v5972, 0
        %v6438 = vsel %vm6384, %v5973, 0
        %v6439 = vsel %vm6385, %v5974, 0
        %v6440 = vsel %vm6386, %v5975, 0
        %v6441 = vsel %vm6387, %v5976, 0
        %v6442 = vsel %vm6388, %v5977, 0
        %v6443 = vsel %vm6389, %v5978, 0
        %v6444 = vsel %vm6390, %v5979, 0
        %v6445 = vsel %vm6391, %v5980, 0
        %v6446 = vsel %vm6392, %v5981, 0
        %v6447 = vsel %vm6393, %v5982, 0
        %v6448 = vsel %vm6394, %v5983, 0
        %v6449 = vsel %vm6395, %v5984, 0
        %v6450 = vsel %vm6396, %v5985, 0
        %v6451 = vsel %vm6397, %v5986, 0
        %v6452 = vsel %vm6398, %v5987, 0
        %v6489 = vunpack.c.l.b16 %v6399
        %v6490 = vunpack.c.l.b16 %v6400
        %v6491 = vunpack.c.l.b16 %v6402
        %v6492 = vunpack.c.l.b16 %v6403
        %v6493 = vunpack.c.l.b16 %v6405
        %v6494 = vunpack.c.l.b16 %v6406
        %v6495 = vunpack.c.l.b16 %v6408
        %v6496 = vunpack.c.l.b16 %v6409
        %v6497 = vunpack.c.l.b16 %v6411
        %v6498 = vunpack.c.l.b16 %v6412
        %v6499 = vunpack.c.l.b16 %v6414
        %v6500 = vunpack.c.l.b16 %v6415
        %v6501 = vunpack.c.l.b16 %v6417
        %v6502 = vunpack.c.l.b16 %v6418
        %v6503 = vunpack.c.l.b16 %v6420
        %v6504 = vunpack.c.l.b16 %v6421
        %v6505 = vunpack.c.l.b16 %v6423
        %v6506 = vunpack.c.l.b16 %v6424
        %v6507 = vunpack.c.l.b16 %v6426
        %v6508 = vunpack.c.l.b16 %v6427
        %v6509 = vunpack.c.l.b16 %v6429
        %v6510 = vunpack.c.l.b16 %v6430
        %v6511 = vunpack.c.l.b16 %v6432
        %v6512 = vunpack.c.l.b16 %v6433
        %v6513 = vunpack.c.l.b16 %v6435
        %v6514 = vunpack.c.l.b16 %v6436
        %v6515 = vunpack.c.l.b16 %v6438
        %v6516 = vunpack.c.l.b16 %v6439
        %v6517 = vunpack.c.l.b16 %v6441
        %v6518 = vunpack.c.l.b16 %v6442
        %v6519 = vunpack.c.l.b16 %v6444
        %v6520 = vunpack.c.l.b16 %v6445
        %v6521 = vunpack.c.l.b16 %v6447
        %v6522 = vunpack.c.l.b16 %v6448
        %v6523 = vunpack.c.l.b16 %v6450
        %v6524 = vunpack.c.l.b16 %v6451
        %v6525 = vpack.c.b16 %v6490, %v6489
        %v6526 = vpack.c.b16 %v6492, %v6491
        %v6527 = vpack.c.b16 %v6494, %v6493
        %v6528 = vpack.c.b16 %v6496, %v6495
        %v6529 = vpack.c.b16 %v6498, %v6497
        %v6530 = vpack.c.b16 %v6500, %v6499
        %v6531 = vpack.c.b16 %v6502, %v6501
        %v6532 = vpack.c.b16 %v6504, %v6503
        %v6533 = vpack.c.b16 %v6506, %v6505
        %v6534 = vpack.c.b16 %v6508, %v6507
        %v6535 = vpack.c.b16 %v6510, %v6509
        %v6536 = vpack.c.b16 %v6512, %v6511
        %v6537 = vpack.c.b16 %v6514, %v6513
        %v6538 = vpack.c.b16 %v6516, %v6515
        %v6539 = vpack.c.b16 %v6518, %v6517
        %v6540 = vpack.c.b16 %v6520, %v6519
        %v6541 = vpack.c.b16 %v6522, %v6521
        %v6542 = vpack.c.b16 %v6524, %v6523
        %6561 = vst [vmem:[#allocation3] sm:$0xff] %v6525
        %6562 = vst [vmem:[#allocation3 + $0x18] sm:$0xff] %v6526
        %6563 = vst [vmem:[#allocation3 + $0x30] sm:$0xff] %v6527
        %6564 = vst [vmem:[#allocation3 + $0x48] sm:$0xff] %v6528
        %6565 = vst [vmem:[#allocation3 + $0x60] sm:$0xff] %v6529
        %6566 = vst [vmem:[#allocation3 + $0x78] sm:$0xff] %v6530
        %6567 = vst [vmem:[#allocation3 + $0x90] sm:$0xff] %v6531
        %6568 = vst [vmem:[#allocation3 + $0xa8] sm:$0xff] %v6532
        %6569 = vst [vmem:[#allocation3 + $0xc0] sm:$0xff] %v6533
        %6570 = vst [vmem:[#allocation3 + $0xd8] sm:$0xff] %v6534
        %6571 = vst [vmem:[#allocation3 + $0xf0] sm:$0xff] %v6535
        %6572 = vst [vmem:[#allocation3 + $0x108] sm:$0xff] %v6536
        %6573 = vst [vmem:[#allocation3 + $0x120] sm:$0xff] %v6537
        %6574 = vst [vmem:[#allocation3 + $0x138] sm:$0xff] %v6538
        %6575 = vst [vmem:[#allocation3 + $0x150] sm:$0xff] %v6539
        %6576 = vst [vmem:[#allocation3 + $0x168] sm:$0xff] %v6540
        %6577 = vst [vmem:[#allocation3 + $0x180] sm:$0xff] %v6541
        %6578 = vst [vmem:[#allocation3 + $0x198] sm:$0xff] %v6542
        %v6597 = vunpack.c.l.b16 %v6401
        %v6598 = vunpack.c.l.b16 %v6404
        %v6599 = vunpack.c.l.b16 %v6407
        %v6600 = vunpack.c.l.b16 %v6410
        %v6601 = vunpack.c.l.b16 %v6413
        %v6602 = vunpack.c.l.b16 %v6416
        %v6603 = vunpack.c.l.b16 %v6419
        %v6604 = vunpack.c.l.b16 %v6422
        %v6605 = vunpack.c.l.b16 %v6425
        %v6606 = vunpack.c.l.b16 %v6428
        %v6607 = vunpack.c.l.b16 %v6431
        %v6608 = vunpack.c.l.b16 %v6434
        %v6609 = vunpack.c.l.b16 %v6437
        %v6610 = vunpack.c.l.b16 %v6440
        %v6611 = vunpack.c.l.b16 %v6443
        %v6612 = vunpack.c.l.b16 %v6446
        %v6613 = vunpack.c.l.b16 %v6449
        %v6614 = vunpack.c.l.b16 %v6452
        %v6615 = vpack.c.b16 %v6597, %v6597
        %v6616 = vpack.c.b16 %v6598, %v6598
        %v6617 = vpack.c.b16 %v6599, %v6599
        %v6618 = vpack.c.b16 %v6600, %v6600
        %v6619 = vpack.c.b16 %v6601, %v6601
        %v6620 = vpack.c.b16 %v6602, %v6602
        %v6621 = vpack.c.b16 %v6603, %v6603
        %v6622 = vpack.c.b16 %v6604, %v6604
        %v6623 = vpack.c.b16 %v6605, %v6605
        %v6624 = vpack.c.b16 %v6606, %v6606
        %v6625 = vpack.c.b16 %v6607, %v6607
        %v6626 = vpack.c.b16 %v6608, %v6608
        %v6627 = vpack.c.b16 %v6609, %v6609
        %v6628 = vpack.c.b16 %v6610, %v6610
        %v6629 = vpack.c.b16 %v6611, %v6611
        %v6630 = vpack.c.b16 %v6612, %v6612
        %v6631 = vpack.c.b16 %v6613, %v6613
        %v6632 = vpack.c.b16 %v6614, %v6614
        %vm6633 = vsmask.f32 7424
        %v6635 = vshrl.u32 %v6525, 16
        %v6637 = vshll.u32 %v6525, 16
        %v6639 = vrot.slane %v6637, 1
        %v6640 = vor.u32 %v6635, %v6639
        %v6642 = vshll.u32 %v6615, 16
        %v6644 = vrot.slane %v6642, 1
        %v6645 = vsel %vm6633, %v6640, %v6644
        %v6647 = vshrl.u32 %v6526, 16
        %v6649 = vshll.u32 %v6526, 16
        %v6651 = vrot.slane %v6649, 1
        %v6652 = vor.u32 %v6647, %v6651
        %v6654 = vshll.u32 %v6616, 16
        %v6656 = vrot.slane %v6654, 1
        %v6657 = vsel %vm6633, %v6652, %v6656
        %v6659 = vshrl.u32 %v6527, 16
        %v6661 = vshll.u32 %v6527, 16
        %v6663 = vrot.slane %v6661, 1
        %v6664 = vor.u32 %v6659, %v6663
        %v6666 = vshll.u32 %v6617, 16
        %v6668 = vrot.slane %v6666, 1
        %v6669 = vsel %vm6633, %v6664, %v6668
        %v6671 = vshrl.u32 %v6528, 16
        %v6673 = vshll.u32 %v6528, 16
        %v6675 = vrot.slane %v6673, 1
        %v6676 = vor.u32 %v6671, %v6675
        %v6678 = vshll.u32 %v6618, 16
        %v6680 = vrot.slane %v6678, 1
        %v6681 = vsel %vm6633, %v6676, %v6680
        %v6683 = vshrl.u32 %v6529, 16
        %v6685 = vshll.u32 %v6529, 16
        %v6687 = vrot.slane %v6685, 1
        %v6688 = vor.u32 %v6683, %v6687
        %v6690 = vshll.u32 %v6619, 16
        %v6692 = vrot.slane %v6690, 1
        %v6693 = vsel %vm6633, %v6688, %v6692
        %v6695 = vshrl.u32 %v6530, 16
        %v6697 = vshll.u32 %v6530, 16
        %v6699 = vrot.slane %v6697, 1
        %v6700 = vor.u32 %v6695, %v6699
        %v6702 = vshll.u32 %v6620, 16
        %v6704 = vrot.slane %v6702, 1
        %v6705 = vsel %vm6633, %v6700, %v6704
        %v6707 = vshrl.u32 %v6531, 16
        %v6709 = vshll.u32 %v6531, 16
        %v6711 = vrot.slane %v6709, 1
        %v6712 = vor.u32 %v6707, %v6711
        %v6714 = vshll.u32 %v6621, 16
        %v6716 = vrot.slane %v6714, 1
        %v6717 = vsel %vm6633, %v6712, %v6716
        %v6719 = vshrl.u32 %v6532, 16
        %v6721 = vshll.u32 %v6532, 16
        %v6723 = vrot.slane %v6721, 1
        %v6724 = vor.u32 %v6719, %v6723
        %v6726 = vshll.u32 %v6622, 16
        %v6728 = vrot.slane %v6726, 1
        %v6729 = vsel %vm6633, %v6724, %v6728
        %v6731 = vshrl.u32 %v6533, 16
        %v6733 = vshll.u32 %v6533, 16
        %v6735 = vrot.slane %v6733, 1
        %v6736 = vor.u32 %v6731, %v6735
        %v6738 = vshll.u32 %v6623, 16
        %v6740 = vrot.slane %v6738, 1
        %v6741 = vsel %vm6633, %v6736, %v6740
        %v6743 = vshrl.u32 %v6534, 16
        %v6745 = vshll.u32 %v6534, 16
        %v6747 = vrot.slane %v6745, 1
        %v6748 = vor.u32 %v6743, %v6747
        %v6750 = vshll.u32 %v6624, 16
        %v6752 = vrot.slane %v6750, 1
        %v6753 = vsel %vm6633, %v6748, %v6752
        %v6755 = vshrl.u32 %v6535, 16
        %v6757 = vshll.u32 %v6535, 16
        %v6759 = vrot.slane %v6757, 1
        %v6760 = vor.u32 %v6755, %v6759
        %v6762 = vshll.u32 %v6625, 16
        %v6764 = vrot.slane %v6762, 1
        %v6765 = vsel %vm6633, %v6760, %v6764
        %v6767 = vshrl.u32 %v6536, 16
        %v6769 = vshll.u32 %v6536, 16
        %v6771 = vrot.slane %v6769, 1
        %v6772 = vor.u32 %v6767, %v6771
        %v6774 = vshll.u32 %v6626, 16
        %v6776 = vrot.slane %v6774, 1
        %v6777 = vsel %vm6633, %v6772, %v6776
        %v6779 = vshrl.u32 %v6537, 16
        %v6781 = vshll.u32 %v6537, 16
        %v6783 = vrot.slane %v6781, 1
        %v6784 = vor.u32 %v6779, %v6783
        %v6786 = vshll.u32 %v6627, 16
        %v6788 = vrot.slane %v6786, 1
        %v6789 = vsel %vm6633, %v6784, %v6788
        %v6791 = vshrl.u32 %v6538, 16
        %v6793 = vshll.u32 %v6538, 16
        %v6795 = vrot.slane %v6793, 1
        %v6796 = vor.u32 %v6791, %v6795
        %v6798 = vshll.u32 %v6628, 16
        %v6800 = vrot.slane %v6798, 1
        %v6801 = vsel %vm6633, %v6796, %v6800
        %v6803 = vshrl.u32 %v6539, 16
        %v6805 = vshll.u32 %v6539, 16
        %v6807 = vrot.slane %v6805, 1
        %v6808 = vor.u32 %v6803, %v6807
        %v6810 = vshll.u32 %v6629, 16
        %v6812 = vrot.slane %v6810, 1
        %v6813 = vsel %vm6633, %v6808, %v6812
        %v6815 = vshrl.u32 %v6540, 16
        %v6817 = vshll.u32 %v6540, 16
        %v6819 = vrot.slane %v6817, 1
        %v6820 = vor.u32 %v6815, %v6819
        %v6822 = vshll.u32 %v6630, 16
        %v6824 = vrot.slane %v6822, 1
        %v6825 = vsel %vm6633, %v6820, %v6824
        %v6827 = vshrl.u32 %v6541, 16
        %v6829 = vshll.u32 %v6541, 16
        %v6831 = vrot.slane %v6829, 1
        %v6832 = vor.u32 %v6827, %v6831
        %v6834 = vshll.u32 %v6631, 16
        %v6836 = vrot.slane %v6834, 1
        %v6837 = vsel %vm6633, %v6832, %v6836
        %v6839 = vshrl.u32 %v6542, 16
        %v6841 = vshll.u32 %v6542, 16
        %v6843 = vrot.slane %v6841, 1
        %v6844 = vor.u32 %v6839, %v6843
        %v6846 = vshll.u32 %v6632, 16
        %v6848 = vrot.slane %v6846, 1
        %v6849 = vsel %vm6633, %v6844, %v6848
        %6868 = vst [vmem:[#allocation3 + $0x8] sm:$0xff] %v6645
        %6869 = vst [vmem:[#allocation3 + $0x20] sm:$0xff] %v6657
        %6870 = vst [vmem:[#allocation3 + $0x38] sm:$0xff] %v6669
        %6871 = vst [vmem:[#allocation3 + $0x50] sm:$0xff] %v6681
        %6872 = vst [vmem:[#allocation3 + $0x68] sm:$0xff] %v6693
        %6873 = vst [vmem:[#allocation3 + $0x80] sm:$0xff] %v6705
        %6874 = vst [vmem:[#allocation3 + $0x98] sm:$0xff] %v6717
        %6875 = vst [vmem:[#allocation3 + $0xb0] sm:$0xff] %v6729
        %6876 = vst [vmem:[#allocation3 + $0xc8] sm:$0xff] %v6741
        %6877 = vst [vmem:[#allocation3 + $0xe0] sm:$0xff] %v6753
        %6878 = vst [vmem:[#allocation3 + $0xf8] sm:$0xff] %v6765
        %6879 = vst [vmem:[#allocation3 + $0x110] sm:$0xff] %v6777
        %6880 = vst [vmem:[#allocation3 + $0x128] sm:$0xff] %v6789
        %6881 = vst [vmem:[#allocation3 + $0x140] sm:$0xff] %v6801
        %6882 = vst [vmem:[#allocation3 + $0x158] sm:$0xff] %v6813
        %6883 = vst [vmem:[#allocation3 + $0x170] sm:$0xff] %v6825
        %6884 = vst [vmem:[#allocation3 + $0x188] sm:$0xff] %v6837
        %6885 = vst [vmem:[#allocation3 + $0x1a0] sm:$0xff] %v6849
        %vm6886 = vcmask 1046528
        %v6887 = vrot.slane %v6525, 1
        %v6888 = vrot.slane %v6615, 1
        %v6889 = vsel %vm6886, %v6887, %v6888
        %v6890 = vrot.slane %v6526, 1
        %v6891 = vrot.slane %v6616, 1
        %v6892 = vsel %vm6886, %v6890, %v6891
        %v6893 = vrot.slane %v6527, 1
        %v6894 = vrot.slane %v6617, 1
        %v6895 = vsel %vm6886, %v6893, %v6894
        %v6896 = vrot.slane %v6528, 1
        %v6897 = vrot.slane %v6618, 1
        %v6898 = vsel %vm6886, %v6896, %v6897
        %v6899 = vrot.slane %v6529, 1
        %v6900 = vrot.slane %v6619, 1
        %v6901 = vsel %vm6886, %v6899, %v6900
        %v6902 = vrot.slane %v6530, 1
        %v6903 = vrot.slane %v6620, 1
        %v6904 = vsel %vm6886, %v6902, %v6903
        %v6905 = vrot.slane %v6531, 1
        %v6906 = vrot.slane %v6621, 1
        %v6907 = vsel %vm6886, %v6905, %v6906
        %v6908 = vrot.slane %v6532, 1
        %v6909 = vrot.slane %v6622, 1
        %v6910 = vsel %vm6886, %v6908, %v6909
        %v6911 = vrot.slane %v6533, 1
        %v6912 = vrot.slane %v6623, 1
        %v6913 = vsel %vm6886, %v6911, %v6912
        %v6914 = vrot.slane %v6534, 1
        %v6915 = vrot.slane %v6624, 1
        %v6916 = vsel %vm6886, %v6914, %v6915
        %v6917 = vrot.slane %v6535, 1
        %v6918 = vrot.slane %v6625, 1
        %v6919 = vsel %vm6886, %v6917, %v6918
        %v6920 = vrot.slane %v6536, 1
        %v6921 = vrot.slane %v6626, 1
        %v6922 = vsel %vm6886, %v6920, %v6921
        %v6923 = vrot.slane %v6537, 1
        %v6924 = vrot.slane %v6627, 1
        %v6925 = vsel %vm6886, %v6923, %v6924
        %v6926 = vrot.slane %v6538, 1
        %v6927 = vrot.slane %v6628, 1
        %v6928 = vsel %vm6886, %v6926, %v6927
        %v6929 = vrot.slane %v6539, 1
        %v6930 = vrot.slane %v6629, 1
        %v6931 = vsel %vm6886, %v6929, %v6930
        %v6932 = vrot.slane %v6540, 1
        %v6933 = vrot.slane %v6630, 1
        %v6934 = vsel %vm6886, %v6932, %v6933
        %v6935 = vrot.slane %v6541, 1
        %v6936 = vrot.slane %v6631, 1
        %v6937 = vsel %vm6886, %v6935, %v6936
        %v6938 = vrot.slane %v6542, 1
        %v6939 = vrot.slane %v6632, 1
        %v6940 = vsel %vm6886, %v6938, %v6939
        %6959 = vst [vmem:[#allocation3 + $0x10] sm:$0xff] %v6889
        %6960 = vst [vmem:[#allocation3 + $0x28] sm:$0xff] %v6892
        %6961 = vst [vmem:[#allocation3 + $0x40] sm:$0xff] %v6895
        %6962 = vst [vmem:[#allocation3 + $0x58] sm:$0xff] %v6898
        %6963 = vst [vmem:[#allocation3 + $0x70] sm:$0xff] %v6901
        %6964 = vst [vmem:[#allocation3 + $0x88] sm:$0xff] %v6904
        %6965 = vst [vmem:[#allocation3 + $0xa0] sm:$0xff] %v6907
        %6966 = vst [vmem:[#allocation3 + $0xb8] sm:$0xff] %v6910
        %6967 = vst [vmem:[#allocation3 + $0xd0] sm:$0xff] %v6913
        %6968 = vst [vmem:[#allocation3 + $0xe8] sm:$0xff] %v6916
        %6969 = vst [vmem:[#allocation3 + $0x100] sm:$0xff] %v6919
        %6970 = vst [vmem:[#allocation3 + $0x118] sm:$0xff] %v6922
        %6971 = vst [vmem:[#allocation3 + $0x130] sm:$0xff] %v6925
        %6972 = vst [vmem:[#allocation3 + $0x148] sm:$0xff] %v6928
        %6973 = vst [vmem:[#allocation3 + $0x160] sm:$0xff] %v6931
        %6974 = vst [vmem:[#allocation3 + $0x178] sm:$0xff] %v6934
        %6975 = vst [vmem:[#allocation3 + $0x190] sm:$0xff] %v6937
        %6976 = vst [vmem:[#allocation3 + $0x1a8] sm:$0xff] %v6940
        %v6977 = vld [vmem:[#allocation3] sm:$0xff]
        %v6978 = vld [vmem:[#allocation3 + $0x8] sm:$0xff]
        %v6979 = vld [vmem:[#allocation3 + $0x10] sm:$0xff]
        %v6980 = vld [vmem:[#allocation3 + $0x18] sm:$0xff]
        %v6981 = vld [vmem:[#allocation3 + $0x20] sm:$0xff]
        %v6982 = vld [vmem:[#allocation3 + $0x28] sm:$0xff]
        %v6983 = vld [vmem:[#allocation3 + $0x30] sm:$0xff]
        %v6984 = vld [vmem:[#allocation3 + $0x38] sm:$0xff]
        %v6985 = vld [vmem:[#allocation3 + $0x40] sm:$0xff]
        %v6986 = vld [vmem:[#allocation3 + $0x48] sm:$0xff]
        %v6987 = vld [vmem:[#allocation3 + $0x50] sm:$0xff]
        %v6988 = vld [vmem:[#allocation3 + $0x58] sm:$0xff]
        %v6989 = vld [vmem:[#allocation3 + $0x60] sm:$0xff]
        %v6990 = vld [vmem:[#allocation3 + $0x68] sm:$0xff]
        %v6991 = vld [vmem:[#allocation3 + $0x70] sm:$0xff]
        %v6992 = vld [vmem:[#allocation3 + $0x78] sm:$0xff]
        %v6993 = vld [vmem:[#allocation3 + $0x80] sm:$0xff]
        %v6994 = vld [vmem:[#allocation3 + $0x88] sm:$0xff]
        %v6995 = vld [vmem:[#allocation3 + $0x90] sm:$0xff]
        %v6996 = vld [vmem:[#allocation3 + $0x98] sm:$0xff]
        %v6997 = vld [vmem:[#allocation3 + $0xa0] sm:$0xff]
        %v6998 = vld [vmem:[#allocation3 + $0xa8] sm:$0xff]
        %v6999 = vld [vmem:[#allocation3 + $0xb0] sm:$0xff]
        %v7000 = vld [vmem:[#allocation3 + $0xb8] sm:$0xff]
        %v7001 = vld [vmem:[#allocation3 + $0xc0] sm:$0xff]
        %v7002 = vld [vmem:[#allocation3 + $0xc8] sm:$0xff]
        %v7003 = vld [vmem:[#allocation3 + $0xd0] sm:$0xff]
        %v7004 = vld [vmem:[#allocation3 + $0xd8] sm:$0xff]
        %v7005 = vld [vmem:[#allocation3 + $0xe0] sm:$0xff]
        %v7006 = vld [vmem:[#allocation3 + $0xe8] sm:$0xff]
        %v7007 = vld [vmem:[#allocation3 + $0xf0] sm:$0xff]
        %v7008 = vld [vmem:[#allocation3 + $0xf8] sm:$0xff]
        %v7009 = vld [vmem:[#allocation3 + $0x100] sm:$0xff]
        %v7010 = vld [vmem:[#allocation3 + $0x108] sm:$0xff]
        %v7011 = vld [vmem:[#allocation3 + $0x110] sm:$0xff]
        %v7012 = vld [vmem:[#allocation3 + $0x118] sm:$0xff]
        %v7013 = vld [vmem:[#allocation3 + $0x120] sm:$0xff]
        %v7014 = vld [vmem:[#allocation3 + $0x128] sm:$0xff]
        %v7015 = vld [vmem:[#allocation3 + $0x130] sm:$0xff]
        %v7016 = vld [vmem:[#allocation3 + $0x138] sm:$0xff]
        %v7017 = vld [vmem:[#allocation3 + $0x140] sm:$0xff]
        %v7018 = vld [vmem:[#allocation3 + $0x148] sm:$0xff]
        %v7019 = vld [vmem:[#allocation3 + $0x150] sm:$0xff]
        %v7020 = vld [vmem:[#allocation3 + $0x158] sm:$0xff]
        %v7021 = vld [vmem:[#allocation3 + $0x160] sm:$0xff]
        %v7022 = vld [vmem:[#allocation3 + $0x168] sm:$0xff]
        %v7023 = vld [vmem:[#allocation3 + $0x170] sm:$0xff]
        %v7024 = vld [vmem:[#allocation3 + $0x178] sm:$0xff]
        %v7025 = vld [vmem:[#allocation12] sm:$0xff]
        %v7026 = vld [vmem:[#allocation12 + $0x8] sm:$0xff]
        %v7027 = vld [vmem:[#allocation12 + $0x10] sm:$0xff]
        %v7028 = vld [vmem:[#allocation12 + $0x18] sm:$0xff]
        %v7029 = vld [vmem:[#allocation12 + $0x20] sm:$0xff]
        %v7030 = vld [vmem:[#allocation12 + $0x28] sm:$0xff]
        %v7031 = vld [vmem:[#allocation12 + $0x30] sm:$0xff]
        %v7032 = vld [vmem:[#allocation12 + $0x38] sm:$0xff]
        %v7033 = vld [vmem:[#allocation12 + $0x40] sm:$0xff]
        %v7034 = vld [vmem:[#allocation12 + $0x48] sm:$0xff]
        %v7035 = vld [vmem:[#allocation12 + $0x50] sm:$0xff]
        %v7036 = vld [vmem:[#allocation12 + $0x58] sm:$0xff]
        %v7037 = vld [vmem:[#allocation12 + $0x60] sm:$0xff]
        %v7038 = vld [vmem:[#allocation12 + $0x68] sm:$0xff]
        %v7039 = vld [vmem:[#allocation12 + $0x70] sm:$0xff]
        %v7040 = vld [vmem:[#allocation12 + $0x78] sm:$0xff]
        %v7041 = vld [vmem:[#allocation12 + $0x80] sm:$0xff]
        %v7042 = vld [vmem:[#allocation12 + $0x88] sm:$0xff]
        %v7043 = vld [vmem:[#allocation12 + $0x90] sm:$0xff]
        %v7044 = vld [vmem:[#allocation12 + $0x98] sm:$0xff]
        %v7045 = vld [vmem:[#allocation12 + $0xa0] sm:$0xff]
        %v7046 = vld [vmem:[#allocation12 + $0xa8] sm:$0xff]
        %v7047 = vld [vmem:[#allocation12 + $0xb0] sm:$0xff]
        %v7048 = vld [vmem:[#allocation12 + $0xb8] sm:$0xff]
        %v7049 = vld [vmem:[#allocation12 + $0xc0] sm:$0xff]
        %v7050 = vld [vmem:[#allocation12 + $0xc8] sm:$0xff]
        %v7051 = vld [vmem:[#allocation12 + $0xd0] sm:$0xff]
        %v7052 = vld [vmem:[#allocation12 + $0xd8] sm:$0xff]
        %v7053 = vld [vmem:[#allocation12 + $0xe0] sm:$0xff]
        %v7054 = vld [vmem:[#allocation12 + $0xe8] sm:$0xff]
        %v7055 = vld [vmem:[#allocation12 + $0xf0] sm:$0xff]
        %v7056 = vld [vmem:[#allocation12 + $0xf8] sm:$0xff]
        %v7057 = vld [vmem:[#allocation12 + $0x100] sm:$0xff]
        %v7058 = vld [vmem:[#allocation12 + $0x108] sm:$0xff]
        %v7059 = vld [vmem:[#allocation12 + $0x110] sm:$0xff]
        %v7060 = vld [vmem:[#allocation12 + $0x118] sm:$0xff]
        %v7061 = vld [vmem:[#allocation12 + $0x120] sm:$0xff]
        %v7062 = vld [vmem:[#allocation12 + $0x128] sm:$0xff]
        %v7063 = vld [vmem:[#allocation12 + $0x130] sm:$0xff]
        %v7064 = vld [vmem:[#allocation12 + $0x138] sm:$0xff]
        %v7065 = vld [vmem:[#allocation12 + $0x140] sm:$0xff]
        %v7066 = vld [vmem:[#allocation12 + $0x148] sm:$0xff]
        %v7067 = vld [vmem:[#allocation12 + $0x150] sm:$0xff]
        %v7068 = vld [vmem:[#allocation12 + $0x158] sm:$0xff]
        %v7069 = vld [vmem:[#allocation12 + $0x160] sm:$0xff]
        %v7070 = vld [vmem:[#allocation12 + $0x168] sm:$0xff]
        %v7071 = vld [vmem:[#allocation12 + $0x170] sm:$0xff]
        %v7072 = vld [vmem:[#allocation12 + $0x178] sm:$0xff]
        %s7073 = scalar_lea.vmem [#allocation3], 24
        %v7074 = vld [vmem:[%s7073] sm:$0xff]
        %v7075 = vld [vmem:[%s7073 + $0x8] sm:$0xff]
        %v7076 = vld [vmem:[%s7073 + $0x10] sm:$0xff]
        %v7077 = vld [vmem:[%s7073 + $0x18] sm:$0xff]
        %v7078 = vld [vmem:[%s7073 + $0x20] sm:$0xff]
        %v7079 = vld [vmem:[%s7073 + $0x28] sm:$0xff]
        %v7080 = vld [vmem:[%s7073 + $0x30] sm:$0xff]
        %v7081 = vld [vmem:[%s7073 + $0x38] sm:$0xff]
        %v7082 = vld [vmem:[%s7073 + $0x40] sm:$0xff]
        %v7083 = vld [vmem:[%s7073 + $0x48] sm:$0xff]
        %v7084 = vld [vmem:[%s7073 + $0x50] sm:$0xff]
        %v7085 = vld [vmem:[%s7073 + $0x58] sm:$0xff]
        %v7086 = vld [vmem:[%s7073 + $0x60] sm:$0xff]
        %v7087 = vld [vmem:[%s7073 + $0x68] sm:$0xff]
        %v7088 = vld [vmem:[%s7073 + $0x70] sm:$0xff]
        %v7089 = vld [vmem:[%s7073 + $0x78] sm:$0xff]
        %v7090 = vld [vmem:[%s7073 + $0x80] sm:$0xff]
        %v7091 = vld [vmem:[%s7073 + $0x88] sm:$0xff]
        %v7092 = vld [vmem:[%s7073 + $0x90] sm:$0xff]
        %v7093 = vld [vmem:[%s7073 + $0x98] sm:$0xff]
        %v7094 = vld [vmem:[%s7073 + $0xa0] sm:$0xff]
        %v7095 = vld [vmem:[%s7073 + $0xa8] sm:$0xff]
        %v7096 = vld [vmem:[%s7073 + $0xb0] sm:$0xff]
        %v7097 = vld [vmem:[%s7073 + $0xb8] sm:$0xff]
        %v7098 = vld [vmem:[%s7073 + $0xc0] sm:$0xff]
        %v7099 = vld [vmem:[%s7073 + $0xc8] sm:$0xff]
        %v7100 = vld [vmem:[%s7073 + $0xd0] sm:$0xff]
        %v7101 = vld [vmem:[%s7073 + $0xd8] sm:$0xff]
        %v7102 = vld [vmem:[%s7073 + $0xe0] sm:$0xff]
        %v7103 = vld [vmem:[%s7073 + $0xe8] sm:$0xff]
        %v7104 = vld [vmem:[%s7073 + $0xf0] sm:$0xff]
        %v7105 = vld [vmem:[%s7073 + $0xf8] sm:$0xff]
        %v7106 = vld [vmem:[%s7073 + $0x100] sm:$0xff]
        %v7107 = vld [vmem:[%s7073 + $0x108] sm:$0xff]
        %v7108 = vld [vmem:[%s7073 + $0x110] sm:$0xff]
        %v7109 = vld [vmem:[%s7073 + $0x118] sm:$0xff]
        %v7110 = vld [vmem:[%s7073 + $0x120] sm:$0xff]
        %v7111 = vld [vmem:[%s7073 + $0x128] sm:$0xff]
        %v7112 = vld [vmem:[%s7073 + $0x130] sm:$0xff]
        %v7113 = vld [vmem:[%s7073 + $0x138] sm:$0xff]
        %v7114 = vld [vmem:[%s7073 + $0x140] sm:$0xff]
        %v7115 = vld [vmem:[%s7073 + $0x148] sm:$0xff]
        %v7116 = vld [vmem:[%s7073 + $0x150] sm:$0xff]
        %v7117 = vld [vmem:[%s7073 + $0x158] sm:$0xff]
        %v7118 = vld [vmem:[%s7073 + $0x160] sm:$0xff]
        %v7119 = vld [vmem:[%s7073 + $0x168] sm:$0xff]
        %v7120 = vld [vmem:[%s7073 + $0x170] sm:$0xff]
        %v7121 = vld [vmem:[%s7073 + $0x178] sm:$0xff]
        %s7122 = scalar_lea.vmem [#allocation12], 384
        %v7123 = vld [vmem:[%s7122] sm:$0xff]
        %v7124 = vld [vmem:[%s7122 + $0x8] sm:$0xff]
        %v7125 = vld [vmem:[%s7122 + $0x10] sm:$0xff]
        %v7126 = vld [vmem:[%s7122 + $0x18] sm:$0xff]
        %v7127 = vld [vmem:[%s7122 + $0x20] sm:$0xff]
        %v7128 = vld [vmem:[%s7122 + $0x28] sm:$0xff]
        %v7129 = vld [vmem:[%s7122 + $0x30] sm:$0xff]
        %v7130 = vld [vmem:[%s7122 + $0x38] sm:$0xff]
        %v7131 = vld [vmem:[%s7122 + $0x40] sm:$0xff]
        %v7132 = vld [vmem:[%s7122 + $0x48] sm:$0xff]
        %v7133 = vld [vmem:[%s7122 + $0x50] sm:$0xff]
        %v7134 = vld [vmem:[%s7122 + $0x58] sm:$0xff]
        %v7135 = vld [vmem:[%s7122 + $0x60] sm:$0xff]
        %v7136 = vld [vmem:[%s7122 + $0x68] sm:$0xff]
        %v7137 = vld [vmem:[%s7122 + $0x70] sm:$0xff]
        %v7138 = vld [vmem:[%s7122 + $0x78] sm:$0xff]
        %v7139 = vld [vmem:[%s7122 + $0x80] sm:$0xff]
        %v7140 = vld [vmem:[%s7122 + $0x88] sm:$0xff]
        %v7141 = vld [vmem:[%s7122 + $0x90] sm:$0xff]
        %v7142 = vld [vmem:[%s7122 + $0x98] sm:$0xff]
        %v7143 = vld [vmem:[%s7122 + $0xa0] sm:$0xff]
        %v7144 = vld [vmem:[%s7122 + $0xa8] sm:$0xff]
        %v7145 = vld [vmem:[%s7122 + $0xb0] sm:$0xff]
        %v7146 = vld [vmem:[%s7122 + $0xb8] sm:$0xff]
        %v7147 = vld [vmem:[%s7122 + $0xc0] sm:$0xff]
        %v7148 = vld [vmem:[%s7122 + $0xc8] sm:$0xff]
        %v7149 = vld [vmem:[%s7122 + $0xd0] sm:$0xff]
        %v7150 = vld [vmem:[%s7122 + $0xd8] sm:$0xff]
        %v7151 = vld [vmem:[%s7122 + $0xe0] sm:$0xff]
        %v7152 = vld [vmem:[%s7122 + $0xe8] sm:$0xff]
        %v7153 = vld [vmem:[%s7122 + $0xf0] sm:$0xff]
        %v7154 = vld [vmem:[%s7122 + $0xf8] sm:$0xff]
        %v7155 = vld [vmem:[%s7122 + $0x100] sm:$0xff]
        %v7156 = vld [vmem:[%s7122 + $0x108] sm:$0xff]
        %v7157 = vld [vmem:[%s7122 + $0x110] sm:$0xff]
        %v7158 = vld [vmem:[%s7122 + $0x118] sm:$0xff]
        %v7159 = vld [vmem:[%s7122 + $0x120] sm:$0xff]
        %v7160 = vld [vmem:[%s7122 + $0x128] sm:$0xff]
        %v7161 = vld [vmem:[%s7122 + $0x130] sm:$0xff]
        %v7162 = vld [vmem:[%s7122 + $0x138] sm:$0xff]
        %v7163 = vld [vmem:[%s7122 + $0x140] sm:$0xff]
        %v7164 = vld [vmem:[%s7122 + $0x148] sm:$0xff]
        %v7165 = vld [vmem:[%s7122 + $0x150] sm:$0xff]
        %v7166 = vld [vmem:[%s7122 + $0x158] sm:$0xff]
        %v7167 = vld [vmem:[%s7122 + $0x160] sm:$0xff]
        %v7168 = vld [vmem:[%s7122 + $0x168] sm:$0xff]
        %v7169 = vld [vmem:[%s7122 + $0x170] sm:$0xff]
        %v7170 = vld [vmem:[%s7122 + $0x178] sm:$0xff]
        %v7219 = vunpack.c.l.b16 %v7123
        %v7220 = vunpack.c.h.b16 %v7123
        %v7221 = vunpack.c.l.b16 %v7124
        %v7222 = vunpack.c.h.b16 %v7124
        %v7223 = vunpack.c.l.b16 %v7125
        %v7224 = vunpack.c.h.b16 %v7125
        %v7225 = vunpack.c.l.b16 %v7126
        %v7226 = vunpack.c.h.b16 %v7126
        %v7227 = vunpack.c.l.b16 %v7127
        %v7228 = vunpack.c.h.b16 %v7127
        %v7229 = vunpack.c.l.b16 %v7128
        %v7230 = vunpack.c.h.b16 %v7128
        %v7231 = vunpack.c.l.b16 %v7129
        %v7232 = vunpack.c.h.b16 %v7129
        %v7233 = vunpack.c.l.b16 %v7130
        %v7234 = vunpack.c.h.b16 %v7130
        %v7235 = vunpack.c.l.b16 %v7131
        %v7236 = vunpack.c.h.b16 %v7131
        %v7237 = vunpack.c.l.b16 %v7132
        %v7238 = vunpack.c.h.b16 %v7132
        %v7239 = vunpack.c.l.b16 %v7133
        %v7240 = vunpack.c.h.b16 %v7133
        %v7241 = vunpack.c.l.b16 %v7134
        %v7242 = vunpack.c.h.b16 %v7134
        %v7243 = vunpack.c.l.b16 %v7135
        %v7244 = vunpack.c.h.b16 %v7135
        %v7245 = vunpack.c.l.b16 %v7136
        %v7246 = vunpack.c.h.b16 %v7136
        %v7247 = vunpack.c.l.b16 %v7137
        %v7248 = vunpack.c.h.b16 %v7137
        %v7249 = vunpack.c.l.b16 %v7138
        %v7250 = vunpack.c.h.b16 %v7138
        %v7251 = vunpack.c.l.b16 %v7139
        %v7252 = vunpack.c.h.b16 %v7139
        %v7253 = vunpack.c.l.b16 %v7140
        %v7254 = vunpack.c.h.b16 %v7140
        %v7255 = vunpack.c.l.b16 %v7141
        %v7256 = vunpack.c.h.b16 %v7141
        %v7257 = vunpack.c.l.b16 %v7142
        %v7258 = vunpack.c.h.b16 %v7142
        %v7259 = vunpack.c.l.b16 %v7143
        %v7260 = vunpack.c.h.b16 %v7143
        %v7261 = vunpack.c.l.b16 %v7144
        %v7262 = vunpack.c.h.b16 %v7144
        %v7263 = vunpack.c.l.b16 %v7145
        %v7264 = vunpack.c.h.b16 %v7145
        %v7265 = vunpack.c.l.b16 %v7146
        %v7266 = vunpack.c.h.b16 %v7146
        %v7267 = vunpack.c.l.b16 %v7147
        %v7268 = vunpack.c.h.b16 %v7147
        %v7269 = vunpack.c.l.b16 %v7148
        %v7270 = vunpack.c.h.b16 %v7148
        %v7271 = vunpack.c.l.b16 %v7149
        %v7272 = vunpack.c.h.b16 %v7149
        %v7273 = vunpack.c.l.b16 %v7150
        %v7274 = vunpack.c.h.b16 %v7150
        %v7275 = vunpack.c.l.b16 %v7151
        %v7276 = vunpack.c.h.b16 %v7151
        %v7277 = vunpack.c.l.b16 %v7152
        %v7278 = vunpack.c.h.b16 %v7152
        %v7279 = vunpack.c.l.b16 %v7153
        %v7280 = vunpack.c.h.b16 %v7153
        %v7281 = vunpack.c.l.b16 %v7154
        %v7282 = vunpack.c.h.b16 %v7154
        %v7283 = vunpack.c.l.b16 %v7155
        %v7284 = vunpack.c.h.b16 %v7155
        %v7285 = vunpack.c.l.b16 %v7156
        %v7286 = vunpack.c.h.b16 %v7156
        %v7287 = vunpack.c.l.b16 %v7157
        %v7288 = vunpack.c.h.b16 %v7157
        %v7289 = vunpack.c.l.b16 %v7158
        %v7290 = vunpack.c.h.b16 %v7158
        %v7291 = vunpack.c.l.b16 %v7159
        %v7292 = vunpack.c.h.b16 %v7159
        %v7293 = vunpack.c.l.b16 %v7160
        %v7294 = vunpack.c.h.b16 %v7160
        %v7295 = vunpack.c.l.b16 %v7161
        %v7296 = vunpack.c.h.b16 %v7161
        %v7297 = vunpack.c.l.b16 %v7162
        %v7298 = vunpack.c.h.b16 %v7162
        %v7299 = vunpack.c.l.b16 %v7163
        %v7300 = vunpack.c.h.b16 %v7163
        %v7301 = vunpack.c.l.b16 %v7164
        %v7302 = vunpack.c.h.b16 %v7164
        %v7303 = vunpack.c.l.b16 %v7165
        %v7304 = vunpack.c.h.b16 %v7165
        %v7305 = vunpack.c.l.b16 %v7166
        %v7306 = vunpack.c.h.b16 %v7166
        %v7307 = vunpack.c.l.b16 %v7167
        %v7308 = vunpack.c.h.b16 %v7167
        %v7309 = vunpack.c.l.b16 %v7168
        %v7310 = vunpack.c.h.b16 %v7168
        %v7311 = vunpack.c.l.b16 %v7169
        %v7312 = vunpack.c.h.b16 %v7169
        %v7313 = vunpack.c.l.b16 %v7170
        %v7314 = vunpack.c.h.b16 %v7170
        %v7315 = vpack.c.b16 %v7221, %v7219
        %v7316 = vpack.c.b16 %v7222, %v7220
        %v7317 = vpack.c.b16 %v7225, %v7223
        %v7318 = vpack.c.b16 %v7226, %v7224
        %v7319 = vpack.c.b16 %v7229, %v7227
        %v7320 = vpack.c.b16 %v7230, %v7228
        %v7321 = vpack.c.b16 %v7233, %v7231
        %v7322 = vpack.c.b16 %v7234, %v7232
        %v7323 = vpack.c.b16 %v7237, %v7235
        %v7324 = vpack.c.b16 %v7238, %v7236
        %v7325 = vpack.c.b16 %v7241, %v7239
        %v7326 = vpack.c.b16 %v7242, %v7240
        %v7327 = vpack.c.b16 %v7245, %v7243
        %v7328 = vpack.c.b16 %v7246, %v7244
        %v7329 = vpack.c.b16 %v7249, %v7247
        %v7330 = vpack.c.b16 %v7250, %v7248
        %v7331 = vpack.c.b16 %v7253, %v7251
        %v7332 = vpack.c.b16 %v7254, %v7252
        %v7333 = vpack.c.b16 %v7257, %v7255
        %v7334 = vpack.c.b16 %v7258, %v7256
        %v7335 = vpack.c.b16 %v7261, %v7259
        %v7336 = vpack.c.b16 %v7262, %v7260
        %v7337 = vpack.c.b16 %v7265, %v7263
        %v7338 = vpack.c.b16 %v7266, %v7264
        %v7339 = vpack.c.b16 %v7269, %v7267
        %v7340 = vpack.c.b16 %v7270, %v7268
        %v7341 = vpack.c.b16 %v7273, %v7271
        %v7342 = vpack.c.b16 %v7274, %v7272
        %v7343 = vpack.c.b16 %v7277, %v7275
        %v7344 = vpack.c.b16 %v7278, %v7276
        %v7345 = vpack.c.b16 %v7281, %v7279
        %v7346 = vpack.c.b16 %v7282, %v7280
        %v7347 = vpack.c.b16 %v7285, %v7283
        %v7348 = vpack.c.b16 %v7286, %v7284
        %v7349 = vpack.c.b16 %v7289, %v7287
        %v7350 = vpack.c.b16 %v7290, %v7288
        %v7351 = vpack.c.b16 %v7293, %v7291
        %v7352 = vpack.c.b16 %v7294, %v7292
        %v7353 = vpack.c.b16 %v7297, %v7295
        %v7354 = vpack.c.b16 %v7298, %v7296
        %v7355 = vpack.c.b16 %v7301, %v7299
        %v7356 = vpack.c.b16 %v7302, %v7300
        %v7357 = vpack.c.b16 %v7305, %v7303
        %v7358 = vpack.c.b16 %v7306, %v7304
        %v7359 = vpack.c.b16 %v7309, %v7307
        %v7360 = vpack.c.b16 %v7310, %v7308
        %v7361 = vpack.c.b16 %v7313, %v7311
        %v7362 = vpack.c.b16 %v7314, %v7312
        %7411 = vmatprep.subr.bf16.mxu0 %v7316
        %7412 = vmatpush1.bf16.msra.mxu0 %v7315
        %7413 = vmatprep.subr.bf16.mxu0 %v7318
        %7414 = vmatpush1.bf16.msra.mxu0 %v7317
        %7415 = vmatprep.subr.bf16.mxu0 %v7320
        %7416 = vmatpush1.bf16.msra.mxu0 %v7319
        %7417 = vmatprep.subr.bf16.mxu0 %v7322
        %7418 = vmatpush1.bf16.msra.mxu0 %v7321
        %7419 = vmatprep.subr.bf16.mxu0 %v7324
        %7420 = vmatpush1.bf16.msra.mxu0 %v7323
        %7421 = vmatprep.subr.bf16.mxu0 %v7326
        %7422 = vmatpush1.bf16.msra.mxu0 %v7325
        %7423 = vmatprep.subr.bf16.mxu0 %v7328
        %7424 = vmatpush1.bf16.msra.mxu0 %v7327
        %7425 = vmatprep.subr.bf16.mxu0 %v7330
        %7426 = vmatpush1.bf16.msra.mxu0 %v7329
        %7427 = vmatprep.subr.bf16.mxu0 %v7332
        %7428 = vmatpush1.bf16.msra.mxu0 %v7331
        %7429 = vmatprep.subr.bf16.mxu0 %v7334
        %7430 = vmatpush1.bf16.msra.mxu0 %v7333
        %7431 = vmatprep.subr.bf16.mxu0 %v7336
        %7432 = vmatpush1.bf16.msra.mxu0 %v7335
        %7433 = vmatprep.subr.bf16.mxu0 %v7338
        %7434 = vmatpush1.bf16.msra.mxu0 %v7337
        %7435 = vmatprep.subr.bf16.mxu0 %v7340
        %7436 = vmatpush1.bf16.msra.mxu0 %v7339
        %7437 = vmatprep.subr.bf16.mxu0 %v7342
        %7438 = vmatpush1.bf16.msra.mxu0 %v7341
        %7439 = vmatprep.subr.bf16.mxu0 %v7344
        %7440 = vmatpush1.bf16.msra.mxu0 %v7343
        %7441 = vmatprep.subr.bf16.mxu0 %v7346
        %7442 = vmatpush1.bf16.msra.mxu0 %v7345
        %7443 = vmatprep.mubr.bf16.mxu0 %v7075
        %7444 = vmatmul.mubr.bf16.gmra.mrb[0].mxu0 %v7074
        %v7445 = vpop.f32.mrb[0].mxu0
        %v7446 = vadd.f32 0.0, %v7445
        %v7447 = vpop.f32.mrb[0].mxu0
        %v7448 = vadd.f32 0.0, %v7447
        %v7449 = vpop.f32.mrb[0].mxu0
        %v7450 = vadd.f32 0.0, %v7449
        %v7451 = vpop.f32.mrb[0].mxu0
        %v7452 = vadd.f32 0.0, %v7451
        %7453 = vmatprep.mubr.bf16.mxu0 %v7078
        %7454 = vmatmul.mubr.bf16.gmra.mrb[0].mxu0 %v7077
        %v7455 = vpop.f32.mrb[0].mxu0
        %v7456 = vadd.f32 0.0, %v7455
        %v7457 = vpop.f32.mrb[0].mxu0
        %v7458 = vadd.f32 0.0, %v7457
        %v7459 = vpop.f32.mrb[0].mxu0
        %v7460 = vadd.f32 0.0, %v7459
        %v7461 = vpop.f32.mrb[0].mxu0
        %v7462 = vadd.f32 0.0, %v7461
        %7463 = vmatprep.mubr.bf16.mxu0 %v7081
        %7464 = vmatmul.mubr.bf16.gmra.mrb[0].mxu0 %v7080
        %v7465 = vpop.f32.mrb[0].mxu0
        %v7466 = vadd.f32 0.0, %v7465
        %v7467 = vpop.f32.mrb[0].mxu0
        %v7468 = vadd.f32 0.0, %v7467
        %v7469 = vpop.f32.mrb[0].mxu0
        %v7470 = vadd.f32 0.0, %v7469
        %v7471 = vpop.f32.mrb[0].mxu0
        %v7472 = vadd.f32 0.0, %v7471
        %7473 = vmatprep.mubr.bf16.mxu0 %v7084
        %7474 = vmatmul.mubr.bf16.gmra.mrb[0].mxu0 %v7083
        %v7475 = vpop.f32.mrb[0].mxu0
        %v7476 = vadd.f32 0.0, %v7475
        %v7477 = vpop.f32.mrb[0].mxu0
        %v7478 = vadd.f32 0.0, %v7477
        %v7479 = vpop.f32.mrb[0].mxu0
        %v7480 = vadd.f32 0.0, %v7479
        %v7481 = vpop.f32.mrb[0].mxu0
        %v7482 = vadd.f32 0.0, %v7481
        %7483 = vmatprep.mubr.bf16.mxu0 %v7087
        %7484 = vmatmul.mubr.bf16.gmra.mrb[0].mxu0 %v7086
        %v7485 = vpop.f32.mrb[0].mxu0
        %v7486 = vadd.f32 0.0, %v7485
        %v7487 = vpop.f32.mrb[0].mxu0
        %v7488 = vadd.f32 0.0, %v7487
        %v7489 = vpop.f32.mrb[0].mxu0
        %v7490 = vadd.f32 0.0, %v7489
        %v7491 = vpop.f32.mrb[0].mxu0
        %v7492 = vadd.f32 0.0, %v7491
        %7493 = vmatprep.mubr.bf16.mxu0 %v7090
        %7494 = vmatmul.mubr.bf16.gmra.mrb[0].mxu0 %v7089
        %v7495 = vpop.f32.mrb[0].mxu0
        %v7496 = vadd.f32 0.0, %v7495
        %v7497 = vpop.f32.mrb[0].mxu0
        %v7498 = vadd.f32 0.0, %v7497
        %v7499 = vpop.f32.mrb[0].mxu0
        %v7500 = vadd.f32 0.0, %v7499
        %v7501 = vpop.f32.mrb[0].mxu0
        %v7502 = vadd.f32 0.0, %v7501
        %7503 = vmatprep.mubr.bf16.mxu0 %v7093
        %7504 = vmatmul.mubr.bf16.gmra.mrb[0].mxu0 %v7092
        %v7505 = vpop.f32.mrb[0].mxu0
        %v7506 = vadd.f32 0.0, %v7505
        %v7507 = vpop.f32.mrb[0].mxu0
        %v7508 = vadd.f32 0.0, %v7507
        %v7509 = vpop.f32.mrb[0].mxu0
        %v7510 = vadd.f32 0.0, %v7509
        %v7511 = vpop.f32.mrb[0].mxu0
        %v7512 = vadd.f32 0.0, %v7511
        %7513 = vmatprep.mubr.bf16.mxu0 %v7096
        %7514 = vmatmul.mubr.bf16.gmra.mrb[0].mxu0 %v7095
        %v7515 = vpop.f32.mrb[0].mxu0
        %v7516 = vadd.f32 0.0, %v7515
        %v7517 = vpop.f32.mrb[0].mxu0
        %v7518 = vadd.f32 0.0, %v7517
        %v7519 = vpop.f32.mrb[0].mxu0
        %v7520 = vadd.f32 0.0, %v7519
        %v7521 = vpop.f32.mrb[0].mxu0
        %v7522 = vadd.f32 0.0, %v7521
        %7523 = vmatprep.mubr.bf16.mxu0 %v7099
        %7524 = vmatmul.mubr.bf16.gmra.mrb[0].mxu0 %v7098
        %v7525 = vpop.f32.mrb[0].mxu0
        %v7526 = vadd.f32 0.0, %v7525
        %v7527 = vpop.f32.mrb[0].mxu0
        %v7528 = vadd.f32 0.0, %v7527
        %v7529 = vpop.f32.mrb[0].mxu0
        %v7530 = vadd.f32 0.0, %v7529
        %v7531 = vpop.f32.mrb[0].mxu0
        %v7532 = vadd.f32 0.0, %v7531
        %7533 = vmatprep.mubr.bf16.mxu0 %v7102
        %7534 = vmatmul.mubr.bf16.gmra.mrb[0].mxu0 %v7101
        %v7535 = vpop.f32.mrb[0].mxu0
        %v7536 = vadd.f32 0.0, %v7535
        %v7537 = vpop.f32.mrb[0].mxu0
        %v7538 = vadd.f32 0.0, %v7537
        %v7539 = vpop.f32.mrb[0].mxu0
        %v7540 = vadd.f32 0.0, %v7539
        %v7541 = vpop.f32.mrb[0].mxu0
        %v7542 = vadd.f32 0.0, %v7541
        %7543 = vmatprep.mubr.bf16.mxu0 %v7105
        %7544 = vmatmul.mubr.bf16.gmra.mrb[0].mxu0 %v7104
        %v7545 = vpop.f32.mrb[0].mxu0
        %v7546 = vadd.f32 0.0, %v7545
        %v7547 = vpop.f32.mrb[0].mxu0
        %v7548 = vadd.f32 0.0, %v7547
        %v7549 = vpop.f32.mrb[0].mxu0
        %v7550 = vadd.f32 0.0, %v7549
        %v7551 = vpop.f32.mrb[0].mxu0
        %v7552 = vadd.f32 0.0, %v7551
        %7553 = vmatprep.mubr.bf16.mxu0 %v7108
        %7554 = vmatmul.mubr.bf16.gmra.mrb[0].mxu0 %v7107
        %v7555 = vpop.f32.mrb[0].mxu0
        %v7556 = vadd.f32 0.0, %v7555
        %v7557 = vpop.f32.mrb[0].mxu0
        %v7558 = vadd.f32 0.0, %v7557
        %v7559 = vpop.f32.mrb[0].mxu0
        %v7560 = vadd.f32 0.0, %v7559
        %v7561 = vpop.f32.mrb[0].mxu0
        %v7562 = vadd.f32 0.0, %v7561
        %7563 = vmatprep.mubr.bf16.mxu0 %v7111
        %7564 = vmatmul.mubr.bf16.gmra.mrb[0].mxu0 %v7110
        %v7565 = vpop.f32.mrb[0].mxu0
        %v7566 = vadd.f32 0.0, %v7565
        %v7567 = vpop.f32.mrb[0].mxu0
        %v7568 = vadd.f32 0.0, %v7567
        %v7569 = vpop.f32.mrb[0].mxu0
        %v7570 = vadd.f32 0.0, %v7569
        %v7571 = vpop.f32.mrb[0].mxu0
        %v7572 = vadd.f32 0.0, %v7571
        %7573 = vmatprep.mubr.bf16.mxu0 %v7114
        %7574 = vmatmul.mubr.bf16.gmra.mrb[0].mxu0 %v7113
        %v7575 = vpop.f32.mrb[0].mxu0
        %v7576 = vadd.f32 0.0, %v7575
        %v7577 = vpop.f32.mrb[0].mxu0
        %v7578 = vadd.f32 0.0, %v7577
        %v7579 = vpop.f32.mrb[0].mxu0
        %v7580 = vadd.f32 0.0, %v7579
        %v7581 = vpop.f32.mrb[0].mxu0
        %v7582 = vadd.f32 0.0, %v7581
        %7583 = vmatprep.mubr.bf16.mxu0 %v7117
        %7584 = vmatmul.mubr.bf16.gmra.mrb[0].mxu0 %v7116
        %v7585 = vpop.f32.mrb[0].mxu0
        %v7586 = vadd.f32 0.0, %v7585
        %v7587 = vpop.f32.mrb[0].mxu0
        %v7588 = vadd.f32 0.0, %v7587
        %v7589 = vpop.f32.mrb[0].mxu0
        %v7590 = vadd.f32 0.0, %v7589
        %v7591 = vpop.f32.mrb[0].mxu0
        %v7592 = vadd.f32 0.0, %v7591
        %7593 = vmatprep.mubr.bf16.mxu0 %v7120
        %7594 = vmatmul.mubr.bf16.gmra.mrb[0].mxu0 %v7119
        %v7595 = vpop.f32.mrb[0].mxu0
        %v7596 = vadd.f32 0.0, %v7595
        %v7597 = vpop.f32.mrb[0].mxu0
        %v7598 = vadd.f32 0.0, %v7597
        %v7599 = vpop.f32.mrb[0].mxu0
        %v7600 = vadd.f32 0.0, %v7599
        %v7601 = vpop.f32.mrb[0].mxu0
        %v7602 = vadd.f32 0.0, %v7601
        %7603 = vdwg.mxu0
        %7604 = vmatprep.subr.bf16.mxu0 %v7348
        %7605 = vmatpush1.bf16.msra.mxu0 %v7347
        %7606 = vmatprep.subr.bf16.mxu0 %v7350
        %7607 = vmatpush1.bf16.msra.mxu0 %v7349
        %7608 = vmatprep.subr.bf16.mxu0 %v7352
        %7609 = vmatpush1.bf16.msra.mxu0 %v7351
        %7610 = vmatprep.subr.bf16.mxu0 %v7354
        %7611 = vmatpush1.bf16.msra.mxu0 %v7353
        %7612 = vmatprep.subr.bf16.mxu0 %v7356
        %7613 = vmatpush1.bf16.msra.mxu0 %v7355
        %7614 = vmatprep.subr.bf16.mxu0 %v7358
        %7615 = vmatpush1.bf16.msra.mxu0 %v7357
        %7616 = vmatprep.subr.bf16.mxu0 %v7360
        %7617 = vmatpush1.bf16.msra.mxu0 %v7359
        %7618 = vmatprep.subr.bf16.mxu0 %v7362
        %7619 = vmatpush1.bf16.msra.mxu0 %v7361
        %7620 = vmatprep.subr.bf16.mxu0 0
        %7621 = vmatpush1.bf16.msra.mxu0 0
        %7622 = vmatprep.subr.bf16.mxu0 0
        %7623 = vmatpush1.bf16.msra.mxu0 0
        %7624 = vmatprep.subr.bf16.mxu0 0
        %7625 = vmatpush1.bf16.msra.mxu0 0
        %7626 = vmatprep.subr.bf16.mxu0 0
        %7627 = vmatpush1.bf16.msra.mxu0 0
        %7628 = vmatprep.subr.bf16.mxu0 0
        %7629 = vmatpush1.bf16.msra.mxu0 0
        %7630 = vmatprep.subr.bf16.mxu0 0
        %7631 = vmatpush1.bf16.msra.mxu0 0
        %7632 = vmatprep.subr.bf16.mxu0 0
        %7633 = vmatpush1.bf16.msra.mxu0 0
        %7634 = vmatprep.subr.bf16.mxu0 0
        %7635 = vmatpush1.bf16.msra.mxu0 0
        %7636 = vmatprep.mubr.bf16.mxu0 0
        %7637 = vmatmul.mubr.bf16.gmra.mrb[0].mxu0 %v7076
        %v7638 = vpop.f32.mrb[0].mxu0
        %v7639 = vadd.f32 %v7446, %v7638
        %v7640 = vpop.f32.mrb[0].mxu0
        %v7641 = vadd.f32 %v7448, %v7640
        %v7642 = vpop.f32.mrb[0].mxu0
        %v7643 = vadd.f32 %v7450, %v7642
        %v7644 = vpop.f32.mrb[0].mxu0
        %v7645 = vadd.f32 %v7452, %v7644
        %7646 = vmatprep.mubr.bf16.mxu0 0
        %7647 = vmatmul.mubr.bf16.gmra.mrb[0].mxu0 %v7079
        %v7648 = vpop.f32.mrb[0].mxu0
        %v7649 = vadd.f32 %v7456, %v7648
        %v7650 = vpop.f32.mrb[0].mxu0
        %v7651 = vadd.f32 %v7458, %v7650
        %v7652 = vpop.f32.mrb[0].mxu0
        %v7653 = vadd.f32 %v7460, %v7652
        %v7654 = vpop.f32.mrb[0].mxu0
        %v7655 = vadd.f32 %v7462, %v7654
        %7656 = vmatprep.mubr.bf16.mxu0 0
        %7657 = vmatmul.mubr.bf16.gmra.mrb[0].mxu0 %v7082
        %v7658 = vpop.f32.mrb[0].mxu0
        %v7659 = vadd.f32 %v7466, %v7658
        %v7660 = vpop.f32.mrb[0].mxu0
        %v7661 = vadd.f32 %v7468, %v7660
        %v7662 = vpop.f32.mrb[0].mxu0
        %v7663 = vadd.f32 %v7470, %v7662
        %v7664 = vpop.f32.mrb[0].mxu0
        %v7665 = vadd.f32 %v7472, %v7664
        %7666 = vmatprep.mubr.bf16.mxu0 0
        %7667 = vmatmul.mubr.bf16.gmra.mrb[0].mxu0 %v7085
        %v7668 = vpop.f32.mrb[0].mxu0
        %v7669 = vadd.f32 %v7476, %v7668
        %v7670 = vpop.f32.mrb[0].mxu0
        %v7671 = vadd.f32 %v7478, %v7670
        %v7672 = vpop.f32.mrb[0].mxu0
        %v7673 = vadd.f32 %v7480, %v7672
        %v7674 = vpop.f32.mrb[0].mxu0
        %v7675 = vadd.f32 %v7482, %v7674
        %7676 = vmatprep.mubr.bf16.mxu0 0
        %7677 = vmatmul.mubr.bf16.gmra.mrb[0].mxu0 %v7088
        %v7678 = vpop.f32.mrb[0].mxu0
        %v7679 = vadd.f32 %v7486, %v7678
        %v7680 = vpop.f32.mrb[0].mxu0
        %v7681 = vadd.f32 %v7488, %v7680
        %v7682 = vpop.f32.mrb[0].mxu0
        %v7683 = vadd.f32 %v7490, %v7682
        %v7684 = vpop.f32.mrb[0].mxu0
        %v7685 = vadd.f32 %v7492, %v7684
        %7686 = vmatprep.mubr.bf16.mxu0 0
        %7687 = vmatmul.mubr.bf16.gmra.mrb[0].mxu0 %v7091
        %v7688 = vpop.f32.mrb[0].mxu0
        %v7689 = vadd.f32 %v7496, %v7688
        %v7690 = vpop.f32.mrb[0].mxu0
        %v7691 = vadd.f32 %v7498, %v7690
        %v7692 = vpop.f32.mrb[0].mxu0
        %v7693 = vadd.f32 %v7500, %v7692
        %v7694 = vpop.f32.mrb[0].mxu0
        %v7695 = vadd.f32 %v7502, %v7694
        %7696 = vmatprep.mubr.bf16.mxu0 0
        %7697 = vmatmul.mubr.bf16.gmra.mrb[0].mxu0 %v7094
        %v7698 = vpop.f32.mrb[0].mxu0
        %v7699 = vadd.f32 %v7506, %v7698
        %v7700 = vpop.f32.mrb[0].mxu0
        %v7701 = vadd.f32 %v7508, %v7700
        %v7702 = vpop.f32.mrb[0].mxu0
        %v7703 = vadd.f32 %v7510, %v7702
        %v7704 = vpop.f32.mrb[0].mxu0
        %v7705 = vadd.f32 %v7512, %v7704
        %7706 = vmatprep.mubr.bf16.mxu0 0
        %7707 = vmatmul.mubr.bf16.gmra.mrb[0].mxu0 %v7097
        %v7708 = vpop.f32.mrb[0].mxu0
        %v7709 = vadd.f32 %v7516, %v7708
        %v7710 = vpop.f32.mrb[0].mxu0
        %v7711 = vadd.f32 %v7518, %v7710
        %v7712 = vpop.f32.mrb[0].mxu0
        %v7713 = vadd.f32 %v7520, %v7712
        %v7714 = vpop.f32.mrb[0].mxu0
        %v7715 = vadd.f32 %v7522, %v7714
        %7716 = vmatprep.mubr.bf16.mxu0 0
        %7717 = vmatmul.mubr.bf16.gmra.mrb[0].mxu0 %v7100
        %v7718 = vpop.f32.mrb[0].mxu0
        %v7719 = vadd.f32 %v7526, %v7718
        %v7720 = vpop.f32.mrb[0].mxu0
        %v7721 = vadd.f32 %v7528, %v7720
        %v7722 = vpop.f32.mrb[0].mxu0
        %v7723 = vadd.f32 %v7530, %v7722
        %v7724 = vpop.f32.mrb[0].mxu0
        %v7725 = vadd.f32 %v7532, %v7724
        %7726 = vmatprep.mubr.bf16.mxu0 0
        %7727 = vmatmul.mubr.bf16.gmra.mrb[0].mxu0 %v7103
        %v7728 = vpop.f32.mrb[0].mxu0
        %v7729 = vadd.f32 %v7536, %v7728
        %v7730 = vpop.f32.mrb[0].mxu0
        %v7731 = vadd.f32 %v7538, %v7730
        %v7732 = vpop.f32.mrb[0].mxu0
        %v7733 = vadd.f32 %v7540, %v7732
        %v7734 = vpop.f32.mrb[0].mxu0
        %v7735 = vadd.f32 %v7542, %v7734
        %7736 = vmatprep.mubr.bf16.mxu0 0
        %7737 = vmatmul.mubr.bf16.gmra.mrb[0].mxu0 %v7106
        %v7738 = vpop.f32.mrb[0].mxu0
        %v7739 = vadd.f32 %v7546, %v7738
        %v7740 = vpop.f32.mrb[0].mxu0
        %v7741 = vadd.f32 %v7548, %v7740
        %v7742 = vpop.f32.mrb[0].mxu0
        %v7743 = vadd.f32 %v7550, %v7742
        %v7744 = vpop.f32.mrb[0].mxu0
        %v7745 = vadd.f32 %v7552, %v7744
        %7746 = vmatprep.mubr.bf16.mxu0 0
        %7747 = vmatmul.mubr.bf16.gmra.mrb[0].mxu0 %v7109
        %v7748 = vpop.f32.mrb[0].mxu0
        %v7749 = vadd.f32 %v7556, %v7748
        %v7750 = vpop.f32.mrb[0].mxu0
        %v7751 = vadd.f32 %v7558, %v7750
        %v7752 = vpop.f32.mrb[0].mxu0
        %v7753 = vadd.f32 %v7560, %v7752
        %v7754 = vpop.f32.mrb[0].mxu0
        %v7755 = vadd.f32 %v7562, %v7754
        %7756 = vmatprep.mubr.bf16.mxu0 0
        %7757 = vmatmul.mubr.bf16.gmra.mrb[0].mxu0 %v7112
        %v7758 = vpop.f32.mrb[0].mxu0
        %v7759 = vadd.f32 %v7566, %v7758
        %v7760 = vpop.f32.mrb[0].mxu0
        %v7761 = vadd.f32 %v7568, %v7760
        %v7762 = vpop.f32.mrb[0].mxu0
        %v7763 = vadd.f32 %v7570, %v7762
        %v7764 = vpop.f32.mrb[0].mxu0
        %v7765 = vadd.f32 %v7572, %v7764
        %7766 = vmatprep.mubr.bf16.mxu0 0
        %7767 = vmatmul.mubr.bf16.gmra.mrb[0].mxu0 %v7115
        %v7768 = vpop.f32.mrb[0].mxu0
        %v7769 = vadd.f32 %v7576, %v7768
        %v7770 = vpop.f32.mrb[0].mxu0
        %v7771 = vadd.f32 %v7578, %v7770
        %v7772 = vpop.f32.mrb[0].mxu0
        %v7773 = vadd.f32 %v7580, %v7772
        %v7774 = vpop.f32.mrb[0].mxu0
        %v7775 = vadd.f32 %v7582, %v7774
        %7776 = vmatprep.mubr.bf16.mxu0 0
        %7777 = vmatmul.mubr.bf16.gmra.mrb[0].mxu0 %v7118
        %v7778 = vpop.f32.mrb[0].mxu0
        %v7779 = vadd.f32 %v7586, %v7778
        %v7780 = vpop.f32.mrb[0].mxu0
        %v7781 = vadd.f32 %v7588, %v7780
        %v7782 = vpop.f32.mrb[0].mxu0
        %v7783 = vadd.f32 %v7590, %v7782
        %v7784 = vpop.f32.mrb[0].mxu0
        %v7785 = vadd.f32 %v7592, %v7784
        %7786 = vmatprep.mubr.bf16.mxu0 0
        %7787 = vmatmul.mubr.bf16.gmra.mrb[0].mxu0 %v7121
        %v7788 = vpop.f32.mrb[0].mxu0
        %v7789 = vadd.f32 %v7596, %v7788
        %v7790 = vpop.f32.mrb[0].mxu0
        %v7791 = vadd.f32 %v7598, %v7790
        %v7792 = vpop.f32.mrb[0].mxu0
        %v7793 = vadd.f32 %v7600, %v7792
        %v7794 = vpop.f32.mrb[0].mxu0
        %v7795 = vadd.f32 %v7602, %v7794
        %7796 = vdwg.mxu0
        %v7845 = vunpack.c.l.b16 %v7025
        %v7846 = vunpack.c.h.b16 %v7025
        %v7847 = vunpack.c.l.b16 %v7026
        %v7848 = vunpack.c.h.b16 %v7026
        %v7849 = vunpack.c.l.b16 %v7027
        %v7850 = vunpack.c.h.b16 %v7027
        %v7851 = vunpack.c.l.b16 %v7028
        %v7852 = vunpack.c.h.b16 %v7028
        %v7853 = vunpack.c.l.b16 %v7029
        %v7854 = vunpack.c.h.b16 %v7029
        %v7855 = vunpack.c.l.b16 %v7030
        %v7856 = vunpack.c.h.b16 %v7030
        %v7857 = vunpack.c.l.b16 %v7031
        %v7858 = vunpack.c.h.b16 %v7031
        %v7859 = vunpack.c.l.b16 %v7032
        %v7860 = vunpack.c.h.b16 %v7032
        %v7861 = vunpack.c.l.b16 %v7033
        %v7862 = vunpack.c.h.b16 %v7033
        %v7863 = vunpack.c.l.b16 %v7034
        %v7864 = vunpack.c.h.b16 %v7034
        %v7865 = vunpack.c.l.b16 %v7035
        %v7866 = vunpack.c.h.b16 %v7035
        %v7867 = vunpack.c.l.b16 %v7036
        %v7868 = vunpack.c.h.b16 %v7036
        %v7869 = vunpack.c.l.b16 %v7037
        %v7870 = vunpack.c.h.b16 %v7037
        %v7871 = vunpack.c.l.b16 %v7038
        %v7872 = vunpack.c.h.b16 %v7038
        %v7873 = vunpack.c.l.b16 %v7039
        %v7874 = vunpack.c.h.b16 %v7039
        %v7875 = vunpack.c.l.b16 %v7040
        %v7876 = vunpack.c.h.b16 %v7040
        %v7877 = vunpack.c.l.b16 %v7041
        %v7878 = vunpack.c.h.b16 %v7041
        %v7879 = vunpack.c.l.b16 %v7042
        %v7880 = vunpack.c.h.b16 %v7042
        %v7881 = vunpack.c.l.b16 %v7043
        %v7882 = vunpack.c.h.b16 %v7043
        %v7883 = vunpack.c.l.b16 %v7044
        %v7884 = vunpack.c.h.b16 %v7044
        %v7885 = vunpack.c.l.b16 %v7045
        %v7886 = vunpack.c.h.b16 %v7045
        %v7887 = vunpack.c.l.b16 %v7046
        %v7888 = vunpack.c.h.b16 %v7046
        %v7889 = vunpack.c.l.b16 %v7047
        %v7890 = vunpack.c.h.b16 %v7047
        %v7891 = vunpack.c.l.b16 %v7048
        %v7892 = vunpack.c.h.b16 %v7048
        %v7893 = vunpack.c.l.b16 %v7049
        %v7894 = vunpack.c.h.b16 %v7049
        %v7895 = vunpack.c.l.b16 %v7050
        %v7896 = vunpack.c.h.b16 %v7050
        %v7897 = vunpack.c.l.b16 %v7051
        %v7898 = vunpack.c.h.b16 %v7051
        %v7899 = vunpack.c.l.b16 %v7052
        %v7900 = vunpack.c.h.b16 %v7052
        %v7901 = vunpack.c.l.b16 %v7053
        %v7902 = vunpack.c.h.b16 %v7053
        %v7903 = vunpack.c.l.b16 %v7054
        %v7904 = vunpack.c.h.b16 %v7054
        %v7905 = vunpack.c.l.b16 %v7055
        %v7906 = vunpack.c.h.b16 %v7055
        %v7907 = vunpack.c.l.b16 %v7056
        %v7908 = vunpack.c.h.b16 %v7056
        %v7909 = vunpack.c.l.b16 %v7057
        %v7910 = vunpack.c.h.b16 %v7057
        %v7911 = vunpack.c.l.b16 %v7058
        %v7912 = vunpack.c.h.b16 %v7058
        %v7913 = vunpack.c.l.b16 %v7059
        %v7914 = vunpack.c.h.b16 %v7059
        %v7915 = vunpack.c.l.b16 %v7060
        %v7916 = vunpack.c.h.b16 %v7060
        %v7917 = vunpack.c.l.b16 %v7061
        %v7918 = vunpack.c.h.b16 %v7061
        %v7919 = vunpack.c.l.b16 %v7062
        %v7920 = vunpack.c.h.b16 %v7062
        %v7921 = vunpack.c.l.b16 %v7063
        %v7922 = vunpack.c.h.b16 %v7063
        %v7923 = vunpack.c.l.b16 %v7064
        %v7924 = vunpack.c.h.b16 %v7064
        %v7925 = vunpack.c.l.b16 %v7065
        %v7926 = vunpack.c.h.b16 %v7065
        %v7927 = vunpack.c.l.b16 %v7066
        %v7928 = vunpack.c.h.b16 %v7066
        %v7929 = vunpack.c.l.b16 %v7067
        %v7930 = vunpack.c.h.b16 %v7067
        %v7931 = vunpack.c.l.b16 %v7068
        %v7932 = vunpack.c.h.b16 %v7068
        %v7933 = vunpack.c.l.b16 %v7069
        %v7934 = vunpack.c.h.b16 %v7069
        %v7935 = vunpack.c.l.b16 %v7070
        %v7936 = vunpack.c.h.b16 %v7070
        %v7937 = vunpack.c.l.b16 %v7071
        %v7938 = vunpack.c.h.b16 %v7071
        %v7939 = vunpack.c.l.b16 %v7072
        %v7940 = vunpack.c.h.b16 %v7072
        %v7941 = vpack.c.b16 %v7847, %v7845
        %v7942 = vpack.c.b16 %v7848, %v7846
        %v7943 = vpack.c.b16 %v7851, %v7849
        %v7944 = vpack.c.b16 %v7852, %v7850
        %v7945 = vpack.c.b16 %v7855, %v7853
        %v7946 = vpack.c.b16 %v7856, %v7854
        %v7947 = vpack.c.b16 %v7859, %v7857
        %v7948 = vpack.c.b16 %v7860, %v7858
        %v7949 = vpack.c.b16 %v7863, %v7861
        %v7950 = vpack.c.b16 %v7864, %v7862
        %v7951 = vpack.c.b16 %v7867, %v7865
        %v7952 = vpack.c.b16 %v7868, %v7866
        %v7953 = vpack.c.b16 %v7871, %v7869
        %v7954 = vpack.c.b16 %v7872, %v7870
        %v7955 = vpack.c.b16 %v7875, %v7873
        %v7956 = vpack.c.b16 %v7876, %v7874
        %v7957 = vpack.c.b16 %v7879, %v7877
        %v7958 = vpack.c.b16 %v7880, %v7878
        %v7959 = vpack.c.b16 %v7883, %v7881
        %v7960 = vpack.c.b16 %v7884, %v7882
        %v7961 = vpack.c.b16 %v7887, %v7885
        %v7962 = vpack.c.b16 %v7888, %v7886
        %v7963 = vpack.c.b16 %v7891, %v7889
        %v7964 = vpack.c.b16 %v7892, %v7890
        %v7965 = vpack.c.b16 %v7895, %v7893
        %v7966 = vpack.c.b16 %v7896, %v7894
        %v7967 = vpack.c.b16 %v7899, %v7897
        %v7968 = vpack.c.b16 %v7900, %v7898
        %v7969 = vpack.c.b16 %v7903, %v7901
        %v7970 = vpack.c.b16 %v7904, %v7902
        %v7971 = vpack.c.b16 %v7907, %v7905
        %v7972 = vpack.c.b16 %v7908, %v7906
        %v7973 = vpack.c.b16 %v7911, %v7909
        %v7974 = vpack.c.b16 %v7912, %v7910
        %v7975 = vpack.c.b16 %v7915, %v7913
        %v7976 = vpack.c.b16 %v7916, %v7914
        %v7977 = vpack.c.b16 %v7919, %v7917
        %v7978 = vpack.c.b16 %v7920, %v7918
        %v7979 = vpack.c.b16 %v7923, %v7921
        %v7980 = vpack.c.b16 %v7924, %v7922
        %v7981 = vpack.c.b16 %v7927, %v7925
        %v7982 = vpack.c.b16 %v7928, %v7926
        %v7983 = vpack.c.b16 %v7931, %v7929
        %v7984 = vpack.c.b16 %v7932, %v7930
        %v7985 = vpack.c.b16 %v7935, %v7933
        %v7986 = vpack.c.b16 %v7936, %v7934
        %v7987 = vpack.c.b16 %v7939, %v7937
        %v7988 = vpack.c.b16 %v7940, %v7938
        %8037 = vmatprep.subr.bf16.mxu0 %v7942
        %8038 = vmatpush1.bf16.msra.mxu0 %v7941
        %8039 = vmatprep.subr.bf16.mxu0 %v7944
        %8040 = vmatpush1.bf16.msra.mxu0 %v7943
        %8041 = vmatprep.subr.bf16.mxu0 %v7946
        %8042 = vmatpush1.bf16.msra.mxu0 %v7945
        %8043 = vmatprep.subr.bf16.mxu0 %v7948
        %8044 = vmatpush1.bf16.msra.mxu0 %v7947
        %8045 = vmatprep.subr.bf16.mxu0 %v7950
        %8046 = vmatpush1.bf16.msra.mxu0 %v7949
        %8047 = vmatprep.subr.bf16.mxu0 %v7952
        %8048 = vmatpush1.bf16.msra.mxu0 %v7951
        %8049 = vmatprep.subr.bf16.mxu0 %v7954
        %8050 = vmatpush1.bf16.msra.mxu0 %v7953
        %8051 = vmatprep.subr.bf16.mxu0 %v7956
        %8052 = vmatpush1.bf16.msra.mxu0 %v7955
        %8053 = vmatprep.subr.bf16.mxu0 %v7958
        %8054 = vmatpush1.bf16.msra.mxu0 %v7957
        %8055 = vmatprep.subr.bf16.mxu0 %v7960
        %8056 = vmatpush1.bf16.msra.mxu0 %v7959
        %8057 = vmatprep.subr.bf16.mxu0 %v7962
        %8058 = vmatpush1.bf16.msra.mxu0 %v7961
        %8059 = vmatprep.subr.bf16.mxu0 %v7964
        %8060 = vmatpush1.bf16.msra.mxu0 %v7963
        %8061 = vmatprep.subr.bf16.mxu0 %v7966
        %8062 = vmatpush1.bf16.msra.mxu0 %v7965
        %8063 = vmatprep.subr.bf16.mxu0 %v7968
        %8064 = vmatpush1.bf16.msra.mxu0 %v7967
        %8065 = vmatprep.subr.bf16.mxu0 %v7970
        %8066 = vmatpush1.bf16.msra.mxu0 %v7969
        %8067 = vmatprep.subr.bf16.mxu0 %v7972
        %8068 = vmatpush1.bf16.msra.mxu0 %v7971
        %8069 = vmatprep.mubr.bf16.mxu0 %v6978
        %8070 = vmatmul.mubr.bf16.gmra.mrb[0].mxu0 %v6977
        %v8071 = vpop.f32.mrb[0].mxu0
        %v8072 = vadd.f32 %v7639, %v8071
        %v8073 = vpop.f32.mrb[0].mxu0
        %v8074 = vadd.f32 %v7641, %v8073
        %v8075 = vpop.f32.mrb[0].mxu0
        %v8076 = vadd.f32 %v7643, %v8075
        %v8077 = vpop.f32.mrb[0].mxu0
        %v8078 = vadd.f32 %v7645, %v8077
        %8079 = vmatprep.mubr.bf16.mxu0 %v6981
        %8080 = vmatmul.mubr.bf16.gmra.mrb[0].mxu0 %v6980
        %v8081 = vpop.f32.mrb[0].mxu0
        %v8082 = vadd.f32 %v7649, %v8081
        %v8083 = vpop.f32.mrb[0].mxu0
        %v8084 = vadd.f32 %v7651, %v8083
        %v8085 = vpop.f32.mrb[0].mxu0
        %v8086 = vadd.f32 %v7653, %v8085
        %v8087 = vpop.f32.mrb[0].mxu0
        %v8088 = vadd.f32 %v7655, %v8087
        %8089 = vmatprep.mubr.bf16.mxu0 %v6984
        %8090 = vmatmul.mubr.bf16.gmra.mrb[0].mxu0 %v6983
        %v8091 = vpop.f32.mrb[0].mxu0
        %v8092 = vadd.f32 %v7659, %v8091
        %v8093 = vpop.f32.mrb[0].mxu0
        %v8094 = vadd.f32 %v7661, %v8093
        %v8095 = vpop.f32.mrb[0].mxu0
        %v8096 = vadd.f32 %v7663, %v8095
        %v8097 = vpop.f32.mrb[0].mxu0
        %v8098 = vadd.f32 %v7665, %v8097
        %8099 = vmatprep.mubr.bf16.mxu0 %v6987
        %8100 = vmatmul.mubr.bf16.gmra.mrb[0].mxu0 %v6986
        %v8101 = vpop.f32.mrb[0].mxu0
        %v8102 = vadd.f32 %v7669, %v8101
        %v8103 = vpop.f32.mrb[0].mxu0
        %v8104 = vadd.f32 %v7671, %v8103
        %v8105 = vpop.f32.mrb[0].mxu0
        %v8106 = vadd.f32 %v7673, %v8105
        %v8107 = vpop.f32.mrb[0].mxu0
        %v8108 = vadd.f32 %v7675, %v8107
        %8109 = vmatprep.mubr.bf16.mxu0 %v6990
        %8110 = vmatmul.mubr.bf16.gmra.mrb[0].mxu0 %v6989
        %v8111 = vpop.f32.mrb[0].mxu0
        %v8112 = vadd.f32 %v7679, %v8111
        %v8113 = vpop.f32.mrb[0].mxu0
        %v8114 = vadd.f32 %v7681, %v8113
        %v8115 = vpop.f32.mrb[0].mxu0
        %v8116 = vadd.f32 %v7683, %v8115
        %v8117 = vpop.f32.mrb[0].mxu0
        %v8118 = vadd.f32 %v7685, %v8117
        %8119 = vmatprep.mubr.bf16.mxu0 %v6993
        %8120 = vmatmul.mubr.bf16.gmra.mrb[0].mxu0 %v6992
        %v8121 = vpop.f32.mrb[0].mxu0
        %v8122 = vadd.f32 %v7689, %v8121
        %v8123 = vpop.f32.mrb[0].mxu0
        %v8124 = vadd.f32 %v7691, %v8123
        %v8125 = vpop.f32.mrb[0].mxu0
        %v8126 = vadd.f32 %v7693, %v8125
        %v8127 = vpop.f32.mrb[0].mxu0
        %v8128 = vadd.f32 %v7695, %v8127
        %8129 = vmatprep.mubr.bf16.mxu0 %v6996
        %8130 = vmatmul.mubr.bf16.gmra.mrb[0].mxu0 %v6995
        %v8131 = vpop.f32.mrb[0].mxu0
        %v8132 = vadd.f32 %v7699, %v8131
        %v8133 = vpop.f32.mrb[0].mxu0
        %v8134 = vadd.f32 %v7701, %v8133
        %v8135 = vpop.f32.mrb[0].mxu0
        %v8136 = vadd.f32 %v7703, %v8135
        %v8137 = vpop.f32.mrb[0].mxu0
        %v8138 = vadd.f32 %v7705, %v8137
        %8139 = vmatprep.mubr.bf16.mxu0 %v6999
        %8140 = vmatmul.mubr.bf16.gmra.mrb[0].mxu0 %v6998
        %v8141 = vpop.f32.mrb[0].mxu0
        %v8142 = vadd.f32 %v7709, %v8141
        %v8143 = vpop.f32.mrb[0].mxu0
        %v8144 = vadd.f32 %v7711, %v8143
        %v8145 = vpop.f32.mrb[0].mxu0
        %v8146 = vadd.f32 %v7713, %v8145
        %v8147 = vpop.f32.mrb[0].mxu0
        %v8148 = vadd.f32 %v7715, %v8147
        %8149 = vmatprep.mubr.bf16.mxu0 %v7002
        %8150 = vmatmul.mubr.bf16.gmra.mrb[0].mxu0 %v7001
        %v8151 = vpop.f32.mrb[0].mxu0
        %v8152 = vadd.f32 %v7719, %v8151
        %v8153 = vpop.f32.mrb[0].mxu0
        %v8154 = vadd.f32 %v7721, %v8153
        %v8155 = vpop.f32.mrb[0].mxu0
        %v8156 = vadd.f32 %v7723, %v8155
        %v8157 = vpop.f32.mrb[0].mxu0
        %v8158 = vadd.f32 %v7725, %v8157
        %8159 = vmatprep.mubr.bf16.mxu0 %v7005
        %8160 = vmatmul.mubr.bf16.gmra.mrb[0].mxu0 %v7004
        %v8161 = vpop.f32.mrb[0].mxu0
        %v8162 = vadd.f32 %v7729, %v8161
        %v8163 = vpop.f32.mrb[0].mxu0
        %v8164 = vadd.f32 %v7731, %v8163
        %v8165 = vpop.f32.mrb[0].mxu0
        %v8166 = vadd.f32 %v7733, %v8165
        %v8167 = vpop.f32.mrb[0].mxu0
        %v8168 = vadd.f32 %v7735, %v8167
        %8169 = vmatprep.mubr.bf16.mxu0 %v7008
        %8170 = vmatmul.mubr.bf16.gmra.mrb[0].mxu0 %v7007
        %v8171 = vpop.f32.mrb[0].mxu0
        %v8172 = vadd.f32 %v7739, %v8171
        %v8173 = vpop.f32.mrb[0].mxu0
        %v8174 = vadd.f32 %v7741, %v8173
        %v8175 = vpop.f32.mrb[0].mxu0
        %v8176 = vadd.f32 %v7743, %v8175
        %v8177 = vpop.f32.mrb[0].mxu0
        %v8178 = vadd.f32 %v7745, %v8177
        %8179 = vmatprep.mubr.bf16.mxu0 %v7011
        %8180 = vmatmul.mubr.bf16.gmra.mrb[0].mxu0 %v7010
        %v8181 = vpop.f32.mrb[0].mxu0
        %v8182 = vadd.f32 %v7749, %v8181
        %v8183 = vpop.f32.mrb[0].mxu0
        %v8184 = vadd.f32 %v7751, %v8183
        %v8185 = vpop.f32.mrb[0].mxu0
        %v8186 = vadd.f32 %v7753, %v8185
        %v8187 = vpop.f32.mrb[0].mxu0
        %v8188 = vadd.f32 %v7755, %v8187
        %8189 = vmatprep.mubr.bf16.mxu0 %v7014
        %8190 = vmatmul.mubr.bf16.gmra.mrb[0].mxu0 %v7013
        %v8191 = vpop.f32.mrb[0].mxu0
        %v8192 = vadd.f32 %v7759, %v8191
        %v8193 = vpop.f32.mrb[0].mxu0
        %v8194 = vadd.f32 %v7761, %v8193
        %v8195 = vpop.f32.mrb[0].mxu0
        %v8196 = vadd.f32 %v7763, %v8195
        %v8197 = vpop.f32.mrb[0].mxu0
        %v8198 = vadd.f32 %v7765, %v8197
        %8199 = vmatprep.mubr.bf16.mxu0 %v7017
        %8200 = vmatmul.mubr.bf16.gmra.mrb[0].mxu0 %v7016
        %v8201 = vpop.f32.mrb[0].mxu0
        %v8202 = vadd.f32 %v7769, %v8201
        %v8203 = vpop.f32.mrb[0].mxu0
        %v8204 = vadd.f32 %v7771, %v8203
        %v8205 = vpop.f32.mrb[0].mxu0
        %v8206 = vadd.f32 %v7773, %v8205
        %v8207 = vpop.f32.mrb[0].mxu0
        %v8208 = vadd.f32 %v7775, %v8207
        %8209 = vmatprep.mubr.bf16.mxu0 %v7020
        %8210 = vmatmul.mubr.bf16.gmra.mrb[0].mxu0 %v7019
        %v8211 = vpop.f32.mrb[0].mxu0
        %v8212 = vadd.f32 %v7779, %v8211
        %v8213 = vpop.f32.mrb[0].mxu0
        %v8214 = vadd.f32 %v7781, %v8213
        %v8215 = vpop.f32.mrb[0].mxu0
        %v8216 = vadd.f32 %v7783, %v8215
        %v8217 = vpop.f32.mrb[0].mxu0
        %v8218 = vadd.f32 %v7785, %v8217
        %8219 = vmatprep.mubr.bf16.mxu0 %v7023
        %8220 = vmatmul.mubr.bf16.gmra.mrb[0].mxu0 %v7022
        %v8221 = vpop.f32.mrb[0].mxu0
        %v8222 = vadd.f32 %v7789, %v8221
        %v8223 = vpop.f32.mrb[0].mxu0
        %v8224 = vadd.f32 %v7791, %v8223
        %v8225 = vpop.f32.mrb[0].mxu0
        %v8226 = vadd.f32 %v7793, %v8225
        %v8227 = vpop.f32.mrb[0].mxu0
        %v8228 = vadd.f32 %v7795, %v8227
        %8229 = vdwg.mxu0
        %8230 = vmatprep.subr.bf16.mxu0 %v7974
        %8231 = vmatpush1.bf16.msra.mxu0 %v7973
        %8232 = vmatprep.subr.bf16.mxu0 %v7976
        %8233 = vmatpush1.bf16.msra.mxu0 %v7975
        %8234 = vmatprep.subr.bf16.mxu0 %v7978
        %8235 = vmatpush1.bf16.msra.mxu0 %v7977
        %8236 = vmatprep.subr.bf16.mxu0 %v7980
        %8237 = vmatpush1.bf16.msra.mxu0 %v7979
        %8238 = vmatprep.subr.bf16.mxu0 %v7982
        %8239 = vmatpush1.bf16.msra.mxu0 %v7981
        %8240 = vmatprep.subr.bf16.mxu0 %v7984
        %8241 = vmatpush1.bf16.msra.mxu0 %v7983
        %8242 = vmatprep.subr.bf16.mxu0 %v7986
        %8243 = vmatpush1.bf16.msra.mxu0 %v7985
        %8244 = vmatprep.subr.bf16.mxu0 %v7988
        %8245 = vmatpush1.bf16.msra.mxu0 %v7987
        %8246 = vmatprep.subr.bf16.mxu0 0
        %8247 = vmatpush1.bf16.msra.mxu0 0
        %8248 = vmatprep.subr.bf16.mxu0 0
        %8249 = vmatpush1.bf16.msra.mxu0 0
        %8250 = vmatprep.subr.bf16.mxu0 0
        %8251 = vmatpush1.bf16.msra.mxu0 0
        %8252 = vmatprep.subr.bf16.mxu0 0
        %8253 = vmatpush1.bf16.msra.mxu0 0
        %8254 = vmatprep.subr.bf16.mxu0 0
        %8255 = vmatpush1.bf16.msra.mxu0 0
        %8256 = vmatprep.subr.bf16.mxu0 0
        %8257 = vmatpush1.bf16.msra.mxu0 0
        %8258 = vmatprep.subr.bf16.mxu0 0
        %8259 = vmatpush1.bf16.msra.mxu0 0
        %8260 = vmatprep.subr.bf16.mxu0 0
        %8261 = vmatpush1.bf16.msra.mxu0 0
        %8262 = vmatprep.mubr.bf16.mxu0 0
        %8263 = vmatmul.mubr.bf16.gmra.mrb[0].mxu0 %v6979
        %v8264 = vpop.f32.mrb[0].mxu0
        %v8265 = vadd.f32 %v8072, %v8264
        %v8266 = vpop.f32.mrb[0].mxu0
        %v8267 = vadd.f32 %v8074, %v8266
        %v8268 = vpop.f32.mrb[0].mxu0
        %v8269 = vadd.f32 %v8076, %v8268
        %v8270 = vpop.f32.mrb[0].mxu0
        %v8271 = vadd.f32 %v8078, %v8270
        %8272 = vmatprep.mubr.bf16.mxu0 0
        %8273 = vmatmul.mubr.bf16.gmra.mrb[0].mxu0 %v6982
        %v8274 = vpop.f32.mrb[0].mxu0
        %v8275 = vadd.f32 %v8082, %v8274
        %v8276 = vpop.f32.mrb[0].mxu0
        %v8277 = vadd.f32 %v8084, %v8276
        %v8278 = vpop.f32.mrb[0].mxu0
        %v8279 = vadd.f32 %v8086, %v8278
        %v8280 = vpop.f32.mrb[0].mxu0
        %v8281 = vadd.f32 %v8088, %v8280
        %8282 = vmatprep.mubr.bf16.mxu0 0
        %8283 = vmatmul.mubr.bf16.gmra.mrb[0].mxu0 %v6985
        %v8284 = vpop.f32.mrb[0].mxu0
        %v8285 = vadd.f32 %v8092, %v8284
        %v8286 = vpop.f32.mrb[0].mxu0
        %v8287 = vadd.f32 %v8094, %v8286
        %v8288 = vpop.f32.mrb[0].mxu0
        %v8289 = vadd.f32 %v8096, %v8288
        %v8290 = vpop.f32.mrb[0].mxu0
        %v8291 = vadd.f32 %v8098, %v8290
        %8292 = vmatprep.mubr.bf16.mxu0 0
        %8293 = vmatmul.mubr.bf16.gmra.mrb[0].mxu0 %v6988
        %v8294 = vpop.f32.mrb[0].mxu0
        %v8295 = vadd.f32 %v8102, %v8294
        %v8296 = vpop.f32.mrb[0].mxu0
        %v8297 = vadd.f32 %v8104, %v8296
        %v8298 = vpop.f32.mrb[0].mxu0
        %v8299 = vadd.f32 %v8106, %v8298
        %v8300 = vpop.f32.mrb[0].mxu0
        %v8301 = vadd.f32 %v8108, %v8300
        %8302 = vmatprep.mubr.bf16.mxu0 0
        %8303 = vmatmul.mubr.bf16.gmra.mrb[0].mxu0 %v6991
        %v8304 = vpop.f32.mrb[0].mxu0
        %v8305 = vadd.f32 %v8112, %v8304
        %v8306 = vpop.f32.mrb[0].mxu0
        %v8307 = vadd.f32 %v8114, %v8306
        %v8308 = vpop.f32.mrb[0].mxu0
        %v8309 = vadd.f32 %v8116, %v8308
        %v8310 = vpop.f32.mrb[0].mxu0
        %v8311 = vadd.f32 %v8118, %v8310
        %8312 = vmatprep.mubr.bf16.mxu0 0
        %8313 = vmatmul.mubr.bf16.gmra.mrb[0].mxu0 %v6994
        %v8314 = vpop.f32.mrb[0].mxu0
        %v8315 = vadd.f32 %v8122, %v8314
        %v8316 = vpop.f32.mrb[0].mxu0
        %v8317 = vadd.f32 %v8124, %v8316
        %v8318 = vpop.f32.mrb[0].mxu0
        %v8319 = vadd.f32 %v8126, %v8318
        %v8320 = vpop.f32.mrb[0].mxu0
        %v8321 = vadd.f32 %v8128, %v8320
        %8322 = vmatprep.mubr.bf16.mxu0 0
        %8323 = vmatmul.mubr.bf16.gmra.mrb[0].mxu0 %v6997
        %v8324 = vpop.f32.mrb[0].mxu0
        %v8325 = vadd.f32 %v8132, %v8324
        %v8326 = vpop.f32.mrb[0].mxu0
        %v8327 = vadd.f32 %v8134, %v8326
        %v8328 = vpop.f32.mrb[0].mxu0
        %v8329 = vadd.f32 %v8136, %v8328
        %v8330 = vpop.f32.mrb[0].mxu0
        %v8331 = vadd.f32 %v8138, %v8330
        %8332 = vmatprep.mubr.bf16.mxu0 0
        %8333 = vmatmul.mubr.bf16.gmra.mrb[0].mxu0 %v7000
        %v8334 = vpop.f32.mrb[0].mxu0
        %v8335 = vadd.f32 %v8142, %v8334
        %v8336 = vpop.f32.mrb[0].mxu0
        %v8337 = vadd.f32 %v8144, %v8336
        %v8338 = vpop.f32.mrb[0].mxu0
        %v8339 = vadd.f32 %v8146, %v8338
        %v8340 = vpop.f32.mrb[0].mxu0
        %v8341 = vadd.f32 %v8148, %v8340
        %8342 = vmatprep.mubr.bf16.mxu0 0
        %8343 = vmatmul.mubr.bf16.gmra.mrb[0].mxu0 %v7003
        %v8344 = vpop.f32.mrb[0].mxu0
        %v8345 = vadd.f32 %v8152, %v8344
        %v8346 = vpop.f32.mrb[0].mxu0
        %v8347 = vadd.f32 %v8154, %v8346
        %v8348 = vpop.f32.mrb[0].mxu0
        %v8349 = vadd.f32 %v8156, %v8348
        %v8350 = vpop.f32.mrb[0].mxu0
        %v8351 = vadd.f32 %v8158, %v8350
        %8352 = vmatprep.mubr.bf16.mxu0 0
        %8353 = vmatmul.mubr.bf16.gmra.mrb[0].mxu0 %v7006
        %v8354 = vpop.f32.mrb[0].mxu0
        %v8355 = vadd.f32 %v8162, %v8354
        %v8356 = vpop.f32.mrb[0].mxu0
        %v8357 = vadd.f32 %v8164, %v8356
        %v8358 = vpop.f32.mrb[0].mxu0
        %v8359 = vadd.f32 %v8166, %v8358
        %v8360 = vpop.f32.mrb[0].mxu0
        %v8361 = vadd.f32 %v8168, %v8360
        %8362 = vmatprep.mubr.bf16.mxu0 0
        %8363 = vmatmul.mubr.bf16.gmra.mrb[0].mxu0 %v7009
        %v8364 = vpop.f32.mrb[0].mxu0
        %v8365 = vadd.f32 %v8172, %v8364
        %v8366 = vpop.f32.mrb[0].mxu0
        %v8367 = vadd.f32 %v8174, %v8366
        %v8368 = vpop.f32.mrb[0].mxu0
        %v8369 = vadd.f32 %v8176, %v8368
        %v8370 = vpop.f32.mrb[0].mxu0
        %v8371 = vadd.f32 %v8178, %v8370
        %8372 = vmatprep.mubr.bf16.mxu0 0
        %8373 = vmatmul.mubr.bf16.gmra.mrb[0].mxu0 %v7012
        %v8374 = vpop.f32.mrb[0].mxu0
        %v8375 = vadd.f32 %v8182, %v8374
        %v8376 = vpop.f32.mrb[0].mxu0
        %v8377 = vadd.f32 %v8184, %v8376
        %v8378 = vpop.f32.mrb[0].mxu0
        %v8379 = vadd.f32 %v8186, %v8378
        %v8380 = vpop.f32.mrb[0].mxu0
        %v8381 = vadd.f32 %v8188, %v8380
        %8382 = vmatprep.mubr.bf16.mxu0 0
        %8383 = vmatmul.mubr.bf16.gmra.mrb[0].mxu0 %v7015
        %v8384 = vpop.f32.mrb[0].mxu0
        %v8385 = vadd.f32 %v8192, %v8384
        %v8386 = vpop.f32.mrb[0].mxu0
        %v8387 = vadd.f32 %v8194, %v8386
        %v8388 = vpop.f32.mrb[0].mxu0
        %v8389 = vadd.f32 %v8196, %v8388
        %v8390 = vpop.f32.mrb[0].mxu0
        %v8391 = vadd.f32 %v8198, %v8390
        %8392 = vmatprep.mubr.bf16.mxu0 0
        %8393 = vmatmul.mubr.bf16.gmra.mrb[0].mxu0 %v7018
        %v8394 = vpop.f32.mrb[0].mxu0
        %v8395 = vadd.f32 %v8202, %v8394
        %v8396 = vpop.f32.mrb[0].mxu0
        %v8397 = vadd.f32 %v8204, %v8396
        %v8398 = vpop.f32.mrb[0].mxu0
        %v8399 = vadd.f32 %v8206, %v8398
        %v8400 = vpop.f32.mrb[0].mxu0
        %v8401 = vadd.f32 %v8208, %v8400
        %8402 = vmatprep.mubr.bf16.mxu0 0
        %8403 = vmatmul.mubr.bf16.gmra.mrb[0].mxu0 %v7021
        %v8404 = vpop.f32.mrb[0].mxu0
        %v8405 = vadd.f32 %v8212, %v8404
        %v8406 = vpop.f32.mrb[0].mxu0
        %v8407 = vadd.f32 %v8214, %v8406
        %v8408 = vpop.f32.mrb[0].mxu0
        %v8409 = vadd.f32 %v8216, %v8408
        %v8410 = vpop.f32.mrb[0].mxu0
        %v8411 = vadd.f32 %v8218, %v8410
        %8412 = vmatprep.mubr.bf16.mxu0 0
        %8413 = vmatmul.mubr.bf16.gmra.mrb[0].mxu0 %v7024
        %v8414 = vpop.f32.mrb[0].mxu0
        %v8415 = vadd.f32 %v8222, %v8414
        %v8416 = vpop.f32.mrb[0].mxu0
        %v8417 = vadd.f32 %v8224, %v8416
        %v8418 = vpop.f32.mrb[0].mxu0
        %v8419 = vadd.f32 %v8226, %v8418
        %v8420 = vpop.f32.mrb[0].mxu0
        %v8421 = vadd.f32 %v8228, %v8420
        %8422 = vdwg.mxu0
        %s8423 = scalar_lea.vmem [#allocation3], 48
        %v8424 = vld [vmem:[%s8423] sm:$0xff]
        %v8425 = vld [vmem:[%s8423 + $0x8] sm:$0xff]
        %v8426 = vld [vmem:[%s8423 + $0x10] sm:$0xff]
        %v8427 = vld [vmem:[%s8423 + $0x18] sm:$0xff]
        %v8428 = vld [vmem:[%s8423 + $0x20] sm:$0xff]
        %v8429 = vld [vmem:[%s8423 + $0x28] sm:$0xff]
        %v8430 = vld [vmem:[%s8423 + $0x30] sm:$0xff]
        %v8431 = vld [vmem:[%s8423 + $0x38] sm:$0xff]
        %v8432 = vld [vmem:[%s8423 + $0x40] sm:$0xff]
        %v8433 = vld [vmem:[%s8423 + $0x48] sm:$0xff]
        %v8434 = vld [vmem:[%s8423 + $0x50] sm:$0xff]
        %v8435 = vld [vmem:[%s8423 + $0x58] sm:$0xff]
        %v8436 = vld [vmem:[%s8423 + $0x60] sm:$0xff]
        %v8437 = vld [vmem:[%s8423 + $0x68] sm:$0xff]
        %v8438 = vld [vmem:[%s8423 + $0x70] sm:$0xff]
        %v8439 = vld [vmem:[%s8423 + $0x78] sm:$0xff]
        %v8440 = vld [vmem:[%s8423 + $0x80] sm:$0xff]
        %v8441 = vld [vmem:[%s8423 + $0x88] sm:$0xff]
        %v8442 = vld [vmem:[%s8423 + $0x90] sm:$0xff]
        %v8443 = vld [vmem:[%s8423 + $0x98] sm:$0xff]
        %v8444 = vld [vmem:[%s8423 + $0xa0] sm:$0xff]
        %v8445 = vld [vmem:[%s8423 + $0xa8] sm:$0xff]
        %v8446 = vld [vmem:[%s8423 + $0xb0] sm:$0xff]
        %v8447 = vld [vmem:[%s8423 + $0xb8] sm:$0xff]
        %v8448 = vld [vmem:[%s8423 + $0xc0] sm:$0xff]
        %v8449 = vld [vmem:[%s8423 + $0xc8] sm:$0xff]
        %v8450 = vld [vmem:[%s8423 + $0xd0] sm:$0xff]
        %v8451 = vld [vmem:[%s8423 + $0xd8] sm:$0xff]
        %v8452 = vld [vmem:[%s8423 + $0xe0] sm:$0xff]
        %v8453 = vld [vmem:[%s8423 + $0xe8] sm:$0xff]
        %v8454 = vld [vmem:[%s8423 + $0xf0] sm:$0xff]
        %v8455 = vld [vmem:[%s8423 + $0xf8] sm:$0xff]
        %v8456 = vld [vmem:[%s8423 + $0x100] sm:$0xff]
        %v8457 = vld [vmem:[%s8423 + $0x108] sm:$0xff]
        %v8458 = vld [vmem:[%s8423 + $0x110] sm:$0xff]
        %v8459 = vld [vmem:[%s8423 + $0x118] sm:$0xff]
        %v8460 = vld [vmem:[%s8423 + $0x120] sm:$0xff]
        %v8461 = vld [vmem:[%s8423 + $0x128] sm:$0xff]
        %v8462 = vld [vmem:[%s8423 + $0x130] sm:$0xff]
        %v8463 = vld [vmem:[%s8423 + $0x138] sm:$0xff]
        %v8464 = vld [vmem:[%s8423 + $0x140] sm:$0xff]
        %v8465 = vld [vmem:[%s8423 + $0x148] sm:$0xff]
        %v8466 = vld [vmem:[%s8423 + $0x150] sm:$0xff]
        %v8467 = vld [vmem:[%s8423 + $0x158] sm:$0xff]
        %v8468 = vld [vmem:[%s8423 + $0x160] sm:$0xff]
        %v8469 = vld [vmem:[%s8423 + $0x168] sm:$0xff]
        %v8470 = vld [vmem:[%s8423 + $0x170] sm:$0xff]
        %v8471 = vld [vmem:[%s8423 + $0x178] sm:$0xff]
        %s8472 = scalar_lea.vmem [#allocation12], 768
        %v8473 = vld [vmem:[%s8472] sm:$0xff]
        %v8474 = vld [vmem:[%s8472 + $0x8] sm:$0xff]
        %v8475 = vld [vmem:[%s8472 + $0x10] sm:$0xff]
        %v8476 = vld [vmem:[%s8472 + $0x18] sm:$0xff]
        %v8477 = vld [vmem:[%s8472 + $0x20] sm:$0xff]
        %v8478 = vld [vmem:[%s8472 + $0x28] sm:$0xff]
        %v8479 = vld [vmem:[%s8472 + $0x30] sm:$0xff]
        %v8480 = vld [vmem:[%s8472 + $0x38] sm:$0xff]
        %v8481 = vld [vmem:[%s8472 + $0x40] sm:$0xff]
        %v8482 = vld [vmem:[%s8472 + $0x48] sm:$0xff]
        %v8483 = vld [vmem:[%s8472 + $0x50] sm:$0xff]
        %v8484 = vld [vmem:[%s8472 + $0x58] sm:$0xff]
        %v8485 = vld [vmem:[%s8472 + $0x60] sm:$0xff]
        %v8486 = vld [vmem:[%s8472 + $0x68] sm:$0xff]
        %v8487 = vld [vmem:[%s8472 + $0x70] sm:$0xff]
        %v8488 = vld [vmem:[%s8472 + $0x78] sm:$0xff]
        %v8489 = vld [vmem:[%s8472 + $0x80] sm:$0xff]
        %v8490 = vld [vmem:[%s8472 + $0x88] sm:$0xff]
        %v8491 = vld [vmem:[%s8472 + $0x90] sm:$0xff]
        %v8492 = vld [vmem:[%s8472 + $0x98] sm:$0xff]
        %v8493 = vld [vmem:[%s8472 + $0xa0] sm:$0xff]
        %v8494 = vld [vmem:[%s8472 + $0xa8] sm:$0xff]
        %v8495 = vld [vmem:[%s8472 + $0xb0] sm:$0xff]
        %v8496 = vld [vmem:[%s8472 + $0xb8] sm:$0xff]
        %v8497 = vld [vmem:[%s8472 + $0xc0] sm:$0xff]
        %v8498 = vld [vmem:[%s8472 + $0xc8] sm:$0xff]
        %v8499 = vld [vmem:[%s8472 + $0xd0] sm:$0xff]
        %v8500 = vld [vmem:[%s8472 + $0xd8] sm:$0xff]
        %v8501 = vld [vmem:[%s8472 + $0xe0] sm:$0xff]
        %v8502 = vld [vmem:[%s8472 + $0xe8] sm:$0xff]
        %v8503 = vld [vmem:[%s8472 + $0xf0] sm:$0xff]
        %v8504 = vld [vmem:[%s8472 + $0xf8] sm:$0xff]
        %v8505 = vld [vmem:[%s8472 + $0x100] sm:$0xff]
        %v8506 = vld [vmem:[%s8472 + $0x108] sm:$0xff]
        %v8507 = vld [vmem:[%s8472 + $0x110] sm:$0xff]
        %v8508 = vld [vmem:[%s8472 + $0x118] sm:$0xff]
        %v8509 = vld [vmem:[%s8472 + $0x120] sm:$0xff]
        %v8510 = vld [vmem:[%s8472 + $0x128] sm:$0xff]
        %v8511 = vld [vmem:[%s8472 + $0x130] sm:$0xff]
        %v8512 = vld [vmem:[%s8472 + $0x138] sm:$0xff]
        %v8513 = vld [vmem:[%s8472 + $0x140] sm:$0xff]
        %v8514 = vld [vmem:[%s8472 + $0x148] sm:$0xff]
        %v8515 = vld [vmem:[%s8472 + $0x150] sm:$0xff]
        %v8516 = vld [vmem:[%s8472 + $0x158] sm:$0xff]
        %v8517 = vld [vmem:[%s8472 + $0x160] sm:$0xff]
        %v8518 = vld [vmem:[%s8472 + $0x168] sm:$0xff]
        %v8519 = vld [vmem:[%s8472 + $0x170] sm:$0xff]
        %v8520 = vld [vmem:[%s8472 + $0x178] sm:$0xff]
        %v8569 = vunpack.c.l.b16 %v8473
        %v8570 = vunpack.c.h.b16 %v8473
        %v8571 = vunpack.c.l.b16 %v8474
        %v8572 = vunpack.c.h.b16 %v8474
        %v8573 = vunpack.c.l.b16 %v8475
        %v8574 = vunpack.c.h.b16 %v8475
        %v8575 = vunpack.c.l.b16 %v8476
        %v8576 = vunpack.c.h.b16 %v8476
        %v8577 = vunpack.c.l.b16 %v8477
        %v8578 = vunpack.c.h.b16 %v8477
        %v8579 = vunpack.c.l.b16 %v8478
        %v8580 = vunpack.c.h.b16 %v8478
        %v8581 = vunpack.c.l.b16 %v8479
        %v8582 = vunpack.c.h.b16 %v8479
        %v8583 = vunpack.c.l.b16 %v8480
        %v8584 = vunpack.c.h.b16 %v8480
        %v8585 = vunpack.c.l.b16 %v8481
        %v8586 = vunpack.c.h.b16 %v8481
        %v8587 = vunpack.c.l.b16 %v8482
        %v8588 = vunpack.c.h.b16 %v8482
        %v8589 = vunpack.c.l.b16 %v8483
        %v8590 = vunpack.c.h.b16 %v8483
        %v8591 = vunpack.c.l.b16 %v8484
        %v8592 = vunpack.c.h.b16 %v8484
        %v8593 = vunpack.c.l.b16 %v8485
        %v8594 = vunpack.c.h.b16 %v8485
        %v8595 = vunpack.c.l.b16 %v8486
        %v8596 = vunpack.c.h.b16 %v8486
        %v8597 = vunpack.c.l.b16 %v8487
        %v8598 = vunpack.c.h.b16 %v8487
        %v8599 = vunpack.c.l.b16 %v8488
        %v8600 = vunpack.c.h.b16 %v8488
        %v8601 = vunpack.c.l.b16 %v8489
        %v8602 = vunpack.c.h.b16 %v8489
        %v8603 = vunpack.c.l.b16 %v8490
        %v8604 = vunpack.c.h.b16 %v8490
        %v8605 = vunpack.c.l.b16 %v8491
        %v8606 = vunpack.c.h.b16 %v8491
        %v8607 = vunpack.c.l.b16 %v8492
        %v8608 = vunpack.c.h.b16 %v8492
        %v8609 = vunpack.c.l.b16 %v8493
        %v8610 = vunpack.c.h.b16 %v8493
        %v8611 = vunpack.c.l.b16 %v8494
        %v8612 = vunpack.c.h.b16 %v8494
        %v8613 = vunpack.c.l.b16 %v8495
        %v8614 = vunpack.c.h.b16 %v8495
        %v8615 = vunpack.c.l.b16 %v8496
        %v8616 = vunpack.c.h.b16 %v8496
        %v8617 = vunpack.c.l.b16 %v8497
        %v8618 = vunpack.c.h.b16 %v8497
        %v8619 = vunpack.c.l.b16 %v8498
        %v8620 = vunpack.c.h.b16 %v8498
        %v8621 = vunpack.c.l.b16 %v8499
        %v8622 = vunpack.c.h.b16 %v8499
        %v8623 = vunpack.c.l.b16 %v8500
        %v8624 = vunpack.c.h.b16 %v8500
        %v8625 = vunpack.c.l.b16 %v8501
        %v8626 = vunpack.c.h.b16 %v8501
        %v8627 = vunpack.c.l.b16 %v8502
        %v8628 = vunpack.c.h.b16 %v8502
        %v8629 = vunpack.c.l.b16 %v8503
        %v8630 = vunpack.c.h.b16 %v8503
        %v8631 = vunpack.c.l.b16 %v8504
        %v8632 = vunpack.c.h.b16 %v8504
        %v8633 = vunpack.c.l.b16 %v8505
        %v8634 = vunpack.c.h.b16 %v8505
        %v8635 = vunpack.c.l.b16 %v8506
        %v8636 = vunpack.c.h.b16 %v8506
        %v8637 = vunpack.c.l.b16 %v8507
        %v8638 = vunpack.c.h.b16 %v8507
        %v8639 = vunpack.c.l.b16 %v8508
        %v8640 = vunpack.c.h.b16 %v8508
        %v8641 = vunpack.c.l.b16 %v8509
        %v8642 = vunpack.c.h.b16 %v8509
        %v8643 = vunpack.c.l.b16 %v8510
        %v8644 = vunpack.c.h.b16 %v8510
        %v8645 = vunpack.c.l.b16 %v8511
        %v8646 = vunpack.c.h.b16 %v8511
        %v8647 = vunpack.c.l.b16 %v8512
        %v8648 = vunpack.c.h.b16 %v8512
        %v8649 = vunpack.c.l.b16 %v8513
        %v8650 = vunpack.c.h.b16 %v8513
        %v8651 = vunpack.c.l.b16 %v8514
        %v8652 = vunpack.c.h.b16 %v8514
        %v8653 = vunpack.c.l.b16 %v8515
        %v8654 = vunpack.c.h.b16 %v8515
        %v8655 = vunpack.c.l.b16 %v8516
        %v8656 = vunpack.c.h.b16 %v8516
        %v8657 = vunpack.c.l.b16 %v8517
        %v8658 = vunpack.c.h.b16 %v8517
        %v8659 = vunpack.c.l.b16 %v8518
        %v8660 = vunpack.c.h.b16 %v8518
        %v8661 = vunpack.c.l.b16 %v8519
        %v8662 = vunpack.c.h.b16 %v8519
        %v8663 = vunpack.c.l.b16 %v8520
        %v8664 = vunpack.c.h.b16 %v8520
        %v8665 = vpack.c.b16 %v8571, %v8569
        %v8666 = vpack.c.b16 %v8572, %v8570
        %v8667 = vpack.c.b16 %v8575, %v8573
        %v8668 = vpack.c.b16 %v8576, %v8574
        %v8669 = vpack.c.b16 %v8579, %v8577
        %v8670 = vpack.c.b16 %v8580, %v8578
        %v8671 = vpack.c.b16 %v8583, %v8581
        %v8672 = vpack.c.b16 %v8584, %v8582
        %v8673 = vpack.c.b16 %v8587, %v8585
        %v8674 = vpack.c.b16 %v8588, %v8586
        %v8675 = vpack.c.b16 %v8591, %v8589
        %v8676 = vpack.c.b16 %v8592, %v8590
        %v8677 = vpack.c.b16 %v8595, %v8593
        %v8678 = vpack.c.b16 %v8596, %v8594
        %v8679 = vpack.c.b16 %v8599, %v8597
        %v8680 = vpack.c.b16 %v8600, %v8598
        %v8681 = vpack.c.b16 %v8603, %v8601
        %v8682 = vpack.c.b16 %v8604, %v8602
        %v8683 = vpack.c.b16 %v8607, %v8605
        %v8684 = vpack.c.b16 %v8608, %v8606
        %v8685 = vpack.c.b16 %v8611, %v8609
        %v8686 = vpack.c.b16 %v8612, %v8610
        %v8687 = vpack.c.b16 %v8615, %v8613
        %v8688 = vpack.c.b16 %v8616, %v8614
        %v8689 = vpack.c.b16 %v8619, %v8617
        %v8690 = vpack.c.b16 %v8620, %v8618
        %v8691 = vpack.c.b16 %v8623, %v8621
        %v8692 = vpack.c.b16 %v8624, %v8622
        %v8693 = vpack.c.b16 %v8627, %v8625
        %v8694 = vpack.c.b16 %v8628, %v8626
        %v8695 = vpack.c.b16 %v8631, %v8629
        %v8696 = vpack.c.b16 %v8632, %v8630
        %v8697 = vpack.c.b16 %v8635, %v8633
        %v8698 = vpack.c.b16 %v8636, %v8634
        %v8699 = vpack.c.b16 %v8639, %v8637
        %v8700 = vpack.c.b16 %v8640, %v8638
        %v8701 = vpack.c.b16 %v8643, %v8641
        %v8702 = vpack.c.b16 %v8644, %v8642
        %v8703 = vpack.c.b16 %v8647, %v8645
        %v8704 = vpack.c.b16 %v8648, %v8646
        %v8705 = vpack.c.b16 %v8651, %v8649
        %v8706 = vpack.c.b16 %v8652, %v8650
        %v8707 = vpack.c.b16 %v8655, %v8653
        %v8708 = vpack.c.b16 %v8656, %v8654
        %v8709 = vpack.c.b16 %v8659, %v8657
        %v8710 = vpack.c.b16 %v8660, %v8658
        %v8711 = vpack.c.b16 %v8663, %v8661
        %v8712 = vpack.c.b16 %v8664, %v8662
        %8761 = vmatprep.subr.bf16.mxu0 %v8666
        %8762 = vmatpush1.bf16.msra.mxu0 %v8665
        %8763 = vmatprep.subr.bf16.mxu0 %v8668
        %8764 = vmatpush1.bf16.msra.mxu0 %v8667
        %8765 = vmatprep.subr.bf16.mxu0 %v8670
        %8766 = vmatpush1.bf16.msra.mxu0 %v8669
        %8767 = vmatprep.subr.bf16.mxu0 %v8672
        %8768 = vmatpush1.bf16.msra.mxu0 %v8671
        %8769 = vmatprep.subr.bf16.mxu0 %v8674
        %8770 = vmatpush1.bf16.msra.mxu0 %v8673
        %8771 = vmatprep.subr.bf16.mxu0 %v8676
        %8772 = vmatpush1.bf16.msra.mxu0 %v8675
        %8773 = vmatprep.subr.bf16.mxu0 %v8678
        %8774 = vmatpush1.bf16.msra.mxu0 %v8677
        %8775 = vmatprep.subr.bf16.mxu0 %v8680
        %8776 = vmatpush1.bf16.msra.mxu0 %v8679
        %8777 = vmatprep.subr.bf16.mxu0 %v8682
        %8778 = vmatpush1.bf16.msra.mxu0 %v8681
        %8779 = vmatprep.subr.bf16.mxu0 %v8684
        %8780 = vmatpush1.bf16.msra.mxu0 %v8683
        %8781 = vmatprep.subr.bf16.mxu0 %v8686
        %8782 = vmatpush1.bf16.msra.mxu0 %v8685
        %8783 = vmatprep.subr.bf16.mxu0 %v8688
        %8784 = vmatpush1.bf16.msra.mxu0 %v8687
        %8785 = vmatprep.subr.bf16.mxu0 %v8690
        %8786 = vmatpush1.bf16.msra.mxu0 %v8689
        %8787 = vmatprep.subr.bf16.mxu0 %v8692
        %8788 = vmatpush1.bf16.msra.mxu0 %v8691
        %8789 = vmatprep.subr.bf16.mxu0 %v8694
        %8790 = vmatpush1.bf16.msra.mxu0 %v8693
        %8791 = vmatprep.subr.bf16.mxu0 %v8696
        %8792 = vmatpush1.bf16.msra.mxu0 %v8695
        %8793 = vmatprep.mubr.bf16.mxu0 %v8425
        %8794 = vmatmul.mubr.bf16.gmra.mrb[0].mxu0 %v8424
        %v8795 = vpop.f32.mrb[0].mxu0
        %v8796 = vadd.f32 0.0, %v8795
        %v8797 = vpop.f32.mrb[0].mxu0
        %v8798 = vadd.f32 0.0, %v8797
        %v8799 = vpop.f32.mrb[0].mxu0
        %v8800 = vadd.f32 0.0, %v8799
        %v8801 = vpop.f32.mrb[0].mxu0
        %v8802 = vadd.f32 0.0, %v8801
        %8803 = vmatprep.mubr.bf16.mxu0 %v8428
        %8804 = vmatmul.mubr.bf16.gmra.mrb[0].mxu0 %v8427
        %v8805 = vpop.f32.mrb[0].mxu0
        %v8806 = vadd.f32 0.0, %v8805
        %v8807 = vpop.f32.mrb[0].mxu0
        %v8808 = vadd.f32 0.0, %v8807
        %v8809 = vpop.f32.mrb[0].mxu0
        %v8810 = vadd.f32 0.0, %v8809
        %v8811 = vpop.f32.mrb[0].mxu0
        %v8812 = vadd.f32 0.0, %v8811
        %8813 = vmatprep.mubr.bf16.mxu0 %v8431
        %8814 = vmatmul.mubr.bf16.gmra.mrb[0].mxu0 %v8430
        %v8815 = vpop.f32.mrb[0].mxu0
        %v8816 = vadd.f32 0.0, %v8815
        %v8817 = vpop.f32.mrb[0].mxu0
        %v8818 = vadd.f32 0.0, %v8817
        %v8819 = vpop.f32.mrb[0].mxu0
        %v8820 = vadd.f32 0.0, %v8819
        %v8821 = vpop.f32.mrb[0].mxu0
        %v8822 = vadd.f32 0.0, %v8821
        %8823 = vmatprep.mubr.bf16.mxu0 %v8434
        %8824 = vmatmul.mubr.bf16.gmra.mrb[0].mxu0 %v8433
        %v8825 = vpop.f32.mrb[0].mxu0
        %v8826 = vadd.f32 0.0, %v8825
        %v8827 = vpop.f32.mrb[0].mxu0
        %v8828 = vadd.f32 0.0, %v8827
        %v8829 = vpop.f32.mrb[0].mxu0
        %v8830 = vadd.f32 0.0, %v8829
        %v8831 = vpop.f32.mrb[0].mxu0
        %v8832 = vadd.f32 0.0, %v8831
        %8833 = vmatprep.mubr.bf16.mxu0 %v8437
        %8834 = vmatmul.mubr.bf16.gmra.mrb[0].mxu0 %v8436
        %v8835 = vpop.f32.mrb[0].mxu0
        %v8836 = vadd.f32 0.0, %v8835
        %v8837 = vpop.f32.mrb[0].mxu0
        %v8838 = vadd.f32 0.0, %v8837
        %v8839 = vpop.f32.mrb[0].mxu0
        %v8840 = vadd.f32 0.0, %v8839
        %v8841 = vpop.f32.mrb[0].mxu0
        %v8842 = vadd.f32 0.0, %v8841
        %8843 = vmatprep.mubr.bf16.mxu0 %v8440
        %8844 = vmatmul.mubr.bf16.gmra.mrb[0].mxu0 %v8439
        %v8845 = vpop.f32.mrb[0].mxu0
        %v8846 = vadd.f32 0.0, %v8845
        %v8847 = vpop.f32.mrb[0].mxu0
        %v8848 = vadd.f32 0.0, %v8847
        %v8849 = vpop.f32.mrb[0].mxu0
        %v8850 = vadd.f32 0.0, %v8849
        %v8851 = vpop.f32.mrb[0].mxu0
        %v8852 = vadd.f32 0.0, %v8851
        %8853 = vmatprep.mubr.bf16.mxu0 %v8443
        %8854 = vmatmul.mubr.bf16.gmra.mrb[0].mxu0 %v8442
        %v8855 = vpop.f32.mrb[0].mxu0
        %v8856 = vadd.f32 0.0, %v8855
        %v8857 = vpop.f32.mrb[0].mxu0
        %v8858 = vadd.f32 0.0, %v8857
        %v8859 = vpop.f32.mrb[0].mxu0
        %v8860 = vadd.f32 0.0, %v8859
        %v8861 = vpop.f32.mrb[0].mxu0
        %v8862 = vadd.f32 0.0, %v8861
        %8863 = vmatprep.mubr.bf16.mxu0 %v8446
        %8864 = vmatmul.mubr.bf16.gmra.mrb[0].mxu0 %v8445
        %v8865 = vpop.f32.mrb[0].mxu0
        %v8866 = vadd.f32 0.0, %v8865
        %v8867 = vpop.f32.mrb[0].mxu0
        %v8868 = vadd.f32 0.0, %v8867
        %v8869 = vpop.f32.mrb[0].mxu0
        %v8870 = vadd.f32 0.0, %v8869
        %v8871 = vpop.f32.mrb[0].mxu0
        %v8872 = vadd.f32 0.0, %v8871
        %8873 = vmatprep.mubr.bf16.mxu0 %v8449
        %8874 = vmatmul.mubr.bf16.gmra.mrb[0].mxu0 %v8448
        %v8875 = vpop.f32.mrb[0].mxu0
        %v8876 = vadd.f32 0.0, %v8875
        %v8877 = vpop.f32.mrb[0].mxu0
        %v8878 = vadd.f32 0.0, %v8877
        %v8879 = vpop.f32.mrb[0].mxu0
        %v8880 = vadd.f32 0.0, %v8879
        %v8881 = vpop.f32.mrb[0].mxu0
        %v8882 = vadd.f32 0.0, %v8881
        %8883 = vmatprep.mubr.bf16.mxu0 %v8452
        %8884 = vmatmul.mubr.bf16.gmra.mrb[0].mxu0 %v8451
        %v8885 = vpop.f32.mrb[0].mxu0
        %v8886 = vadd.f32 0.0, %v8885
        %v8887 = vpop.f32.mrb[0].mxu0
        %v8888 = vadd.f32 0.0, %v8887
        %v8889 = vpop.f32.mrb[0].mxu0
        %v8890 = vadd.f32 0.0, %v8889
        %v8891 = vpop.f32.mrb[0].mxu0
        %v8892 = vadd.f32 0.0, %v8891
        %8893 = vmatprep.mubr.bf16.mxu0 %v8455
        %8894 = vmatmul.mubr.bf16.gmra.mrb[0].mxu0 %v8454
        %v8895 = vpop.f32.mrb[0].mxu0
        %v8896 = vadd.f32 0.0, %v8895
        %v8897 = vpop.f32.mrb[0].mxu0
        %v8898 = vadd.f32 0.0, %v8897
        %v8899 = vpop.f32.mrb[0].mxu0
        %v8900 = vadd.f32 0.0, %v8899
        %v8901 = vpop.f32.mrb[0].mxu0
        %v8902 = vadd.f32 0.0, %v8901
        %8903 = vmatprep.mubr.bf16.mxu0 %v8458
        %8904 = vmatmul.mubr.bf16.gmra.mrb[0].mxu0 %v8457
        %v8905 = vpop.f32.mrb[0].mxu0
        %v8906 = vadd.f32 0.0, %v8905
        %v8907 = vpop.f32.mrb[0].mxu0
        %v8908 = vadd.f32 0.0, %v8907
        %v8909 = vpop.f32.mrb[0].mxu0
        %v8910 = vadd.f32 0.0, %v8909
        %v8911 = vpop.f32.mrb[0].mxu0
        %v8912 = vadd.f32 0.0, %v8911
        %8913 = vmatprep.mubr.bf16.mxu0 %v8461
        %8914 = vmatmul.mubr.bf16.gmra.mrb[0].mxu0 %v8460
        %v8915 = vpop.f32.mrb[0].mxu0
        %v8916 = vadd.f32 0.0, %v8915
        %v8917 = vpop.f32.mrb[0].mxu0
        %v8918 = vadd.f32 0.0, %v8917
        %v8919 = vpop.f32.mrb[0].mxu0
        %v8920 = vadd.f32 0.0, %v8919
        %v8921 = vpop.f32.mrb[0].mxu0
        %v8922 = vadd.f32 0.0, %v8921
        %8923 = vmatprep.mubr.bf16.mxu0 %v8464
        %8924 = vmatmul.mubr.bf16.gmra.mrb[0].mxu0 %v8463
        %v8925 = vpop.f32.mrb[0].mxu0
        %v8926 = vadd.f32 0.0, %v8925
        %v8927 = vpop.f32.mrb[0].mxu0
        %v8928 = vadd.f32 0.0, %v8927
        %v8929 = vpop.f32.mrb[0].mxu0
        %v8930 = vadd.f32 0.0, %v8929
        %v8931 = vpop.f32.mrb[0].mxu0
        %v8932 = vadd.f32 0.0, %v8931
        %8933 = vmatprep.mubr.bf16.mxu0 %v8467
        %8934 = vmatmul.mubr.bf16.gmra.mrb[0].mxu0 %v8466
        %v8935 = vpop.f32.mrb[0].mxu0
        %v8936 = vadd.f32 0.0, %v8935
        %v8937 = vpop.f32.mrb[0].mxu0
        %v8938 = vadd.f32 0.0, %v8937
        %v8939 = vpop.f32.mrb[0].mxu0
        %v8940 = vadd.f32 0.0, %v8939
        %v8941 = vpop.f32.mrb[0].mxu0
        %v8942 = vadd.f32 0.0, %v8941
        %8943 = vmatprep.mubr.bf16.mxu0 %v8470
        %8944 = vmatmul.mubr.bf16.gmra.mrb[0].mxu0 %v8469
        %v8945 = vpop.f32.mrb[0].mxu0
        %v8946 = vadd.f32 0.0, %v8945
        %v8947 = vpop.f32.mrb[0].mxu0
        %v8948 = vadd.f32 0.0, %v8947
        %v8949 = vpop.f32.mrb[0].mxu0
        %v8950 = vadd.f32 0.0, %v8949
        %v8951 = vpop.f32.mrb[0].mxu0
        %v8952 = vadd.f32 0.0, %v8951
        %8953 = vdwg.mxu0
        %8954 = vmatprep.subr.bf16.mxu0 %v8698
        %8955 = vmatpush1.bf16.msra.mxu0 %v8697
        %8956 = vmatprep.subr.bf16.mxu0 %v8700
        %8957 = vmatpush1.bf16.msra.mxu0 %v8699
        %8958 = vmatprep.subr.bf16.mxu0 %v8702
        %8959 = vmatpush1.bf16.msra.mxu0 %v8701
        %8960 = vmatprep.subr.bf16.mxu0 %v8704
        %8961 = vmatpush1.bf16.msra.mxu0 %v8703
        %8962 = vmatprep.subr.bf16.mxu0 %v8706
        %8963 = vmatpush1.bf16.msra.mxu0 %v8705
        %8964 = vmatprep.subr.bf16.mxu0 %v8708
        %8965 = vmatpush1.bf16.msra.mxu0 %v8707
        %8966 = vmatprep.subr.bf16.mxu0 %v8710
        %8967 = vmatpush1.bf16.msra.mxu0 %v8709
        %8968 = vmatprep.subr.bf16.mxu0 %v8712
        %8969 = vmatpush1.bf16.msra.mxu0 %v8711
        %8970 = vmatprep.subr.bf16.mxu0 0
        %8971 = vmatpush1.bf16.msra.mxu0 0
        %8972 = vmatprep.subr.bf16.mxu0 0
        %8973 = vmatpush1.bf16.msra.mxu0 0
        %8974 = vmatprep.subr.bf16.mxu0 0
        %8975 = vmatpush1.bf16.msra.mxu0 0
        %8976 = vmatprep.subr.bf16.mxu0 0
        %8977 = vmatpush1.bf16.msra.mxu0 0
        %8978 = vmatprep.subr.bf16.mxu0 0
        %8979 = vmatpush1.bf16.msra.mxu0 0
        %8980 = vmatprep.subr.bf16.mxu0 0
        %8981 = vmatpush1.bf16.msra.mxu0 0
        %8982 = vmatprep.subr.bf16.mxu0 0
        %8983 = vmatpush1.bf16.msra.mxu0 0
        %8984 = vmatprep.subr.bf16.mxu0 0
        %8985 = vmatpush1.bf16.msra.mxu0 0
        %8986 = vmatprep.mubr.bf16.mxu0 0
        %8987 = vmatmul.mubr.bf16.gmra.mrb[0].mxu0 %v8426
        %v8988 = vpop.f32.mrb[0].mxu0
        %v8989 = vadd.f32 %v8796, %v8988
        %v8990 = vpop.f32.mrb[0].mxu0
        %v8991 = vadd.f32 %v8798, %v8990
        %v8992 = vpop.f32.mrb[0].mxu0
        %v8993 = vadd.f32 %v8800, %v8992
        %v8994 = vpop.f32.mrb[0].mxu0
        %v8995 = vadd.f32 %v8802, %v8994
        %8996 = vmatprep.mubr.bf16.mxu0 0
        %8997 = vmatmul.mubr.bf16.gmra.mrb[0].mxu0 %v8429
        %v8998 = vpop.f32.mrb[0].mxu0
        %v8999 = vadd.f32 %v8806, %v8998
        %v9000 = vpop.f32.mrb[0].mxu0
        %v9001 = vadd.f32 %v8808, %v9000
        %v9002 = vpop.f32.mrb[0].mxu0
        %v9003 = vadd.f32 %v8810, %v9002
        %v9004 = vpop.f32.mrb[0].mxu0
        %v9005 = vadd.f32 %v8812, %v9004
        %9006 = vmatprep.mubr.bf16.mxu0 0
        %9007 = vmatmul.mubr.bf16.gmra.mrb[0].mxu0 %v8432
        %v9008 = vpop.f32.mrb[0].mxu0
        %v9009 = vadd.f32 %v8816, %v9008
        %v9010 = vpop.f32.mrb[0].mxu0
        %v9011 = vadd.f32 %v8818, %v9010
        %v9012 = vpop.f32.mrb[0].mxu0
        %v9013 = vadd.f32 %v8820, %v9012
        %v9014 = vpop.f32.mrb[0].mxu0
        %v9015 = vadd.f32 %v8822, %v9014
        %9016 = vmatprep.mubr.bf16.mxu0 0
        %9017 = vmatmul.mubr.bf16.gmra.mrb[0].mxu0 %v8435
        %v9018 = vpop.f32.mrb[0].mxu0
        %v9019 = vadd.f32 %v8826, %v9018
        %v9020 = vpop.f32.mrb[0].mxu0
        %v9021 = vadd.f32 %v8828, %v9020
        %v9022 = vpop.f32.mrb[0].mxu0
        %v9023 = vadd.f32 %v8830, %v9022
        %v9024 = vpop.f32.mrb[0].mxu0
        %v9025 = vadd.f32 %v8832, %v9024
        %9026 = vmatprep.mubr.bf16.mxu0 0
        %9027 = vmatmul.mubr.bf16.gmra.mrb[0].mxu0 %v8438
        %v9028 = vpop.f32.mrb[0].mxu0
        %v9029 = vadd.f32 %v8836, %v9028
        %v9030 = vpop.f32.mrb[0].mxu0
        %v9031 = vadd.f32 %v8838, %v9030
        %v9032 = vpop.f32.mrb[0].mxu0
        %v9033 = vadd.f32 %v8840, %v9032
        %v9034 = vpop.f32.mrb[0].mxu0
        %v9035 = vadd.f32 %v8842, %v9034
        %9036 = vmatprep.mubr.bf16.mxu0 0
        %9037 = vmatmul.mubr.bf16.gmra.mrb[0].mxu0 %v8441
        %v9038 = vpop.f32.mrb[0].mxu0
        %v9039 = vadd.f32 %v8846, %v9038
        %v9040 = vpop.f32.mrb[0].mxu0
        %v9041 = vadd.f32 %v8848, %v9040
        %v9042 = vpop.f32.mrb[0].mxu0
        %v9043 = vadd.f32 %v8850, %v9042
        %v9044 = vpop.f32.mrb[0].mxu0
        %v9045 = vadd.f32 %v8852, %v9044
        %9046 = vmatprep.mubr.bf16.mxu0 0
        %9047 = vmatmul.mubr.bf16.gmra.mrb[0].mxu0 %v8444
        %v9048 = vpop.f32.mrb[0].mxu0
        %v9049 = vadd.f32 %v8856, %v9048
        %v9050 = vpop.f32.mrb[0].mxu0
        %v9051 = vadd.f32 %v8858, %v9050
        %v9052 = vpop.f32.mrb[0].mxu0
        %v9053 = vadd.f32 %v8860, %v9052
        %v9054 = vpop.f32.mrb[0].mxu0
        %v9055 = vadd.f32 %v8862, %v9054
        %9056 = vmatprep.mubr.bf16.mxu0 0
        %9057 = vmatmul.mubr.bf16.gmra.mrb[0].mxu0 %v8447
        %v9058 = vpop.f32.mrb[0].mxu0
        %v9059 = vadd.f32 %v8866, %v9058
        %v9060 = vpop.f32.mrb[0].mxu0
        %v9061 = vadd.f32 %v8868, %v9060
        %v9062 = vpop.f32.mrb[0].mxu0
        %v9063 = vadd.f32 %v8870, %v9062
        %v9064 = vpop.f32.mrb[0].mxu0
        %v9065 = vadd.f32 %v8872, %v9064
        %9066 = vmatprep.mubr.bf16.mxu0 0
        %9067 = vmatmul.mubr.bf16.gmra.mrb[0].mxu0 %v8450
        %v9068 = vpop.f32.mrb[0].mxu0
        %v9069 = vadd.f32 %v8876, %v9068
        %v9070 = vpop.f32.mrb[0].mxu0
        %v9071 = vadd.f32 %v8878, %v9070
        %v9072 = vpop.f32.mrb[0].mxu0
        %v9073 = vadd.f32 %v8880, %v9072
        %v9074 = vpop.f32.mrb[0].mxu0
        %v9075 = vadd.f32 %v8882, %v9074
        %9076 = vmatprep.mubr.bf16.mxu0 0
        %9077 = vmatmul.mubr.bf16.gmra.mrb[0].mxu0 %v8453
        %v9078 = vpop.f32.mrb[0].mxu0
        %v9079 = vadd.f32 %v8886, %v9078
        %v9080 = vpop.f32.mrb[0].mxu0
        %v9081 = vadd.f32 %v8888, %v9080
        %v9082 = vpop.f32.mrb[0].mxu0
        %v9083 = vadd.f32 %v8890, %v9082
        %v9084 = vpop.f32.mrb[0].mxu0
        %v9085 = vadd.f32 %v8892, %v9084
        %9086 = vmatprep.mubr.bf16.mxu0 0
        %9087 = vmatmul.mubr.bf16.gmra.mrb[0].mxu0 %v8456
        %v9088 = vpop.f32.mrb[0].mxu0
        %v9089 = vadd.f32 %v8896, %v9088
        %v9090 = vpop.f32.mrb[0].mxu0
        %v9091 = vadd.f32 %v8898, %v9090
        %v9092 = vpop.f32.mrb[0].mxu0
        %v9093 = vadd.f32 %v8900, %v9092
        %v9094 = vpop.f32.mrb[0].mxu0
        %v9095 = vadd.f32 %v8902, %v9094
        %9096 = vmatprep.mubr.bf16.mxu0 0
        %9097 = vmatmul.mubr.bf16.gmra.mrb[0].mxu0 %v8459
        %v9098 = vpop.f32.mrb[0].mxu0
        %v9099 = vadd.f32 %v8906, %v9098
        %v9100 = vpop.f32.mrb[0].mxu0
        %v9101 = vadd.f32 %v8908, %v9100
        %v9102 = vpop.f32.mrb[0].mxu0
        %v9103 = vadd.f32 %v8910, %v9102
        %v9104 = vpop.f32.mrb[0].mxu0
        %v9105 = vadd.f32 %v8912, %v9104
        %9106 = vmatprep.mubr.bf16.mxu0 0
        %9107 = vmatmul.mubr.bf16.gmra.mrb[0].mxu0 %v8462
        %v9108 = vpop.f32.mrb[0].mxu0
        %v9109 = vadd.f32 %v8916, %v9108
        %v9110 = vpop.f32.mrb[0].mxu0
        %v9111 = vadd.f32 %v8918, %v9110
        %v9112 = vpop.f32.mrb[0].mxu0
        %v9113 = vadd.f32 %v8920, %v9112
        %v9114 = vpop.f32.mrb[0].mxu0
        %v9115 = vadd.f32 %v8922, %v9114
        %9116 = vmatprep.mubr.bf16.mxu0 0
        %9117 = vmatmul.mubr.bf16.gmra.mrb[0].mxu0 %v8465
        %v9118 = vpop.f32.mrb[0].mxu0
        %v9119 = vadd.f32 %v8926, %v9118
        %v9120 = vpop.f32.mrb[0].mxu0
        %v9121 = vadd.f32 %v8928, %v9120
        %v9122 = vpop.f32.mrb[0].mxu0
        %v9123 = vadd.f32 %v8930, %v9122
        %v9124 = vpop.f32.mrb[0].mxu0
        %v9125 = vadd.f32 %v8932, %v9124
        %9126 = vmatprep.mubr.bf16.mxu0 0
        %9127 = vmatmul.mubr.bf16.gmra.mrb[0].mxu0 %v8468
        %v9128 = vpop.f32.mrb[0].mxu0
        %v9129 = vadd.f32 %v8936, %v9128
        %v9130 = vpop.f32.mrb[0].mxu0
        %v9131 = vadd.f32 %v8938, %v9130
        %v9132 = vpop.f32.mrb[0].mxu0
        %v9133 = vadd.f32 %v8940, %v9132
        %v9134 = vpop.f32.mrb[0].mxu0
        %v9135 = vadd.f32 %v8942, %v9134
        %9136 = vmatprep.mubr.bf16.mxu0 0
        %9137 = vmatmul.mubr.bf16.gmra.mrb[0].mxu0 %v8471
        %v9138 = vpop.f32.mrb[0].mxu0
        %v9139 = vadd.f32 %v8946, %v9138
        %v9140 = vpop.f32.mrb[0].mxu0
        %v9141 = vadd.f32 %v8948, %v9140
        %v9142 = vpop.f32.mrb[0].mxu0
        %v9143 = vadd.f32 %v8950, %v9142
        %v9144 = vpop.f32.mrb[0].mxu0
        %v9145 = vadd.f32 %v8952, %v9144
        %9146 = vdwg.mxu0
        %v9147 = vadd.f32 %v8265, %v8989
        %v9148 = vadd.f32 %v8267, %v8991
        %v9149 = vadd.f32 %v8269, %v8993
        %v9150 = vadd.f32 %v8271, %v8995
        %v9151 = vadd.f32 %v8275, %v8999
        %v9152 = vadd.f32 %v8277, %v9001
        %v9153 = vadd.f32 %v8279, %v9003
        %v9154 = vadd.f32 %v8281, %v9005
        %v9155 = vadd.f32 %v8285, %v9009
        %v9156 = vadd.f32 %v8287, %v9011
        %v9157 = vadd.f32 %v8289, %v9013
        %v9158 = vadd.f32 %v8291, %v9015
        %v9159 = vadd.f32 %v8295, %v9019
        %v9160 = vadd.f32 %v8297, %v9021
        %v9161 = vadd.f32 %v8299, %v9023
        %v9162 = vadd.f32 %v8301, %v9025
        %v9163 = vadd.f32 %v8305, %v9029
        %v9164 = vadd.f32 %v8307, %v9031
        %v9165 = vadd.f32 %v8309, %v9033
        %v9166 = vadd.f32 %v8311, %v9035
        %v9167 = vadd.f32 %v8315, %v9039
        %v9168 = vadd.f32 %v8317, %v9041
        %v9169 = vadd.f32 %v8319, %v9043
        %v9170 = vadd.f32 %v8321, %v9045
        %v9171 = vadd.f32 %v8325, %v9049
        %v9172 = vadd.f32 %v8327, %v9051
        %v9173 = vadd.f32 %v8329, %v9053
        %v9174 = vadd.f32 %v8331, %v9055
        %v9175 = vadd.f32 %v8335, %v9059
        %v9176 = vadd.f32 %v8337, %v9061
        %v9177 = vadd.f32 %v8339, %v9063
        %v9178 = vadd.f32 %v8341, %v9065
        %v9179 = vadd.f32 %v8345, %v9069
        %v9180 = vadd.f32 %v8347, %v9071
        %v9181 = vadd.f32 %v8349, %v9073
        %v9182 = vadd.f32 %v8351, %v9075
        %v9183 = vadd.f32 %v8355, %v9079
        %v9184 = vadd.f32 %v8357, %v9081
        %v9185 = vadd.f32 %v8359, %v9083
        %v9186 = vadd.f32 %v8361, %v9085
        %v9187 = vadd.f32 %v8365, %v9089
        %v9188 = vadd.f32 %v8367, %v9091
        %v9189 = vadd.f32 %v8369, %v9093
        %v9190 = vadd.f32 %v8371, %v9095
        %v9191 = vadd.f32 %v8375, %v9099
        %v9192 = vadd.f32 %v8377, %v9101
        %v9193 = vadd.f32 %v8379, %v9103
        %v9194 = vadd.f32 %v8381, %v9105
        %v9195 = vadd.f32 %v8385, %v9109
        %v9196 = vadd.f32 %v8387, %v9111
        %v9197 = vadd.f32 %v8389, %v9113
        %v9198 = vadd.f32 %v8391, %v9115
        %v9199 = vadd.f32 %v8395, %v9119
        %v9200 = vadd.f32 %v8397, %v9121
        %v9201 = vadd.f32 %v8399, %v9123
        %v9202 = vadd.f32 %v8401, %v9125
        %v9203 = vadd.f32 %v8405, %v9129
        %v9204 = vadd.f32 %v8407, %v9131
        %v9205 = vadd.f32 %v8409, %v9133
        %v9206 = vadd.f32 %v8411, %v9135
        %v9207 = vadd.f32 %v8415, %v9139
        %v9208 = vadd.f32 %v8417, %v9141
        %v9209 = vadd.f32 %v8419, %v9143
        %v9210 = vadd.f32 %v8421, %v9145
        %v9211 = vld [vmem:[#allocation13] sm:$0x3]
        %v9213 = vlaneseq
        %v9214 = vshrl.u32 %v9213, 7
        %v9215 = vsub.s32 0, %v9214
        %v9216 = vrot.slane %v9211, %v9215
        %v9217 = vlaneseq
        %v9218 = vshrl.u32 %v9217, 7
        %v9219 = vsub.s32 1, %v9218
        %v9220 = vrot.slane %v9211, %v9219
        %v9223 = vadd.f32 %v9147, %v9216
        %v9224 = vadd.f32 %v9148, %v9220
        %v9225 = vadd.f32 %v9149, %v9216
        %v9226 = vadd.f32 %v9150, %v9220
        %v9227 = vadd.f32 %v9151, %v9216
        %v9228 = vadd.f32 %v9152, %v9220
        %v9229 = vadd.f32 %v9153, %v9216
        %v9230 = vadd.f32 %v9154, %v9220
        %v9231 = vadd.f32 %v9155, %v9216
        %v9232 = vadd.f32 %v9156, %v9220
        %v9233 = vadd.f32 %v9157, %v9216
        %v9234 = vadd.f32 %v9158, %v9220
        %v9235 = vadd.f32 %v9159, %v9216
        %v9236 = vadd.f32 %v9160, %v9220
        %v9237 = vadd.f32 %v9161, %v9216
        %v9238 = vadd.f32 %v9162, %v9220
        %v9239 = vadd.f32 %v9163, %v9216
        %v9240 = vadd.f32 %v9164, %v9220
        %v9241 = vadd.f32 %v9165, %v9216
        %v9242 = vadd.f32 %v9166, %v9220
        %v9243 = vadd.f32 %v9167, %v9216
        %v9244 = vadd.f32 %v9168, %v9220
        %v9245 = vadd.f32 %v9169, %v9216
        %v9246 = vadd.f32 %v9170, %v9220
        %v9247 = vadd.f32 %v9171, %v9216
        %v9248 = vadd.f32 %v9172, %v9220
        %v9249 = vadd.f32 %v9173, %v9216
        %v9250 = vadd.f32 %v9174, %v9220
        %v9251 = vadd.f32 %v9175, %v9216
        %v9252 = vadd.f32 %v9176, %v9220
        %v9253 = vadd.f32 %v9177, %v9216
        %v9254 = vadd.f32 %v9178, %v9220
        %v9255 = vadd.f32 %v9179, %v9216
        %v9256 = vadd.f32 %v9180, %v9220
        %v9257 = vadd.f32 %v9181, %v9216
        %v9258 = vadd.f32 %v9182, %v9220
        %v9259 = vadd.f32 %v9183, %v9216
        %v9260 = vadd.f32 %v9184, %v9220
        %v9261 = vadd.f32 %v9185, %v9216
        %v9262 = vadd.f32 %v9186, %v9220
        %v9263 = vadd.f32 %v9187, %v9216
        %v9264 = vadd.f32 %v9188, %v9220
        %v9265 = vadd.f32 %v9189, %v9216
        %v9266 = vadd.f32 %v9190, %v9220
        %v9267 = vadd.f32 %v9191, %v9216
        %v9268 = vadd.f32 %v9192, %v9220
        %v9269 = vadd.f32 %v9193, %v9216
        %v9270 = vadd.f32 %v9194, %v9220
        %v9271 = vadd.f32 %v9195, %v9216
        %v9272 = vadd.f32 %v9196, %v9220
        %v9273 = vadd.f32 %v9197, %v9216
        %v9274 = vadd.f32 %v9198, %v9220
        %v9275 = vadd.f32 %v9199, %v9216
        %v9276 = vadd.f32 %v9200, %v9220
        %v9277 = vadd.f32 %v9201, %v9216
        %v9278 = vadd.f32 %v9202, %v9220
        %v9279 = vadd.f32 %v9203, %v9216
        %v9280 = vadd.f32 %v9204, %v9220
        %v9281 = vadd.f32 %v9205, %v9216
        %v9282 = vadd.f32 %v9206, %v9220
        %v9283 = vadd.f32 %v9207, %v9216
        %v9284 = vadd.f32 %v9208, %v9220
        %v9285 = vadd.f32 %v9209, %v9216
        %v9286 = vadd.f32 %v9210, %v9220
        %v9287 = vadd.f32 %v9223, 3.0
        %v9288 = vadd.f32 %v9224, 3.0
        %v9289 = vadd.f32 %v9225, 3.0
        %v9290 = vadd.f32 %v9226, 3.0
        %v9291 = vadd.f32 %v9227, 3.0
        %v9292 = vadd.f32 %v9228, 3.0
        %v9293 = vadd.f32 %v9229, 3.0
        %v9294 = vadd.f32 %v9230, 3.0
        %v9295 = vadd.f32 %v9231, 3.0
        %v9296 = vadd.f32 %v9232, 3.0
        %v9297 = vadd.f32 %v9233, 3.0
        %v9298 = vadd.f32 %v9234, 3.0
        %v9299 = vadd.f32 %v9235, 3.0
        %v9300 = vadd.f32 %v9236, 3.0
        %v9301 = vadd.f32 %v9237, 3.0
        %v9302 = vadd.f32 %v9238, 3.0
        %v9303 = vadd.f32 %v9239, 3.0
        %v9304 = vadd.f32 %v9240, 3.0
        %v9305 = vadd.f32 %v9241, 3.0
        %v9306 = vadd.f32 %v9242, 3.0
        %v9307 = vadd.f32 %v9243, 3.0
        %v9308 = vadd.f32 %v9244, 3.0
        %v9309 = vadd.f32 %v9245, 3.0
        %v9310 = vadd.f32 %v9246, 3.0
        %v9311 = vadd.f32 %v9247, 3.0
        %v9312 = vadd.f32 %v9248, 3.0
        %v9313 = vadd.f32 %v9249, 3.0
        %v9314 = vadd.f32 %v9250, 3.0
        %v9315 = vadd.f32 %v9251, 3.0
        %v9316 = vadd.f32 %v9252, 3.0
        %v9317 = vadd.f32 %v9253, 3.0
        %v9318 = vadd.f32 %v9254, 3.0
        %v9319 = vadd.f32 %v9255, 3.0
        %v9320 = vadd.f32 %v9256, 3.0
        %v9321 = vadd.f32 %v9257, 3.0
        %v9322 = vadd.f32 %v9258, 3.0
        %v9323 = vadd.f32 %v9259, 3.0
        %v9324 = vadd.f32 %v9260, 3.0
        %v9325 = vadd.f32 %v9261, 3.0
        %v9326 = vadd.f32 %v9262, 3.0
        %v9327 = vadd.f32 %v9263, 3.0
        %v9328 = vadd.f32 %v9264, 3.0
        %v9329 = vadd.f32 %v9265, 3.0
        %v9330 = vadd.f32 %v9266, 3.0
        %v9331 = vadd.f32 %v9267, 3.0
        %v9332 = vadd.f32 %v9268, 3.0
        %v9333 = vadd.f32 %v9269, 3.0
        %v9334 = vadd.f32 %v9270, 3.0
        %v9335 = vadd.f32 %v9271, 3.0
        %v9336 = vadd.f32 %v9272, 3.0
        %v9337 = vadd.f32 %v9273, 3.0
        %v9338 = vadd.f32 %v9274, 3.0
        %v9339 = vadd.f32 %v9275, 3.0
        %v9340 = vadd.f32 %v9276, 3.0
        %v9341 = vadd.f32 %v9277, 3.0
        %v9342 = vadd.f32 %v9278, 3.0
        %v9343 = vadd.f32 %v9279, 3.0
        %v9344 = vadd.f32 %v9280, 3.0
        %v9345 = vadd.f32 %v9281, 3.0
        %v9346 = vadd.f32 %v9282, 3.0
        %v9347 = vadd.f32 %v9283, 3.0
        %v9348 = vadd.f32 %v9284, 3.0
        %v9349 = vadd.f32 %v9285, 3.0
        %v9350 = vadd.f32 %v9286, 3.0
        %v9351 = vmax.f32 %v9287, 0.0
        %v9352 = vmax.f32 %v9288, 0.0
        %v9353 = vmax.f32 %v9289, 0.0
        %v9354 = vmax.f32 %v9290, 0.0
        %v9355 = vmax.f32 %v9291, 0.0
        %v9356 = vmax.f32 %v9292, 0.0
        %v9357 = vmax.f32 %v9293, 0.0
        %v9358 = vmax.f32 %v9294, 0.0
        %v9359 = vmax.f32 %v9295, 0.0
        %v9360 = vmax.f32 %v9296, 0.0
        %v9361 = vmax.f32 %v9297, 0.0
        %v9362 = vmax.f32 %v9298, 0.0
        %v9363 = vmax.f32 %v9299, 0.0
        %v9364 = vmax.f32 %v9300, 0.0
        %v9365 = vmax.f32 %v9301, 0.0
        %v9366 = vmax.f32 %v9302, 0.0
        %v9367 = vmax.f32 %v9303, 0.0
        %v9368 = vmax.f32 %v9304, 0.0
        %v9369 = vmax.f32 %v9305, 0.0
        %v9370 = vmax.f32 %v9306, 0.0
        %v9371 = vmax.f32 %v9307, 0.0
        %v9372 = vmax.f32 %v9308, 0.0
        %v9373 = vmax.f32 %v9309, 0.0
        %v9374 = vmax.f32 %v9310, 0.0
        %v9375 = vmax.f32 %v9311, 0.0
        %v9376 = vmax.f32 %v9312, 0.0
        %v9377 = vmax.f32 %v9313, 0.0
        %v9378 = vmax.f32 %v9314, 0.0
        %v9379 = vmax.f32 %v9315, 0.0
        %v9380 = vmax.f32 %v9316, 0.0
        %v9381 = vmax.f32 %v9317, 0.0
        %v9382 = vmax.f32 %v9318, 0.0
        %v9383 = vmax.f32 %v9319, 0.0
        %v9384 = vmax.f32 %v9320, 0.0
        %v9385 = vmax.f32 %v9321, 0.0
        %v9386 = vmax.f32 %v9322, 0.0
        %v9387 = vmax.f32 %v9323, 0.0
        %v9388 = vmax.f32 %v9324, 0.0
        %v9389 = vmax.f32 %v9325, 0.0
        %v9390 = vmax.f32 %v9326, 0.0
        %v9391 = vmax.f32 %v9327, 0.0
        %v9392 = vmax.f32 %v9328, 0.0
        %v9393 = vmax.f32 %v9329, 0.0
        %v9394 = vmax.f32 %v9330, 0.0
        %v9395 = vmax.f32 %v9331, 0.0
        %v9396 = vmax.f32 %v9332, 0.0
        %v9397 = vmax.f32 %v9333, 0.0
        %v9398 = vmax.f32 %v9334, 0.0
        %v9399 = vmax.f32 %v9335, 0.0
        %v9400 = vmax.f32 %v9336, 0.0
        %v9401 = vmax.f32 %v9337, 0.0
        %v9402 = vmax.f32 %v9338, 0.0
        %v9403 = vmax.f32 %v9339, 0.0
        %v9404 = vmax.f32 %v9340, 0.0
        %v9405 = vmax.f32 %v9341, 0.0
        %v9406 = vmax.f32 %v9342, 0.0
        %v9407 = vmax.f32 %v9343, 0.0
        %v9408 = vmax.f32 %v9344, 0.0
        %v9409 = vmax.f32 %v9345, 0.0
        %v9410 = vmax.f32 %v9346, 0.0
        %v9411 = vmax.f32 %v9347, 0.0
        %v9412 = vmax.f32 %v9348, 0.0
        %v9413 = vmax.f32 %v9349, 0.0
        %v9414 = vmax.f32 %v9350, 0.0
        %v9415 = vmin.f32 %v9351, 6.0
        %v9416 = vmin.f32 %v9352, 6.0
        %v9417 = vmin.f32 %v9353, 6.0
        %v9418 = vmin.f32 %v9354, 6.0
        %v9419 = vmin.f32 %v9355, 6.0
        %v9420 = vmin.f32 %v9356, 6.0
        %v9421 = vmin.f32 %v9357, 6.0
        %v9422 = vmin.f32 %v9358, 6.0
        %v9423 = vmin.f32 %v9359, 6.0
        %v9424 = vmin.f32 %v9360, 6.0
        %v9425 = vmin.f32 %v9361, 6.0
        %v9426 = vmin.f32 %v9362, 6.0
        %v9427 = vmin.f32 %v9363, 6.0
        %v9428 = vmin.f32 %v9364, 6.0
        %v9429 = vmin.f32 %v9365, 6.0
        %v9430 = vmin.f32 %v9366, 6.0
        %v9431 = vmin.f32 %v9367, 6.0
        %v9432 = vmin.f32 %v9368, 6.0
        %v9433 = vmin.f32 %v9369, 6.0
        %v9434 = vmin.f32 %v9370, 6.0
        %v9435 = vmin.f32 %v9371, 6.0
        %v9436 = vmin.f32 %v9372, 6.0
        %v9437 = vmin.f32 %v9373, 6.0
        %v9438 = vmin.f32 %v9374, 6.0
        %v9439 = vmin.f32 %v9375, 6.0
        %v9440 = vmin.f32 %v9376, 6.0
        %v9441 = vmin.f32 %v9377, 6.0
        %v9442 = vmin.f32 %v9378, 6.0
        %v9443 = vmin.f32 %v9379, 6.0
        %v9444 = vmin.f32 %v9380, 6.0
        %v9445 = vmin.f32 %v9381, 6.0
        %v9446 = vmin.f32 %v9382, 6.0
        %v9447 = vmin.f32 %v9383, 6.0
        %v9448 = vmin.f32 %v9384, 6.0
        %v9449 = vmin.f32 %v9385, 6.0
        %v9450 = vmin.f32 %v9386, 6.0
        %v9451 = vmin.f32 %v9387, 6.0
        %v9452 = vmin.f32 %v9388, 6.0
        %v9453 = vmin.f32 %v9389, 6.0
        %v9454 = vmin.f32 %v9390, 6.0
        %v9455 = vmin.f32 %v9391, 6.0
        %v9456 = vmin.f32 %v9392, 6.0
        %v9457 = vmin.f32 %v9393, 6.0
        %v9458 = vmin.f32 %v9394, 6.0
        %v9459 = vmin.f32 %v9395, 6.0
        %v9460 = vmin.f32 %v9396, 6.0
        %v9461 = vmin.f32 %v9397, 6.0
        %v9462 = vmin.f32 %v9398, 6.0
        %v9463 = vmin.f32 %v9399, 6.0
        %v9464 = vmin.f32 %v9400, 6.0
        %v9465 = vmin.f32 %v9401, 6.0
        %v9466 = vmin.f32 %v9402, 6.0
        %v9467 = vmin.f32 %v9403, 6.0
        %v9468 = vmin.f32 %v9404, 6.0
        %v9469 = vmin.f32 %v9405, 6.0
        %v9470 = vmin.f32 %v9406, 6.0
        %v9471 = vmin.f32 %v9407, 6.0
        %v9472 = vmin.f32 %v9408, 6.0
        %v9473 = vmin.f32 %v9409, 6.0
        %v9474 = vmin.f32 %v9410, 6.0
        %v9475 = vmin.f32 %v9411, 6.0
        %v9476 = vmin.f32 %v9412, 6.0
        %v9477 = vmin.f32 %v9413, 6.0
        %v9478 = vmin.f32 %v9414, 6.0
        %v9479 = vmul.f32 %v9223, %v9415
        %v9480 = vmul.f32 %v9224, %v9416
        %v9481 = vmul.f32 %v9225, %v9417
        %v9482 = vmul.f32 %v9226, %v9418
        %v9483 = vmul.f32 %v9227, %v9419
        %v9484 = vmul.f32 %v9228, %v9420
        %v9485 = vmul.f32 %v9229, %v9421
        %v9486 = vmul.f32 %v9230, %v9422
        %v9487 = vmul.f32 %v9231, %v9423
        %v9488 = vmul.f32 %v9232, %v9424
        %v9489 = vmul.f32 %v9233, %v9425
        %v9490 = vmul.f32 %v9234, %v9426
        %v9491 = vmul.f32 %v9235, %v9427
        %v9492 = vmul.f32 %v9236, %v9428
        %v9493 = vmul.f32 %v9237, %v9429
        %v9494 = vmul.f32 %v9238, %v9430
        %v9495 = vmul.f32 %v9239, %v9431
        %v9496 = vmul.f32 %v9240, %v9432
        %v9497 = vmul.f32 %v9241, %v9433
        %v9498 = vmul.f32 %v9242, %v9434
        %v9499 = vmul.f32 %v9243, %v9435
        %v9500 = vmul.f32 %v9244, %v9436
        %v9501 = vmul.f32 %v9245, %v9437
        %v9502 = vmul.f32 %v9246, %v9438
        %v9503 = vmul.f32 %v9247, %v9439
        %v9504 = vmul.f32 %v9248, %v9440
        %v9505 = vmul.f32 %v9249, %v9441
        %v9506 = vmul.f32 %v9250, %v9442
        %v9507 = vmul.f32 %v9251, %v9443
        %v9508 = vmul.f32 %v9252, %v9444
        %v9509 = vmul.f32 %v9253, %v9445
        %v9510 = vmul.f32 %v9254, %v9446
        %v9511 = vmul.f32 %v9255, %v9447
        %v9512 = vmul.f32 %v9256, %v9448
        %v9513 = vmul.f32 %v9257, %v9449
        %v9514 = vmul.f32 %v9258, %v9450
        %v9515 = vmul.f32 %v9259, %v9451
        %v9516 = vmul.f32 %v9260, %v9452
        %v9517 = vmul.f32 %v9261, %v9453
        %v9518 = vmul.f32 %v9262, %v9454
        %v9519 = vmul.f32 %v9263, %v9455
        %v9520 = vmul.f32 %v9264, %v9456
        %v9521 = vmul.f32 %v9265, %v9457
        %v9522 = vmul.f32 %v9266, %v9458
        %v9523 = vmul.f32 %v9267, %v9459
        %v9524 = vmul.f32 %v9268, %v9460
        %v9525 = vmul.f32 %v9269, %v9461
        %v9526 = vmul.f32 %v9270, %v9462
        %v9527 = vmul.f32 %v9271, %v9463
        %v9528 = vmul.f32 %v9272, %v9464
        %v9529 = vmul.f32 %v9273, %v9465
        %v9530 = vmul.f32 %v9274, %v9466
        %v9531 = vmul.f32 %v9275, %v9467
        %v9532 = vmul.f32 %v9276, %v9468
        %v9533 = vmul.f32 %v9277, %v9469
        %v9534 = vmul.f32 %v9278, %v9470
        %v9535 = vmul.f32 %v9279, %v9471
        %v9536 = vmul.f32 %v9280, %v9472
        %v9537 = vmul.f32 %v9281, %v9473
        %v9538 = vmul.f32 %v9282, %v9474
        %v9539 = vmul.f32 %v9283, %v9475
        %v9540 = vmul.f32 %v9284, %v9476
        %v9541 = vmul.f32 %v9285, %v9477
        %v9542 = vmul.f32 %v9286, %v9478
        %v9543 = vmul.f32 %v9479, 0.16666667
        %v9544 = vmul.f32 %v9480, 0.16666667
        %v9545 = vmul.f32 %v9481, 0.16666667
        %v9546 = vmul.f32 %v9482, 0.16666667
        %v9547 = vmul.f32 %v9483, 0.16666667
        %v9548 = vmul.f32 %v9484, 0.16666667
        %v9549 = vmul.f32 %v9485, 0.16666667
        %v9550 = vmul.f32 %v9486, 0.16666667
        %v9551 = vmul.f32 %v9487, 0.16666667
        %v9552 = vmul.f32 %v9488, 0.16666667
        %v9553 = vmul.f32 %v9489, 0.16666667
        %v9554 = vmul.f32 %v9490, 0.16666667
        %v9555 = vmul.f32 %v9491, 0.16666667
        %v9556 = vmul.f32 %v9492, 0.16666667
        %v9557 = vmul.f32 %v9493, 0.16666667
        %v9558 = vmul.f32 %v9494, 0.16666667
        %v9559 = vmul.f32 %v9495, 0.16666667
        %v9560 = vmul.f32 %v9496, 0.16666667
        %v9561 = vmul.f32 %v9497, 0.16666667
        %v9562 = vmul.f32 %v9498, 0.16666667
        %v9563 = vmul.f32 %v9499, 0.16666667
        %v9564 = vmul.f32 %v9500, 0.16666667
        %v9565 = vmul.f32 %v9501, 0.16666667
        %v9566 = vmul.f32 %v9502, 0.16666667
        %v9567 = vmul.f32 %v9503, 0.16666667
        %v9568 = vmul.f32 %v9504, 0.16666667
        %v9569 = vmul.f32 %v9505, 0.16666667
        %v9570 = vmul.f32 %v9506, 0.16666667
        %v9571 = vmul.f32 %v9507, 0.16666667
        %v9572 = vmul.f32 %v9508, 0.16666667
        %v9573 = vmul.f32 %v9509, 0.16666667
        %v9574 = vmul.f32 %v9510, 0.16666667
        %v9575 = vmul.f32 %v9511, 0.16666667
        %v9576 = vmul.f32 %v9512, 0.16666667
        %v9577 = vmul.f32 %v9513, 0.16666667
        %v9578 = vmul.f32 %v9514, 0.16666667
        %v9579 = vmul.f32 %v9515, 0.16666667
        %v9580 = vmul.f32 %v9516, 0.16666667
        %v9581 = vmul.f32 %v9517, 0.16666667
        %v9582 = vmul.f32 %v9518, 0.16666667
        %v9583 = vmul.f32 %v9519, 0.16666667
        %v9584 = vmul.f32 %v9520, 0.16666667
        %v9585 = vmul.f32 %v9521, 0.16666667
        %v9586 = vmul.f32 %v9522, 0.16666667
        %v9587 = vmul.f32 %v9523, 0.16666667
        %v9588 = vmul.f32 %v9524, 0.16666667
        %v9589 = vmul.f32 %v9525, 0.16666667
        %v9590 = vmul.f32 %v9526, 0.16666667
        %v9591 = vmul.f32 %v9527, 0.16666667
        %v9592 = vmul.f32 %v9528, 0.16666667
        %v9593 = vmul.f32 %v9529, 0.16666667
        %v9594 = vmul.f32 %v9530, 0.16666667
        %v9595 = vmul.f32 %v9531, 0.16666667
        %v9596 = vmul.f32 %v9532, 0.16666667
        %v9597 = vmul.f32 %v9533, 0.16666667
        %v9598 = vmul.f32 %v9534, 0.16666667
        %v9599 = vmul.f32 %v9535, 0.16666667
        %v9600 = vmul.f32 %v9536, 0.16666667
        %v9601 = vmul.f32 %v9537, 0.16666667
        %v9602 = vmul.f32 %v9538, 0.16666667
        %v9603 = vmul.f32 %v9539, 0.16666667
        %v9604 = vmul.f32 %v9540, 0.16666667
        %v9605 = vmul.f32 %v9541, 0.16666667
        %v9606 = vmul.f32 %v9542, 0.16666667
        %v9607 = vadd.f32 %v9543, %v9544
        %v9608 = vadd.f32 %v9545, %v9546
        %v9609 = vadd.f32 %v9547, %v9548
        %v9610 = vadd.f32 %v9549, %v9550
        %v9611 = vadd.f32 %v9551, %v9552
        %v9612 = vadd.f32 %v9553, %v9554
        %v9613 = vadd.f32 %v9555, %v9556
        %v9614 = vadd.f32 %v9557, %v9558
        %v9615 = vadd.f32 %v9559, %v9560
        %v9616 = vadd.f32 %v9561, %v9562
        %v9617 = vadd.f32 %v9563, %v9564
        %v9618 = vadd.f32 %v9565, %v9566
        %v9619 = vadd.f32 %v9567, %v9568
        %v9620 = vadd.f32 %v9569, %v9570
        %v9621 = vadd.f32 %v9571, %v9572
        %v9622 = vadd.f32 %v9573, %v9574
        %v9623 = vadd.f32 %v9575, %v9576
        %v9624 = vadd.f32 %v9577, %v9578
        %v9625 = vadd.f32 %v9579, %v9580
        %v9626 = vadd.f32 %v9581, %v9582
        %v9627 = vadd.f32 %v9583, %v9584
        %v9628 = vadd.f32 %v9585, %v9586
        %v9629 = vadd.f32 %v9587, %v9588
        %v9630 = vadd.f32 %v9589, %v9590
        %v9631 = vadd.f32 %v9591, %v9592
        %v9632 = vadd.f32 %v9593, %v9594
        %v9633 = vadd.f32 %v9595, %v9596
        %v9634 = vadd.f32 %v9597, %v9598
        %v9635 = vadd.f32 %v9599, %v9600
        %v9636 = vadd.f32 %v9601, %v9602
        %v9637 = vadd.f32 %v9603, %v9604
        %v9638 = vadd.f32 %v9605, %v9606
        %v9639 = vmax.f32 %v9607, 0.0
        %v9640 = vmax.f32 %v9608, 0.0
        %v9641 = vmax.f32 %v9609, 0.0
        %v9642 = vmax.f32 %v9610, 0.0
        %v9643 = vmax.f32 %v9611, 0.0
        %v9644 = vmax.f32 %v9612, 0.0
        %v9645 = vmax.f32 %v9613, 0.0
        %v9646 = vmax.f32 %v9614, 0.0
        %v9647 = vmax.f32 %v9615, 0.0
        %v9648 = vmax.f32 %v9616, 0.0
        %v9649 = vmax.f32 %v9617, 0.0
        %v9650 = vmax.f32 %v9618, 0.0
        %v9651 = vmax.f32 %v9619, 0.0
        %v9652 = vmax.f32 %v9620, 0.0
        %v9653 = vmax.f32 %v9621, 0.0
        %v9654 = vmax.f32 %v9622, 0.0
        %v9655 = vmax.f32 %v9623, 0.0
        %v9656 = vmax.f32 %v9624, 0.0
        %v9657 = vmax.f32 %v9625, 0.0
        %v9658 = vmax.f32 %v9626, 0.0
        %v9659 = vmax.f32 %v9627, 0.0
        %v9660 = vmax.f32 %v9628, 0.0
        %v9661 = vmax.f32 %v9629, 0.0
        %v9662 = vmax.f32 %v9630, 0.0
        %v9663 = vmax.f32 %v9631, 0.0
        %v9664 = vmax.f32 %v9632, 0.0
        %v9665 = vmax.f32 %v9633, 0.0
        %v9666 = vmax.f32 %v9634, 0.0
        %v9667 = vmax.f32 %v9635, 0.0
        %v9668 = vmax.f32 %v9636, 0.0
        %v9669 = vmax.f32 %v9637, 0.0
        %v9670 = vmax.f32 %v9638, 0.0
        %v9671 = vld [vmem:[%s4209 + $0x8] sm:$0xf]
        %v9672 = vld [vmem:[%s4209 + $0x14] sm:$0xf]
        %v9673 = vld [vmem:[%s4209 + $0x2c] sm:$0xf]
        %v9674 = vld [vmem:[%s4209 + $0x38] sm:$0xf]
        %v9675 = vld [vmem:[%s4209 + $0x50] sm:$0xf]
        %v9676 = vld [vmem:[%s4209 + $0x5c] sm:$0xf]
        %v9677 = vld [vmem:[%s4209 + $0x74] sm:$0xf]
        %v9678 = vld [vmem:[%s4209 + $0x80] sm:$0xf]
        %v9679 = vld [vmem:[%s4209 + $0x98] sm:$0xf]
        %v9680 = vld [vmem:[%s4209 + $0xa4] sm:$0xf]
        %v9681 = vld [vmem:[%s4209 + $0xbc] sm:$0xf]
        %v9682 = vld [vmem:[%s4209 + $0xc8] sm:$0xf]
        %v9683 = vld [vmem:[%s4209 + $0xe0] sm:$0xf]
        %v9684 = vld [vmem:[%s4209 + $0xec] sm:$0xf]
        %v9685 = vld [vmem:[%s4209 + $0x104] sm:$0xf]
        %v9686 = vld [vmem:[%s4209 + $0x110] sm:$0xf]
        %v9687 = vld [vmem:[%s4209 + $0x128] sm:$0xf]
        %v9688 = vld [vmem:[%s4209 + $0x134] sm:$0xf]
        %v9689 = vld [vmem:[%s4209 + $0x14c] sm:$0xf]
        %v9690 = vld [vmem:[%s4209 + $0x158] sm:$0xf]
        %v9691 = vld [vmem:[%s4209 + $0x170] sm:$0xf]
        %v9692 = vld [vmem:[%s4209 + $0x17c] sm:$0xf]
        %v9693 = vld [vmem:[%s4209 + $0x194] sm:$0xf]
        %v9694 = vld [vmem:[%s4209 + $0x1a0] sm:$0xf]
        %v9695 = vld [vmem:[%s4209 + $0x1b8] sm:$0xf]
        %v9696 = vld [vmem:[%s4209 + $0x1c4] sm:$0xf]
        %v9697 = vld [vmem:[%s4209 + $0x1dc] sm:$0xf]
        %v9698 = vld [vmem:[%s4209 + $0x1e8] sm:$0xf]
        %v9699 = vld [vmem:[%s4209 + $0x200] sm:$0xf]
        %v9700 = vld [vmem:[%s4209 + $0x20c] sm:$0xf]
        %v9701 = vld [vmem:[%s4209 + $0x224] sm:$0xf]
        %v9702 = vld [vmem:[%s4209 + $0x230] sm:$0xf]
        %v9703 = vunpack.c.l.bf16 %v9671
        %v9704 = vunpack.c.l.bf16 %v9672
        %v9705 = vunpack.c.l.bf16 %v9673
        %v9706 = vunpack.c.l.bf16 %v9674
        %v9707 = vunpack.c.l.bf16 %v9675
        %v9708 = vunpack.c.l.bf16 %v9676
        %v9709 = vunpack.c.l.bf16 %v9677
        %v9710 = vunpack.c.l.bf16 %v9678
        %v9711 = vunpack.c.l.bf16 %v9679
        %v9712 = vunpack.c.l.bf16 %v9680
        %v9713 = vunpack.c.l.bf16 %v9681
        %v9714 = vunpack.c.l.bf16 %v9682
        %v9715 = vunpack.c.l.bf16 %v9683
        %v9716 = vunpack.c.l.bf16 %v9684
        %v9717 = vunpack.c.l.bf16 %v9685
        %v9718 = vunpack.c.l.bf16 %v9686
        %v9719 = vunpack.c.l.bf16 %v9687
        %v9720 = vunpack.c.l.bf16 %v9688
        %v9721 = vunpack.c.l.bf16 %v9689
        %v9722 = vunpack.c.l.bf16 %v9690
        %v9723 = vunpack.c.l.bf16 %v9691
        %v9724 = vunpack.c.l.bf16 %v9692
        %v9725 = vunpack.c.l.bf16 %v9693
        %v9726 = vunpack.c.l.bf16 %v9694
        %v9727 = vunpack.c.l.bf16 %v9695
        %v9728 = vunpack.c.l.bf16 %v9696
        %v9729 = vunpack.c.l.bf16 %v9697
        %v9730 = vunpack.c.l.bf16 %v9698
        %v9731 = vunpack.c.l.bf16 %v9699
        %v9732 = vunpack.c.l.bf16 %v9700
        %v9733 = vunpack.c.l.bf16 %v9701
        %v9734 = vunpack.c.l.bf16 %v9702
        %v9735 = vadd.f32 %v9703, %v9639
        %v9736 = vadd.f32 %v9704, %v9640
        %v9737 = vadd.f32 %v9705, %v9641
        %v9738 = vadd.f32 %v9706, %v9642
        %v9739 = vadd.f32 %v9707, %v9643
        %v9740 = vadd.f32 %v9708, %v9644
        %v9741 = vadd.f32 %v9709, %v9645
        %v9742 = vadd.f32 %v9710, %v9646
        %v9743 = vadd.f32 %v9711, %v9647
        %v9744 = vadd.f32 %v9712, %v9648
        %v9745 = vadd.f32 %v9713, %v9649
        %v9746 = vadd.f32 %v9714, %v9650
        %v9747 = vadd.f32 %v9715, %v9651
        %v9748 = vadd.f32 %v9716, %v9652
        %v9749 = vadd.f32 %v9717, %v9653
        %v9750 = vadd.f32 %v9718, %v9654
        %v9751 = vadd.f32 %v9719, %v9655
        %v9752 = vadd.f32 %v9720, %v9656
        %v9753 = vadd.f32 %v9721, %v9657
        %v9754 = vadd.f32 %v9722, %v9658
        %v9755 = vadd.f32 %v9723, %v9659
        %v9756 = vadd.f32 %v9724, %v9660
        %v9757 = vadd.f32 %v9725, %v9661
        %v9758 = vadd.f32 %v9726, %v9662
        %v9759 = vadd.f32 %v9727, %v9663
        %v9760 = vadd.f32 %v9728, %v9664
        %v9761 = vadd.f32 %v9729, %v9665
        %v9762 = vadd.f32 %v9730, %v9666
        %v9763 = vadd.f32 %v9731, %v9667
        %v9764 = vadd.f32 %v9732, %v9668
        %v9765 = vadd.f32 %v9733, %v9669
        %v9766 = vadd.f32 %v9734, %v9670
        %v9767 = vpack.c.bf16 %v9736, %v9735
        %v9768 = vpack.c.bf16 %v9738, %v9737
        %v9769 = vpack.c.bf16 %v9740, %v9739
        %v9770 = vpack.c.bf16 %v9742, %v9741
        %v9771 = vpack.c.bf16 %v9744, %v9743
        %v9772 = vpack.c.bf16 %v9746, %v9745
        %v9773 = vpack.c.bf16 %v9748, %v9747
        %v9774 = vpack.c.bf16 %v9750, %v9749
        %v9775 = vpack.c.bf16 %v9752, %v9751
        %v9776 = vpack.c.bf16 %v9754, %v9753
        %v9777 = vpack.c.bf16 %v9756, %v9755
        %v9778 = vpack.c.bf16 %v9758, %v9757
        %v9779 = vpack.c.bf16 %v9760, %v9759
        %v9780 = vpack.c.bf16 %v9762, %v9761
        %v9781 = vpack.c.bf16 %v9764, %v9763
        %v9782 = vpack.c.bf16 %v9766, %v9765
        %v9799 = vunpack.c.l.b16 %v9767
        %v9800 = vunpack.c.h.b16 %v9767
        %v9801 = vunpack.c.l.b16 %v9768
        %v9802 = vunpack.c.h.b16 %v9768
        %v9803 = vunpack.c.l.b16 %v9769
        %v9804 = vunpack.c.h.b16 %v9769
        %v9805 = vunpack.c.l.b16 %v9770
        %v9806 = vunpack.c.h.b16 %v9770
        %v9807 = vunpack.c.l.b16 %v9771
        %v9808 = vunpack.c.h.b16 %v9771
        %v9809 = vunpack.c.l.b16 %v9772
        %v9810 = vunpack.c.h.b16 %v9772
        %v9811 = vunpack.c.l.b16 %v9773
        %v9812 = vunpack.c.h.b16 %v9773
        %v9813 = vunpack.c.l.b16 %v9774
        %v9814 = vunpack.c.h.b16 %v9774
        %v9815 = vunpack.c.l.b16 %v9775
        %v9816 = vunpack.c.h.b16 %v9775
        %v9817 = vunpack.c.l.b16 %v9776
        %v9818 = vunpack.c.h.b16 %v9776
        %v9819 = vunpack.c.l.b16 %v9777
        %v9820 = vunpack.c.h.b16 %v9777
        %v9821 = vunpack.c.l.b16 %v9778
        %v9822 = vunpack.c.h.b16 %v9778
        %v9823 = vunpack.c.l.b16 %v9779
        %v9824 = vunpack.c.h.b16 %v9779
        %v9825 = vunpack.c.l.b16 %v9780
        %v9826 = vunpack.c.h.b16 %v9780
        %v9827 = vunpack.c.l.b16 %v9781
        %v9828 = vunpack.c.h.b16 %v9781
        %v9829 = vunpack.c.l.b16 %v9782
        %v9830 = vunpack.c.h.b16 %v9782
        %v9831 = vpack.c.b16 %v9799, %v9799
        %v9832 = vpack.c.b16 %v9800, %v9800
        %v9833 = vpack.c.b16 %v9801, %v9801
        %v9834 = vpack.c.b16 %v9802, %v9802
        %v9835 = vpack.c.b16 %v9803, %v9803
        %v9836 = vpack.c.b16 %v9804, %v9804
        %v9837 = vpack.c.b16 %v9805, %v9805
        %v9838 = vpack.c.b16 %v9806, %v9806
        %v9839 = vpack.c.b16 %v9807, %v9807
        %v9840 = vpack.c.b16 %v9808, %v9808
        %v9841 = vpack.c.b16 %v9809, %v9809
        %v9842 = vpack.c.b16 %v9810, %v9810
        %v9843 = vpack.c.b16 %v9811, %v9811
        %v9844 = vpack.c.b16 %v9812, %v9812
        %v9845 = vpack.c.b16 %v9813, %v9813
        %v9846 = vpack.c.b16 %v9814, %v9814
        %v9847 = vpack.c.b16 %v9815, %v9815
        %v9848 = vpack.c.b16 %v9816, %v9816
        %v9849 = vpack.c.b16 %v9817, %v9817
        %v9850 = vpack.c.b16 %v9818, %v9818
        %v9851 = vpack.c.b16 %v9819, %v9819
        %v9852 = vpack.c.b16 %v9820, %v9820
        %v9853 = vpack.c.b16 %v9821, %v9821
        %v9854 = vpack.c.b16 %v9822, %v9822
        %v9855 = vpack.c.b16 %v9823, %v9823
        %v9856 = vpack.c.b16 %v9824, %v9824
        %v9857 = vpack.c.b16 %v9825, %v9825
        %v9858 = vpack.c.b16 %v9826, %v9826
        %v9859 = vpack.c.b16 %v9827, %v9827
        %v9860 = vpack.c.b16 %v9828, %v9828
        %v9861 = vpack.c.b16 %v9829, %v9829
        %v9862 = vpack.c.b16 %v9830, %v9830
        %9895 = vst [vmem:[%s393] sm:$0xf] %v9831
        %9896 = vst [vmem:[%s393 + $0x4] sm:$0xf] %v9832
        %9897 = vst [vmem:[%s393 + $0x8] sm:$0xf] %v9833
        %9898 = vst [vmem:[%s393 + $0xc] sm:$0xf] %v9834
        %9899 = vst [vmem:[%s393 + $0x10] sm:$0xf] %v9835
        %9900 = vst [vmem:[%s393 + $0x14] sm:$0xf] %v9836
        %9901 = vst [vmem:[%s393 + $0x18] sm:$0xf] %v9837
        %9902 = vst [vmem:[%s393 + $0x1c] sm:$0xf] %v9838
        %9903 = vst [vmem:[%s393 + $0x20] sm:$0xf] %v9839
        %9904 = vst [vmem:[%s393 + $0x24] sm:$0xf] %v9840
        %9905 = vst [vmem:[%s393 + $0x28] sm:$0xf] %v9841
        %9906 = vst [vmem:[%s393 + $0x2c] sm:$0xf] %v9842
        %9907 = vst [vmem:[%s393 + $0x30] sm:$0xf] %v9843
        %9908 = vst [vmem:[%s393 + $0x34] sm:$0xf] %v9844
        %9909 = vst [vmem:[%s393 + $0x38] sm:$0xf] %v9845
        %9910 = vst [vmem:[%s393 + $0x3c] sm:$0xf] %v9846
        %9911 = vst [vmem:[%s393 + $0x40] sm:$0xf] %v9847
        %9912 = vst [vmem:[%s393 + $0x44] sm:$0xf] %v9848
        %9913 = vst [vmem:[%s393 + $0x48] sm:$0xf] %v9849
        %9914 = vst [vmem:[%s393 + $0x4c] sm:$0xf] %v9850
        %9915 = vst [vmem:[%s393 + $0x50] sm:$0xf] %v9851
        %9916 = vst [vmem:[%s393 + $0x54] sm:$0xf] %v9852
        %9917 = vst [vmem:[%s393 + $0x58] sm:$0xf] %v9853
        %9918 = vst [vmem:[%s393 + $0x5c] sm:$0xf] %v9854
        %9919 = vst [vmem:[%s393 + $0x60] sm:$0xf] %v9855
        %9920 = vst [vmem:[%s393 + $0x64] sm:$0xf] %v9856
        %9921 = vst [vmem:[%s393 + $0x68] sm:$0xf] %v9857
        %9922 = vst [vmem:[%s393 + $0x6c] sm:$0xf] %v9858
        %9923 = vst [vmem:[%s393 + $0x70] sm:$0xf] %v9859
        %9924 = vst [vmem:[%s393 + $0x74] sm:$0xf] %v9860
        %9925 = vst [vmem:[%s393 + $0x78] sm:$0xf] %v9861
        %9926 = vst [vmem:[%s393 + $0x7c] sm:$0xf] %v9862
        %s9927 = sand.u32 %s194, 1
        %s9928 = scalar_lea.sflag [#allocation6], %s9927
        %s9929 = sand.u32 %s194, 1
        %s9930 = smul.addr %s9929, 128
        %s9931 = scalar_lea.vmem [#allocation15], %s9930
        // Predicated region
        $region69: #{_basic_block_jit.1} parent=43 // pred_check
          %p9932 = pneg %p204
        $region70: #{_basic_block_jit.1} parent=43 // pred_check_branch
          %9934 = sbr.rel (%p9932) target = $region72
        $region71: #{_basic_block_jit.1} parent=43 // pred_region
          %s9935 = smul.u32 16, %s33
          %s9937 = ssub.s32 2048, 2048
          %9938 = vsyncadd %s9928, %s9937
          %s9939 = smul.addr %s9935, 2
          %s9940 = smul.addr %s32, 32
          %s9941 = sadd.s32 %s9939, %s9940
          %s9942 = smul.addr %s9941, 64
          %s9943 = scalar_lea.hbm %s6, %s9942
          %s9944 = sshll.u32 %s9931, 4
          %s9945 = int_to_ptr.vmem [resolvable:$true] %s9944
          %9950 = dma.vmem_to_hbm [thread:$0]  %s9945, 2048, %s9943, %s9928, 64, 64, 4
        $region72: #{_basic_block_jit.1} parent=43 // pred_fallthru
          _
      $region44: #{_basic_block_jit.1} parent=5 // pred_fallthru
        _
      %p9951 = scmp.le.s32.totalorder 2, %s23
      // Predicated region
      $region73: #{_basic_block_jit.1} parent=5 // pred_check
        %p9952 = pneg %p9951
      $region74: #{_basic_block_jit.1} parent=5 // pred_check_branch
        %9954 = sbr.rel (%p9952) target = $region76
      $region75: #{_basic_block_jit.1} parent=5 // pred_region
        %s9955 = ssub.s32 %s23, 2
        // Predicated region
        $region77: #{_basic_block_jit.1} parent=75 // pred_check
          %p9956 = pneg %p210
        $region78: #{_basic_block_jit.1} parent=75 // pred_check_branch
          %9958 = sbr.rel (%p9956) target = $region80
        $region79: #{_basic_block_jit.1} parent=75 // pred_region
          %s9959 = sand.u32 %s195, 1
          %s9960 = scalar_lea.sflag [#allocation6], %s9959
          %s9961 = sand.u32 %s195, 1
          %s9962 = smul.addr %s9961, 128
          %s9963 = scalar_lea.vmem [#allocation15], %s9962
          %9964 = dma.done %s9960, 2048
        $region80: #{_basic_block_jit.1} parent=75 // pred_fallthru
          _
      $region76: #{_basic_block_jit.1} parent=5 // pred_fallthru
        _
    $region6: #{_basic_block_jit.1} parent=1 // loop_footer
      %s27 = sadd.s32 1, %s23
    $region7: #{_basic_block_jit.1} parent=1 // loop_footer_branch
      %22 = sbr.rel target = $region3
    $region8: #{_basic_block_jit.1} parent=1 // loop_exit
      _
    %9965 = vsyncpa [#allocation5], 1
    %s9966 = scalar_lea.sflag [#allocation5], 1
    %9967 = vsyncpa %s9966, 1
    %9968 = vsyncpa [#allocation8], 1
    %s9969 = scalar_lea.sflag [#allocation8], 1
    %9970 = vsyncpa %s9969, 1
    %9971 = vsyncpa [#allocation11], 1
    %9972 = vsyncpa [#allocation14], 1
    %9973 = vsyncpa [#allocation6], 1
    %s9974 = scalar_lea.sflag [#allocation6], 1
    %9975 = vsyncpa %s9974, 1

</llo_original>
